<compile_context>
chip_gen: v7x
topology: tpu7x:2x2x1
jax: 0.10.0
libtpu: 0.0.40
codegen_flags: <defaults>
</compile_context>

<pallas_src>
import functools

import jax
import jax.numpy as jnp
from jax.experimental import pallas as pl
from jax.experimental.pallas import tpu as pltpu


# ----------------------------- Pallas kernel --------------------------------


def _conv3x3_bias(xp_ref, w_ref, b_ref, *, H, W, Cin, Cout):
    """3x3 conv on a zero-padded (H+2, W+2, Cin) VMEM ref.

    w_ref: (3, 3*Cin, Cout) bf16, row index = kw*Cin + cin for each kh.
    b_ref: (1, Cout) f32 (post-BN scale/bias already folded in).
    Returns (H*W, Cout) f32.
    """
    # One kw-concat (3 sublane-shifted slices) reused by all three kh taps.
    xw = jnp.concatenate(
        [xp_ref[:, 0:W, :], xp_ref[:, 1:W + 1, :], xp_ref[:, 2:W + 2, :]],
        axis=-1)                                        # (H+2, W, 3*Cin) f32
    acc = jnp.zeros((H * W, Cout), jnp.float32)
    for kh in range(3):                                 # kh shift = free H offset
        patch = xw[kh:kh + H].reshape(H * W, 3 * Cin).astype(jnp.bfloat16)
        acc = acc + jnp.dot(patch, w_ref[kh],
                            preferred_element_type=jnp.float32)
    return acc + b_ref[...]


def _generator_kernel(z_ref, wl1_ref, bl1_ref,
                      wc1_ref, bc1_ref, wc2_ref, bc2_ref, wc3_ref, bc3_ref,
                      o_ref,
                      up1_ref, h1_ref, up2_ref, pad3_ref,
                      *, S0, C1, C2, C3P):
    S1, S2 = 2 * S0, 4 * S0
    b = pl.program_id(0)

    # ---- Linear (+ folded BN1); columns already ordered (h, w, c) ----------
    zb = z_ref[pl.ds(b, 1), :].astype(jnp.bfloat16)                 # (1, L)
    lin = jnp.dot(zb, wl1_ref[...],
                  preferred_element_type=jnp.float32) + bl1_ref[...]  # (1, S0*S0*C1)

    # ---- Upsample x2 (S0 -> S1) + zero-pad(1) into up1 scratch -------------
    up1_ref[...] = jnp.zeros_like(up1_ref)
    for h in range(S0):
        for w in range(S0):
            v = lin[:, (h * S0 + w) * C1:(h * S0 + w + 1) * C1]     # (1, C1)
            up1_ref[1 + 2 * h:3 + 2 * h, 1 + 2 * w:3 + 2 * w, :] = (
                jnp.broadcast_to(v.reshape(1, 1, C1), (2, 2, C1)))

    # ---- Conv1 128->128 (BN2 folded) + LeakyReLU(0.2) ----------------------
    y1 = _conv3x3_bias(up1_ref, wc1_ref, bc1_ref, H=S1, W=S1, Cin=C1, Cout=C1)
    y1 = jnp.where(y1 > 0, y1, 0.2 * y1)
    h1_ref[...] = y1.reshape(S1, S1, C1)

    # ---- Upsample x2 (S1 -> S2) + zero-pad(1) into up2 scratch -------------
    up2_ref[...] = jnp.zeros_like(up2_ref)
    for w in range(S1):
        col = h1_ref[:, w:w + 1, :]                                 # (S1, 1, C1)
        col = jnp.broadcast_to(col[:, None],
                               (S1, 2, 1, C1)).reshape(S2, 1, C1)   # H-repeat
        up2_ref[1:1 + S2, 1 + 2 * w:3 + 2 * w, :] = (
            jnp.broadcast_to(col, (S2, 2, C1)))                     # W-repeat

    # ---- Conv2 128->64 (BN3 folded) + LeakyReLU(0.2) -----------------------
    y2 = _conv3x3_bias(up2_ref, wc2_ref, bc2_ref, H=S2, W=S2, Cin=C1, Cout=C2)
    y2 = jnp.where(y2 > 0, y2, 0.2 * y2)

    # ---- zero-pad(1) for conv3 ---------------------------------------------
    pad3_ref[...] = jnp.zeros_like(pad3_ref)
    pad3_ref[1:1 + S2, 1:1 + S2, :] = y2.reshape(S2, S2, C2)

    # ---- Conv3 64->3 (out channels padded to C3P for lane-dense store) -----
    y3 = _conv3x3_bias(pad3_ref, wc3_ref, bc3_ref, H=S2, W=S2, Cin=C2, Cout=C3P)
    y3 = jnp.tanh(y3)
    o_ref[0] = y3.reshape(S2, S2, C3P).astype(o_ref.dtype)


# ------------------------------ wrapper --------------------------------------


def generator_forward(z, p, *, init_size, channels):
    B, L = z.shape
    C1, C2 = 128, 64
    C3P = p["w_c3"].shape[-1]
    S0, S1, S2 = init_size, 2 * init_size, 4 * init_size
    f32 = jnp.float32

    kernel = functools.partial(_generator_kernel, S0=S0, C1=C1, C2=C2, C3P=C3P)

    out = pl.pallas_call(
        kernel,
        out_shape=jax.ShapeDtypeStruct((B, S2, S2, C3P), f32),
        grid=(B,),
        in_specs=[
            pl.BlockSpec((B, L), lambda b: (0, 0)),                   # z (full)
            pl.BlockSpec((L, S0 * S0 * C1), lambda b: (0, 0)),        # w_l1
            pl.BlockSpec((1, S0 * S0 * C1), lambda b: (0, 0)),        # b_l1
            pl.BlockSpec((3, 3 * C1, C1), lambda b: (0, 0, 0)),       # w_c1
            pl.BlockSpec((1, C1), lambda b: (0, 0)),                  # b_c1
            pl.BlockSpec((3, 3 * C1, C2), lambda b: (0, 0, 0)),       # w_c2
            pl.BlockSpec((1, C2), lambda b: (0, 0)),                  # b_c2
            pl.BlockSpec((3, 3 * C2, C3P), lambda b: (0, 0, 0)),      # w_c3
            pl.BlockSpec((1, C3P), lambda b: (0, 0)),                 # b_c3
        ],
        out_specs=pl.BlockSpec((1, S2, S2, C3P), lambda b: (b, 0, 0, 0)),
        scratch_shapes=[
            pltpu.VMEM((S1 + 2, S1 + 2, C1), f32),   # up1 (padded, upsampled)
            pltpu.VMEM((S1, S1, C1), f32),           # h1  (conv1 activation)
            pltpu.VMEM((S2 + 2, S2 + 2, C1), f32),   # up2
            pltpu.VMEM((S2 + 2, S2 + 2, C2), f32),   # pad3
        ],
        compiler_params=pltpu.CompilerParams(
            dimension_semantics=("parallel",)),      # one image per TC on v7x
    )(z, p["w_l1"], p["b_l1"], p["w_c1"], p["b_c1"],
      p["w_c2"], p["b_c2"], p["w_c3"], p["b_c3"])

    # Slice the real channels from the lane-dense output and go back to NCHW.
    return out[..., :channels].transpose(0, 3, 1, 2)


# ------------------------------ params ---------------------------------------


def _fold_bn(gamma, beta, rmean, rvar, eps):
    s = gamma / jnp.sqrt(rvar + eps)
    t = beta - rmean * s
    return s, t


def make_params(key, latent_dim, img_size, channels):
    S0 = img_size // 4
    C1, C2 = 128, 64
    C3P = 128                      # padded final Cout (lane-dense store)
    HW0 = S0 * S0
    f32 = jnp.float32
    ks = jax.random.split(key, 20)

    def nrm(k, shape, scale):
        return jax.random.normal(k, shape, dtype=f32) * scale

    # ---- raw "torch-layout" parameters --------------------------------------
    w_l1 = nrm(ks[0], (latent_dim, C1 * HW0), 0.05)   # col = c*HW0 + h*S0 + w
    b_l1 = nrm(ks[1], (C1 * HW0,), 0.01)

    def bn(k0, k1, k2, k3, c):
        g = 1.0 + nrm(k0, (c,), 0.1)
        beta = nrm(k1, (c,), 0.1)
        rm = nrm(k2, (c,), 0.1)
        rv = 0.5 + jax.random.uniform(k3, (c,), dtype=f32)
        return g, beta, rm, rv

    s1, t1 = _fold_bn(*bn(ks[2], ks[3], ks[4], ks[5], C1), 1e-5)   # BN2d(128)
    s2, t2 = _fold_bn(*bn(ks[6], ks[7], ks[8], ks[9], C1), 0.8)    # BN2d(128, 0.8)
    s3, t3 = _fold_bn(*bn(ks[10], ks[11], ks[12], ks[13], C2), 0.8)  # BN2d(64, 0.8)

    w_c1 = nrm(ks[14], (3, 3, C1, C1), 0.05)          # (kh, kw, cin, cout)
    b_c1 = nrm(ks[15], (C1,), 0.01)
    w_c2 = nrm(ks[16], (3, 3, C1, C2), 0.05)
    b_c2 = nrm(ks[17], (C2,), 0.01)
    w_c3 = nrm(ks[18], (3, 3, C2, channels), 0.05)
    b_c3 = nrm(ks[19], (channels,), 0.01)

    # ---- fold BN1 into the linear & permute columns to channels-last --------
    wl = w_l1.reshape(latent_dim, C1, S0, S0) * s1[None, :, None, None]
    wl = wl.transpose(0, 2, 3, 1).reshape(latent_dim, HW0 * C1)
    bl = b_l1.reshape(C1, S0, S0) * s1[:, None, None] + t1[:, None, None]
    bl = bl.transpose(1, 2, 0).reshape(1, HW0 * C1)

    # ---- fold post-conv BN scale/bias into conv weights/bias ----------------
    wc1 = (w_c1 * s2[None, None, None, :]).reshape(3, 3 * C1, C1)
    bc1 = (b_c1 * s2 + t2).reshape(1, C1)
    wc2 = (w_c2 * s3[None, None, None, :]).reshape(3, 3 * C1, C2)
    bc2 = (b_c2 * s3 + t3).reshape(1, C2)

    # ---- pad final conv to lane-dense Cout -----------------------------------
    wc3 = jnp.zeros((3, 3, C2, C3P), f32).at[..., :channels].set(w_c3)
    wc3 = wc3.reshape(3, 3 * C2, C3P)
    bc3 = jnp.zeros((1, C3P), f32).at[0, :channels].set(b_c3)

    bf16 = jnp.bfloat16
    return dict(
        w_l1=wl.astype(bf16), b_l1=bl,
        w_c1=wc1.astype(bf16), b_c1=bc1,
        w_c2=wc2.astype(bf16), b_c2=bc2,
        w_c3=wc3.astype(bf16), b_c3=bc3,
    )


# -------------------------------- main ----------------------------------------


if __name__ == "__main__":
    latent_dim = 32
    img_size = 16
    channels = 3
    batch = 2

    key = jax.random.PRNGKey(0)
    kp, kz = jax.random.split(key)
    params = make_params(kp, latent_dim, img_size, channels)
    z = jax.random.normal(kz, (batch, latent_dim), dtype=jnp.float32)

    img = generator_forward(z, params, init_size=img_size // 4,
                            channels=channels)
    img = jax.block_until_ready(img)

    assert img.shape == (batch, channels, img_size, img_size), img.shape
    assert bool(jnp.all(jnp.isfinite(img)))
    assert bool(jnp.all(jnp.abs(img) <= 1.0))   # tanh output range
    print("KERNEL_OK")
</pallas_src>

<mosaic_0001>
module attributes {stable_mosaic.version = 11 : i64} {
  func.func @_generator_kernel(%arg0: i32, %arg1: memref<2x32xf32, #tpu.memory_space<vmem>>, %arg2: memref<32x2048xbf16, #tpu.memory_space<vmem>>, %arg3: memref<1x2048xf32, #tpu.memory_space<vmem>>, %arg4: memref<3x384x128xbf16, #tpu.memory_space<vmem>>, %arg5: memref<1x128xf32, #tpu.memory_space<vmem>>, %arg6: memref<3x384x64xbf16, #tpu.memory_space<vmem>>, %arg7: memref<1x64xf32, #tpu.memory_space<vmem>>, %arg8: memref<3x192x128xbf16, #tpu.memory_space<vmem>>, %arg9: memref<1x128xf32, #tpu.memory_space<vmem>>, %arg10: memref<1x16x16x128xf32, #tpu.memory_space<vmem>>, %arg11: memref<10x10x128xf32, #tpu.memory_space<vmem>>, %arg12: memref<8x8x128xf32, #tpu.memory_space<vmem>>, %arg13: memref<18x18x128xf32, #tpu.memory_space<vmem>>, %arg14: memref<18x18x64xf32, #tpu.memory_space<vmem>>) attributes {dimension_semantics = [#tpu.dimension_semantics<parallel>], iteration_bounds = array<i64: 2>, scalar_prefetch = 0 : i64, scratch_operands = 4 : i64, tpu.core_type = #tpu.core_type<tc>, window_params = [{pipeline_mode = #tpu.pipeline_mode<synchronous>, transform_indices = @transform_0, window_bounds = array<i64: 2, 32>}, {pipeline_mode = #tpu.pipeline_mode<synchronous>, transform_indices = @transform_1, window_bounds = array<i64: 32, 2048>}, {pipeline_mode = #tpu.pipeline_mode<synchronous>, transform_indices = @transform_2, window_bounds = array<i64: 1, 2048>}, {pipeline_mode = #tpu.pipeline_mode<synchronous>, transform_indices = @transform_3, window_bounds = array<i64: 3, 384, 128>}, {pipeline_mode = #tpu.pipeline_mode<synchronous>, transform_indices = @transform_4, window_bounds = array<i64: 1, 128>}, {pipeline_mode = #tpu.pipeline_mode<synchronous>, transform_indices = @transform_5, window_bounds = array<i64: 3, 384, 64>}, {pipeline_mode = #tpu.pipeline_mode<synchronous>, transform_indices = @transform_6, window_bounds = array<i64: 1, 64>}, {pipeline_mode = #tpu.pipeline_mode<synchronous>, transform_indices = @transform_7, window_bounds = array<i64: 3, 192, 128>}, {pipeline_mode = #tpu.pipeline_mode<synchronous>, transform_indices = @transform_8, window_bounds = array<i64: 1, 128>}, {transform_indices = @transform_9, window_bounds = array<i64: 1, 16, 16, 128>}]} {
    %0 = arith.index_cast %arg0 : i32 to index
    %c0 = arith.constant 0 : index
    %1 = vector.load %arg1[%0, %c0] : memref<2x32xf32, #tpu.memory_space<vmem>>, vector<1x32xf32>
    %2 = arith.truncf %1 : vector<1x32xf32> to vector<1x32xbf16>
    %c0_0 = arith.constant 0 : index
    %c0_1 = arith.constant 0 : index
    %3 = vector.load %arg2[%c0_0, %c0_1] : memref<32x2048xbf16, #tpu.memory_space<vmem>>, vector<32x2048xbf16>
    %cst = arith.constant dense<0.000000e+00> : vector<1x2048xf32>
    %4 = tpu.matmul %2, %3, %cst {dimension_numbers = #tpu.dot_dimension_numbers<[1], [0], [0], [1], [0, 0, 1, 1], [], []>} : vector<1x32xbf16>, vector<32x2048xbf16>, vector<1x2048xf32> -> vector<1x2048xf32>
    %c0_2 = arith.constant 0 : index
    %c0_3 = arith.constant 0 : index
    %5 = vector.load %arg3[%c0_2, %c0_3] : memref<1x2048xf32, #tpu.memory_space<vmem>>, vector<1x2048xf32>
    %6 = arith.addf %4, %5 : vector<1x2048xf32>
    %cst_4 = arith.constant 0.000000e+00 : f32
    %7 = vector.broadcast %cst_4 : f32 to vector<10x10x128xf32>
    %c0_5 = arith.constant 0 : index
    %c0_6 = arith.constant 0 : index
    %c0_7 = arith.constant 0 : index
    %8 = vector.load %arg11[%c0_5, %c0_6, %c0_7] : memref<10x10x128xf32, #tpu.memory_space<vmem>>, vector<10x10x128xf32>
    tpu.vector_store %arg11[%c0_5, %c0_6, %c0_7], %7 {strides = array<i32>} : memref<10x10x128xf32, #tpu.memory_space<vmem>>, vector<10x10x128xf32>,
    %9 = vector.extract_strided_slice %6 {offsets = [0, 0], sizes = [1, 128], strides = [1, 1]} : vector<1x2048xf32> to vector<1x128xf32>
    %10 = vector.shape_cast %9 : vector<1x128xf32> to vector<1x1x128xf32>
    %11 = vector.shape_cast %10 : vector<1x1x128xf32> to vector<1x1x128xf32>
    %12 = vector.broadcast %11 : vector<1x1x128xf32> to vector<2x2x128xf32>
    %c1 = arith.constant 1 : index
    %c1_8 = arith.constant 1 : index
    %c0_9 = arith.constant 0 : index
    %13 = vector.load %arg11[%c1, %c1_8, %c0_9] : memref<10x10x128xf32, #tpu.memory_space<vmem>>, vector<2x2x128xf32>
    tpu.vector_store %arg11[%c1, %c1_8, %c0_9], %12 {strides = array<i32>} : memref<10x10x128xf32, #tpu.memory_space<vmem>>, vector<2x2x128xf32>,
    %14 = vector.extract_strided_slice %6 {offsets = [0, 128], sizes = [1, 128], strides = [1, 1]} : vector<1x2048xf32> to vector<1x128xf32>
    %15 = vector.shape_cast %14 : vector<1x128xf32> to vector<1x1x128xf32>
    %16 = vector.shape_cast %15 : vector<1x1x128xf32> to vector<1x1x128xf32>
    %17 = vector.broadcast %16 : vector<1x1x128xf32> to vector<2x2x128xf32>
    %c1_10 = arith.constant 1 : index
    %c3 = arith.constant 3 : index
    %c0_11 = arith.constant 0 : index
    %18 = vector.load %arg11[%c1_10, %c3, %c0_11] : memref<10x10x128xf32, #tpu.memory_space<vmem>>, vector<2x2x128xf32>
    tpu.vector_store %arg11[%c1_10, %c3, %c0_11], %17 {strides = array<i32>} : memref<10x10x128xf32, #tpu.memory_space<vmem>>, vector<2x2x128xf32>,
    %19 = vector.extract_strided_slice %6 {offsets = [0, 256], sizes = [1, 128], strides = [1, 1]} : vector<1x2048xf32> to vector<1x128xf32>
    %20 = vector.shape_cast %19 : vector<1x128xf32> to vector<1x1x128xf32>
    %21 = vector.shape_cast %20 : vector<1x1x128xf32> to vector<1x1x128xf32>
    %22 = vector.broadcast %21 : vector<1x1x128xf32> to vector<2x2x128xf32>
    %c1_12 = arith.constant 1 : index
    %c5 = arith.constant 5 : index
    %c0_13 = arith.constant 0 : index
    %23 = vector.load %arg11[%c1_12, %c5, %c0_13] : memref<10x10x128xf32, #tpu.memory_space<vmem>>, vector<2x2x128xf32>
    tpu.vector_store %arg11[%c1_12, %c5, %c0_13], %22 {strides = array<i32>} : memref<10x10x128xf32, #tpu.memory_space<vmem>>, vector<2x2x128xf32>,
    %24 = vector.extract_strided_slice %6 {offsets = [0, 384], sizes = [1, 128], strides = [1, 1]} : vector<1x2048xf32> to vector<1x128xf32>
    %25 = vector.shape_cast %24 : vector<1x128xf32> to vector<1x1x128xf32>
    %26 = vector.shape_cast %25 : vector<1x1x128xf32> to vector<1x1x128xf32>
    %27 = vector.broadcast %26 : vector<1x1x128xf32> to vector<2x2x128xf32>
    %c1_14 = arith.constant 1 : index
    %c7 = arith.constant 7 : index
    %c0_15 = arith.constant 0 : index
    %28 = vector.load %arg11[%c1_14, %c7, %c0_15] : memref<10x10x128xf32, #tpu.memory_space<vmem>>, vector<2x2x128xf32>
    tpu.vector_store %arg11[%c1_14, %c7, %c0_15], %27 {strides = array<i32>} : memref<10x10x128xf32, #tpu.memory_space<vmem>>, vector<2x2x128xf32>,
    %29 = vector.extract_strided_slice %6 {offsets = [0, 512], sizes = [1, 128], strides = [1, 1]} : vector<1x2048xf32> to vector<1x128xf32>
    %30 = vector.shape_cast %29 : vector<1x128xf32> to vector<1x1x128xf32>
    %31 = vector.shape_cast %30 : vector<1x1x128xf32> to vector<1x1x128xf32>
    %32 = vector.broadcast %31 : vector<1x1x128xf32> to vector<2x2x128xf32>
    %c3_16 = arith.constant 3 : index
    %c1_17 = arith.constant 1 : index
    %c0_18 = arith.constant 0 : index
    %33 = vector.load %arg11[%c3_16, %c1_17, %c0_18] : memref<10x10x128xf32, #tpu.memory_space<vmem>>, vector<2x2x128xf32>
    tpu.vector_store %arg11[%c3_16, %c1_17, %c0_18], %32 {strides = array<i32>} : memref<10x10x128xf32, #tpu.memory_space<vmem>>, vector<2x2x128xf32>,
    %34 = vector.extract_strided_slice %6 {offsets = [0, 640], sizes = [1, 128], strides = [1, 1]} : vector<1x2048xf32> to vector<1x128xf32>
    %35 = vector.shape_cast %34 : vector<1x128xf32> to vector<1x1x128xf32>
    %36 = vector.shape_cast %35 : vector<1x1x128xf32> to vector<1x1x128xf32>
    %37 = vector.broadcast %36 : vector<1x1x128xf32> to vector<2x2x128xf32>
    %c3_19 = arith.constant 3 : index
    %c3_20 = arith.constant 3 : index
    %c0_21 = arith.constant 0 : index
    %38 = vector.load %arg11[%c3_19, %c3_20, %c0_21] : memref<10x10x128xf32, #tpu.memory_space<vmem>>, vector<2x2x128xf32>
    tpu.vector_store %arg11[%c3_19, %c3_20, %c0_21], %37 {strides = array<i32>} : memref<10x10x128xf32, #tpu.memory_space<vmem>>, vector<2x2x128xf32>,
    %39 = vector.extract_strided_slice %6 {offsets = [0, 768], sizes = [1, 128], strides = [1, 1]} : vector<1x2048xf32> to vector<1x128xf32>
    %40 = vector.shape_cast %39 : vector<1x128xf32> to vector<1x1x128xf32>
    %41 = vector.shape_cast %40 : vector<1x1x128xf32> to vector<1x1x128xf32>
    %42 = vector.broadcast %41 : vector<1x1x128xf32> to vector<2x2x128xf32>
    %c3_22 = arith.constant 3 : index
    %c5_23 = arith.constant 5 : index
    %c0_24 = arith.constant 0 : index
    %43 = vector.load %arg11[%c3_22, %c5_23, %c0_24] : memref<10x10x128xf32, #tpu.memory_space<vmem>>, vector<2x2x128xf32>
    tpu.vector_store %arg11[%c3_22, %c5_23, %c0_24], %42 {strides = array<i32>} : memref<10x10x128xf32, #tpu.memory_space<vmem>>, vector<2x2x128xf32>,
    %44 = vector.extract_strided_slice %6 {offsets = [0, 896], sizes = [1, 128], strides = [1, 1]} : vector<1x2048xf32> to vector<1x128xf32>
    %45 = vector.shape_cast %44 : vector<1x128xf32> to vector<1x1x128xf32>
    %46 = vector.shape_cast %45 : vector<1x1x128xf32> to vector<1x1x128xf32>
    %47 = vector.broadcast %46 : vector<1x1x128xf32> to vector<2x2x128xf32>
    %c3_25 = arith.constant 3 : index
    %c7_26 = arith.constant 7 : index
    %c0_27 = arith.constant 0 : index
    %48 = vector.load %arg11[%c3_25, %c7_26, %c0_27] : memref<10x10x128xf32, #tpu.memory_space<vmem>>, vector<2x2x128xf32>
    tpu.vector_store %arg11[%c3_25, %c7_26, %c0_27], %47 {strides = array<i32>} : memref<10x10x128xf32, #tpu.memory_space<vmem>>, vector<2x2x128xf32>,
    %49 = vector.extract_strided_slice %6 {offsets = [0, 1024], sizes = [1, 128], strides = [1, 1]} : vector<1x2048xf32> to vector<1x128xf32>
    %50 = vector.shape_cast %49 : vector<1x128xf32> to vector<1x1x128xf32>
    %51 = vector.shape_cast %50 : vector<1x1x128xf32> to vector<1x1x128xf32>
    %52 = vector.broadcast %51 : vector<1x1x128xf32> to vector<2x2x128xf32>
    %c5_28 = arith.constant 5 : index
    %c1_29 = arith.constant 1 : index
    %c0_30 = arith.constant 0 : index
    %53 = vector.load %arg11[%c5_28, %c1_29, %c0_30] : memref<10x10x128xf32, #tpu.memory_space<vmem>>, vector<2x2x128xf32>
    tpu.vector_store %arg11[%c5_28, %c1_29, %c0_30], %52 {strides = array<i32>} : memref<10x10x128xf32, #tpu.memory_space<vmem>>, vector<2x2x128xf32>,
    %54 = vector.extract_strided_slice %6 {offsets = [0, 1152], sizes = [1, 128], strides = [1, 1]} : vector<1x2048xf32> to vector<1x128xf32>
    %55 = vector.shape_cast %54 : vector<1x128xf32> to vector<1x1x128xf32>
    %56 = vector.shape_cast %55 : vector<1x1x128xf32> to vector<1x1x128xf32>
    %57 = vector.broadcast %56 : vector<1x1x128xf32> to vector<2x2x128xf32>
    %c5_31 = arith.constant 5 : index
    %c3_32 = arith.constant 3 : index
    %c0_33 = arith.constant 0 : index
    %58 = vector.load %arg11[%c5_31, %c3_32, %c0_33] : memref<10x10x128xf32, #tpu.memory_space<vmem>>, vector<2x2x128xf32>
    tpu.vector_store %arg11[%c5_31, %c3_32, %c0_33], %57 {strides = array<i32>} : memref<10x10x128xf32, #tpu.memory_space<vmem>>, vector<2x2x128xf32>,
    %59 = vector.extract_strided_slice %6 {offsets = [0, 1280], sizes = [1, 128], strides = [1, 1]} : vector<1x2048xf32> to vector<1x128xf32>
    %60 = vector.shape_cast %59 : vector<1x128xf32> to vector<1x1x128xf32>
    %61 = vector.shape_cast %60 : vector<1x1x128xf32> to vector<1x1x128xf32>
    %62 = vector.broadcast %61 : vector<1x1x128xf32> to vector<2x2x128xf32>
    %c5_34 = arith.constant 5 : index
    %c5_35 = arith.constant 5 : index
    %c0_36 = arith.constant 0 : index
    %63 = vector.load %arg11[%c5_34, %c5_35, %c0_36] : memref<10x10x128xf32, #tpu.memory_space<vmem>>, vector<2x2x128xf32>
    tpu.vector_store %arg11[%c5_34, %c5_35, %c0_36], %62 {strides = array<i32>} : memref<10x10x128xf32, #tpu.memory_space<vmem>>, vector<2x2x128xf32>,
    %64 = vector.extract_strided_slice %6 {offsets = [0, 1408], sizes = [1, 128], strides = [1, 1]} : vector<1x2048xf32> to vector<1x128xf32>
    %65 = vector.shape_cast %64 : vector<1x128xf32> to vector<1x1x128xf32>
    %66 = vector.shape_cast %65 : vector<1x1x128xf32> to vector<1x1x128xf32>
    %67 = vector.broadcast %66 : vector<1x1x128xf32> to vector<2x2x128xf32>
    %c5_37 = arith.constant 5 : index
    %c7_38 = arith.constant 7 : index
    %c0_39 = arith.constant 0 : index
    %68 = vector.load %arg11[%c5_37, %c7_38, %c0_39] : memref<10x10x128xf32, #tpu.memory_space<vmem>>, vector<2x2x128xf32>
    tpu.vector_store %arg11[%c5_37, %c7_38, %c0_39], %67 {strides = array<i32>} : memref<10x10x128xf32, #tpu.memory_space<vmem>>, vector<2x2x128xf32>,
    %69 = vector.extract_strided_slice %6 {offsets = [0, 1536], sizes = [1, 128], strides = [1, 1]} : vector<1x2048xf32> to vector<1x128xf32>
    %70 = vector.shape_cast %69 : vector<1x128xf32> to vector<1x1x128xf32>
    %71 = vector.shape_cast %70 : vector<1x1x128xf32> to vector<1x1x128xf32>
    %72 = vector.broadcast %71 : vector<1x1x128xf32> to vector<2x2x128xf32>
    %c7_40 = arith.constant 7 : index
    %c1_41 = arith.constant 1 : index
    %c0_42 = arith.constant 0 : index
    %73 = vector.load %arg11[%c7_40, %c1_41, %c0_42] : memref<10x10x128xf32, #tpu.memory_space<vmem>>, vector<2x2x128xf32>
    tpu.vector_store %arg11[%c7_40, %c1_41, %c0_42], %72 {strides = array<i32>} : memref<10x10x128xf32, #tpu.memory_space<vmem>>, vector<2x2x128xf32>,
    %74 = vector.extract_strided_slice %6 {offsets = [0, 1664], sizes = [1, 128], strides = [1, 1]} : vector<1x2048xf32> to vector<1x128xf32>
    %75 = vector.shape_cast %74 : vector<1x128xf32> to vector<1x1x128xf32>
    %76 = vector.shape_cast %75 : vector<1x1x128xf32> to vector<1x1x128xf32>
    %77 = vector.broadcast %76 : vector<1x1x128xf32> to vector<2x2x128xf32>
    %c7_43 = arith.constant 7 : index
    %c3_44 = arith.constant 3 : index
    %c0_45 = arith.constant 0 : index
    %78 = vector.load %arg11[%c7_43, %c3_44, %c0_45] : memref<10x10x128xf32, #tpu.memory_space<vmem>>, vector<2x2x128xf32>
    tpu.vector_store %arg11[%c7_43, %c3_44, %c0_45], %77 {strides = array<i32>} : memref<10x10x128xf32, #tpu.memory_space<vmem>>, vector<2x2x128xf32>,
    %79 = vector.extract_strided_slice %6 {offsets = [0, 1792], sizes = [1, 128], strides = [1, 1]} : vector<1x2048xf32> to vector<1x128xf32>
    %80 = vector.shape_cast %79 : vector<1x128xf32> to vector<1x1x128xf32>
    %81 = vector.shape_cast %80 : vector<1x1x128xf32> to vector<1x1x128xf32>
    %82 = vector.broadcast %81 : vector<1x1x128xf32> to vector<2x2x128xf32>
    %c7_46 = arith.constant 7 : index
    %c5_47 = arith.constant 5 : index
    %c0_48 = arith.constant 0 : index
    %83 = vector.load %arg11[%c7_46, %c5_47, %c0_48] : memref<10x10x128xf32, #tpu.memory_space<vmem>>, vector<2x2x128xf32>
    tpu.vector_store %arg11[%c7_46, %c5_47, %c0_48], %82 {strides = array<i32>} : memref<10x10x128xf32, #tpu.memory_space<vmem>>, vector<2x2x128xf32>,
    %84 = vector.extract_strided_slice %6 {offsets = [0, 1920], sizes = [1, 128], strides = [1, 1]} : vector<1x2048xf32> to vector<1x128xf32>
    %85 = vector.shape_cast %84 : vector<1x128xf32> to vector<1x1x128xf32>
    %86 = vector.shape_cast %85 : vector<1x1x128xf32> to vector<1x1x128xf32>
    %87 = vector.broadcast %86 : vector<1x1x128xf32> to vector<2x2x128xf32>
    %c7_49 = arith.constant 7 : index
    %c7_50 = arith.constant 7 : index
    %c0_51 = arith.constant 0 : index
    %88 = vector.load %arg11[%c7_49, %c7_50, %c0_51] : memref<10x10x128xf32, #tpu.memory_space<vmem>>, vector<2x2x128xf32>
    tpu.vector_store %arg11[%c7_49, %c7_50, %c0_51], %87 {strides = array<i32>} : memref<10x10x128xf32, #tpu.memory_space<vmem>>, vector<2x2x128xf32>,
    %c0_52 = arith.constant 0 : index
    %c0_53 = arith.constant 0 : index
    %c0_54 = arith.constant 0 : index
    %89 = vector.load %arg11[%c0_52, %c0_53, %c0_54] : memref<10x10x128xf32, #tpu.memory_space<vmem>>, vector<10x8x128xf32>
    %c0_55 = arith.constant 0 : index
    %c1_56 = arith.constant 1 : index
    %c0_57 = arith.constant 0 : index
    %90 = vector.load %arg11[%c0_55, %c1_56, %c0_57] : memref<10x10x128xf32, #tpu.memory_space<vmem>>, vector<10x8x128xf32>
    %c0_58 = arith.constant 0 : index
    %c2 = arith.constant 2 : index
    %c0_59 = arith.constant 0 : index
    %91 = vector.load %arg11[%c0_58, %c2, %c0_59] : memref<10x10x128xf32, #tpu.memory_space<vmem>>, vector<10x8x128xf32>
    %92 = tpu.concatenate %89, %90, %91 in 2 : vector<10x8x128xf32>, vector<10x8x128xf32>, vector<10x8x128xf32> -> vector<10x8x384xf32>
    %cst_60 = arith.constant 0.000000e+00 : f32
    %93 = vector.broadcast %cst_60 : f32 to vector<64x128xf32>
    %94 = vector.extract_strided_slice %92 {offsets = [0, 0, 0], sizes = [8, 8, 384], strides = [1, 1, 1]} : vector<10x8x384xf32> to vector<8x8x384xf32>
    %95 = vector.shape_cast %94 : vector<8x8x384xf32> to vector<64x384xf32>
    %96 = arith.truncf %95 : vector<64x384xf32> to vector<64x384xbf16>
    %c0_61 = arith.constant 0 : index
    %c0_62 = arith.constant 0 : index
    %c0_63 = arith.constant 0 : index
    %97 = vector.load %arg4[%c0_61, %c0_62, %c0_63] : memref<3x384x128xbf16, #tpu.memory_space<vmem>>, vector<1x384x128xbf16>
    %98 = vector.shape_cast %97 : vector<1x384x128xbf16> to vector<384x128xbf16>
    %cst_64 = arith.constant dense<0.000000e+00> : vector<64x128xf32>
    %99 = tpu.matmul %96, %98, %cst_64 {dimension_numbers = #tpu.dot_dimension_numbers<[1], [0], [0], [1], [0, 0, 1, 1], [], []>} : vector<64x384xbf16>, vector<384x128xbf16>, vector<64x128xf32> -> vector<64x128xf32>
    %100 = arith.addf %93, %99 : vector<64x128xf32>
    %101 = vector.extract_strided_slice %92 {offsets = [1, 0, 0], sizes = [8, 8, 384], strides = [1, 1, 1]} : vector<10x8x384xf32> to vector<8x8x384xf32>
    %102 = vector.shape_cast %101 : vector<8x8x384xf32> to vector<64x384xf32>
    %103 = arith.truncf %102 : vector<64x384xf32> to vector<64x384xbf16>
    %c1_65 = arith.constant 1 : index
    %c0_66 = arith.constant 0 : index
    %c0_67 = arith.constant 0 : index
    %104 = vector.load %arg4[%c1_65, %c0_66, %c0_67] : memref<3x384x128xbf16, #tpu.memory_space<vmem>>, vector<1x384x128xbf16>
    %105 = vector.shape_cast %104 : vector<1x384x128xbf16> to vector<384x128xbf16>
    %cst_68 = arith.constant dense<0.000000e+00> : vector<64x128xf32>
    %106 = tpu.matmul %103, %105, %cst_68 {dimension_numbers = #tpu.dot_dimension_numbers<[1], [0], [0], [1], [0, 0, 1, 1], [], []>} : vector<64x384xbf16>, vector<384x128xbf16>, vector<64x128xf32> -> vector<64x128xf32>
    %107 = arith.addf %100, %106 : vector<64x128xf32>
    %108 = vector.extract_strided_slice %92 {offsets = [2, 0, 0], sizes = [8, 8, 384], strides = [1, 1, 1]} : vector<10x8x384xf32> to vector<8x8x384xf32>
    %109 = vector.shape_cast %108 : vector<8x8x384xf32> to vector<64x384xf32>
    %110 = arith.truncf %109 : vector<64x384xf32> to vector<64x384xbf16>
    %c2_69 = arith.constant 2 : index
    %c0_70 = arith.constant 0 : index
    %c0_71 = arith.constant 0 : index
    %111 = vector.load %arg4[%c2_69, %c0_70, %c0_71] : memref<3x384x128xbf16, #tpu.memory_space<vmem>>, vector<1x384x128xbf16>
    %112 = vector.shape_cast %111 : vector<1x384x128xbf16> to vector<384x128xbf16>
    %cst_72 = arith.constant dense<0.000000e+00> : vector<64x128xf32>
    %113 = tpu.matmul %110, %112, %cst_72 {dimension_numbers = #tpu.dot_dimension_numbers<[1], [0], [0], [1], [0, 0, 1, 1], [], []>} : vector<64x384xbf16>, vector<384x128xbf16>, vector<64x128xf32> -> vector<64x128xf32>
    %114 = arith.addf %107, %113 : vector<64x128xf32>
    %c0_73 = arith.constant 0 : index
    %c0_74 = arith.constant 0 : index
    %115 = vector.load %arg5[%c0_73, %c0_74] : memref<1x128xf32, #tpu.memory_space<vmem>>, vector<1x128xf32>
    %116 = vector.broadcast %115 : vector<1x128xf32> to vector<64x128xf32>
    %117 = arith.addf %114, %116 : vector<64x128xf32>
    %cst_75 = arith.constant 0.000000e+00 : f32
    %118 = vector.broadcast %cst_75 : f32 to vector<64x128xf32>
    %119 = arith.cmpf ogt, %117, %118 : vector<64x128xf32>
    %cst_76 = arith.constant 2.000000e-01 : f32
    %120 = vector.broadcast %cst_76 : f32 to vector<64x128xf32>
    %121 = arith.mulf %120, %117 : vector<64x128xf32>
    %122 = arith.select %119, %117, %121 : vector<64x128xi1>, vector<64x128xf32>
    %123 = vector.shape_cast %122 : vector<64x128xf32> to vector<8x8x128xf32>
    %c0_77 = arith.constant 0 : index
    %c0_78 = arith.constant 0 : index
    %c0_79 = arith.constant 0 : index
    %124 = vector.load %arg12[%c0_77, %c0_78, %c0_79] : memref<8x8x128xf32, #tpu.memory_space<vmem>>, vector<8x8x128xf32>
    tpu.vector_store %arg12[%c0_77, %c0_78, %c0_79], %123 {strides = array<i32>} : memref<8x8x128xf32, #tpu.memory_space<vmem>>, vector<8x8x128xf32>,
    %cst_80 = arith.constant 0.000000e+00 : f32
    %125 = vector.broadcast %cst_80 : f32 to vector<18x18x128xf32>
    %c0_81 = arith.constant 0 : index
    %c0_82 = arith.constant 0 : index
    %c0_83 = arith.constant 0 : index
    %126 = vector.load %arg13[%c0_81, %c0_82, %c0_83] : memref<18x18x128xf32, #tpu.memory_space<vmem>>, vector<18x18x128xf32>
    tpu.vector_store %arg13[%c0_81, %c0_82, %c0_83], %125 {strides = array<i32>} : memref<18x18x128xf32, #tpu.memory_space<vmem>>, vector<18x18x128xf32>,
    %c0_84 = arith.constant 0 : index
    %c0_85 = arith.constant 0 : index
    %c0_86 = arith.constant 0 : index
    %127 = vector.load %arg12[%c0_84, %c0_85, %c0_86] : memref<8x8x128xf32, #tpu.memory_space<vmem>>, vector<8x1x128xf32>
    %128 = vector.shape_cast %127 : vector<8x1x128xf32> to vector<8x1x1x128xf32>
    %129 = vector.shape_cast %128 : vector<8x1x1x128xf32> to vector<8x1x1x128xf32>
    %130 = vector.broadcast %129 : vector<8x1x1x128xf32> to vector<8x2x1x128xf32>
    %131 = vector.shape_cast %130 : vector<8x2x1x128xf32> to vector<16x1x128xf32>
    %132 = vector.shape_cast %131 : vector<16x1x128xf32> to vector<16x1x128xf32>
    %133 = vector.broadcast %132 : vector<16x1x128xf32> to vector<16x2x128xf32>
    %c1_87 = arith.constant 1 : index
    %c1_88 = arith.constant 1 : index
    %c0_89 = arith.constant 0 : index
    %134 = vector.load %arg13[%c1_87, %c1_88, %c0_89] : memref<18x18x128xf32, #tpu.memory_space<vmem>>, vector<16x2x128xf32>
    tpu.vector_store %arg13[%c1_87, %c1_88, %c0_89], %133 {strides = array<i32>} : memref<18x18x128xf32, #tpu.memory_space<vmem>>, vector<16x2x128xf32>,
    %c0_90 = arith.constant 0 : index
    %c1_91 = arith.constant 1 : index
    %c0_92 = arith.constant 0 : index
    %135 = vector.load %arg12[%c0_90, %c1_91, %c0_92] : memref<8x8x128xf32, #tpu.memory_space<vmem>>, vector<8x1x128xf32>
    %136 = vector.shape_cast %135 : vector<8x1x128xf32> to vector<8x1x1x128xf32>
    %137 = vector.shape_cast %136 : vector<8x1x1x128xf32> to vector<8x1x1x128xf32>
    %138 = vector.broadcast %137 : vector<8x1x1x128xf32> to vector<8x2x1x128xf32>
    %139 = vector.shape_cast %138 : vector<8x2x1x128xf32> to vector<16x1x128xf32>
    %140 = vector.shape_cast %139 : vector<16x1x128xf32> to vector<16x1x128xf32>
    %141 = vector.broadcast %140 : vector<16x1x128xf32> to vector<16x2x128xf32>
    %c1_93 = arith.constant 1 : index
    %c3_94 = arith.constant 3 : index
    %c0_95 = arith.constant 0 : index
    %142 = vector.load %arg13[%c1_93, %c3_94, %c0_95] : memref<18x18x128xf32, #tpu.memory_space<vmem>>, vector<16x2x128xf32>
    tpu.vector_store %arg13[%c1_93, %c3_94, %c0_95], %141 {strides = array<i32>} : memref<18x18x128xf32, #tpu.memory_space<vmem>>, vector<16x2x128xf32>,
    %c0_96 = arith.constant 0 : index
    %c2_97 = arith.constant 2 : index
    %c0_98 = arith.constant 0 : index
    %143 = vector.load %arg12[%c0_96, %c2_97, %c0_98] : memref<8x8x128xf32, #tpu.memory_space<vmem>>, vector<8x1x128xf32>
    %144 = vector.shape_cast %143 : vector<8x1x128xf32> to vector<8x1x1x128xf32>
    %145 = vector.shape_cast %144 : vector<8x1x1x128xf32> to vector<8x1x1x128xf32>
    %146 = vector.broadcast %145 : vector<8x1x1x128xf32> to vector<8x2x1x128xf32>
    %147 = vector.shape_cast %146 : vector<8x2x1x128xf32> to vector<16x1x128xf32>
    %148 = vector.shape_cast %147 : vector<16x1x128xf32> to vector<16x1x128xf32>
    %149 = vector.broadcast %148 : vector<16x1x128xf32> to vector<16x2x128xf32>
    %c1_99 = arith.constant 1 : index
    %c5_100 = arith.constant 5 : index
    %c0_101 = arith.constant 0 : index
    %150 = vector.load %arg13[%c1_99, %c5_100, %c0_101] : memref<18x18x128xf32, #tpu.memory_space<vmem>>, vector<16x2x128xf32>
    tpu.vector_store %arg13[%c1_99, %c5_100, %c0_101], %149 {strides = array<i32>} : memref<18x18x128xf32, #tpu.memory_space<vmem>>, vector<16x2x128xf32>,
    %c0_102 = arith.constant 0 : index
    %c3_103 = arith.constant 3 : index
    %c0_104 = arith.constant 0 : index
    %151 = vector.load %arg12[%c0_102, %c3_103, %c0_104] : memref<8x8x128xf32, #tpu.memory_space<vmem>>, vector<8x1x128xf32>
    %152 = vector.shape_cast %151 : vector<8x1x128xf32> to vector<8x1x1x128xf32>
    %153 = vector.shape_cast %152 : vector<8x1x1x128xf32> to vector<8x1x1x128xf32>
    %154 = vector.broadcast %153 : vector<8x1x1x128xf32> to vector<8x2x1x128xf32>
    %155 = vector.shape_cast %154 : vector<8x2x1x128xf32> to vector<16x1x128xf32>
    %156 = vector.shape_cast %155 : vector<16x1x128xf32> to vector<16x1x128xf32>
    %157 = vector.broadcast %156 : vector<16x1x128xf32> to vector<16x2x128xf32>
    %c1_105 = arith.constant 1 : index
    %c7_106 = arith.constant 7 : index
    %c0_107 = arith.constant 0 : index
    %158 = vector.load %arg13[%c1_105, %c7_106, %c0_107] : memref<18x18x128xf32, #tpu.memory_space<vmem>>, vector<16x2x128xf32>
    tpu.vector_store %arg13[%c1_105, %c7_106, %c0_107], %157 {strides = array<i32>} : memref<18x18x128xf32, #tpu.memory_space<vmem>>, vector<16x2x128xf32>,
    %c0_108 = arith.constant 0 : index
    %c4 = arith.constant 4 : index
    %c0_109 = arith.constant 0 : index
    %159 = vector.load %arg12[%c0_108, %c4, %c0_109] : memref<8x8x128xf32, #tpu.memory_space<vmem>>, vector<8x1x128xf32>
    %160 = vector.shape_cast %159 : vector<8x1x128xf32> to vector<8x1x1x128xf32>
    %161 = vector.shape_cast %160 : vector<8x1x1x128xf32> to vector<8x1x1x128xf32>
    %162 = vector.broadcast %161 : vector<8x1x1x128xf32> to vector<8x2x1x128xf32>
    %163 = vector.shape_cast %162 : vector<8x2x1x128xf32> to vector<16x1x128xf32>
    %164 = vector.shape_cast %163 : vector<16x1x128xf32> to vector<16x1x128xf32>
    %165 = vector.broadcast %164 : vector<16x1x128xf32> to vector<16x2x128xf32>
    %c1_110 = arith.constant 1 : index
    %c9 = arith.constant 9 : index
    %c0_111 = arith.constant 0 : index
    %166 = vector.load %arg13[%c1_110, %c9, %c0_111] : memref<18x18x128xf32, #tpu.memory_space<vmem>>, vector<16x2x128xf32>
    tpu.vector_store %arg13[%c1_110, %c9, %c0_111], %165 {strides = array<i32>} : memref<18x18x128xf32, #tpu.memory_space<vmem>>, vector<16x2x128xf32>,
    %c0_112 = arith.constant 0 : index
    %c5_113 = arith.constant 5 : index
    %c0_114 = arith.constant 0 : index
    %167 = vector.load %arg12[%c0_112, %c5_113, %c0_114] : memref<8x8x128xf32, #tpu.memory_space<vmem>>, vector<8x1x128xf32>
    %168 = vector.shape_cast %167 : vector<8x1x128xf32> to vector<8x1x1x128xf32>
    %169 = vector.shape_cast %168 : vector<8x1x1x128xf32> to vector<8x1x1x128xf32>
    %170 = vector.broadcast %169 : vector<8x1x1x128xf32> to vector<8x2x1x128xf32>
    %171 = vector.shape_cast %170 : vector<8x2x1x128xf32> to vector<16x1x128xf32>
    %172 = vector.shape_cast %171 : vector<16x1x128xf32> to vector<16x1x128xf32>
    %173 = vector.broadcast %172 : vector<16x1x128xf32> to vector<16x2x128xf32>
    %c1_115 = arith.constant 1 : index
    %c11 = arith.constant 11 : index
    %c0_116 = arith.constant 0 : index
    %174 = vector.load %arg13[%c1_115, %c11, %c0_116] : memref<18x18x128xf32, #tpu.memory_space<vmem>>, vector<16x2x128xf32>
    tpu.vector_store %arg13[%c1_115, %c11, %c0_116], %173 {strides = array<i32>} : memref<18x18x128xf32, #tpu.memory_space<vmem>>, vector<16x2x128xf32>,
    %c0_117 = arith.constant 0 : index
    %c6 = arith.constant 6 : index
    %c0_118 = arith.constant 0 : index
    %175 = vector.load %arg12[%c0_117, %c6, %c0_118] : memref<8x8x128xf32, #tpu.memory_space<vmem>>, vector<8x1x128xf32>
    %176 = vector.shape_cast %175 : vector<8x1x128xf32> to vector<8x1x1x128xf32>
    %177 = vector.shape_cast %176 : vector<8x1x1x128xf32> to vector<8x1x1x128xf32>
    %178 = vector.broadcast %177 : vector<8x1x1x128xf32> to vector<8x2x1x128xf32>
    %179 = vector.shape_cast %178 : vector<8x2x1x128xf32> to vector<16x1x128xf32>
    %180 = vector.shape_cast %179 : vector<16x1x128xf32> to vector<16x1x128xf32>
    %181 = vector.broadcast %180 : vector<16x1x128xf32> to vector<16x2x128xf32>
    %c1_119 = arith.constant 1 : index
    %c13 = arith.constant 13 : index
    %c0_120 = arith.constant 0 : index
    %182 = vector.load %arg13[%c1_119, %c13, %c0_120] : memref<18x18x128xf32, #tpu.memory_space<vmem>>, vector<16x2x128xf32>
    tpu.vector_store %arg13[%c1_119, %c13, %c0_120], %181 {strides = array<i32>} : memref<18x18x128xf32, #tpu.memory_space<vmem>>, vector<16x2x128xf32>,
    %c0_121 = arith.constant 0 : index
    %c7_122 = arith.constant 7 : index
    %c0_123 = arith.constant 0 : index
    %183 = vector.load %arg12[%c0_121, %c7_122, %c0_123] : memref<8x8x128xf32, #tpu.memory_space<vmem>>, vector<8x1x128xf32>
    %184 = vector.shape_cast %183 : vector<8x1x128xf32> to vector<8x1x1x128xf32>
    %185 = vector.shape_cast %184 : vector<8x1x1x128xf32> to vector<8x1x1x128xf32>
    %186 = vector.broadcast %185 : vector<8x1x1x128xf32> to vector<8x2x1x128xf32>
    %187 = vector.shape_cast %186 : vector<8x2x1x128xf32> to vector<16x1x128xf32>
    %188 = vector.shape_cast %187 : vector<16x1x128xf32> to vector<16x1x128xf32>
    %189 = vector.broadcast %188 : vector<16x1x128xf32> to vector<16x2x128xf32>
    %c1_124 = arith.constant 1 : index
    %c15 = arith.constant 15 : index
    %c0_125 = arith.constant 0 : index
    %190 = vector.load %arg13[%c1_124, %c15, %c0_125] : memref<18x18x128xf32, #tpu.memory_space<vmem>>, vector<16x2x128xf32>
    tpu.vector_store %arg13[%c1_124, %c15, %c0_125], %189 {strides = array<i32>} : memref<18x18x128xf32, #tpu.memory_space<vmem>>, vector<16x2x128xf32>,
    %c0_126 = arith.constant 0 : index
    %c0_127 = arith.constant 0 : index
    %c0_128 = arith.constant 0 : index
    %191 = vector.load %arg13[%c0_126, %c0_127, %c0_128] : memref<18x18x128xf32, #tpu.memory_space<vmem>>, vector<18x16x128xf32>
    %c0_129 = arith.constant 0 : index
    %c1_130 = arith.constant 1 : index
    %c0_131 = arith.constant 0 : index
    %192 = vector.load %arg13[%c0_129, %c1_130, %c0_131] : memref<18x18x128xf32, #tpu.memory_space<vmem>>, vector<18x16x128xf32>
    %c0_132 = arith.constant 0 : index
    %c2_133 = arith.constant 2 : index
    %c0_134 = arith.constant 0 : index
    %193 = vector.load %arg13[%c0_132, %c2_133, %c0_134] : memref<18x18x128xf32, #tpu.memory_space<vmem>>, vector<18x16x128xf32>
    %194 = tpu.concatenate %191, %192, %193 in 2 : vector<18x16x128xf32>, vector<18x16x128xf32>, vector<18x16x128xf32> -> vector<18x16x384xf32>
    %cst_135 = arith.constant 0.000000e+00 : f32
    %195 = vector.broadcast %cst_135 : f32 to vector<256x64xf32>
    %196 = vector.extract_strided_slice %194 {offsets = [0, 0, 0], sizes = [16, 16, 384], strides = [1, 1, 1]} : vector<18x16x384xf32> to vector<16x16x384xf32>
    %197 = vector.shape_cast %196 : vector<16x16x384xf32> to vector<256x384xf32>
    %198 = arith.truncf %197 : vector<256x384xf32> to vector<256x384xbf16>
    %c0_136 = arith.constant 0 : index
    %c0_137 = arith.constant 0 : index
    %c0_138 = arith.constant 0 : index
    %199 = vector.load %arg6[%c0_136, %c0_137, %c0_138] : memref<3x384x64xbf16, #tpu.memory_space<vmem>>, vector<1x384x64xbf16>
    %200 = vector.shape_cast %199 : vector<1x384x64xbf16> to vector<384x64xbf16>
    %cst_139 = arith.constant dense<0.000000e+00> : vector<256x64xf32>
    %201 = tpu.matmul %198, %200, %cst_139 {dimension_numbers = #tpu.dot_dimension_numbers<[1], [0], [0], [1], [0, 0, 1, 1], [], []>} : vector<256x384xbf16>, vector<384x64xbf16>, vector<256x64xf32> -> vector<256x64xf32>
    %202 = arith.addf %195, %201 : vector<256x64xf32>
    %203 = vector.extract_strided_slice %194 {offsets = [1, 0, 0], sizes = [16, 16, 384], strides = [1, 1, 1]} : vector<18x16x384xf32> to vector<16x16x384xf32>
    %204 = vector.shape_cast %203 : vector<16x16x384xf32> to vector<256x384xf32>
    %205 = arith.truncf %204 : vector<256x384xf32> to vector<256x384xbf16>
    %c1_140 = arith.constant 1 : index
    %c0_141 = arith.constant 0 : index
    %c0_142 = arith.constant 0 : index
    %206 = vector.load %arg6[%c1_140, %c0_141, %c0_142] : memref<3x384x64xbf16, #tpu.memory_space<vmem>>, vector<1x384x64xbf16>
    %207 = vector.shape_cast %206 : vector<1x384x64xbf16> to vector<384x64xbf16>
    %cst_143 = arith.constant dense<0.000000e+00> : vector<256x64xf32>
    %208 = tpu.matmul %205, %207, %cst_143 {dimension_numbers = #tpu.dot_dimension_numbers<[1], [0], [0], [1], [0, 0, 1, 1], [], []>} : vector<256x384xbf16>, vector<384x64xbf16>, vector<256x64xf32> -> vector<256x64xf32>
    %209 = arith.addf %202, %208 : vector<256x64xf32>
    %210 = vector.extract_strided_slice %194 {offsets = [2, 0, 0], sizes = [16, 16, 384], strides = [1, 1, 1]} : vector<18x16x384xf32> to vector<16x16x384xf32>
    %211 = vector.shape_cast %210 : vector<16x16x384xf32> to vector<256x384xf32>
    %212 = arith.truncf %211 : vector<256x384xf32> to vector<256x384xbf16>
    %c2_144 = arith.constant 2 : index
    %c0_145 = arith.constant 0 : index
    %c0_146 = arith.constant 0 : index
    %213 = vector.load %arg6[%c2_144, %c0_145, %c0_146] : memref<3x384x64xbf16, #tpu.memory_space<vmem>>, vector<1x384x64xbf16>
    %214 = vector.shape_cast %213 : vector<1x384x64xbf16> to vector<384x64xbf16>
    %cst_147 = arith.constant dense<0.000000e+00> : vector<256x64xf32>
    %215 = tpu.matmul %212, %214, %cst_147 {dimension_numbers = #tpu.dot_dimension_numbers<[1], [0], [0], [1], [0, 0, 1, 1], [], []>} : vector<256x384xbf16>, vector<384x64xbf16>, vector<256x64xf32> -> vector<256x64xf32>
    %216 = arith.addf %209, %215 : vector<256x64xf32>
    %c0_148 = arith.constant 0 : index
    %c0_149 = arith.constant 0 : index
    %217 = vector.load %arg7[%c0_148, %c0_149] : memref<1x64xf32, #tpu.memory_space<vmem>>, vector<1x64xf32>
    %218 = vector.broadcast %217 : vector<1x64xf32> to vector<256x64xf32>
    %219 = arith.addf %216, %218 : vector<256x64xf32>
    %cst_150 = arith.constant 0.000000e+00 : f32
    %220 = vector.broadcast %cst_150 : f32 to vector<256x64xf32>
    %221 = arith.cmpf ogt, %219, %220 : vector<256x64xf32>
    %cst_151 = arith.constant 2.000000e-01 : f32
    %222 = vector.broadcast %cst_151 : f32 to vector<256x64xf32>
    %223 = arith.mulf %222, %219 : vector<256x64xf32>
    %224 = arith.select %221, %219, %223 : vector<256x64xi1>, vector<256x64xf32>
    %cst_152 = arith.constant 0.000000e+00 : f32
    %225 = vector.broadcast %cst_152 : f32 to vector<18x18x64xf32>
    %c0_153 = arith.constant 0 : index
    %c0_154 = arith.constant 0 : index
    %c0_155 = arith.constant 0 : index
    %226 = vector.load %arg14[%c0_153, %c0_154, %c0_155] : memref<18x18x64xf32, #tpu.memory_space<vmem>>, vector<18x18x64xf32>
    tpu.vector_store %arg14[%c0_153, %c0_154, %c0_155], %225 {strides = array<i32>} : memref<18x18x64xf32, #tpu.memory_space<vmem>>, vector<18x18x64xf32>,
    %227 = vector.shape_cast %224 : vector<256x64xf32> to vector<16x16x64xf32>
    %c1_156 = arith.constant 1 : index
    %c1_157 = arith.constant 1 : index
    %c0_158 = arith.constant 0 : index
    %228 = vector.load %arg14[%c1_156, %c1_157, %c0_158] : memref<18x18x64xf32, #tpu.memory_space<vmem>>, vector<16x16x64xf32>
    tpu.vector_store %arg14[%c1_156, %c1_157, %c0_158], %227 {strides = array<i32>} : memref<18x18x64xf32, #tpu.memory_space<vmem>>, vector<16x16x64xf32>,
    %c0_159 = arith.constant 0 : index
    %c0_160 = arith.constant 0 : index
    %c0_161 = arith.constant 0 : index
    %229 = vector.load %arg14[%c0_159, %c0_160, %c0_161] : memref<18x18x64xf32, #tpu.memory_space<vmem>>, vector<18x16x64xf32>
    %c0_162 = arith.constant 0 : index
    %c1_163 = arith.constant 1 : index
    %c0_164 = arith.constant 0 : index
    %230 = vector.load %arg14[%c0_162, %c1_163, %c0_164] : memref<18x18x64xf32, #tpu.memory_space<vmem>>, vector<18x16x64xf32>
    %c0_165 = arith.constant 0 : index
    %c2_166 = arith.constant 2 : index
    %c0_167 = arith.constant 0 : index
    %231 = vector.load %arg14[%c0_165, %c2_166, %c0_167] : memref<18x18x64xf32, #tpu.memory_space<vmem>>, vector<18x16x64xf32>
    %232 = tpu.concatenate %229, %230, %231 in 2 : vector<18x16x64xf32>, vector<18x16x64xf32>, vector<18x16x64xf32> -> vector<18x16x192xf32>
    %cst_168 = arith.constant 0.000000e+00 : f32
    %233 = vector.broadcast %cst_168 : f32 to vector<256x128xf32>
    %234 = vector.extract_strided_slice %232 {offsets = [0, 0, 0], sizes = [16, 16, 192], strides = [1, 1, 1]} : vector<18x16x192xf32> to vector<16x16x192xf32>
    %235 = vector.shape_cast %234 : vector<16x16x192xf32> to vector<256x192xf32>
    %236 = arith.truncf %235 : vector<256x192xf32> to vector<256x192xbf16>
    %c0_169 = arith.constant 0 : index
    %c0_170 = arith.constant 0 : index
    %c0_171 = arith.constant 0 : index
    %237 = vector.load %arg8[%c0_169, %c0_170, %c0_171] : memref<3x192x128xbf16, #tpu.memory_space<vmem>>, vector<1x192x128xbf16>
    %238 = vector.shape_cast %237 : vector<1x192x128xbf16> to vector<192x128xbf16>
    %cst_172 = arith.constant dense<0.000000e+00> : vector<256x128xf32>
    %239 = tpu.matmul %236, %238, %cst_172 {dimension_numbers = #tpu.dot_dimension_numbers<[1], [0], [0], [1], [0, 0, 1, 1], [], []>} : vector<256x192xbf16>, vector<192x128xbf16>, vector<256x128xf32> -> vector<256x128xf32>
    %240 = arith.addf %233, %239 : vector<256x128xf32>
    %241 = vector.extract_strided_slice %232 {offsets = [1, 0, 0], sizes = [16, 16, 192], strides = [1, 1, 1]} : vector<18x16x192xf32> to vector<16x16x192xf32>
    %242 = vector.shape_cast %241 : vector<16x16x192xf32> to vector<256x192xf32>
    %243 = arith.truncf %242 : vector<256x192xf32> to vector<256x192xbf16>
    %c1_173 = arith.constant 1 : index
    %c0_174 = arith.constant 0 : index
    %c0_175 = arith.constant 0 : index
    %244 = vector.load %arg8[%c1_173, %c0_174, %c0_175] : memref<3x192x128xbf16, #tpu.memory_space<vmem>>, vector<1x192x128xbf16>
    %245 = vector.shape_cast %244 : vector<1x192x128xbf16> to vector<192x128xbf16>
    %cst_176 = arith.constant dense<0.000000e+00> : vector<256x128xf32>
    %246 = tpu.matmul %243, %245, %cst_176 {dimension_numbers = #tpu.dot_dimension_numbers<[1], [0], [0], [1], [0, 0, 1, 1], [], []>} : vector<256x192xbf16>, vector<192x128xbf16>, vector<256x128xf32> -> vector<256x128xf32>
    %247 = arith.addf %240, %246 : vector<256x128xf32>
    %248 = vector.extract_strided_slice %232 {offsets = [2, 0, 0], sizes = [16, 16, 192], strides = [1, 1, 1]} : vector<18x16x192xf32> to vector<16x16x192xf32>
    %249 = vector.shape_cast %248 : vector<16x16x192xf32> to vector<256x192xf32>
    %250 = arith.truncf %249 : vector<256x192xf32> to vector<256x192xbf16>
    %c2_177 = arith.constant 2 : index
    %c0_178 = arith.constant 0 : index
    %c0_179 = arith.constant 0 : index
    %251 = vector.load %arg8[%c2_177, %c0_178, %c0_179] : memref<3x192x128xbf16, #tpu.memory_space<vmem>>, vector<1x192x128xbf16>
    %252 = vector.shape_cast %251 : vector<1x192x128xbf16> to vector<192x128xbf16>
    %cst_180 = arith.constant dense<0.000000e+00> : vector<256x128xf32>
    %253 = tpu.matmul %250, %252, %cst_180 {dimension_numbers = #tpu.dot_dimension_numbers<[1], [0], [0], [1], [0, 0, 1, 1], [], []>} : vector<256x192xbf16>, vector<192x128xbf16>, vector<256x128xf32> -> vector<256x128xf32>
    %254 = arith.addf %247, %253 : vector<256x128xf32>
    %c0_181 = arith.constant 0 : index
    %c0_182 = arith.constant 0 : index
    %255 = vector.load %arg9[%c0_181, %c0_182] : memref<1x128xf32, #tpu.memory_space<vmem>>, vector<1x128xf32>
    %256 = vector.broadcast %255 : vector<1x128xf32> to vector<256x128xf32>
    %257 = arith.addf %254, %256 : vector<256x128xf32>
    %258 = math.tanh %257 : vector<256x128xf32>
    %259 = vector.shape_cast %258 : vector<256x128xf32> to vector<16x16x128xf32>
    %c0_183 = arith.constant 0 : index
    %c0_184 = arith.constant 0 : index
    %c0_185 = arith.constant 0 : index
    %c0_186 = arith.constant 0 : index
    %260 = vector.load %arg10[%c0_183, %c0_184, %c0_185, %c0_186] : memref<1x16x16x128xf32, #tpu.memory_space<vmem>>, vector<1x16x16x128xf32>
    %261 = vector.shape_cast %260 : vector<1x16x16x128xf32> to vector<16x16x128xf32>
    %262 = vector.shape_cast %259 : vector<16x16x128xf32> to vector<1x16x16x128xf32>
    tpu.vector_store %arg10[%c0_183, %c0_184, %c0_185, %c0_186], %262 {strides = array<i32>} : memref<1x16x16x128xf32, #tpu.memory_space<vmem>>, vector<1x16x16x128xf32>,
    return
  }
  func.func @transform_0(%arg0: i32) -> (i32, i32) {
    %c0_i32 = arith.constant 0 : i32
    %c0_i32_0 = arith.constant 0 : i32
    %c0_i32_1 = arith.constant 0 : i32
    return %c0_i32, %c0_i32_0 : i32, i32
  }
  func.func @transform_1(%arg0: i32) -> (i32, i32) {
    %c0_i32 = arith.constant 0 : i32
    %c0_i32_0 = arith.constant 0 : i32
    %c0_i32_1 = arith.constant 0 : i32
    return %c0_i32, %c0_i32_0 : i32, i32
  }
  func.func @transform_2(%arg0: i32) -> (i32, i32) {
    %c0_i32 = arith.constant 0 : i32
    %c0_i32_0 = arith.constant 0 : i32
    %c0_i32_1 = arith.constant 0 : i32
    return %c0_i32, %c0_i32_0 : i32, i32
  }
  func.func @transform_3(%arg0: i32) -> (i32, i32, i32) {
    %c0_i32 = arith.constant 0 : i32
    %c0_i32_0 = arith.constant 0 : i32
    %c0_i32_1 = arith.constant 0 : i32
    %c0_i32_2 = arith.constant 0 : i32
    return %c0_i32, %c0_i32_0, %c0_i32_1 : i32, i32, i32
  }
  func.func @transform_4(%arg0: i32) -> (i32, i32) {
    %c0_i32 = arith.constant 0 : i32
    %c0_i32_0 = arith.constant 0 : i32
    %c0_i32_1 = arith.constant 0 : i32
    return %c0_i32, %c0_i32_0 : i32, i32
  }
  func.func @transform_5(%arg0: i32) -> (i32, i32, i32) {
    %c0_i32 = arith.constant 0 : i32
    %c0_i32_0 = arith.constant 0 : i32
    %c0_i32_1 = arith.constant 0 : i32
    %c0_i32_2 = arith.constant 0 : i32
    return %c0_i32, %c0_i32_0, %c0_i32_1 : i32, i32, i32
  }
  func.func @transform_6(%arg0: i32) -> (i32, i32) {
    %c0_i32 = arith.constant 0 : i32
    %c0_i32_0 = arith.constant 0 : i32
    %c0_i32_1 = arith.constant 0 : i32
    return %c0_i32, %c0_i32_0 : i32, i32
  }
  func.func @transform_7(%arg0: i32) -> (i32, i32, i32) {
    %c0_i32 = arith.constant 0 : i32
    %c0_i32_0 = arith.constant 0 : i32
    %c0_i32_1 = arith.constant 0 : i32
    %c0_i32_2 = arith.constant 0 : i32
    return %c0_i32, %c0_i32_0, %c0_i32_1 : i32, i32, i32
  }
  func.func @transform_8(%arg0: i32) -> (i32, i32) {
    %c0_i32 = arith.constant 0 : i32
    %c0_i32_0 = arith.constant 0 : i32
    %c0_i32_1 = arith.constant 0 : i32
    return %c0_i32, %c0_i32_0 : i32, i32
  }
  func.func @transform_9(%arg0: i32) -> (i32, i32, i32, i32) {
    %c0_i32 = arith.constant 0 : i32
    %c0_i32_0 = arith.constant 0 : i32
    %c0_i32_1 = arith.constant 0 : i32
    %c0_i32_2 = arith.constant 0 : i32
    return %arg0, %c0_i32, %c0_i32_0, %c0_i32_1 : i32, i32, i32, i32
  }
}

</mosaic_0001>

<llo_original>
// kernel: tpu_custom_call.1
$region0: #{tpu_custom_call.1}
  #allocation0 [shape = 'u32[]', space=smem, size = 0x4, offset = 0x4, fixed_abs, tag = 'smem constant byte address 0x4 - core index']
  #allocation1 [shape = 'u32[144,128]{1,0:T(1,128)}', space=vmem, size = 0x12000, scoped, tag = 'internal scratch']
  #allocation2 [shape = 'f32[10,10,128]{2,1,0:T(8,128)}', space=vmem, size = 0x14000, scoped, tag = 'scratch operand']
  #allocation3 [shape = 'f32[8,8,128]{2,1,0:T(8,128)}', space=vmem, size = 0x8000, scoped, tag = 'scratch operand']
  #allocation4 [shape = 'f32[18,18,128]{2,1,0:T(8,128)}', space=vmem, size = 0x36000, scoped, tag = 'scratch operand']
  #allocation5 [shape = 'f32[18,18,64]{2,1,0:T(8,128)}', space=vmem, size = 0x36000, scoped, tag = 'scratch operand']
  %s0 = inlined_call_operand.vmem [shape: f32[2,32], index: 0, kind: input, shape index: {}]
  %s1 = inlined_call_operand.hbm [shape: bf16[32,2048], index: 1, kind: input, shape index: {}]
  %s2 = inlined_call_operand.hbm [shape: f32[1,2048], index: 2, kind: input, shape index: {}]
  %s3 = inlined_call_operand.vmem [shape: bf16[3,384,128], index: 3, kind: input, shape index: {}]
  %s4 = inlined_call_operand.vmem [shape: f32[1,128], index: 4, kind: input, shape index: {}]
  %s5 = inlined_call_operand.vmem [shape: bf16[3,384,64], index: 5, kind: input, shape index: {}]
  %s6 = inlined_call_operand.vmem [shape: f32[1,64], index: 6, kind: input, shape index: {}]
  %s7 = inlined_call_operand.vmem [shape: bf16[3,192,128], index: 7, kind: input, shape index: {}]
  %s8 = inlined_call_operand.vmem [shape: f32[1,128], index: 8, kind: input, shape index: {}]
  %s9 = inlined_call_operand.hbm [shape: f32[2,16,16,128], index: 9, kind: output, shape index: {}]
  %s10 = sld [smem:[#allocation0]]
  $region77: #{tpu_custom_call.1} parent=0
    _
  %s12 = ssub.s32 1, %s10
  %s13 = scalar_select 0, %s12, %s10
  $region1: #{tpu_custom_call.1} parent=0
    #allocation6 [shape = 'u8[131072]{0}', space=vmem, size = 0x20000, scoped, tag = 'input window, operand 1, single buffered']
    #allocation7 [shape = 's32[2]{0}', space=sflag, size = 0x8, scoped, tag = 'scoped memory for tpu_custom_call.1']
    #allocation8 [shape = 's32[2]{0}', space=sflag, size = 0x8, scoped, tag = 'scoped memory for tpu_custom_call.1']
    #allocation9 [shape = 'u8[8192]{0}', space=vmem, size = 0x2000, scoped, tag = 'input window, operand 2, single buffered']
    #allocation10 [shape = 's32[1]{0}', space=sflag, size = 0x4, scoped, tag = 'scoped memory for tpu_custom_call.1']
    #allocation11 [shape = 'u8[262144]{0}', space=vmem, size = 0x40000, scoped, tag = 'output window, operand 0']
    %14 = vsyncpa [#allocation7], 0
    %15 = vsyncpa [#allocation10], 0
    %16 = vsyncpa [#allocation8], 0
    %s17 = scalar_lea.sflag [#allocation8], 1
    %18 = vsyncpa %s17, 0
    loop: start=0, step=1, limit=4
    $region2: #{tpu_custom_call.1} parent=1 // loop_pre_header
      _
    $region3: #{tpu_custom_call.1} parent=1 // loop_header
      %s20 = sphi 0, %s24
      %p21 = scmp.ge.s32.totalorder %s20, 4
      %s28 = sphi 0, %s28
      %s30 = sphi 0, %s28
      %s31 = sphi 0, %s30
      %s45 = sphi 0, %s31
      %s49 = sphi 0, %s49
      %s51 = sphi 0, %s49
      %s52 = sphi 0, %s51
      %s66 = sphi 0, %s52
      %s70 = sphi 0, %s70
      %s72 = sphi 0, %s70
      %s73 = sphi 0, %s72
      %s87 = sphi 0, %s73
      %s91 = sphi 0, %s91
      %s93 = sphi 0, %s91
      %s94 = sphi 0, %s93
      %s108 = sphi 0, %s94
      %s112 = sphi 0, %s112
      %s114 = sphi 0, %s112
      %s115 = sphi 0, %s114
      %s129 = sphi 0, %s115
      %s133 = sphi 0, %s133
      %s135 = sphi 0, %s133
      %s136 = sphi 0, %s135
      %s150 = sphi 0, %s136
      %s154 = sphi 0, %s154
      %s156 = sphi 0, %s154
      %s157 = sphi 0, %s156
      %s171 = sphi 0, %s157
      %s175 = sphi 0, %s175
      %s177 = sphi 0, %s175
      %s178 = sphi 0, %s177
      %s192 = sphi 0, %s178
      %s196 = sphi 0, %s196
      %s198 = sphi 0, %s196
      %s199 = sphi 0, %s198
      %s213 = sphi 0, %s199
      %s219 = sphi 0, %s221
      %s222 = sphi 0, %s219
      %s223 = sphi 0, %s222
      %s239 = sphi 0, %s223
    $region4: #{tpu_custom_call.1} parent=1 // loop_header_branch
      %23 = sbr.rel (%p21) target = $region8
    $region5: #{tpu_custom_call.1} parent=1 // loop_body
      %s25 = ssub.s32 %s20, 1
      %s26 = ssub.s32 %s20, 2
      %s27 = sadd.s32 %s20, 1
      %s29 = sadd.s32 %s28, 1
      %p32 = scmp.eq.s32.totalorder %s20, 1
      %p33 = scmp.ne.s32.totalorder %s28, %s30
      %p34 = scmp.eq.s32.totalorder %s20, 0
      %p35 = por %p33, %p34
      %p36 = scmp.ne.s32.totalorder %s28, %s30
      %p37 = scmp.eq.s32.totalorder %s25, 1
      %p38 = por %p36, %p37
      %p39 = scmp.ne.s32.totalorder %s30, %s31
      %p40 = scmp.eq.s32.totalorder %s25, 0
      %p41 = por %p39, %p40
      %p42 = scmp.ne.s32.totalorder %s30, %s31
      %p43 = scmp.eq.s32.totalorder %s26, 1
      %p44 = por %p42, %p43
      %p46 = scmp.ne.s32.totalorder %s31, %s45
      %p47 = scmp.eq.s32.totalorder %s26, 0
      %p48 = por %p46, %p47
      %s50 = sadd.s32 %s49, 1
      %p53 = scmp.eq.s32.totalorder %s20, 1
      %p54 = scmp.ne.s32.totalorder %s49, %s51
      %p55 = scmp.eq.s32.totalorder %s20, 0
      %p56 = por %p54, %p55
      %p57 = scmp.ne.s32.totalorder %s49, %s51
      %p58 = scmp.eq.s32.totalorder %s25, 1
      %p59 = por %p57, %p58
      %p60 = scmp.ne.s32.totalorder %s51, %s52
      %p61 = scmp.eq.s32.totalorder %s25, 0
      %p62 = por %p60, %p61
      %p63 = scmp.ne.s32.totalorder %s51, %s52
      %p64 = scmp.eq.s32.totalorder %s26, 1
      %p65 = por %p63, %p64
      %p67 = scmp.ne.s32.totalorder %s52, %s66
      %p68 = scmp.eq.s32.totalorder %s26, 0
      %p69 = por %p67, %p68
      %s71 = sadd.s32 %s70, 1
      %p74 = scmp.eq.s32.totalorder %s20, 1
      %p75 = scmp.ne.s32.totalorder %s70, %s72
      %p76 = scmp.eq.s32.totalorder %s20, 0
      %p77 = por %p75, %p76
      %p78 = scmp.ne.s32.totalorder %s70, %s72
      %p79 = scmp.eq.s32.totalorder %s25, 1
      %p80 = por %p78, %p79
      %p81 = scmp.ne.s32.totalorder %s72, %s73
      %p82 = scmp.eq.s32.totalorder %s25, 0
      %p83 = por %p81, %p82
      %p84 = scmp.ne.s32.totalorder %s72, %s73
      %p85 = scmp.eq.s32.totalorder %s26, 1
      %p86 = por %p84, %p85
      %p88 = scmp.ne.s32.totalorder %s73, %s87
      %p89 = scmp.eq.s32.totalorder %s26, 0
      %p90 = por %p88, %p89
      %s92 = sadd.s32 %s91, 1
      %p95 = scmp.eq.s32.totalorder %s20, 1
      %p96 = scmp.ne.s32.totalorder %s91, %s93
      %p97 = scmp.eq.s32.totalorder %s20, 0
      %p98 = por %p96, %p97
      %p99 = scmp.ne.s32.totalorder %s91, %s93
      %p100 = scmp.eq.s32.totalorder %s25, 1
      %p101 = por %p99, %p100
      %p102 = scmp.ne.s32.totalorder %s93, %s94
      %p103 = scmp.eq.s32.totalorder %s25, 0
      %p104 = por %p102, %p103
      %p105 = scmp.ne.s32.totalorder %s93, %s94
      %p106 = scmp.eq.s32.totalorder %s26, 1
      %p107 = por %p105, %p106
      %p109 = scmp.ne.s32.totalorder %s94, %s108
      %p110 = scmp.eq.s32.totalorder %s26, 0
      %p111 = por %p109, %p110
      %s113 = sadd.s32 %s112, 1
      %p116 = scmp.eq.s32.totalorder %s20, 1
      %p117 = scmp.ne.s32.totalorder %s112, %s114
      %p118 = scmp.eq.s32.totalorder %s20, 0
      %p119 = por %p117, %p118
      %p120 = scmp.ne.s32.totalorder %s112, %s114
      %p121 = scmp.eq.s32.totalorder %s25, 1
      %p122 = por %p120, %p121
      %p123 = scmp.ne.s32.totalorder %s114, %s115
      %p124 = scmp.eq.s32.totalorder %s25, 0
      %p125 = por %p123, %p124
      %p126 = scmp.ne.s32.totalorder %s114, %s115
      %p127 = scmp.eq.s32.totalorder %s26, 1
      %p128 = por %p126, %p127
      %p130 = scmp.ne.s32.totalorder %s115, %s129
      %p131 = scmp.eq.s32.totalorder %s26, 0
      %p132 = por %p130, %p131
      %s134 = sadd.s32 %s133, 1
      %p137 = scmp.eq.s32.totalorder %s20, 1
      %p138 = scmp.ne.s32.totalorder %s133, %s135
      %p139 = scmp.eq.s32.totalorder %s20, 0
      %p140 = por %p138, %p139
      %p141 = scmp.ne.s32.totalorder %s133, %s135
      %p142 = scmp.eq.s32.totalorder %s25, 1
      %p143 = por %p141, %p142
      %p144 = scmp.ne.s32.totalorder %s135, %s136
      %p145 = scmp.eq.s32.totalorder %s25, 0
      %p146 = por %p144, %p145
      %p147 = scmp.ne.s32.totalorder %s135, %s136
      %p148 = scmp.eq.s32.totalorder %s26, 1
      %p149 = por %p147, %p148
      %p151 = scmp.ne.s32.totalorder %s136, %s150
      %p152 = scmp.eq.s32.totalorder %s26, 0
      %p153 = por %p151, %p152
      %s155 = sadd.s32 %s154, 1
      %p158 = scmp.eq.s32.totalorder %s20, 1
      %p159 = scmp.ne.s32.totalorder %s154, %s156
      %p160 = scmp.eq.s32.totalorder %s20, 0
      %p161 = por %p159, %p160
      %p162 = scmp.ne.s32.totalorder %s154, %s156
      %p163 = scmp.eq.s32.totalorder %s25, 1
      %p164 = por %p162, %p163
      %p165 = scmp.ne.s32.totalorder %s156, %s157
      %p166 = scmp.eq.s32.totalorder %s25, 0
      %p167 = por %p165, %p166
      %p168 = scmp.ne.s32.totalorder %s156, %s157
      %p169 = scmp.eq.s32.totalorder %s26, 1
      %p170 = por %p168, %p169
      %p172 = scmp.ne.s32.totalorder %s157, %s171
      %p173 = scmp.eq.s32.totalorder %s26, 0
      %p174 = por %p172, %p173
      %s176 = sadd.s32 %s175, 1
      %p179 = scmp.eq.s32.totalorder %s20, 1
      %p180 = scmp.ne.s32.totalorder %s175, %s177
      %p181 = scmp.eq.s32.totalorder %s20, 0
      %p182 = por %p180, %p181
      %p183 = scmp.ne.s32.totalorder %s175, %s177
      %p184 = scmp.eq.s32.totalorder %s25, 1
      %p185 = por %p183, %p184
      %p186 = scmp.ne.s32.totalorder %s177, %s178
      %p187 = scmp.eq.s32.totalorder %s25, 0
      %p188 = por %p186, %p187
      %p189 = scmp.ne.s32.totalorder %s177, %s178
      %p190 = scmp.eq.s32.totalorder %s26, 1
      %p191 = por %p189, %p190
      %p193 = scmp.ne.s32.totalorder %s178, %s192
      %p194 = scmp.eq.s32.totalorder %s26, 0
      %p195 = por %p193, %p194
      %s197 = sadd.s32 %s196, 1
      %p200 = scmp.eq.s32.totalorder %s20, 1
      %p201 = scmp.ne.s32.totalorder %s196, %s198
      %p202 = scmp.eq.s32.totalorder %s20, 0
      %p203 = por %p201, %p202
      %p204 = scmp.ne.s32.totalorder %s196, %s198
      %p205 = scmp.eq.s32.totalorder %s25, 1
      %p206 = por %p204, %p205
      %p207 = scmp.ne.s32.totalorder %s198, %s199
      %p208 = scmp.eq.s32.totalorder %s25, 0
      %p209 = por %p207, %p208
      %p210 = scmp.ne.s32.totalorder %s198, %s199
      %p211 = scmp.eq.s32.totalorder %s26, 1
      %p212 = por %p210, %p211
      %p214 = scmp.ne.s32.totalorder %s199, %s213
      %p215 = scmp.eq.s32.totalorder %s26, 0
      %p216 = por %p214, %p215
      %s217 = ssub.s32 %s20, %s27
      %p218 = scmp.eq.s32.totalorder %s217, 0
      %s220 = sadd.s32 %s219, 1
      %s221 = scalar_select %p218, %s219, %s220
      %p224 = pneg %p218
      %p225 = scmp.eq.s32.totalorder %s20, 1
      %p226 = por %p224, %p225
      %p227 = scmp.ne.s32.totalorder %s219, %s222
      %p228 = scmp.eq.s32.totalorder %s20, 0
      %p229 = por %p227, %p228
      %p230 = scmp.ne.s32.totalorder %s219, %s222
      %p231 = scmp.eq.s32.totalorder %s25, 1
      %p232 = por %p230, %p231
      %p233 = scmp.ne.s32.totalorder %s222, %s223
      %p234 = scmp.eq.s32.totalorder %s25, 0
      %p235 = por %p233, %p234
      %p236 = scmp.ne.s32.totalorder %s222, %s223
      %p237 = scmp.eq.s32.totalorder %s26, 1
      %p238 = por %p236, %p237
      %p240 = scmp.ne.s32.totalorder %s223, %s239
      %p241 = scmp.eq.s32.totalorder %s26, 0
      %p242 = por %p240, %p241
      %p243 = scmp.le.s32.totalorder 1, %s20
      %p244 = scmp.lt.s32.totalorder %s20, 3
      %p245 = pnand %p243, %p244
      %p246 = pneg %p245
      // Predicated region
      $region9: #{tpu_custom_call.1} parent=5 // pred_check
        _
      $region10: #{tpu_custom_call.1} parent=5 // pred_check_branch
        %248 = sbr.rel (%p245) target = $region12
      $region11: #{tpu_custom_call.1} parent=5 // pred_region
        %s249 = ssub.s32 %s20, 1
        // Predicated region
        $region13: #{tpu_custom_call.1} parent=11 // pred_check
          %p250 = pneg %p41
        $region14: #{tpu_custom_call.1} parent=11 // pred_check_branch
          %252 = sbr.rel (%p250) target = $region16
        $region15: #{tpu_custom_call.1} parent=11 // pred_region
          _
        $region16: #{tpu_custom_call.1} parent=11 // pred_fallthru
          _
        // Predicated region
        $region17: #{tpu_custom_call.1} parent=11 // pred_check
          %p253 = pneg %p62
        $region18: #{tpu_custom_call.1} parent=11 // pred_check_branch
          %255 = sbr.rel (%p253) target = $region20
        $region19: #{tpu_custom_call.1} parent=11 // pred_region
          %s257 = ssub.s32 4096, 4096
          %258 = vsyncadd [#allocation7], %s257
          %s259 = sshll.u32 [#allocation6], 4
          %s260 = int_to_ptr.vmem [resolvable:$true] %s259
          %265 = dma.hbm_to_vmem [thread:$0]  %s1, 4096, %s260, [#allocation7], 1024, 1024, 64
        $region20: #{tpu_custom_call.1} parent=11 // pred_fallthru
          _
        // Predicated region
        $region21: #{tpu_custom_call.1} parent=11 // pred_check
          %p266 = pneg %p83
        $region22: #{tpu_custom_call.1} parent=11 // pred_check_branch
          %268 = sbr.rel (%p266) target = $region24
        $region23: #{tpu_custom_call.1} parent=11 // pred_region
          %s270 = ssub.s32 256, 256
          %271 = vsyncadd [#allocation10], %s270
          %s273 = sshll.u32 [#allocation9], 4
          %s274 = int_to_ptr.vmem [resolvable:$true] %s273
          %276 = dma.hbm_to_vmem [thread:$0]  %s2, 256, %s274, [#allocation10]
        $region24: #{tpu_custom_call.1} parent=11 // pred_fallthru
          _
        // Predicated region
        $region25: #{tpu_custom_call.1} parent=11 // pred_check
          %p277 = pneg %p104
        $region26: #{tpu_custom_call.1} parent=11 // pred_check_branch
          %279 = sbr.rel (%p277) target = $region28
        $region27: #{tpu_custom_call.1} parent=11 // pred_region
          _
        $region28: #{tpu_custom_call.1} parent=11 // pred_fallthru
          _
        // Predicated region
        $region29: #{tpu_custom_call.1} parent=11 // pred_check
          %p280 = pneg %p125
        $region30: #{tpu_custom_call.1} parent=11 // pred_check_branch
          %282 = sbr.rel (%p280) target = $region32
        $region31: #{tpu_custom_call.1} parent=11 // pred_region
          _
        $region32: #{tpu_custom_call.1} parent=11 // pred_fallthru
          _
        // Predicated region
        $region33: #{tpu_custom_call.1} parent=11 // pred_check
          %p283 = pneg %p146
        $region34: #{tpu_custom_call.1} parent=11 // pred_check_branch
          %285 = sbr.rel (%p283) target = $region36
        $region35: #{tpu_custom_call.1} parent=11 // pred_region
          _
        $region36: #{tpu_custom_call.1} parent=11 // pred_fallthru
          _
        // Predicated region
        $region37: #{tpu_custom_call.1} parent=11 // pred_check
          %p286 = pneg %p167
        $region38: #{tpu_custom_call.1} parent=11 // pred_check_branch
          %288 = sbr.rel (%p286) target = $region40
        $region39: #{tpu_custom_call.1} parent=11 // pred_region
          _
        $region40: #{tpu_custom_call.1} parent=11 // pred_fallthru
          _
        // Predicated region
        $region41: #{tpu_custom_call.1} parent=11 // pred_check
          %p289 = pneg %p188
        $region42: #{tpu_custom_call.1} parent=11 // pred_check_branch
          %291 = sbr.rel (%p289) target = $region44
        $region43: #{tpu_custom_call.1} parent=11 // pred_region
          _
        $region44: #{tpu_custom_call.1} parent=11 // pred_fallthru
          _
        // Predicated region
        $region45: #{tpu_custom_call.1} parent=11 // pred_check
          %p292 = pneg %p209
        $region46: #{tpu_custom_call.1} parent=11 // pred_check_branch
          %294 = sbr.rel (%p292) target = $region48
        $region47: #{tpu_custom_call.1} parent=11 // pred_region
          _
        $region48: #{tpu_custom_call.1} parent=11 // pred_fallthru
          _
      $region12: #{tpu_custom_call.1} parent=5 // pred_fallthru
        _
      %p295 = scmp.lt.s32.totalorder %s20, 2
      // Predicated region
      $region49: #{tpu_custom_call.1} parent=5 // pred_check
        %p296 = pneg %p295
      $region50: #{tpu_custom_call.1} parent=5 // pred_check_branch
        %298 = sbr.rel (%p296) target = $region52
      $region51: #{tpu_custom_call.1} parent=5 // pred_region
        _
      $region52: #{tpu_custom_call.1} parent=5 // pred_fallthru
        _
      %p299 = scmp.le.s32.totalorder 1, %s20
      %p300 = scmp.lt.s32.totalorder %s20, 3
      %p301 = pnand %p299, %p300
      %p302 = pneg %p301
      // Predicated region
      $region53: #{tpu_custom_call.1} parent=5 // pred_check
        _
      $region54: #{tpu_custom_call.1} parent=5 // pred_check_branch
        %304 = sbr.rel (%p301) target = $region56
      $region55: #{tpu_custom_call.1} parent=5 // pred_region
        %s305 = ssub.s32 %s20, 1
        // Predicated region
        $region57: #{tpu_custom_call.1} parent=55 // pred_check
          %p306 = pneg %p62
        $region58: #{tpu_custom_call.1} parent=55 // pred_check_branch
          %308 = sbr.rel (%p306) target = $region60
        $region59: #{tpu_custom_call.1} parent=55 // pred_region
          %309 = dma.done [#allocation7], 4096
        $region60: #{tpu_custom_call.1} parent=55 // pred_fallthru
          _
        // Predicated region
        $region61: #{tpu_custom_call.1} parent=55 // pred_check
          %p310 = pneg %p83
        $region62: #{tpu_custom_call.1} parent=55 // pred_check_branch
          %312 = sbr.rel (%p310) target = $region64
        $region63: #{tpu_custom_call.1} parent=55 // pred_region
          %313 = dma.done [#allocation10], 256
        $region64: #{tpu_custom_call.1} parent=55 // pred_fallthru
          _
        %p314 = pneg %p41
        %p315 = pneg %p38
        %p316 = pneg %p62
        %p317 = pneg %p59
        %p318 = pneg %p83
        %p319 = pneg %p80
        %p320 = pneg %p104
        %p321 = pneg %p101
        %p322 = pneg %p125
        %p323 = pneg %p122
        %p324 = pneg %p146
        %p325 = pneg %p143
        %p326 = pneg %p167
        %p327 = pneg %p164
        %p328 = pneg %p188
        %p329 = pneg %p185
        %p330 = pneg %p209
        %p331 = pneg %p206
        %p332 = pneg %p235
        %p333 = pneg %p232
        %s334 = sand.u32 %s222, 1
        %s335 = scalar_lea.sflag [#allocation8], %s334
        %s336 = sand.u32 %s222, 1
        %s337 = smul.addr %s336, 256
        %s338 = scalar_lea.vmem [#allocation11], %s337
        %s340 = scalar_lea.vmem %s0, %s25
        %v341 = vld [vmem:[%s340] sm:$0x1]
        %v342 = vpack.c.bf16 %v341, %v341
        %v343 = vld [vmem:[#allocation6] sm:$0xff]
        %v344 = vld [vmem:[#allocation6 + $0x8] sm:$0xff]
        %v345 = vld [vmem:[#allocation6 + $0x10] sm:$0xff]
        %v346 = vld [vmem:[#allocation6 + $0x18] sm:$0xff]
        %v347 = vld [vmem:[#allocation6 + $0x20] sm:$0xff]
        %v348 = vld [vmem:[#allocation6 + $0x28] sm:$0xff]
        %v349 = vld [vmem:[#allocation6 + $0x30] sm:$0xff]
        %v350 = vld [vmem:[#allocation6 + $0x38] sm:$0xff]
        %v351 = vld [vmem:[#allocation6 + $0x40] sm:$0xff]
        %v352 = vld [vmem:[#allocation6 + $0x48] sm:$0xff]
        %v353 = vld [vmem:[#allocation6 + $0x50] sm:$0xff]
        %v354 = vld [vmem:[#allocation6 + $0x58] sm:$0xff]
        %v355 = vld [vmem:[#allocation6 + $0x60] sm:$0xff]
        %v356 = vld [vmem:[#allocation6 + $0x68] sm:$0xff]
        %v357 = vld [vmem:[#allocation6 + $0x70] sm:$0xff]
        %v358 = vld [vmem:[#allocation6 + $0x78] sm:$0xff]
        %v359 = vld [vmem:[#allocation6 + $0x80] sm:$0xff]
        %v360 = vld [vmem:[#allocation6 + $0x88] sm:$0xff]
        %v361 = vld [vmem:[#allocation6 + $0x90] sm:$0xff]
        %v362 = vld [vmem:[#allocation6 + $0x98] sm:$0xff]
        %v363 = vld [vmem:[#allocation6 + $0xa0] sm:$0xff]
        %v364 = vld [vmem:[#allocation6 + $0xa8] sm:$0xff]
        %v365 = vld [vmem:[#allocation6 + $0xb0] sm:$0xff]
        %v366 = vld [vmem:[#allocation6 + $0xb8] sm:$0xff]
        %v367 = vld [vmem:[#allocation6 + $0xc0] sm:$0xff]
        %v368 = vld [vmem:[#allocation6 + $0xc8] sm:$0xff]
        %v369 = vld [vmem:[#allocation6 + $0xd0] sm:$0xff]
        %v370 = vld [vmem:[#allocation6 + $0xd8] sm:$0xff]
        %v371 = vld [vmem:[#allocation6 + $0xe0] sm:$0xff]
        %v372 = vld [vmem:[#allocation6 + $0xe8] sm:$0xff]
        %v373 = vld [vmem:[#allocation6 + $0xf0] sm:$0xff]
        %v374 = vld [vmem:[#allocation6 + $0xf8] sm:$0xff]
        %v375 = vld [vmem:[#allocation9] sm:$0xff]
        %v376 = vld [vmem:[#allocation9 + $0x8] sm:$0xff]
        %v409 = vunpack.c.l.b16 %v343
        %v410 = vunpack.c.h.b16 %v343
        %v411 = vunpack.c.l.b16 %v344
        %v412 = vunpack.c.h.b16 %v344
        %v413 = vunpack.c.l.b16 %v345
        %v414 = vunpack.c.h.b16 %v345
        %v415 = vunpack.c.l.b16 %v346
        %v416 = vunpack.c.h.b16 %v346
        %v417 = vunpack.c.l.b16 %v347
        %v418 = vunpack.c.h.b16 %v347
        %v419 = vunpack.c.l.b16 %v348
        %v420 = vunpack.c.h.b16 %v348
        %v421 = vunpack.c.l.b16 %v349
        %v422 = vunpack.c.h.b16 %v349
        %v423 = vunpack.c.l.b16 %v350
        %v424 = vunpack.c.h.b16 %v350
        %v425 = vunpack.c.l.b16 %v351
        %v426 = vunpack.c.h.b16 %v351
        %v427 = vunpack.c.l.b16 %v352
        %v428 = vunpack.c.h.b16 %v352
        %v429 = vunpack.c.l.b16 %v353
        %v430 = vunpack.c.h.b16 %v353
        %v431 = vunpack.c.l.b16 %v354
        %v432 = vunpack.c.h.b16 %v354
        %v433 = vunpack.c.l.b16 %v355
        %v434 = vunpack.c.h.b16 %v355
        %v435 = vunpack.c.l.b16 %v356
        %v436 = vunpack.c.h.b16 %v356
        %v437 = vunpack.c.l.b16 %v357
        %v438 = vunpack.c.h.b16 %v357
        %v439 = vunpack.c.l.b16 %v358
        %v440 = vunpack.c.h.b16 %v358
        %v441 = vunpack.c.l.b16 %v359
        %v442 = vunpack.c.h.b16 %v359
        %v443 = vunpack.c.l.b16 %v360
        %v444 = vunpack.c.h.b16 %v360
        %v445 = vunpack.c.l.b16 %v361
        %v446 = vunpack.c.h.b16 %v361
        %v447 = vunpack.c.l.b16 %v362
        %v448 = vunpack.c.h.b16 %v362
        %v449 = vunpack.c.l.b16 %v363
        %v450 = vunpack.c.h.b16 %v363
        %v451 = vunpack.c.l.b16 %v364
        %v452 = vunpack.c.h.b16 %v364
        %v453 = vunpack.c.l.b16 %v365
        %v454 = vunpack.c.h.b16 %v365
        %v455 = vunpack.c.l.b16 %v366
        %v456 = vunpack.c.h.b16 %v366
        %v457 = vunpack.c.l.b16 %v367
        %v458 = vunpack.c.h.b16 %v367
        %v459 = vunpack.c.l.b16 %v368
        %v460 = vunpack.c.h.b16 %v368
        %v461 = vunpack.c.l.b16 %v369
        %v462 = vunpack.c.h.b16 %v369
        %v463 = vunpack.c.l.b16 %v370
        %v464 = vunpack.c.h.b16 %v370
        %v465 = vunpack.c.l.b16 %v371
        %v466 = vunpack.c.h.b16 %v371
        %v467 = vunpack.c.l.b16 %v372
        %v468 = vunpack.c.h.b16 %v372
        %v469 = vunpack.c.l.b16 %v373
        %v470 = vunpack.c.h.b16 %v373
        %v471 = vunpack.c.l.b16 %v374
        %v472 = vunpack.c.h.b16 %v374
        %v473 = vpack.c.b16 %v425, %v409
        %v474 = vpack.c.b16 %v426, %v410
        %v475 = vpack.c.b16 %v427, %v411
        %v476 = vpack.c.b16 %v428, %v412
        %v477 = vpack.c.b16 %v429, %v413
        %v478 = vpack.c.b16 %v430, %v414
        %v479 = vpack.c.b16 %v431, %v415
        %v480 = vpack.c.b16 %v432, %v416
        %v481 = vpack.c.b16 %v433, %v417
        %v482 = vpack.c.b16 %v434, %v418
        %v483 = vpack.c.b16 %v435, %v419
        %v484 = vpack.c.b16 %v436, %v420
        %v485 = vpack.c.b16 %v437, %v421
        %v486 = vpack.c.b16 %v438, %v422
        %v487 = vpack.c.b16 %v439, %v423
        %v488 = vpack.c.b16 %v440, %v424
        %v489 = vpack.c.b16 %v457, %v441
        %v490 = vpack.c.b16 %v458, %v442
        %v491 = vpack.c.b16 %v459, %v443
        %v492 = vpack.c.b16 %v460, %v444
        %v493 = vpack.c.b16 %v461, %v445
        %v494 = vpack.c.b16 %v462, %v446
        %v495 = vpack.c.b16 %v463, %v447
        %v496 = vpack.c.b16 %v464, %v448
        %v497 = vpack.c.b16 %v465, %v449
        %v498 = vpack.c.b16 %v466, %v450
        %v499 = vpack.c.b16 %v467, %v451
        %v500 = vpack.c.b16 %v468, %v452
        %v501 = vpack.c.b16 %v469, %v453
        %v502 = vpack.c.b16 %v470, %v454
        %v503 = vpack.c.b16 %v471, %v455
        %v504 = vpack.c.b16 %v472, %v456
        %v539 = vlaneseq
        %v540 = vshrl.u32 %v539, 7
        %v541 = vsub.s32 0, %v540
        %v542 = vrot.slane %v375, %v541
        %v543 = vlaneseq
        %v544 = vshrl.u32 %v543, 7
        %v545 = vsub.s32 1, %v544
        %v546 = vrot.slane %v375, %v545
        %v547 = vlaneseq
        %v548 = vshrl.u32 %v547, 7
        %v549 = vsub.s32 2, %v548
        %v550 = vrot.slane %v375, %v549
        %v551 = vlaneseq
        %v552 = vshrl.u32 %v551, 7
        %v553 = vsub.s32 3, %v552
        %v554 = vrot.slane %v375, %v553
        %v555 = vlaneseq
        %v556 = vshrl.u32 %v555, 7
        %v557 = vsub.s32 4, %v556
        %v558 = vrot.slane %v375, %v557
        %v559 = vlaneseq
        %v560 = vshrl.u32 %v559, 7
        %v561 = vsub.s32 5, %v560
        %v562 = vrot.slane %v375, %v561
        %v563 = vlaneseq
        %v564 = vshrl.u32 %v563, 7
        %v565 = vsub.s32 6, %v564
        %v566 = vrot.slane %v375, %v565
        %v567 = vlaneseq
        %v568 = vshrl.u32 %v567, 7
        %v569 = vsub.s32 7, %v568
        %v570 = vrot.slane %v375, %v569
        %v571 = vlaneseq
        %v572 = vshrl.u32 %v571, 7
        %v573 = vsub.s32 0, %v572
        %v574 = vrot.slane %v376, %v573
        %v575 = vlaneseq
        %v576 = vshrl.u32 %v575, 7
        %v577 = vsub.s32 1, %v576
        %v578 = vrot.slane %v376, %v577
        %v579 = vlaneseq
        %v580 = vshrl.u32 %v579, 7
        %v581 = vsub.s32 2, %v580
        %v582 = vrot.slane %v376, %v581
        %v583 = vlaneseq
        %v584 = vshrl.u32 %v583, 7
        %v585 = vsub.s32 3, %v584
        %v586 = vrot.slane %v376, %v585
        %v587 = vlaneseq
        %v588 = vshrl.u32 %v587, 7
        %v589 = vsub.s32 4, %v588
        %v590 = vrot.slane %v376, %v589
        %v591 = vlaneseq
        %v592 = vshrl.u32 %v591, 7
        %v593 = vsub.s32 5, %v592
        %v594 = vrot.slane %v376, %v593
        %v595 = vlaneseq
        %v596 = vshrl.u32 %v595, 7
        %v597 = vsub.s32 6, %v596
        %v598 = vrot.slane %v376, %v597
        %v599 = vlaneseq
        %v600 = vshrl.u32 %v599, 7
        %v601 = vsub.s32 7, %v600
        %v602 = vrot.slane %v376, %v601
        %vm619 = vcmask 261120
        %v621 = vsel %vm619, %v342, 0
        %623 = vmatprep.subr.bf16.mxu0 %v474
        %624 = vmatpush1.bf16.msra.mxu0 %v473
        %625 = vmatprep.subr.bf16.mxu0 %v490
        %626 = vmatpush1.bf16.msra.mxu0 %v489
        %627 = vmatprep.subr.bf16.mxu0 0
        %628 = vmatpush1.bf16.msra.mxu0 0
        %629 = vmatprep.subr.bf16.mxu0 0
        %630 = vmatpush1.bf16.msra.mxu0 0
        %631 = vmatprep.subr.bf16.mxu0 0
        %632 = vmatpush1.bf16.msra.mxu0 0
        %633 = vmatprep.subr.bf16.mxu0 0
        %634 = vmatpush1.bf16.msra.mxu0 0
        %635 = vmatprep.subr.bf16.mxu0 0
        %636 = vmatpush1.bf16.msra.mxu0 0
        %637 = vmatprep.subr.bf16.mxu0 0
        %638 = vmatpush1.bf16.msra.mxu0 0
        %639 = vmatprep.subr.bf16.mxu0 0
        %640 = vmatpush1.bf16.msra.mxu0 0
        %641 = vmatprep.subr.bf16.mxu0 0
        %642 = vmatpush1.bf16.msra.mxu0 0
        %643 = vmatprep.subr.bf16.mxu0 0
        %644 = vmatpush1.bf16.msra.mxu0 0
        %645 = vmatprep.subr.bf16.mxu0 0
        %646 = vmatpush1.bf16.msra.mxu0 0
        %647 = vmatprep.subr.bf16.mxu0 0
        %648 = vmatpush1.bf16.msra.mxu0 0
        %649 = vmatprep.subr.bf16.mxu0 0
        %650 = vmatpush1.bf16.msra.mxu0 0
        %651 = vmatprep.subr.bf16.mxu0 0
        %652 = vmatpush1.bf16.msra.mxu0 0
        %653 = vmatprep.subr.bf16.mxu0 0
        %654 = vmatpush1.bf16.msra.mxu0 0
        %655 = vmatprep.mubr.bf16.mxu0 0
        %656 = vmatmul.mubr.bf16.gmra.mrb[0].mxu0 %v621
        %v657 = vpop.f32.mrb[0].mxu0
        %v658 = vadd.f32 %v542, %v657
        %v659 = vpop.f32.mrb[0].mxu0
        %v660 = vadd.f32 %v546, %v659
        %v661 = vpop.f32.mrb[0].mxu0
        %v662 = vpop.f32.mrb[0].mxu0
        %663 = vdwg.mxu0
        %664 = vmatprep.subr.bf16.mxu0 %v476
        %665 = vmatpush1.bf16.msra.mxu0 %v475
        %666 = vmatprep.subr.bf16.mxu0 %v492
        %667 = vmatpush1.bf16.msra.mxu0 %v491
        %668 = vmatprep.subr.bf16.mxu0 0
        %669 = vmatpush1.bf16.msra.mxu0 0
        %670 = vmatprep.subr.bf16.mxu0 0
        %671 = vmatpush1.bf16.msra.mxu0 0
        %672 = vmatprep.subr.bf16.mxu0 0
        %673 = vmatpush1.bf16.msra.mxu0 0
        %674 = vmatprep.subr.bf16.mxu0 0
        %675 = vmatpush1.bf16.msra.mxu0 0
        %676 = vmatprep.subr.bf16.mxu0 0
        %677 = vmatpush1.bf16.msra.mxu0 0
        %678 = vmatprep.subr.bf16.mxu0 0
        %679 = vmatpush1.bf16.msra.mxu0 0
        %680 = vmatprep.subr.bf16.mxu0 0
        %681 = vmatpush1.bf16.msra.mxu0 0
        %682 = vmatprep.subr.bf16.mxu0 0
        %683 = vmatpush1.bf16.msra.mxu0 0
        %684 = vmatprep.subr.bf16.mxu0 0
        %685 = vmatpush1.bf16.msra.mxu0 0
        %686 = vmatprep.subr.bf16.mxu0 0
        %687 = vmatpush1.bf16.msra.mxu0 0
        %688 = vmatprep.subr.bf16.mxu0 0
        %689 = vmatpush1.bf16.msra.mxu0 0
        %690 = vmatprep.subr.bf16.mxu0 0
        %691 = vmatpush1.bf16.msra.mxu0 0
        %692 = vmatprep.subr.bf16.mxu0 0
        %693 = vmatpush1.bf16.msra.mxu0 0
        %694 = vmatprep.subr.bf16.mxu0 0
        %695 = vmatpush1.bf16.msra.mxu0 0
        %696 = vmatprep.mubr.bf16.mxu0 0
        %697 = vmatmul.mubr.bf16.gmra.mrb[0].mxu0 %v621
        %v698 = vpop.f32.mrb[0].mxu0
        %v699 = vadd.f32 %v550, %v698
        %v700 = vpop.f32.mrb[0].mxu0
        %v701 = vadd.f32 %v554, %v700
        %v702 = vpop.f32.mrb[0].mxu0
        %v703 = vpop.f32.mrb[0].mxu0
        %704 = vdwg.mxu0
        %705 = vmatprep.subr.bf16.mxu0 %v478
        %706 = vmatpush1.bf16.msra.mxu0 %v477
        %707 = vmatprep.subr.bf16.mxu0 %v494
        %708 = vmatpush1.bf16.msra.mxu0 %v493
        %709 = vmatprep.subr.bf16.mxu0 0
        %710 = vmatpush1.bf16.msra.mxu0 0
        %711 = vmatprep.subr.bf16.mxu0 0
        %712 = vmatpush1.bf16.msra.mxu0 0
        %713 = vmatprep.subr.bf16.mxu0 0
        %714 = vmatpush1.bf16.msra.mxu0 0
        %715 = vmatprep.subr.bf16.mxu0 0
        %716 = vmatpush1.bf16.msra.mxu0 0
        %717 = vmatprep.subr.bf16.mxu0 0
        %718 = vmatpush1.bf16.msra.mxu0 0
        %719 = vmatprep.subr.bf16.mxu0 0
        %720 = vmatpush1.bf16.msra.mxu0 0
        %721 = vmatprep.subr.bf16.mxu0 0
        %722 = vmatpush1.bf16.msra.mxu0 0
        %723 = vmatprep.subr.bf16.mxu0 0
        %724 = vmatpush1.bf16.msra.mxu0 0
        %725 = vmatprep.subr.bf16.mxu0 0
        %726 = vmatpush1.bf16.msra.mxu0 0
        %727 = vmatprep.subr.bf16.mxu0 0
        %728 = vmatpush1.bf16.msra.mxu0 0
        %729 = vmatprep.subr.bf16.mxu0 0
        %730 = vmatpush1.bf16.msra.mxu0 0
        %731 = vmatprep.subr.bf16.mxu0 0
        %732 = vmatpush1.bf16.msra.mxu0 0
        %733 = vmatprep.subr.bf16.mxu0 0
        %734 = vmatpush1.bf16.msra.mxu0 0
        %735 = vmatprep.subr.bf16.mxu0 0
        %736 = vmatpush1.bf16.msra.mxu0 0
        %737 = vmatprep.mubr.bf16.mxu0 0
        %738 = vmatmul.mubr.bf16.gmra.mrb[0].mxu0 %v621
        %v739 = vpop.f32.mrb[0].mxu0
        %v740 = vadd.f32 %v558, %v739
        %v741 = vpop.f32.mrb[0].mxu0
        %v742 = vadd.f32 %v562, %v741
        %v743 = vpop.f32.mrb[0].mxu0
        %v744 = vpop.f32.mrb[0].mxu0
        %745 = vdwg.mxu0
        %746 = vmatprep.subr.bf16.mxu0 %v480
        %747 = vmatpush1.bf16.msra.mxu0 %v479
        %748 = vmatprep.subr.bf16.mxu0 %v496
        %749 = vmatpush1.bf16.msra.mxu0 %v495
        %750 = vmatprep.subr.bf16.mxu0 0
        %751 = vmatpush1.bf16.msra.mxu0 0
        %752 = vmatprep.subr.bf16.mxu0 0
        %753 = vmatpush1.bf16.msra.mxu0 0
        %754 = vmatprep.subr.bf16.mxu0 0
        %755 = vmatpush1.bf16.msra.mxu0 0
        %756 = vmatprep.subr.bf16.mxu0 0
        %757 = vmatpush1.bf16.msra.mxu0 0
        %758 = vmatprep.subr.bf16.mxu0 0
        %759 = vmatpush1.bf16.msra.mxu0 0
        %760 = vmatprep.subr.bf16.mxu0 0
        %761 = vmatpush1.bf16.msra.mxu0 0
        %762 = vmatprep.subr.bf16.mxu0 0
        %763 = vmatpush1.bf16.msra.mxu0 0
        %764 = vmatprep.subr.bf16.mxu0 0
        %765 = vmatpush1.bf16.msra.mxu0 0
        %766 = vmatprep.subr.bf16.mxu0 0
        %767 = vmatpush1.bf16.msra.mxu0 0
        %768 = vmatprep.subr.bf16.mxu0 0
        %769 = vmatpush1.bf16.msra.mxu0 0
        %770 = vmatprep.subr.bf16.mxu0 0
        %771 = vmatpush1.bf16.msra.mxu0 0
        %772 = vmatprep.subr.bf16.mxu0 0
        %773 = vmatpush1.bf16.msra.mxu0 0
        %774 = vmatprep.subr.bf16.mxu0 0
        %775 = vmatpush1.bf16.msra.mxu0 0
        %776 = vmatprep.subr.bf16.mxu0 0
        %777 = vmatpush1.bf16.msra.mxu0 0
        %778 = vmatprep.mubr.bf16.mxu0 0
        %779 = vmatmul.mubr.bf16.gmra.mrb[0].mxu0 %v621
        %v780 = vpop.f32.mrb[0].mxu0
        %v781 = vadd.f32 %v566, %v780
        %v782 = vpop.f32.mrb[0].mxu0
        %v783 = vadd.f32 %v570, %v782
        %v784 = vpop.f32.mrb[0].mxu0
        %v785 = vpop.f32.mrb[0].mxu0
        %786 = vdwg.mxu0
        %787 = vmatprep.subr.bf16.mxu0 %v482
        %788 = vmatpush1.bf16.msra.mxu0 %v481
        %789 = vmatprep.subr.bf16.mxu0 %v498
        %790 = vmatpush1.bf16.msra.mxu0 %v497
        %791 = vmatprep.subr.bf16.mxu0 0
        %792 = vmatpush1.bf16.msra.mxu0 0
        %793 = vmatprep.subr.bf16.mxu0 0
        %794 = vmatpush1.bf16.msra.mxu0 0
        %795 = vmatprep.subr.bf16.mxu0 0
        %796 = vmatpush1.bf16.msra.mxu0 0
        %797 = vmatprep.subr.bf16.mxu0 0
        %798 = vmatpush1.bf16.msra.mxu0 0
        %799 = vmatprep.subr.bf16.mxu0 0
        %800 = vmatpush1.bf16.msra.mxu0 0
        %801 = vmatprep.subr.bf16.mxu0 0
        %802 = vmatpush1.bf16.msra.mxu0 0
        %803 = vmatprep.subr.bf16.mxu0 0
        %804 = vmatpush1.bf16.msra.mxu0 0
        %805 = vmatprep.subr.bf16.mxu0 0
        %806 = vmatpush1.bf16.msra.mxu0 0
        %807 = vmatprep.subr.bf16.mxu0 0
        %808 = vmatpush1.bf16.msra.mxu0 0
        %809 = vmatprep.subr.bf16.mxu0 0
        %810 = vmatpush1.bf16.msra.mxu0 0
        %811 = vmatprep.subr.bf16.mxu0 0
        %812 = vmatpush1.bf16.msra.mxu0 0
        %813 = vmatprep.subr.bf16.mxu0 0
        %814 = vmatpush1.bf16.msra.mxu0 0
        %815 = vmatprep.subr.bf16.mxu0 0
        %816 = vmatpush1.bf16.msra.mxu0 0
        %817 = vmatprep.subr.bf16.mxu0 0
        %818 = vmatpush1.bf16.msra.mxu0 0
        %819 = vmatprep.mubr.bf16.mxu0 0
        %820 = vmatmul.mubr.bf16.gmra.mrb[0].mxu0 %v621
        %v821 = vpop.f32.mrb[0].mxu0
        %v822 = vadd.f32 %v574, %v821
        %v823 = vpop.f32.mrb[0].mxu0
        %v824 = vadd.f32 %v578, %v823
        %v825 = vpop.f32.mrb[0].mxu0
        %v826 = vpop.f32.mrb[0].mxu0
        %827 = vdwg.mxu0
        %828 = vmatprep.subr.bf16.mxu0 %v484
        %829 = vmatpush1.bf16.msra.mxu0 %v483
        %830 = vmatprep.subr.bf16.mxu0 %v500
        %831 = vmatpush1.bf16.msra.mxu0 %v499
        %832 = vmatprep.subr.bf16.mxu0 0
        %833 = vmatpush1.bf16.msra.mxu0 0
        %834 = vmatprep.subr.bf16.mxu0 0
        %835 = vmatpush1.bf16.msra.mxu0 0
        %836 = vmatprep.subr.bf16.mxu0 0
        %837 = vmatpush1.bf16.msra.mxu0 0
        %838 = vmatprep.subr.bf16.mxu0 0
        %839 = vmatpush1.bf16.msra.mxu0 0
        %840 = vmatprep.subr.bf16.mxu0 0
        %841 = vmatpush1.bf16.msra.mxu0 0
        %842 = vmatprep.subr.bf16.mxu0 0
        %843 = vmatpush1.bf16.msra.mxu0 0
        %844 = vmatprep.subr.bf16.mxu0 0
        %845 = vmatpush1.bf16.msra.mxu0 0
        %846 = vmatprep.subr.bf16.mxu0 0
        %847 = vmatpush1.bf16.msra.mxu0 0
        %848 = vmatprep.subr.bf16.mxu0 0
        %849 = vmatpush1.bf16.msra.mxu0 0
        %850 = vmatprep.subr.bf16.mxu0 0
        %851 = vmatpush1.bf16.msra.mxu0 0
        %852 = vmatprep.subr.bf16.mxu0 0
        %853 = vmatpush1.bf16.msra.mxu0 0
        %854 = vmatprep.subr.bf16.mxu0 0
        %855 = vmatpush1.bf16.msra.mxu0 0
        %856 = vmatprep.subr.bf16.mxu0 0
        %857 = vmatpush1.bf16.msra.mxu0 0
        %858 = vmatprep.subr.bf16.mxu0 0
        %859 = vmatpush1.bf16.msra.mxu0 0
        %860 = vmatprep.mubr.bf16.mxu0 0
        %861 = vmatmul.mubr.bf16.gmra.mrb[0].mxu0 %v621
        %v862 = vpop.f32.mrb[0].mxu0
        %v863 = vadd.f32 %v582, %v862
        %v864 = vpop.f32.mrb[0].mxu0
        %v865 = vadd.f32 %v586, %v864
        %v866 = vpop.f32.mrb[0].mxu0
        %v867 = vpop.f32.mrb[0].mxu0
        %868 = vdwg.mxu0
        %869 = vmatprep.subr.bf16.mxu0 %v486
        %870 = vmatpush1.bf16.msra.mxu0 %v485
        %871 = vmatprep.subr.bf16.mxu0 %v502
        %872 = vmatpush1.bf16.msra.mxu0 %v501
        %873 = vmatprep.subr.bf16.mxu0 0
        %874 = vmatpush1.bf16.msra.mxu0 0
        %875 = vmatprep.subr.bf16.mxu0 0
        %876 = vmatpush1.bf16.msra.mxu0 0
        %877 = vmatprep.subr.bf16.mxu0 0
        %878 = vmatpush1.bf16.msra.mxu0 0
        %879 = vmatprep.subr.bf16.mxu0 0
        %880 = vmatpush1.bf16.msra.mxu0 0
        %881 = vmatprep.subr.bf16.mxu0 0
        %882 = vmatpush1.bf16.msra.mxu0 0
        %883 = vmatprep.subr.bf16.mxu0 0
        %884 = vmatpush1.bf16.msra.mxu0 0
        %885 = vmatprep.subr.bf16.mxu0 0
        %886 = vmatpush1.bf16.msra.mxu0 0
        %887 = vmatprep.subr.bf16.mxu0 0
        %888 = vmatpush1.bf16.msra.mxu0 0
        %889 = vmatprep.subr.bf16.mxu0 0
        %890 = vmatpush1.bf16.msra.mxu0 0
        %891 = vmatprep.subr.bf16.mxu0 0
        %892 = vmatpush1.bf16.msra.mxu0 0
        %893 = vmatprep.subr.bf16.mxu0 0
        %894 = vmatpush1.bf16.msra.mxu0 0
        %895 = vmatprep.subr.bf16.mxu0 0
        %896 = vmatpush1.bf16.msra.mxu0 0
        %897 = vmatprep.subr.bf16.mxu0 0
        %898 = vmatpush1.bf16.msra.mxu0 0
        %899 = vmatprep.subr.bf16.mxu0 0
        %900 = vmatpush1.bf16.msra.mxu0 0
        %901 = vmatprep.mubr.bf16.mxu0 0
        %902 = vmatmul.mubr.bf16.gmra.mrb[0].mxu0 %v621
        %v903 = vpop.f32.mrb[0].mxu0
        %v904 = vadd.f32 %v590, %v903
        %v905 = vpop.f32.mrb[0].mxu0
        %v906 = vadd.f32 %v594, %v905
        %v907 = vpop.f32.mrb[0].mxu0
        %v908 = vpop.f32.mrb[0].mxu0
        %909 = vdwg.mxu0
        %910 = vmatprep.subr.bf16.mxu0 %v488
        %911 = vmatpush1.bf16.msra.mxu0 %v487
        %912 = vmatprep.subr.bf16.mxu0 %v504
        %913 = vmatpush1.bf16.msra.mxu0 %v503
        %914 = vmatprep.subr.bf16.mxu0 0
        %915 = vmatpush1.bf16.msra.mxu0 0
        %916 = vmatprep.subr.bf16.mxu0 0
        %917 = vmatpush1.bf16.msra.mxu0 0
        %918 = vmatprep.subr.bf16.mxu0 0
        %919 = vmatpush1.bf16.msra.mxu0 0
        %920 = vmatprep.subr.bf16.mxu0 0
        %921 = vmatpush1.bf16.msra.mxu0 0
        %922 = vmatprep.subr.bf16.mxu0 0
        %923 = vmatpush1.bf16.msra.mxu0 0
        %924 = vmatprep.subr.bf16.mxu0 0
        %925 = vmatpush1.bf16.msra.mxu0 0
        %926 = vmatprep.subr.bf16.mxu0 0
        %927 = vmatpush1.bf16.msra.mxu0 0
        %928 = vmatprep.subr.bf16.mxu0 0
        %929 = vmatpush1.bf16.msra.mxu0 0
        %930 = vmatprep.subr.bf16.mxu0 0
        %931 = vmatpush1.bf16.msra.mxu0 0
        %932 = vmatprep.subr.bf16.mxu0 0
        %933 = vmatpush1.bf16.msra.mxu0 0
        %934 = vmatprep.subr.bf16.mxu0 0
        %935 = vmatpush1.bf16.msra.mxu0 0
        %936 = vmatprep.subr.bf16.mxu0 0
        %937 = vmatpush1.bf16.msra.mxu0 0
        %938 = vmatprep.subr.bf16.mxu0 0
        %939 = vmatpush1.bf16.msra.mxu0 0
        %940 = vmatprep.subr.bf16.mxu0 0
        %941 = vmatpush1.bf16.msra.mxu0 0
        %942 = vmatprep.mubr.bf16.mxu0 0
        %943 = vmatmul.mubr.bf16.gmra.mrb[0].mxu0 %v621
        %v944 = vpop.f32.mrb[0].mxu0
        %v945 = vadd.f32 %v598, %v944
        %v946 = vpop.f32.mrb[0].mxu0
        %v947 = vadd.f32 %v602, %v946
        %v948 = vpop.f32.mrb[0].mxu0
        %v949 = vpop.f32.mrb[0].mxu0
        %950 = vdwg.mxu0
        %951 = vst [vmem:[#allocation2] sm:$0xff] 0.0
        %952 = vst [vmem:[#allocation2 + $0x8] sm:$0x3] 0.0
        %953 = vst [vmem:[#allocation2 + $0x10] sm:$0xff] 0.0
        %954 = vst [vmem:[#allocation2 + $0x18] sm:$0x3] 0.0
        %955 = vst [vmem:[#allocation2 + $0x20] sm:$0xff] 0.0
        %956 = vst [vmem:[#allocation2 + $0x28] sm:$0x3] 0.0
        %957 = vst [vmem:[#allocation2 + $0x30] sm:$0xff] 0.0
        %958 = vst [vmem:[#allocation2 + $0x38] sm:$0x3] 0.0
        %959 = vst [vmem:[#allocation2 + $0x40] sm:$0xff] 0.0
        %960 = vst [vmem:[#allocation2 + $0x48] sm:$0x3] 0.0
        %961 = vst [vmem:[#allocation2 + $0x50] sm:$0xff] 0.0
        %962 = vst [vmem:[#allocation2 + $0x58] sm:$0x3] 0.0
        %963 = vst [vmem:[#allocation2 + $0x60] sm:$0xff] 0.0
        %964 = vst [vmem:[#allocation2 + $0x68] sm:$0x3] 0.0
        %965 = vst [vmem:[#allocation2 + $0x70] sm:$0xff] 0.0
        %966 = vst [vmem:[#allocation2 + $0x78] sm:$0x3] 0.0
        %967 = vst [vmem:[#allocation2 + $0x80] sm:$0xff] 0.0
        %968 = vst [vmem:[#allocation2 + $0x88] sm:$0x3] 0.0
        %969 = vst [vmem:[#allocation2 + $0x90] sm:$0xff] 0.0
        %970 = vst [vmem:[#allocation2 + $0x98] sm:$0x3] 0.0
        %v971 = vlaneseq
        %v972 = vshrl.u32 %v971, 7
        %v973 = vsub.s32 0, %v972
        %v974 = vrot.slane %v658, %v973
        %s975 = scalar_lea.vmem [#allocation2], 16
        %976 = vst [vmem:[%s975 + $0x1] sm:$0x3] %v974
        %977 = vst [vmem:[%s975 + $0x11] sm:$0x3] %v974
        %v978 = vlaneseq
        %v979 = vshrl.u32 %v978, 7
        %v980 = vsub.s32 0, %v979
        %v981 = vrot.slane %v660, %v980
        %982 = vst [vmem:[%s975 + $0x3] sm:$0x3] %v981
        %983 = vst [vmem:[%s975 + $0x13] sm:$0x3] %v981
        %v984 = vlaneseq
        %v985 = vshrl.u32 %v984, 7
        %v986 = vsub.s32 0, %v985
        %v987 = vrot.slane %v699, %v986
        %988 = vst [vmem:[%s975 + $0x5] sm:$0x3] %v987
        %989 = vst [vmem:[%s975 + $0x15] sm:$0x3] %v987
        %v990 = vlaneseq
        %v991 = vshrl.u32 %v990, 7
        %v992 = vsub.s32 0, %v991
        %v993 = vrot.slane %v701, %v992
        %994 = vst [vmem:[%s975 + $0x7] sm:$0x3] %v993
        %995 = vst [vmem:[%s975 + $0x17] sm:$0x3] %v993
        %v996 = vlaneseq
        %v997 = vshrl.u32 %v996, 7
        %v998 = vsub.s32 0, %v997
        %v999 = vrot.slane %v740, %v998
        %s1000 = scalar_lea.vmem [#allocation2], 48
        %1001 = vst [vmem:[%s1000 + $0x1] sm:$0x3] %v999
        %1002 = vst [vmem:[%s1000 + $0x11] sm:$0x3] %v999
        %v1003 = vlaneseq
        %v1004 = vshrl.u32 %v1003, 7
        %v1005 = vsub.s32 0, %v1004
        %v1006 = vrot.slane %v742, %v1005
        %1007 = vst [vmem:[%s1000 + $0x3] sm:$0x3] %v1006
        %1008 = vst [vmem:[%s1000 + $0x13] sm:$0x3] %v1006
        %v1009 = vlaneseq
        %v1010 = vshrl.u32 %v1009, 7
        %v1011 = vsub.s32 0, %v1010
        %v1012 = vrot.slane %v781, %v1011
        %1013 = vst [vmem:[%s1000 + $0x5] sm:$0x3] %v1012
        %1014 = vst [vmem:[%s1000 + $0x15] sm:$0x3] %v1012
        %v1015 = vlaneseq
        %v1016 = vshrl.u32 %v1015, 7
        %v1017 = vsub.s32 0, %v1016
        %v1018 = vrot.slane %v783, %v1017
        %1019 = vst [vmem:[%s1000 + $0x7] sm:$0x3] %v1018
        %1020 = vst [vmem:[%s1000 + $0x17] sm:$0x3] %v1018
        %v1021 = vlaneseq
        %v1022 = vshrl.u32 %v1021, 7
        %v1023 = vsub.s32 0, %v1022
        %v1024 = vrot.slane %v822, %v1023
        %s1025 = scalar_lea.vmem [#allocation2], 80
        %1026 = vst [vmem:[%s1025 + $0x1] sm:$0x3] %v1024
        %1027 = vst [vmem:[%s1025 + $0x11] sm:$0x3] %v1024
        %v1028 = vlaneseq
        %v1029 = vshrl.u32 %v1028, 7
        %v1030 = vsub.s32 0, %v1029
        %v1031 = vrot.slane %v824, %v1030
        %1032 = vst [vmem:[%s1025 + $0x3] sm:$0x3] %v1031
        %1033 = vst [vmem:[%s1025 + $0x13] sm:$0x3] %v1031
        %v1034 = vlaneseq
        %v1035 = vshrl.u32 %v1034, 7
        %v1036 = vsub.s32 0, %v1035
        %v1037 = vrot.slane %v863, %v1036
        %1038 = vst [vmem:[%s1025 + $0x5] sm:$0x3] %v1037
        %1039 = vst [vmem:[%s1025 + $0x15] sm:$0x3] %v1037
        %v1040 = vlaneseq
        %v1041 = vshrl.u32 %v1040, 7
        %v1042 = vsub.s32 0, %v1041
        %v1043 = vrot.slane %v865, %v1042
        %1044 = vst [vmem:[%s1025 + $0x7] sm:$0x3] %v1043
        %1045 = vst [vmem:[%s1025 + $0x17] sm:$0x3] %v1043
        %v1046 = vlaneseq
        %v1047 = vshrl.u32 %v1046, 7
        %v1048 = vsub.s32 0, %v1047
        %v1049 = vrot.slane %v904, %v1048
        %s1050 = scalar_lea.vmem [#allocation2], 112
        %1051 = vst [vmem:[%s1050 + $0x1] sm:$0x3] %v1049
        %1052 = vst [vmem:[%s1050 + $0x11] sm:$0x3] %v1049
        %v1053 = vlaneseq
        %v1054 = vshrl.u32 %v1053, 7
        %v1055 = vsub.s32 0, %v1054
        %v1056 = vrot.slane %v906, %v1055
        %1057 = vst [vmem:[%s1050 + $0x3] sm:$0x3] %v1056
        %1058 = vst [vmem:[%s1050 + $0x13] sm:$0x3] %v1056
        %v1059 = vlaneseq
        %v1060 = vshrl.u32 %v1059, 7
        %v1061 = vsub.s32 0, %v1060
        %v1062 = vrot.slane %v945, %v1061
        %1063 = vst [vmem:[%s1050 + $0x5] sm:$0x3] %v1062
        %1064 = vst [vmem:[%s1050 + $0x15] sm:$0x3] %v1062
        %v1065 = vlaneseq
        %v1066 = vshrl.u32 %v1065, 7
        %v1067 = vsub.s32 0, %v1066
        %v1068 = vrot.slane %v947, %v1067
        %1069 = vst [vmem:[%s1050 + $0x7] sm:$0x3] %v1068
        %1070 = vst [vmem:[%s1050 + $0x17] sm:$0x3] %v1068
        %v1071 = vld [vmem:[#allocation2] sm:$0xff]
        %v1072 = vld [vmem:[#allocation2 + $0x10] sm:$0xff]
        %v1073 = vld [vmem:[#allocation2 + $0x20] sm:$0xff]
        %v1074 = vld [vmem:[#allocation2 + $0x30] sm:$0xff]
        %v1075 = vld [vmem:[#allocation2 + $0x40] sm:$0xff]
        %v1076 = vld [vmem:[#allocation2 + $0x50] sm:$0xff]
        %v1077 = vld [vmem:[#allocation2 + $0x60] sm:$0xff]
        %v1078 = vld [vmem:[#allocation2 + $0x70] sm:$0xff]
        %v1079 = vld [vmem:[#allocation2 + $0x80] sm:$0xff]
        %v1080 = vld [vmem:[#allocation2 + $0x90] sm:$0xff]
        %v1081 = vld [vmem:[#allocation2 + $0x1] sm:$0xff]
        %v1082 = vld [vmem:[#allocation2 + $0x11] sm:$0xff]
        %v1083 = vld [vmem:[#allocation2 + $0x21] sm:$0xff]
        %v1084 = vld [vmem:[#allocation2 + $0x31] sm:$0xff]
        %v1085 = vld [vmem:[#allocation2 + $0x41] sm:$0xff]
        %v1086 = vld [vmem:[#allocation2 + $0x51] sm:$0xff]
        %v1087 = vld [vmem:[#allocation2 + $0x61] sm:$0xff]
        %v1088 = vld [vmem:[#allocation2 + $0x71] sm:$0xff]
        %v1089 = vld [vmem:[#allocation2 + $0x81] sm:$0xff]
        %v1090 = vld [vmem:[#allocation2 + $0x91] sm:$0xff]
        %v1091 = vld [vmem:[#allocation2 + $0x2] sm:$0xff]
        %v1092 = vld [vmem:[#allocation2 + $0x12] sm:$0xff]
        %v1093 = vld [vmem:[#allocation2 + $0x22] sm:$0xff]
        %v1094 = vld [vmem:[#allocation2 + $0x32] sm:$0xff]
        %v1095 = vld [vmem:[#allocation2 + $0x42] sm:$0xff]
        %v1096 = vld [vmem:[#allocation2 + $0x52] sm:$0xff]
        %v1097 = vld [vmem:[#allocation2 + $0x62] sm:$0xff]
        %v1098 = vld [vmem:[#allocation2 + $0x72] sm:$0xff]
        %v1099 = vld [vmem:[#allocation2 + $0x82] sm:$0xff]
        %v1100 = vld [vmem:[#allocation2 + $0x92] sm:$0xff]
        %v1101 = vpack.c.bf16 %v1072, %v1071
        %v1102 = vpack.c.bf16 %v1082, %v1081
        %v1103 = vpack.c.bf16 %v1092, %v1091
        %v1104 = vpack.c.bf16 %v1074, %v1073
        %v1105 = vpack.c.bf16 %v1084, %v1083
        %v1106 = vpack.c.bf16 %v1094, %v1093
        %v1107 = vpack.c.bf16 %v1076, %v1075
        %v1108 = vpack.c.bf16 %v1086, %v1085
        %v1109 = vpack.c.bf16 %v1096, %v1095
        %v1110 = vpack.c.bf16 %v1078, %v1077
        %v1111 = vpack.c.bf16 %v1088, %v1087
        %v1112 = vpack.c.bf16 %v1098, %v1097
        %v1113 = vld [vmem:[%s3] sm:$0xf]
        %v1114 = vld [vmem:[%s3 + $0x4] sm:$0xf]
        %v1115 = vld [vmem:[%s3 + $0x8] sm:$0xf]
        %v1116 = vld [vmem:[%s3 + $0xc] sm:$0xf]
        %v1117 = vld [vmem:[%s3 + $0x10] sm:$0xf]
        %v1118 = vld [vmem:[%s3 + $0x14] sm:$0xf]
        %v1119 = vld [vmem:[%s3 + $0x18] sm:$0xf]
        %v1120 = vld [vmem:[%s3 + $0x1c] sm:$0xf]
        %v1121 = vld [vmem:[%s3 + $0x20] sm:$0xf]
        %v1122 = vld [vmem:[%s3 + $0x24] sm:$0xf]
        %v1123 = vld [vmem:[%s3 + $0x28] sm:$0xf]
        %v1124 = vld [vmem:[%s3 + $0x2c] sm:$0xf]
        %v1125 = vld [vmem:[%s3 + $0x30] sm:$0xf]
        %v1126 = vld [vmem:[%s3 + $0x34] sm:$0xf]
        %v1127 = vld [vmem:[%s3 + $0x38] sm:$0xf]
        %v1128 = vld [vmem:[%s3 + $0x3c] sm:$0xf]
        %v1129 = vld [vmem:[%s3 + $0x40] sm:$0xf]
        %v1130 = vld [vmem:[%s3 + $0x44] sm:$0xf]
        %v1131 = vld [vmem:[%s3 + $0x48] sm:$0xf]
        %v1132 = vld [vmem:[%s3 + $0x4c] sm:$0xf]
        %v1133 = vld [vmem:[%s3 + $0x50] sm:$0xf]
        %v1134 = vld [vmem:[%s3 + $0x54] sm:$0xf]
        %v1135 = vld [vmem:[%s3 + $0x58] sm:$0xf]
        %v1136 = vld [vmem:[%s3 + $0x5c] sm:$0xf]
        %v1137 = vld [vmem:[%s3 + $0x60] sm:$0xf]
        %v1138 = vld [vmem:[%s3 + $0x64] sm:$0xf]
        %v1139 = vld [vmem:[%s3 + $0x68] sm:$0xf]
        %v1140 = vld [vmem:[%s3 + $0x6c] sm:$0xf]
        %v1141 = vld [vmem:[%s3 + $0x70] sm:$0xf]
        %v1142 = vld [vmem:[%s3 + $0x74] sm:$0xf]
        %v1143 = vld [vmem:[%s3 + $0x78] sm:$0xf]
        %v1144 = vld [vmem:[%s3 + $0x7c] sm:$0xf]
        %v1145 = vld [vmem:[%s3 + $0x80] sm:$0xf]
        %v1146 = vld [vmem:[%s3 + $0x84] sm:$0xf]
        %v1147 = vld [vmem:[%s3 + $0x88] sm:$0xf]
        %v1148 = vld [vmem:[%s3 + $0x8c] sm:$0xf]
        %v1149 = vld [vmem:[%s3 + $0x90] sm:$0xf]
        %v1150 = vld [vmem:[%s3 + $0x94] sm:$0xf]
        %v1151 = vld [vmem:[%s3 + $0x98] sm:$0xf]
        %v1152 = vld [vmem:[%s3 + $0x9c] sm:$0xf]
        %v1153 = vld [vmem:[%s3 + $0xa0] sm:$0xf]
        %v1154 = vld [vmem:[%s3 + $0xa4] sm:$0xf]
        %v1155 = vld [vmem:[%s3 + $0xa8] sm:$0xf]
        %v1156 = vld [vmem:[%s3 + $0xac] sm:$0xf]
        %v1157 = vld [vmem:[%s3 + $0xb0] sm:$0xf]
        %v1158 = vld [vmem:[%s3 + $0xb4] sm:$0xf]
        %v1159 = vld [vmem:[%s3 + $0xb8] sm:$0xf]
        %v1160 = vld [vmem:[%s3 + $0xbc] sm:$0xf]
        %v1161 = vpack.c.bf16 %v1073, %v1072
        %v1162 = vpack.c.bf16 %v1083, %v1082
        %v1163 = vpack.c.bf16 %v1093, %v1092
        %v1164 = vpack.c.bf16 %v1075, %v1074
        %v1165 = vpack.c.bf16 %v1085, %v1084
        %v1166 = vpack.c.bf16 %v1095, %v1094
        %v1167 = vpack.c.bf16 %v1077, %v1076
        %v1168 = vpack.c.bf16 %v1087, %v1086
        %v1169 = vpack.c.bf16 %v1097, %v1096
        %v1170 = vpack.c.bf16 %v1079, %v1078
        %v1171 = vpack.c.bf16 %v1089, %v1088
        %v1172 = vpack.c.bf16 %v1099, %v1098
        %s1173 = scalar_lea.vmem %s3, 192
        %v1174 = vld [vmem:[%s1173] sm:$0xf]
        %v1175 = vld [vmem:[%s1173 + $0x4] sm:$0xf]
        %v1176 = vld [vmem:[%s1173 + $0x8] sm:$0xf]
        %v1177 = vld [vmem:[%s1173 + $0xc] sm:$0xf]
        %v1178 = vld [vmem:[%s1173 + $0x10] sm:$0xf]
        %v1179 = vld [vmem:[%s1173 + $0x14] sm:$0xf]
        %v1180 = vld [vmem:[%s1173 + $0x18] sm:$0xf]
        %v1181 = vld [vmem:[%s1173 + $0x1c] sm:$0xf]
        %v1182 = vld [vmem:[%s1173 + $0x20] sm:$0xf]
        %v1183 = vld [vmem:[%s1173 + $0x24] sm:$0xf]
        %v1184 = vld [vmem:[%s1173 + $0x28] sm:$0xf]
        %v1185 = vld [vmem:[%s1173 + $0x2c] sm:$0xf]
        %v1186 = vld [vmem:[%s1173 + $0x30] sm:$0xf]
        %v1187 = vld [vmem:[%s1173 + $0x34] sm:$0xf]
        %v1188 = vld [vmem:[%s1173 + $0x38] sm:$0xf]
        %v1189 = vld [vmem:[%s1173 + $0x3c] sm:$0xf]
        %v1190 = vld [vmem:[%s1173 + $0x40] sm:$0xf]
        %v1191 = vld [vmem:[%s1173 + $0x44] sm:$0xf]
        %v1192 = vld [vmem:[%s1173 + $0x48] sm:$0xf]
        %v1193 = vld [vmem:[%s1173 + $0x4c] sm:$0xf]
        %v1194 = vld [vmem:[%s1173 + $0x50] sm:$0xf]
        %v1195 = vld [vmem:[%s1173 + $0x54] sm:$0xf]
        %v1196 = vld [vmem:[%s1173 + $0x58] sm:$0xf]
        %v1197 = vld [vmem:[%s1173 + $0x5c] sm:$0xf]
        %v1198 = vld [vmem:[%s1173 + $0x60] sm:$0xf]
        %v1199 = vld [vmem:[%s1173 + $0x64] sm:$0xf]
        %v1200 = vld [vmem:[%s1173 + $0x68] sm:$0xf]
        %v1201 = vld [vmem:[%s1173 + $0x6c] sm:$0xf]
        %v1202 = vld [vmem:[%s1173 + $0x70] sm:$0xf]
        %v1203 = vld [vmem:[%s1173 + $0x74] sm:$0xf]
        %v1204 = vld [vmem:[%s1173 + $0x78] sm:$0xf]
        %v1205 = vld [vmem:[%s1173 + $0x7c] sm:$0xf]
        %v1206 = vld [vmem:[%s1173 + $0x80] sm:$0xf]
        %v1207 = vld [vmem:[%s1173 + $0x84] sm:$0xf]
        %v1208 = vld [vmem:[%s1173 + $0x88] sm:$0xf]
        %v1209 = vld [vmem:[%s1173 + $0x8c] sm:$0xf]
        %v1210 = vld [vmem:[%s1173 + $0x90] sm:$0xf]
        %v1211 = vld [vmem:[%s1173 + $0x94] sm:$0xf]
        %v1212 = vld [vmem:[%s1173 + $0x98] sm:$0xf]
        %v1213 = vld [vmem:[%s1173 + $0x9c] sm:$0xf]
        %v1214 = vld [vmem:[%s1173 + $0xa0] sm:$0xf]
        %v1215 = vld [vmem:[%s1173 + $0xa4] sm:$0xf]
        %v1216 = vld [vmem:[%s1173 + $0xa8] sm:$0xf]
        %v1217 = vld [vmem:[%s1173 + $0xac] sm:$0xf]
        %v1218 = vld [vmem:[%s1173 + $0xb0] sm:$0xf]
        %v1219 = vld [vmem:[%s1173 + $0xb4] sm:$0xf]
        %v1220 = vld [vmem:[%s1173 + $0xb8] sm:$0xf]
        %v1221 = vld [vmem:[%s1173 + $0xbc] sm:$0xf]
        %v1270 = vunpack.c.l.b16 %v1174
        %v1271 = vunpack.c.l.b16 %v1175
        %v1272 = vunpack.c.l.b16 %v1176
        %v1273 = vunpack.c.l.b16 %v1177
        %v1274 = vunpack.c.l.b16 %v1178
        %v1275 = vunpack.c.l.b16 %v1179
        %v1276 = vunpack.c.l.b16 %v1180
        %v1277 = vunpack.c.l.b16 %v1181
        %v1278 = vunpack.c.l.b16 %v1182
        %v1279 = vunpack.c.l.b16 %v1183
        %v1280 = vunpack.c.l.b16 %v1184
        %v1281 = vunpack.c.l.b16 %v1185
        %v1282 = vunpack.c.l.b16 %v1186
        %v1283 = vunpack.c.l.b16 %v1187
        %v1284 = vunpack.c.l.b16 %v1188
        %v1285 = vunpack.c.l.b16 %v1189
        %v1286 = vunpack.c.l.b16 %v1190
        %v1287 = vunpack.c.l.b16 %v1191
        %v1288 = vunpack.c.l.b16 %v1192
        %v1289 = vunpack.c.l.b16 %v1193
        %v1290 = vunpack.c.l.b16 %v1194
        %v1291 = vunpack.c.l.b16 %v1195
        %v1292 = vunpack.c.l.b16 %v1196
        %v1293 = vunpack.c.l.b16 %v1197
        %v1294 = vunpack.c.l.b16 %v1198
        %v1295 = vunpack.c.l.b16 %v1199
        %v1296 = vunpack.c.l.b16 %v1200
        %v1297 = vunpack.c.l.b16 %v1201
        %v1298 = vunpack.c.l.b16 %v1202
        %v1299 = vunpack.c.l.b16 %v1203
        %v1300 = vunpack.c.l.b16 %v1204
        %v1301 = vunpack.c.l.b16 %v1205
        %v1302 = vunpack.c.l.b16 %v1206
        %v1303 = vunpack.c.l.b16 %v1207
        %v1304 = vunpack.c.l.b16 %v1208
        %v1305 = vunpack.c.l.b16 %v1209
        %v1306 = vunpack.c.l.b16 %v1210
        %v1307 = vunpack.c.l.b16 %v1211
        %v1308 = vunpack.c.l.b16 %v1212
        %v1309 = vunpack.c.l.b16 %v1213
        %v1310 = vunpack.c.l.b16 %v1214
        %v1311 = vunpack.c.l.b16 %v1215
        %v1312 = vunpack.c.l.b16 %v1216
        %v1313 = vunpack.c.l.b16 %v1217
        %v1314 = vunpack.c.l.b16 %v1218
        %v1315 = vunpack.c.l.b16 %v1219
        %v1316 = vunpack.c.l.b16 %v1220
        %v1317 = vunpack.c.l.b16 %v1221
        %v1318 = vpack.c.b16 %v1271, %v1270
        %v1319 = vpack.c.b16 %v1273, %v1272
        %v1320 = vpack.c.b16 %v1275, %v1274
        %v1321 = vpack.c.b16 %v1277, %v1276
        %v1322 = vpack.c.b16 %v1279, %v1278
        %v1323 = vpack.c.b16 %v1281, %v1280
        %v1324 = vpack.c.b16 %v1283, %v1282
        %v1325 = vpack.c.b16 %v1285, %v1284
        %v1326 = vpack.c.b16 %v1287, %v1286
        %v1327 = vpack.c.b16 %v1289, %v1288
        %v1328 = vpack.c.b16 %v1291, %v1290
        %v1329 = vpack.c.b16 %v1293, %v1292
        %v1330 = vpack.c.b16 %v1295, %v1294
        %v1331 = vpack.c.b16 %v1297, %v1296
        %v1332 = vpack.c.b16 %v1299, %v1298
        %v1333 = vpack.c.b16 %v1301, %v1300
        %v1334 = vpack.c.b16 %v1303, %v1302
        %v1335 = vpack.c.b16 %v1305, %v1304
        %v1336 = vpack.c.b16 %v1307, %v1306
        %v1337 = vpack.c.b16 %v1309, %v1308
        %v1338 = vpack.c.b16 %v1311, %v1310
        %v1339 = vpack.c.b16 %v1313, %v1312
        %v1340 = vpack.c.b16 %v1315, %v1314
        %v1341 = vpack.c.b16 %v1317, %v1316
        %1366 = vmatprep.subr.bf16.mxu0 0
        %1367 = vmatpush1.bf16.msra.mxu0 %v1318
        %1368 = vmatprep.subr.bf16.mxu0 0
        %1369 = vmatpush1.bf16.msra.mxu0 %v1319
        %1370 = vmatprep.subr.bf16.mxu0 0
        %1371 = vmatpush1.bf16.msra.mxu0 %v1320
        %1372 = vmatprep.subr.bf16.mxu0 0
        %1373 = vmatpush1.bf16.msra.mxu0 %v1321
        %1374 = vmatprep.subr.bf16.mxu0 0
        %1375 = vmatpush1.bf16.msra.mxu0 %v1322
        %1376 = vmatprep.subr.bf16.mxu0 0
        %1377 = vmatpush1.bf16.msra.mxu0 %v1323
        %1378 = vmatprep.subr.bf16.mxu0 0
        %1379 = vmatpush1.bf16.msra.mxu0 %v1324
        %1380 = vmatprep.subr.bf16.mxu0 0
        %1381 = vmatpush1.bf16.msra.mxu0 %v1325
        %1382 = vmatprep.subr.bf16.mxu0 0
        %1383 = vmatpush1.bf16.msra.mxu0 %v1326
        %1384 = vmatprep.subr.bf16.mxu0 0
        %1385 = vmatpush1.bf16.msra.mxu0 %v1327
        %1386 = vmatprep.subr.bf16.mxu0 0
        %1387 = vmatpush1.bf16.msra.mxu0 %v1328
        %1388 = vmatprep.subr.bf16.mxu0 0
        %1389 = vmatpush1.bf16.msra.mxu0 %v1329
        %1390 = vmatprep.subr.bf16.mxu0 0
        %1391 = vmatpush1.bf16.msra.mxu0 %v1330
        %1392 = vmatprep.subr.bf16.mxu0 0
        %1393 = vmatpush1.bf16.msra.mxu0 %v1331
        %1394 = vmatprep.subr.bf16.mxu0 0
        %1395 = vmatpush1.bf16.msra.mxu0 %v1332
        %1396 = vmatprep.subr.bf16.mxu0 0
        %1397 = vmatpush1.bf16.msra.mxu0 %v1333
        %1398 = vmatprep.mubr.bf16.mxu0 %v1162
        %1399 = vmatmul.mubr.bf16.gmra.mrb[0].mxu0 %v1161
        %v1400 = vpop.f32.mrb[0].mxu0
        %v1401 = vadd.f32 0.0, %v1400
        %v1402 = vpop.f32.mrb[0].mxu0
        %v1403 = vpop.f32.mrb[0].mxu0
        %v1404 = vadd.f32 0.0, %v1403
        %v1405 = vpop.f32.mrb[0].mxu0
        %1406 = vmatprep.mubr.bf16.mxu0 %v1165
        %1407 = vmatmul.mubr.bf16.gmra.mrb[0].mxu0 %v1164
        %v1408 = vpop.f32.mrb[0].mxu0
        %v1409 = vadd.f32 0.0, %v1408
        %v1410 = vpop.f32.mrb[0].mxu0
        %v1411 = vpop.f32.mrb[0].mxu0
        %v1412 = vadd.f32 0.0, %v1411
        %v1413 = vpop.f32.mrb[0].mxu0
        %1414 = vmatprep.mubr.bf16.mxu0 %v1168
        %1415 = vmatmul.mubr.bf16.gmra.mrb[0].mxu0 %v1167
        %v1416 = vpop.f32.mrb[0].mxu0
        %v1417 = vadd.f32 0.0, %v1416
        %v1418 = vpop.f32.mrb[0].mxu0
        %v1419 = vpop.f32.mrb[0].mxu0
        %v1420 = vadd.f32 0.0, %v1419
        %v1421 = vpop.f32.mrb[0].mxu0
        %1422 = vmatprep.mubr.bf16.mxu0 %v1171
        %1423 = vmatmul.mubr.bf16.gmra.mrb[0].mxu0 %v1170
        %v1424 = vpop.f32.mrb[0].mxu0
        %v1425 = vadd.f32 0.0, %v1424
        %v1426 = vpop.f32.mrb[0].mxu0
        %v1427 = vpop.f32.mrb[0].mxu0
        %v1428 = vadd.f32 0.0, %v1427
        %v1429 = vpop.f32.mrb[0].mxu0
        %1430 = vdwg.mxu0
        %1431 = vmatprep.subr.bf16.mxu0 0
        %1432 = vmatpush1.bf16.msra.mxu0 %v1334
        %1433 = vmatprep.subr.bf16.mxu0 0
        %1434 = vmatpush1.bf16.msra.mxu0 %v1335
        %1435 = vmatprep.subr.bf16.mxu0 0
        %1436 = vmatpush1.bf16.msra.mxu0 %v1336
        %1437 = vmatprep.subr.bf16.mxu0 0
        %1438 = vmatpush1.bf16.msra.mxu0 %v1337
        %1439 = vmatprep.subr.bf16.mxu0 0
        %1440 = vmatpush1.bf16.msra.mxu0 %v1338
        %1441 = vmatprep.subr.bf16.mxu0 0
        %1442 = vmatpush1.bf16.msra.mxu0 %v1339
        %1443 = vmatprep.subr.bf16.mxu0 0
        %1444 = vmatpush1.bf16.msra.mxu0 %v1340
        %1445 = vmatprep.subr.bf16.mxu0 0
        %1446 = vmatpush1.bf16.msra.mxu0 %v1341
        %1447 = vmatprep.subr.bf16.mxu0 0
        %1448 = vmatpush1.bf16.msra.mxu0 0
        %1449 = vmatprep.subr.bf16.mxu0 0
        %1450 = vmatpush1.bf16.msra.mxu0 0
        %1451 = vmatprep.subr.bf16.mxu0 0
        %1452 = vmatpush1.bf16.msra.mxu0 0
        %1453 = vmatprep.subr.bf16.mxu0 0
        %1454 = vmatpush1.bf16.msra.mxu0 0
        %1455 = vmatprep.subr.bf16.mxu0 0
        %1456 = vmatpush1.bf16.msra.mxu0 0
        %1457 = vmatprep.subr.bf16.mxu0 0
        %1458 = vmatpush1.bf16.msra.mxu0 0
        %1459 = vmatprep.subr.bf16.mxu0 0
        %1460 = vmatpush1.bf16.msra.mxu0 0
        %1461 = vmatprep.subr.bf16.mxu0 0
        %1462 = vmatpush1.bf16.msra.mxu0 0
        %1463 = vmatprep.mubr.bf16.mxu0 0
        %1464 = vmatmul.mubr.bf16.gmra.mrb[0].mxu0 %v1163
        %v1465 = vpop.f32.mrb[0].mxu0
        %v1466 = vadd.f32 %v1401, %v1465
        %v1467 = vpop.f32.mrb[0].mxu0
        %v1468 = vpop.f32.mrb[0].mxu0
        %v1469 = vadd.f32 %v1404, %v1468
        %v1470 = vpop.f32.mrb[0].mxu0
        %1471 = vmatprep.mubr.bf16.mxu0 0
        %1472 = vmatmul.mubr.bf16.gmra.mrb[0].mxu0 %v1166
        %v1473 = vpop.f32.mrb[0].mxu0
        %v1474 = vadd.f32 %v1409, %v1473
        %v1475 = vpop.f32.mrb[0].mxu0
        %v1476 = vpop.f32.mrb[0].mxu0
        %v1477 = vadd.f32 %v1412, %v1476
        %v1478 = vpop.f32.mrb[0].mxu0
        %1479 = vmatprep.mubr.bf16.mxu0 0
        %1480 = vmatmul.mubr.bf16.gmra.mrb[0].mxu0 %v1169
        %v1481 = vpop.f32.mrb[0].mxu0
        %v1482 = vadd.f32 %v1417, %v1481
        %v1483 = vpop.f32.mrb[0].mxu0
        %v1484 = vpop.f32.mrb[0].mxu0
        %v1485 = vadd.f32 %v1420, %v1484
        %v1486 = vpop.f32.mrb[0].mxu0
        %1487 = vmatprep.mubr.bf16.mxu0 0
        %1488 = vmatmul.mubr.bf16.gmra.mrb[0].mxu0 %v1172
        %v1489 = vpop.f32.mrb[0].mxu0
        %v1490 = vadd.f32 %v1425, %v1489
        %v1491 = vpop.f32.mrb[0].mxu0
        %v1492 = vpop.f32.mrb[0].mxu0
        %v1493 = vadd.f32 %v1428, %v1492
        %v1494 = vpop.f32.mrb[0].mxu0
        %1495 = vdwg.mxu0
        %v1544 = vunpack.c.l.b16 %v1113
        %v1545 = vunpack.c.l.b16 %v1114
        %v1546 = vunpack.c.l.b16 %v1115
        %v1547 = vunpack.c.l.b16 %v1116
        %v1548 = vunpack.c.l.b16 %v1117
        %v1549 = vunpack.c.l.b16 %v1118
        %v1550 = vunpack.c.l.b16 %v1119
        %v1551 = vunpack.c.l.b16 %v1120
        %v1552 = vunpack.c.l.b16 %v1121
        %v1553 = vunpack.c.l.b16 %v1122
        %v1554 = vunpack.c.l.b16 %v1123
        %v1555 = vunpack.c.l.b16 %v1124
        %v1556 = vunpack.c.l.b16 %v1125
        %v1557 = vunpack.c.l.b16 %v1126
        %v1558 = vunpack.c.l.b16 %v1127
        %v1559 = vunpack.c.l.b16 %v1128
        %v1560 = vunpack.c.l.b16 %v1129
        %v1561 = vunpack.c.l.b16 %v1130
        %v1562 = vunpack.c.l.b16 %v1131
        %v1563 = vunpack.c.l.b16 %v1132
        %v1564 = vunpack.c.l.b16 %v1133
        %v1565 = vunpack.c.l.b16 %v1134
        %v1566 = vunpack.c.l.b16 %v1135
        %v1567 = vunpack.c.l.b16 %v1136
        %v1568 = vunpack.c.l.b16 %v1137
        %v1569 = vunpack.c.l.b16 %v1138
        %v1570 = vunpack.c.l.b16 %v1139
        %v1571 = vunpack.c.l.b16 %v1140
        %v1572 = vunpack.c.l.b16 %v1141
        %v1573 = vunpack.c.l.b16 %v1142
        %v1574 = vunpack.c.l.b16 %v1143
        %v1575 = vunpack.c.l.b16 %v1144
        %v1576 = vunpack.c.l.b16 %v1145
        %v1577 = vunpack.c.l.b16 %v1146
        %v1578 = vunpack.c.l.b16 %v1147
        %v1579 = vunpack.c.l.b16 %v1148
        %v1580 = vunpack.c.l.b16 %v1149
        %v1581 = vunpack.c.l.b16 %v1150
        %v1582 = vunpack.c.l.b16 %v1151
        %v1583 = vunpack.c.l.b16 %v1152
        %v1584 = vunpack.c.l.b16 %v1153
        %v1585 = vunpack.c.l.b16 %v1154
        %v1586 = vunpack.c.l.b16 %v1155
        %v1587 = vunpack.c.l.b16 %v1156
        %v1588 = vunpack.c.l.b16 %v1157
        %v1589 = vunpack.c.l.b16 %v1158
        %v1590 = vunpack.c.l.b16 %v1159
        %v1591 = vunpack.c.l.b16 %v1160
        %v1592 = vpack.c.b16 %v1545, %v1544
        %v1593 = vpack.c.b16 %v1547, %v1546
        %v1594 = vpack.c.b16 %v1549, %v1548
        %v1595 = vpack.c.b16 %v1551, %v1550
        %v1596 = vpack.c.b16 %v1553, %v1552
        %v1597 = vpack.c.b16 %v1555, %v1554
        %v1598 = vpack.c.b16 %v1557, %v1556
        %v1599 = vpack.c.b16 %v1559, %v1558
        %v1600 = vpack.c.b16 %v1561, %v1560
        %v1601 = vpack.c.b16 %v1563, %v1562
        %v1602 = vpack.c.b16 %v1565, %v1564
        %v1603 = vpack.c.b16 %v1567, %v1566
        %v1604 = vpack.c.b16 %v1569, %v1568
        %v1605 = vpack.c.b16 %v1571, %v1570
        %v1606 = vpack.c.b16 %v1573, %v1572
        %v1607 = vpack.c.b16 %v1575, %v1574
        %v1608 = vpack.c.b16 %v1577, %v1576
        %v1609 = vpack.c.b16 %v1579, %v1578
        %v1610 = vpack.c.b16 %v1581, %v1580
        %v1611 = vpack.c.b16 %v1583, %v1582
        %v1612 = vpack.c.b16 %v1585, %v1584
        %v1613 = vpack.c.b16 %v1587, %v1586
        %v1614 = vpack.c.b16 %v1589, %v1588
        %v1615 = vpack.c.b16 %v1591, %v1590
        %1640 = vmatprep.subr.bf16.mxu0 0
        %1641 = vmatpush1.bf16.msra.mxu0 %v1592
        %1642 = vmatprep.subr.bf16.mxu0 0
        %1643 = vmatpush1.bf16.msra.mxu0 %v1593
        %1644 = vmatprep.subr.bf16.mxu0 0
        %1645 = vmatpush1.bf16.msra.mxu0 %v1594
        %1646 = vmatprep.subr.bf16.mxu0 0
        %1647 = vmatpush1.bf16.msra.mxu0 %v1595
        %1648 = vmatprep.subr.bf16.mxu0 0
        %1649 = vmatpush1.bf16.msra.mxu0 %v1596
        %1650 = vmatprep.subr.bf16.mxu0 0
        %1651 = vmatpush1.bf16.msra.mxu0 %v1597
        %1652 = vmatprep.subr.bf16.mxu0 0
        %1653 = vmatpush1.bf16.msra.mxu0 %v1598
        %1654 = vmatprep.subr.bf16.mxu0 0
        %1655 = vmatpush1.bf16.msra.mxu0 %v1599
        %1656 = vmatprep.subr.bf16.mxu0 0
        %1657 = vmatpush1.bf16.msra.mxu0 %v1600
        %1658 = vmatprep.subr.bf16.mxu0 0
        %1659 = vmatpush1.bf16.msra.mxu0 %v1601
        %1660 = vmatprep.subr.bf16.mxu0 0
        %1661 = vmatpush1.bf16.msra.mxu0 %v1602
        %1662 = vmatprep.subr.bf16.mxu0 0
        %1663 = vmatpush1.bf16.msra.mxu0 %v1603
        %1664 = vmatprep.subr.bf16.mxu0 0
        %1665 = vmatpush1.bf16.msra.mxu0 %v1604
        %1666 = vmatprep.subr.bf16.mxu0 0
        %1667 = vmatpush1.bf16.msra.mxu0 %v1605
        %1668 = vmatprep.subr.bf16.mxu0 0
        %1669 = vmatpush1.bf16.msra.mxu0 %v1606
        %1670 = vmatprep.subr.bf16.mxu0 0
        %1671 = vmatpush1.bf16.msra.mxu0 %v1607
        %1672 = vmatprep.mubr.bf16.mxu0 %v1102
        %1673 = vmatmul.mubr.bf16.gmra.mrb[0].mxu0 %v1101
        %v1674 = vpop.f32.mrb[0].mxu0
        %v1675 = vadd.f32 %v1466, %v1674
        %v1676 = vpop.f32.mrb[0].mxu0
        %v1677 = vpop.f32.mrb[0].mxu0
        %v1678 = vadd.f32 %v1469, %v1677
        %v1679 = vpop.f32.mrb[0].mxu0
        %1680 = vmatprep.mubr.bf16.mxu0 %v1105
        %1681 = vmatmul.mubr.bf16.gmra.mrb[0].mxu0 %v1104
        %v1682 = vpop.f32.mrb[0].mxu0
        %v1683 = vadd.f32 %v1474, %v1682
        %v1684 = vpop.f32.mrb[0].mxu0
        %v1685 = vpop.f32.mrb[0].mxu0
        %v1686 = vadd.f32 %v1477, %v1685
        %v1687 = vpop.f32.mrb[0].mxu0
        %1688 = vmatprep.mubr.bf16.mxu0 %v1108
        %1689 = vmatmul.mubr.bf16.gmra.mrb[0].mxu0 %v1107
        %v1690 = vpop.f32.mrb[0].mxu0
        %v1691 = vadd.f32 %v1482, %v1690
        %v1692 = vpop.f32.mrb[0].mxu0
        %v1693 = vpop.f32.mrb[0].mxu0
        %v1694 = vadd.f32 %v1485, %v1693
        %v1695 = vpop.f32.mrb[0].mxu0
        %1696 = vmatprep.mubr.bf16.mxu0 %v1111
        %1697 = vmatmul.mubr.bf16.gmra.mrb[0].mxu0 %v1110
        %v1698 = vpop.f32.mrb[0].mxu0
        %v1699 = vadd.f32 %v1490, %v1698
        %v1700 = vpop.f32.mrb[0].mxu0
        %v1701 = vpop.f32.mrb[0].mxu0
        %v1702 = vadd.f32 %v1493, %v1701
        %v1703 = vpop.f32.mrb[0].mxu0
        %1704 = vdwg.mxu0
        %1705 = vmatprep.subr.bf16.mxu0 0
        %1706 = vmatpush1.bf16.msra.mxu0 %v1608
        %1707 = vmatprep.subr.bf16.mxu0 0
        %1708 = vmatpush1.bf16.msra.mxu0 %v1609
        %1709 = vmatprep.subr.bf16.mxu0 0
        %1710 = vmatpush1.bf16.msra.mxu0 %v1610
        %1711 = vmatprep.subr.bf16.mxu0 0
        %1712 = vmatpush1.bf16.msra.mxu0 %v1611
        %1713 = vmatprep.subr.bf16.mxu0 0
        %1714 = vmatpush1.bf16.msra.mxu0 %v1612
        %1715 = vmatprep.subr.bf16.mxu0 0
        %1716 = vmatpush1.bf16.msra.mxu0 %v1613
        %1717 = vmatprep.subr.bf16.mxu0 0
        %1718 = vmatpush1.bf16.msra.mxu0 %v1614
        %1719 = vmatprep.subr.bf16.mxu0 0
        %1720 = vmatpush1.bf16.msra.mxu0 %v1615
        %1721 = vmatprep.subr.bf16.mxu0 0
        %1722 = vmatpush1.bf16.msra.mxu0 0
        %1723 = vmatprep.subr.bf16.mxu0 0
        %1724 = vmatpush1.bf16.msra.mxu0 0
        %1725 = vmatprep.subr.bf16.mxu0 0
        %1726 = vmatpush1.bf16.msra.mxu0 0
        %1727 = vmatprep.subr.bf16.mxu0 0
        %1728 = vmatpush1.bf16.msra.mxu0 0
        %1729 = vmatprep.subr.bf16.mxu0 0
        %1730 = vmatpush1.bf16.msra.mxu0 0
        %1731 = vmatprep.subr.bf16.mxu0 0
        %1732 = vmatpush1.bf16.msra.mxu0 0
        %1733 = vmatprep.subr.bf16.mxu0 0
        %1734 = vmatpush1.bf16.msra.mxu0 0
        %1735 = vmatprep.subr.bf16.mxu0 0
        %1736 = vmatpush1.bf16.msra.mxu0 0
        %1737 = vmatprep.mubr.bf16.mxu0 0
        %1738 = vmatmul.mubr.bf16.gmra.mrb[0].mxu0 %v1103
        %v1739 = vpop.f32.mrb[0].mxu0
        %v1740 = vadd.f32 %v1675, %v1739
        %v1741 = vpop.f32.mrb[0].mxu0
        %v1742 = vpop.f32.mrb[0].mxu0
        %v1743 = vadd.f32 %v1678, %v1742
        %v1744 = vpop.f32.mrb[0].mxu0
        %1745 = vmatprep.mubr.bf16.mxu0 0
        %1746 = vmatmul.mubr.bf16.gmra.mrb[0].mxu0 %v1106
        %v1747 = vpop.f32.mrb[0].mxu0
        %v1748 = vadd.f32 %v1683, %v1747
        %v1749 = vpop.f32.mrb[0].mxu0
        %v1750 = vpop.f32.mrb[0].mxu0
        %v1751 = vadd.f32 %v1686, %v1750
        %v1752 = vpop.f32.mrb[0].mxu0
        %1753 = vmatprep.mubr.bf16.mxu0 0
        %1754 = vmatmul.mubr.bf16.gmra.mrb[0].mxu0 %v1109
        %v1755 = vpop.f32.mrb[0].mxu0
        %v1756 = vadd.f32 %v1691, %v1755
        %v1757 = vpop.f32.mrb[0].mxu0
        %v1758 = vpop.f32.mrb[0].mxu0
        %v1759 = vadd.f32 %v1694, %v1758
        %v1760 = vpop.f32.mrb[0].mxu0
        %1761 = vmatprep.mubr.bf16.mxu0 0
        %1762 = vmatmul.mubr.bf16.gmra.mrb[0].mxu0 %v1112
        %v1763 = vpop.f32.mrb[0].mxu0
        %v1764 = vadd.f32 %v1699, %v1763
        %v1765 = vpop.f32.mrb[0].mxu0
        %v1766 = vpop.f32.mrb[0].mxu0
        %v1767 = vadd.f32 %v1702, %v1766
        %v1768 = vpop.f32.mrb[0].mxu0
        %1769 = vdwg.mxu0
        %v1770 = vpack.c.bf16 %v1080, %v1079
        %v1771 = vpack.c.bf16 %v1090, %v1089
        %v1772 = vpack.c.bf16 %v1100, %v1099
        %s1773 = scalar_lea.vmem %s3, 384
        %v1774 = vld [vmem:[%s1773] sm:$0xf]
        %v1775 = vld [vmem:[%s1773 + $0x4] sm:$0xf]
        %v1776 = vld [vmem:[%s1773 + $0x8] sm:$0xf]
        %v1777 = vld [vmem:[%s1773 + $0xc] sm:$0xf]
        %v1778 = vld [vmem:[%s1773 + $0x10] sm:$0xf]
        %v1779 = vld [vmem:[%s1773 + $0x14] sm:$0xf]
        %v1780 = vld [vmem:[%s1773 + $0x18] sm:$0xf]
        %v1781 = vld [vmem:[%s1773 + $0x1c] sm:$0xf]
        %v1782 = vld [vmem:[%s1773 + $0x20] sm:$0xf]
        %v1783 = vld [vmem:[%s1773 + $0x24] sm:$0xf]
        %v1784 = vld [vmem:[%s1773 + $0x28] sm:$0xf]
        %v1785 = vld [vmem:[%s1773 + $0x2c] sm:$0xf]
        %v1786 = vld [vmem:[%s1773 + $0x30] sm:$0xf]
        %v1787 = vld [vmem:[%s1773 + $0x34] sm:$0xf]
        %v1788 = vld [vmem:[%s1773 + $0x38] sm:$0xf]
        %v1789 = vld [vmem:[%s1773 + $0x3c] sm:$0xf]
        %v1790 = vld [vmem:[%s1773 + $0x40] sm:$0xf]
        %v1791 = vld [vmem:[%s1773 + $0x44] sm:$0xf]
        %v1792 = vld [vmem:[%s1773 + $0x48] sm:$0xf]
        %v1793 = vld [vmem:[%s1773 + $0x4c] sm:$0xf]
        %v1794 = vld [vmem:[%s1773 + $0x50] sm:$0xf]
        %v1795 = vld [vmem:[%s1773 + $0x54] sm:$0xf]
        %v1796 = vld [vmem:[%s1773 + $0x58] sm:$0xf]
        %v1797 = vld [vmem:[%s1773 + $0x5c] sm:$0xf]
        %v1798 = vld [vmem:[%s1773 + $0x60] sm:$0xf]
        %v1799 = vld [vmem:[%s1773 + $0x64] sm:$0xf]
        %v1800 = vld [vmem:[%s1773 + $0x68] sm:$0xf]
        %v1801 = vld [vmem:[%s1773 + $0x6c] sm:$0xf]
        %v1802 = vld [vmem:[%s1773 + $0x70] sm:$0xf]
        %v1803 = vld [vmem:[%s1773 + $0x74] sm:$0xf]
        %v1804 = vld [vmem:[%s1773 + $0x78] sm:$0xf]
        %v1805 = vld [vmem:[%s1773 + $0x7c] sm:$0xf]
        %v1806 = vld [vmem:[%s1773 + $0x80] sm:$0xf]
        %v1807 = vld [vmem:[%s1773 + $0x84] sm:$0xf]
        %v1808 = vld [vmem:[%s1773 + $0x88] sm:$0xf]
        %v1809 = vld [vmem:[%s1773 + $0x8c] sm:$0xf]
        %v1810 = vld [vmem:[%s1773 + $0x90] sm:$0xf]
        %v1811 = vld [vmem:[%s1773 + $0x94] sm:$0xf]
        %v1812 = vld [vmem:[%s1773 + $0x98] sm:$0xf]
        %v1813 = vld [vmem:[%s1773 + $0x9c] sm:$0xf]
        %v1814 = vld [vmem:[%s1773 + $0xa0] sm:$0xf]
        %v1815 = vld [vmem:[%s1773 + $0xa4] sm:$0xf]
        %v1816 = vld [vmem:[%s1773 + $0xa8] sm:$0xf]
        %v1817 = vld [vmem:[%s1773 + $0xac] sm:$0xf]
        %v1818 = vld [vmem:[%s1773 + $0xb0] sm:$0xf]
        %v1819 = vld [vmem:[%s1773 + $0xb4] sm:$0xf]
        %v1820 = vld [vmem:[%s1773 + $0xb8] sm:$0xf]
        %v1821 = vld [vmem:[%s1773 + $0xbc] sm:$0xf]
        %v1870 = vunpack.c.l.b16 %v1774
        %v1871 = vunpack.c.l.b16 %v1775
        %v1872 = vunpack.c.l.b16 %v1776
        %v1873 = vunpack.c.l.b16 %v1777
        %v1874 = vunpack.c.l.b16 %v1778
        %v1875 = vunpack.c.l.b16 %v1779
        %v1876 = vunpack.c.l.b16 %v1780
        %v1877 = vunpack.c.l.b16 %v1781
        %v1878 = vunpack.c.l.b16 %v1782
        %v1879 = vunpack.c.l.b16 %v1783
        %v1880 = vunpack.c.l.b16 %v1784
        %v1881 = vunpack.c.l.b16 %v1785
        %v1882 = vunpack.c.l.b16 %v1786
        %v1883 = vunpack.c.l.b16 %v1787
        %v1884 = vunpack.c.l.b16 %v1788
        %v1885 = vunpack.c.l.b16 %v1789
        %v1886 = vunpack.c.l.b16 %v1790
        %v1887 = vunpack.c.l.b16 %v1791
        %v1888 = vunpack.c.l.b16 %v1792
        %v1889 = vunpack.c.l.b16 %v1793
        %v1890 = vunpack.c.l.b16 %v1794
        %v1891 = vunpack.c.l.b16 %v1795
        %v1892 = vunpack.c.l.b16 %v1796
        %v1893 = vunpack.c.l.b16 %v1797
        %v1894 = vunpack.c.l.b16 %v1798
        %v1895 = vunpack.c.l.b16 %v1799
        %v1896 = vunpack.c.l.b16 %v1800
        %v1897 = vunpack.c.l.b16 %v1801
        %v1898 = vunpack.c.l.b16 %v1802
        %v1899 = vunpack.c.l.b16 %v1803
        %v1900 = vunpack.c.l.b16 %v1804
        %v1901 = vunpack.c.l.b16 %v1805
        %v1902 = vunpack.c.l.b16 %v1806
        %v1903 = vunpack.c.l.b16 %v1807
        %v1904 = vunpack.c.l.b16 %v1808
        %v1905 = vunpack.c.l.b16 %v1809
        %v1906 = vunpack.c.l.b16 %v1810
        %v1907 = vunpack.c.l.b16 %v1811
        %v1908 = vunpack.c.l.b16 %v1812
        %v1909 = vunpack.c.l.b16 %v1813
        %v1910 = vunpack.c.l.b16 %v1814
        %v1911 = vunpack.c.l.b16 %v1815
        %v1912 = vunpack.c.l.b16 %v1816
        %v1913 = vunpack.c.l.b16 %v1817
        %v1914 = vunpack.c.l.b16 %v1818
        %v1915 = vunpack.c.l.b16 %v1819
        %v1916 = vunpack.c.l.b16 %v1820
        %v1917 = vunpack.c.l.b16 %v1821
        %v1918 = vpack.c.b16 %v1871, %v1870
        %v1919 = vpack.c.b16 %v1873, %v1872
        %v1920 = vpack.c.b16 %v1875, %v1874
        %v1921 = vpack.c.b16 %v1877, %v1876
        %v1922 = vpack.c.b16 %v1879, %v1878
        %v1923 = vpack.c.b16 %v1881, %v1880
        %v1924 = vpack.c.b16 %v1883, %v1882
        %v1925 = vpack.c.b16 %v1885, %v1884
        %v1926 = vpack.c.b16 %v1887, %v1886
        %v1927 = vpack.c.b16 %v1889, %v1888
        %v1928 = vpack.c.b16 %v1891, %v1890
        %v1929 = vpack.c.b16 %v1893, %v1892
        %v1930 = vpack.c.b16 %v1895, %v1894
        %v1931 = vpack.c.b16 %v1897, %v1896
        %v1932 = vpack.c.b16 %v1899, %v1898
        %v1933 = vpack.c.b16 %v1901, %v1900
        %v1934 = vpack.c.b16 %v1903, %v1902
        %v1935 = vpack.c.b16 %v1905, %v1904
        %v1936 = vpack.c.b16 %v1907, %v1906
        %v1937 = vpack.c.b16 %v1909, %v1908
        %v1938 = vpack.c.b16 %v1911, %v1910
        %v1939 = vpack.c.b16 %v1913, %v1912
        %v1940 = vpack.c.b16 %v1915, %v1914
        %v1941 = vpack.c.b16 %v1917, %v1916
        %1966 = vmatprep.subr.bf16.mxu0 0
        %1967 = vmatpush1.bf16.msra.mxu0 %v1918
        %1968 = vmatprep.subr.bf16.mxu0 0
        %1969 = vmatpush1.bf16.msra.mxu0 %v1919
        %1970 = vmatprep.subr.bf16.mxu0 0
        %1971 = vmatpush1.bf16.msra.mxu0 %v1920
        %1972 = vmatprep.subr.bf16.mxu0 0
        %1973 = vmatpush1.bf16.msra.mxu0 %v1921
        %1974 = vmatprep.subr.bf16.mxu0 0
        %1975 = vmatpush1.bf16.msra.mxu0 %v1922
        %1976 = vmatprep.subr.bf16.mxu0 0
        %1977 = vmatpush1.bf16.msra.mxu0 %v1923
        %1978 = vmatprep.subr.bf16.mxu0 0
        %1979 = vmatpush1.bf16.msra.mxu0 %v1924
        %1980 = vmatprep.subr.bf16.mxu0 0
        %1981 = vmatpush1.bf16.msra.mxu0 %v1925
        %1982 = vmatprep.subr.bf16.mxu0 0
        %1983 = vmatpush1.bf16.msra.mxu0 %v1926
        %1984 = vmatprep.subr.bf16.mxu0 0
        %1985 = vmatpush1.bf16.msra.mxu0 %v1927
        %1986 = vmatprep.subr.bf16.mxu0 0
        %1987 = vmatpush1.bf16.msra.mxu0 %v1928
        %1988 = vmatprep.subr.bf16.mxu0 0
        %1989 = vmatpush1.bf16.msra.mxu0 %v1929
        %1990 = vmatprep.subr.bf16.mxu0 0
        %1991 = vmatpush1.bf16.msra.mxu0 %v1930
        %1992 = vmatprep.subr.bf16.mxu0 0
        %1993 = vmatpush1.bf16.msra.mxu0 %v1931
        %1994 = vmatprep.subr.bf16.mxu0 0
        %1995 = vmatpush1.bf16.msra.mxu0 %v1932
        %1996 = vmatprep.subr.bf16.mxu0 0
        %1997 = vmatpush1.bf16.msra.mxu0 %v1933
        %1998 = vmatprep.mubr.bf16.mxu0 %v1105
        %1999 = vmatmul.mubr.bf16.gmra.mrb[0].mxu0 %v1104
        %v2000 = vpop.f32.mrb[0].mxu0
        %v2001 = vadd.f32 0.0, %v2000
        %v2002 = vpop.f32.mrb[0].mxu0
        %v2003 = vpop.f32.mrb[0].mxu0
        %v2004 = vadd.f32 0.0, %v2003
        %v2005 = vpop.f32.mrb[0].mxu0
        %2006 = vmatprep.mubr.bf16.mxu0 %v1108
        %2007 = vmatmul.mubr.bf16.gmra.mrb[0].mxu0 %v1107
        %v2008 = vpop.f32.mrb[0].mxu0
        %v2009 = vadd.f32 0.0, %v2008
        %v2010 = vpop.f32.mrb[0].mxu0
        %v2011 = vpop.f32.mrb[0].mxu0
        %v2012 = vadd.f32 0.0, %v2011
        %v2013 = vpop.f32.mrb[0].mxu0
        %2014 = vmatprep.mubr.bf16.mxu0 %v1111
        %2015 = vmatmul.mubr.bf16.gmra.mrb[0].mxu0 %v1110
        %v2016 = vpop.f32.mrb[0].mxu0
        %v2017 = vadd.f32 0.0, %v2016
        %v2018 = vpop.f32.mrb[0].mxu0
        %v2019 = vpop.f32.mrb[0].mxu0
        %v2020 = vadd.f32 0.0, %v2019
        %v2021 = vpop.f32.mrb[0].mxu0
        %2022 = vmatprep.mubr.bf16.mxu0 %v1771
        %2023 = vmatmul.mubr.bf16.gmra.mrb[0].mxu0 %v1770
        %v2024 = vpop.f32.mrb[0].mxu0
        %v2025 = vadd.f32 0.0, %v2024
        %v2026 = vpop.f32.mrb[0].mxu0
        %v2027 = vpop.f32.mrb[0].mxu0
        %v2028 = vadd.f32 0.0, %v2027
        %v2029 = vpop.f32.mrb[0].mxu0
        %2030 = vdwg.mxu0
        %2031 = vmatprep.subr.bf16.mxu0 0
        %2032 = vmatpush1.bf16.msra.mxu0 %v1934
        %2033 = vmatprep.subr.bf16.mxu0 0
        %2034 = vmatpush1.bf16.msra.mxu0 %v1935
        %2035 = vmatprep.subr.bf16.mxu0 0
        %2036 = vmatpush1.bf16.msra.mxu0 %v1936
        %2037 = vmatprep.subr.bf16.mxu0 0
        %2038 = vmatpush1.bf16.msra.mxu0 %v1937
        %2039 = vmatprep.subr.bf16.mxu0 0
        %2040 = vmatpush1.bf16.msra.mxu0 %v1938
        %2041 = vmatprep.subr.bf16.mxu0 0
        %2042 = vmatpush1.bf16.msra.mxu0 %v1939
        %2043 = vmatprep.subr.bf16.mxu0 0
        %2044 = vmatpush1.bf16.msra.mxu0 %v1940
        %2045 = vmatprep.subr.bf16.mxu0 0
        %2046 = vmatpush1.bf16.msra.mxu0 %v1941
        %2047 = vmatprep.subr.bf16.mxu0 0
        %2048 = vmatpush1.bf16.msra.mxu0 0
        %2049 = vmatprep.subr.bf16.mxu0 0
        %2050 = vmatpush1.bf16.msra.mxu0 0
        %2051 = vmatprep.subr.bf16.mxu0 0
        %2052 = vmatpush1.bf16.msra.mxu0 0
        %2053 = vmatprep.subr.bf16.mxu0 0
        %2054 = vmatpush1.bf16.msra.mxu0 0
        %2055 = vmatprep.subr.bf16.mxu0 0
        %2056 = vmatpush1.bf16.msra.mxu0 0
        %2057 = vmatprep.subr.bf16.mxu0 0
        %2058 = vmatpush1.bf16.msra.mxu0 0
        %2059 = vmatprep.subr.bf16.mxu0 0
        %2060 = vmatpush1.bf16.msra.mxu0 0
        %2061 = vmatprep.subr.bf16.mxu0 0
        %2062 = vmatpush1.bf16.msra.mxu0 0
        %2063 = vmatprep.mubr.bf16.mxu0 0
        %2064 = vmatmul.mubr.bf16.gmra.mrb[0].mxu0 %v1106
        %v2065 = vpop.f32.mrb[0].mxu0
        %v2066 = vadd.f32 %v2001, %v2065
        %v2067 = vpop.f32.mrb[0].mxu0
        %v2068 = vpop.f32.mrb[0].mxu0
        %v2069 = vadd.f32 %v2004, %v2068
        %v2070 = vpop.f32.mrb[0].mxu0
        %2071 = vmatprep.mubr.bf16.mxu0 0
        %2072 = vmatmul.mubr.bf16.gmra.mrb[0].mxu0 %v1109
        %v2073 = vpop.f32.mrb[0].mxu0
        %v2074 = vadd.f32 %v2009, %v2073
        %v2075 = vpop.f32.mrb[0].mxu0
        %v2076 = vpop.f32.mrb[0].mxu0
        %v2077 = vadd.f32 %v2012, %v2076
        %v2078 = vpop.f32.mrb[0].mxu0
        %2079 = vmatprep.mubr.bf16.mxu0 0
        %2080 = vmatmul.mubr.bf16.gmra.mrb[0].mxu0 %v1112
        %v2081 = vpop.f32.mrb[0].mxu0
        %v2082 = vadd.f32 %v2017, %v2081
        %v2083 = vpop.f32.mrb[0].mxu0
        %v2084 = vpop.f32.mrb[0].mxu0
        %v2085 = vadd.f32 %v2020, %v2084
        %v2086 = vpop.f32.mrb[0].mxu0
        %2087 = vmatprep.mubr.bf16.mxu0 0
        %2088 = vmatmul.mubr.bf16.gmra.mrb[0].mxu0 %v1772
        %v2089 = vpop.f32.mrb[0].mxu0
        %v2090 = vadd.f32 %v2025, %v2089
        %v2091 = vpop.f32.mrb[0].mxu0
        %v2092 = vpop.f32.mrb[0].mxu0
        %v2093 = vadd.f32 %v2028, %v2092
        %v2094 = vpop.f32.mrb[0].mxu0
        %2095 = vdwg.mxu0
        %v2096 = vadd.f32 %v1740, %v2066
        %v2097 = vadd.f32 %v1743, %v2069
        %v2098 = vadd.f32 %v1748, %v2074
        %v2099 = vadd.f32 %v1751, %v2077
        %v2100 = vadd.f32 %v1756, %v2082
        %v2101 = vadd.f32 %v1759, %v2085
        %v2102 = vadd.f32 %v1764, %v2090
        %v2103 = vadd.f32 %v1767, %v2093
        %v2104 = vld [vmem:[%s4] sm:$0x1]
        %v2106 = vlaneseq
        %v2107 = vshrl.u32 %v2106, 7
        %v2108 = vsub.s32 0, %v2107
        %v2109 = vrot.slane %v2104, %v2108
        %v2111 = vadd.f32 %v2096, %v2109
        %v2112 = vadd.f32 %v2097, %v2109
        %v2113 = vadd.f32 %v2098, %v2109
        %v2114 = vadd.f32 %v2099, %v2109
        %v2115 = vadd.f32 %v2100, %v2109
        %v2116 = vadd.f32 %v2101, %v2109
        %v2117 = vadd.f32 %v2102, %v2109
        %v2118 = vadd.f32 %v2103, %v2109
        %vm2119 = vcmp.gt.f32.partialorder %v2111, 0.0
        %vm2120 = vcmp.gt.f32.partialorder %v2112, 0.0
        %vm2121 = vcmp.gt.f32.partialorder %v2113, 0.0
        %vm2122 = vcmp.gt.f32.partialorder %v2114, 0.0
        %vm2123 = vcmp.gt.f32.partialorder %v2115, 0.0
        %vm2124 = vcmp.gt.f32.partialorder %v2116, 0.0
        %vm2125 = vcmp.gt.f32.partialorder %v2117, 0.0
        %vm2126 = vcmp.gt.f32.partialorder %v2118, 0.0
        %v2127 = vmul.f32 %v2111, 0.2
        %v2128 = vmul.f32 %v2112, 0.2
        %v2129 = vmul.f32 %v2113, 0.2
        %v2130 = vmul.f32 %v2114, 0.2
        %v2131 = vmul.f32 %v2115, 0.2
        %v2132 = vmul.f32 %v2116, 0.2
        %v2133 = vmul.f32 %v2117, 0.2
        %v2134 = vmul.f32 %v2118, 0.2
        %v2135 = vsel %vm2119, %v2111, %v2127
        %v2136 = vsel %vm2120, %v2112, %v2128
        %v2137 = vsel %vm2121, %v2113, %v2129
        %v2138 = vsel %vm2122, %v2114, %v2130
        %v2139 = vsel %vm2123, %v2115, %v2131
        %v2140 = vsel %vm2124, %v2116, %v2132
        %v2141 = vsel %vm2125, %v2117, %v2133
        %v2142 = vsel %vm2126, %v2118, %v2134
        %2143 = vst [vmem:[#allocation3] sm:$0xff] %v2135
        %2144 = vst [vmem:[#allocation3 + $0x8] sm:$0xff] %v2136
        %2145 = vst [vmem:[#allocation3 + $0x10] sm:$0xff] %v2137
        %2146 = vst [vmem:[#allocation3 + $0x18] sm:$0xff] %v2138
        %2147 = vst [vmem:[#allocation3 + $0x20] sm:$0xff] %v2139
        %2148 = vst [vmem:[#allocation3 + $0x28] sm:$0xff] %v2140
        %2149 = vst [vmem:[#allocation3 + $0x30] sm:$0xff] %v2141
        %2150 = vst [vmem:[#allocation3 + $0x38] sm:$0xff] %v2142
        %2151 = vst [vmem:[#allocation4] sm:$0xff] 0.0
        %2152 = vst [vmem:[#allocation4 + $0x8] sm:$0xff] 0.0
        %2153 = vst [vmem:[#allocation4 + $0x10] sm:$0x3] 0.0
        %2154 = vst [vmem:[#allocation4 + $0x18] sm:$0xff] 0.0
        %2155 = vst [vmem:[#allocation4 + $0x20] sm:$0xff] 0.0
        %2156 = vst [vmem:[#allocation4 + $0x28] sm:$0x3] 0.0
        %2157 = vst [vmem:[#allocation4 + $0x30] sm:$0xff] 0.0
        %2158 = vst [vmem:[#allocation4 + $0x38] sm:$0xff] 0.0
        %2159 = vst [vmem:[#allocation4 + $0x40] sm:$0x3] 0.0
        %2160 = vst [vmem:[#allocation4 + $0x48] sm:$0xff] 0.0
        %2161 = vst [vmem:[#allocation4 + $0x50] sm:$0xff] 0.0
        %2162 = vst [vmem:[#allocation4 + $0x58] sm:$0x3] 0.0
        %2163 = vst [vmem:[#allocation4 + $0x60] sm:$0xff] 0.0
        %2164 = vst [vmem:[#allocation4 + $0x68] sm:$0xff] 0.0
        %2165 = vst [vmem:[#allocation4 + $0x70] sm:$0x3] 0.0
        %2166 = vst [vmem:[#allocation4 + $0x78] sm:$0xff] 0.0
        %2167 = vst [vmem:[#allocation4 + $0x80] sm:$0xff] 0.0
        %2168 = vst [vmem:[#allocation4 + $0x88] sm:$0x3] 0.0
        %2169 = vst [vmem:[#allocation4 + $0x90] sm:$0xff] 0.0
        %2170 = vst [vmem:[#allocation4 + $0x98] sm:$0xff] 0.0
        %2171 = vst [vmem:[#allocation4 + $0xa0] sm:$0x3] 0.0
        %2172 = vst [vmem:[#allocation4 + $0xa8] sm:$0xff] 0.0
        %2173 = vst [vmem:[#allocation4 + $0xb0] sm:$0xff] 0.0
        %2174 = vst [vmem:[#allocation4 + $0xb8] sm:$0x3] 0.0
        %2175 = vst [vmem:[#allocation4 + $0xc0] sm:$0xff] 0.0
        %2176 = vst [vmem:[#allocation4 + $0xc8] sm:$0xff] 0.0
        %2177 = vst [vmem:[#allocation4 + $0xd0] sm:$0x3] 0.0
        %2178 = vst [vmem:[#allocation4 + $0xd8] sm:$0xff] 0.0
        %2179 = vst [vmem:[#allocation4 + $0xe0] sm:$0xff] 0.0
        %2180 = vst [vmem:[#allocation4 + $0xe8] sm:$0x3] 0.0
        %2181 = vst [vmem:[#allocation4 + $0xf0] sm:$0xff] 0.0
        %2182 = vst [vmem:[#allocation4 + $0xf8] sm:$0xff] 0.0
        %2183 = vst [vmem:[#allocation4 + $0x100] sm:$0x3] 0.0
        %2184 = vst [vmem:[#allocation4 + $0x108] sm:$0xff] 0.0
        %2185 = vst [vmem:[#allocation4 + $0x110] sm:$0xff] 0.0
        %2186 = vst [vmem:[#allocation4 + $0x118] sm:$0x3] 0.0
        %2187 = vst [vmem:[#allocation4 + $0x120] sm:$0xff] 0.0
        %2188 = vst [vmem:[#allocation4 + $0x128] sm:$0xff] 0.0
        %2189 = vst [vmem:[#allocation4 + $0x130] sm:$0x3] 0.0
        %2190 = vst [vmem:[#allocation4 + $0x138] sm:$0xff] 0.0
        %2191 = vst [vmem:[#allocation4 + $0x140] sm:$0xff] 0.0
        %2192 = vst [vmem:[#allocation4 + $0x148] sm:$0x3] 0.0
        %2193 = vst [vmem:[#allocation4 + $0x150] sm:$0xff] 0.0
        %2194 = vst [vmem:[#allocation4 + $0x158] sm:$0xff] 0.0
        %2195 = vst [vmem:[#allocation4 + $0x160] sm:$0x3] 0.0
        %2196 = vst [vmem:[#allocation4 + $0x168] sm:$0xff] 0.0
        %2197 = vst [vmem:[#allocation4 + $0x170] sm:$0xff] 0.0
        %2198 = vst [vmem:[#allocation4 + $0x178] sm:$0x3] 0.0
        %2199 = vst [vmem:[#allocation4 + $0x180] sm:$0xff] 0.0
        %2200 = vst [vmem:[#allocation4 + $0x188] sm:$0xff] 0.0
        %2201 = vst [vmem:[#allocation4 + $0x190] sm:$0x3] 0.0
        %2202 = vst [vmem:[#allocation4 + $0x198] sm:$0xff] 0.0
        %2203 = vst [vmem:[#allocation4 + $0x1a0] sm:$0xff] 0.0
        %2204 = vst [vmem:[#allocation4 + $0x1a8] sm:$0x3] 0.0
        %v2205 = vld [vmem:[#allocation3] sm:$0x1]
        %v2206 = vld [vmem:[#allocation3 + $0x8] sm:$0x1]
        %v2207 = vld [vmem:[#allocation3 + $0x10] sm:$0x1]
        %v2208 = vld [vmem:[#allocation3 + $0x18] sm:$0x1]
        %v2209 = vld [vmem:[#allocation3 + $0x20] sm:$0x1]
        %v2210 = vld [vmem:[#allocation3 + $0x28] sm:$0x1]
        %v2211 = vld [vmem:[#allocation3 + $0x30] sm:$0x1]
        %v2212 = vld [vmem:[#allocation3 + $0x38] sm:$0x1]
        %v2213 = vlaneseq
        %v2214 = vshrl.u32 %v2213, 7
        %v2215 = vsub.s32 0, %v2214
        %v2216 = vrot.slane %v2205, %v2215
        %v2217 = vlaneseq
        %v2218 = vshrl.u32 %v2217, 7
        %v2219 = vsub.s32 0, %v2218
        %v2220 = vrot.slane %v2206, %v2219
        %v2221 = vlaneseq
        %v2222 = vshrl.u32 %v2221, 7
        %v2223 = vsub.s32 0, %v2222
        %v2224 = vrot.slane %v2207, %v2223
        %v2225 = vlaneseq
        %v2226 = vshrl.u32 %v2225, 7
        %v2227 = vsub.s32 0, %v2226
        %v2228 = vrot.slane %v2208, %v2227
        %v2229 = vlaneseq
        %v2230 = vshrl.u32 %v2229, 7
        %v2231 = vsub.s32 0, %v2230
        %v2232 = vrot.slane %v2209, %v2231
        %v2233 = vlaneseq
        %v2234 = vshrl.u32 %v2233, 7
        %v2235 = vsub.s32 0, %v2234
        %v2236 = vrot.slane %v2210, %v2235
        %v2237 = vlaneseq
        %v2238 = vshrl.u32 %v2237, 7
        %v2239 = vsub.s32 0, %v2238
        %v2240 = vrot.slane %v2211, %v2239
        %v2241 = vlaneseq
        %v2242 = vshrl.u32 %v2241, 7
        %v2243 = vsub.s32 0, %v2242
        %v2244 = vrot.slane %v2212, %v2243
        %s2245 = scalar_lea.vmem [#allocation4], 24
        %2246 = vst [vmem:[%s2245 + $0x1] sm:$0x3] %v2216
        %2247 = vst [vmem:[%s2245 + $0x19] sm:$0x3] %v2216
        %2248 = vst [vmem:[%s2245 + $0x31] sm:$0x3] %v2220
        %2249 = vst [vmem:[%s2245 + $0x49] sm:$0x3] %v2220
        %2250 = vst [vmem:[%s2245 + $0x61] sm:$0x3] %v2224
        %2251 = vst [vmem:[%s2245 + $0x79] sm:$0x3] %v2224
        %2252 = vst [vmem:[%s2245 + $0x91] sm:$0x3] %v2228
        %2253 = vst [vmem:[%s2245 + $0xa9] sm:$0x3] %v2228
        %2254 = vst [vmem:[%s2245 + $0xc1] sm:$0x3] %v2232
        %2255 = vst [vmem:[%s2245 + $0xd9] sm:$0x3] %v2232
        %2256 = vst [vmem:[%s2245 + $0xf1] sm:$0x3] %v2236
        %2257 = vst [vmem:[%s2245 + $0x109] sm:$0x3] %v2236
        %2258 = vst [vmem:[%s2245 + $0x121] sm:$0x3] %v2240
        %2259 = vst [vmem:[%s2245 + $0x139] sm:$0x3] %v2240
        %2260 = vst [vmem:[%s2245 + $0x151] sm:$0x3] %v2244
        %2261 = vst [vmem:[%s2245 + $0x169] sm:$0x3] %v2244
        %v2262 = vld [vmem:[#allocation3 + $0x1] sm:$0x1]
        %v2263 = vld [vmem:[#allocation3 + $0x9] sm:$0x1]
        %v2264 = vld [vmem:[#allocation3 + $0x11] sm:$0x1]
        %v2265 = vld [vmem:[#allocation3 + $0x19] sm:$0x1]
        %v2266 = vld [vmem:[#allocation3 + $0x21] sm:$0x1]
        %v2267 = vld [vmem:[#allocation3 + $0x29] sm:$0x1]
        %v2268 = vld [vmem:[#allocation3 + $0x31] sm:$0x1]
        %v2269 = vld [vmem:[#allocation3 + $0x39] sm:$0x1]
        %v2270 = vlaneseq
        %v2271 = vshrl.u32 %v2270, 7
        %v2272 = vsub.s32 0, %v2271
        %v2273 = vrot.slane %v2262, %v2272
        %v2274 = vlaneseq
        %v2275 = vshrl.u32 %v2274, 7
        %v2276 = vsub.s32 0, %v2275
        %v2277 = vrot.slane %v2263, %v2276
        %v2278 = vlaneseq
        %v2279 = vshrl.u32 %v2278, 7
        %v2280 = vsub.s32 0, %v2279
        %v2281 = vrot.slane %v2264, %v2280
        %v2282 = vlaneseq
        %v2283 = vshrl.u32 %v2282, 7
        %v2284 = vsub.s32 0, %v2283
        %v2285 = vrot.slane %v2265, %v2284
        %v2286 = vlaneseq
        %v2287 = vshrl.u32 %v2286, 7
        %v2288 = vsub.s32 0, %v2287
        %v2289 = vrot.slane %v2266, %v2288
        %v2290 = vlaneseq
        %v2291 = vshrl.u32 %v2290, 7
        %v2292 = vsub.s32 0, %v2291
        %v2293 = vrot.slane %v2267, %v2292
        %v2294 = vlaneseq
        %v2295 = vshrl.u32 %v2294, 7
        %v2296 = vsub.s32 0, %v2295
        %v2297 = vrot.slane %v2268, %v2296
        %v2298 = vlaneseq
        %v2299 = vshrl.u32 %v2298, 7
        %v2300 = vsub.s32 0, %v2299
        %v2301 = vrot.slane %v2269, %v2300
        %2302 = vst [vmem:[%s2245 + $0x3] sm:$0x3] %v2273
        %2303 = vst [vmem:[%s2245 + $0x1b] sm:$0x3] %v2273
        %2304 = vst [vmem:[%s2245 + $0x33] sm:$0x3] %v2277
        %2305 = vst [vmem:[%s2245 + $0x4b] sm:$0x3] %v2277
        %2306 = vst [vmem:[%s2245 + $0x63] sm:$0x3] %v2281
        %2307 = vst [vmem:[%s2245 + $0x7b] sm:$0x3] %v2281
        %2308 = vst [vmem:[%s2245 + $0x93] sm:$0x3] %v2285
        %2309 = vst [vmem:[%s2245 + $0xab] sm:$0x3] %v2285
        %2310 = vst [vmem:[%s2245 + $0xc3] sm:$0x3] %v2289
        %2311 = vst [vmem:[%s2245 + $0xdb] sm:$0x3] %v2289
        %2312 = vst [vmem:[%s2245 + $0xf3] sm:$0x3] %v2293
        %2313 = vst [vmem:[%s2245 + $0x10b] sm:$0x3] %v2293
        %2314 = vst [vmem:[%s2245 + $0x123] sm:$0x3] %v2297
        %2315 = vst [vmem:[%s2245 + $0x13b] sm:$0x3] %v2297
        %2316 = vst [vmem:[%s2245 + $0x153] sm:$0x3] %v2301
        %2317 = vst [vmem:[%s2245 + $0x16b] sm:$0x3] %v2301
        %v2318 = vld [vmem:[#allocation3 + $0x2] sm:$0x1]
        %v2319 = vld [vmem:[#allocation3 + $0xa] sm:$0x1]
        %v2320 = vld [vmem:[#allocation3 + $0x12] sm:$0x1]
        %v2321 = vld [vmem:[#allocation3 + $0x1a] sm:$0x1]
        %v2322 = vld [vmem:[#allocation3 + $0x22] sm:$0x1]
        %v2323 = vld [vmem:[#allocation3 + $0x2a] sm:$0x1]
        %v2324 = vld [vmem:[#allocation3 + $0x32] sm:$0x1]
        %v2325 = vld [vmem:[#allocation3 + $0x3a] sm:$0x1]
        %v2326 = vlaneseq
        %v2327 = vshrl.u32 %v2326, 7
        %v2328 = vsub.s32 0, %v2327
        %v2329 = vrot.slane %v2318, %v2328
        %v2330 = vlaneseq
        %v2331 = vshrl.u32 %v2330, 7
        %v2332 = vsub.s32 0, %v2331
        %v2333 = vrot.slane %v2319, %v2332
        %v2334 = vlaneseq
        %v2335 = vshrl.u32 %v2334, 7
        %v2336 = vsub.s32 0, %v2335
        %v2337 = vrot.slane %v2320, %v2336
        %v2338 = vlaneseq
        %v2339 = vshrl.u32 %v2338, 7
        %v2340 = vsub.s32 0, %v2339
        %v2341 = vrot.slane %v2321, %v2340
        %v2342 = vlaneseq
        %v2343 = vshrl.u32 %v2342, 7
        %v2344 = vsub.s32 0, %v2343
        %v2345 = vrot.slane %v2322, %v2344
        %v2346 = vlaneseq
        %v2347 = vshrl.u32 %v2346, 7
        %v2348 = vsub.s32 0, %v2347
        %v2349 = vrot.slane %v2323, %v2348
        %v2350 = vlaneseq
        %v2351 = vshrl.u32 %v2350, 7
        %v2352 = vsub.s32 0, %v2351
        %v2353 = vrot.slane %v2324, %v2352
        %v2354 = vlaneseq
        %v2355 = vshrl.u32 %v2354, 7
        %v2356 = vsub.s32 0, %v2355
        %v2357 = vrot.slane %v2325, %v2356
        %2358 = vst [vmem:[%s2245 + $0x5] sm:$0x3] %v2329
        %2359 = vst [vmem:[%s2245 + $0x1d] sm:$0x3] %v2329
        %2360 = vst [vmem:[%s2245 + $0x35] sm:$0x3] %v2333
        %2361 = vst [vmem:[%s2245 + $0x4d] sm:$0x3] %v2333
        %2362 = vst [vmem:[%s2245 + $0x65] sm:$0x3] %v2337
        %2363 = vst [vmem:[%s2245 + $0x7d] sm:$0x3] %v2337
        %2364 = vst [vmem:[%s2245 + $0x95] sm:$0x3] %v2341
        %2365 = vst [vmem:[%s2245 + $0xad] sm:$0x3] %v2341
        %2366 = vst [vmem:[%s2245 + $0xc5] sm:$0x3] %v2345
        %2367 = vst [vmem:[%s2245 + $0xdd] sm:$0x3] %v2345
        %2368 = vst [vmem:[%s2245 + $0xf5] sm:$0x3] %v2349
        %2369 = vst [vmem:[%s2245 + $0x10d] sm:$0x3] %v2349
        %2370 = vst [vmem:[%s2245 + $0x125] sm:$0x3] %v2353
        %2371 = vst [vmem:[%s2245 + $0x13d] sm:$0x3] %v2353
        %2372 = vst [vmem:[%s2245 + $0x155] sm:$0x3] %v2357
        %2373 = vst [vmem:[%s2245 + $0x16d] sm:$0x3] %v2357
        %v2374 = vld [vmem:[#allocation3 + $0x3] sm:$0x1]
        %v2375 = vld [vmem:[#allocation3 + $0xb] sm:$0x1]
        %v2376 = vld [vmem:[#allocation3 + $0x13] sm:$0x1]
        %v2377 = vld [vmem:[#allocation3 + $0x1b] sm:$0x1]
        %v2378 = vld [vmem:[#allocation3 + $0x23] sm:$0x1]
        %v2379 = vld [vmem:[#allocation3 + $0x2b] sm:$0x1]
        %v2380 = vld [vmem:[#allocation3 + $0x33] sm:$0x1]
        %v2381 = vld [vmem:[#allocation3 + $0x3b] sm:$0x1]
        %v2382 = vlaneseq
        %v2383 = vshrl.u32 %v2382, 7
        %v2384 = vsub.s32 0, %v2383
        %v2385 = vrot.slane %v2374, %v2384
        %v2386 = vlaneseq
        %v2387 = vshrl.u32 %v2386, 7
        %v2388 = vsub.s32 0, %v2387
        %v2389 = vrot.slane %v2375, %v2388
        %v2390 = vlaneseq
        %v2391 = vshrl.u32 %v2390, 7
        %v2392 = vsub.s32 0, %v2391
        %v2393 = vrot.slane %v2376, %v2392
        %v2394 = vlaneseq
        %v2395 = vshrl.u32 %v2394, 7
        %v2396 = vsub.s32 0, %v2395
        %v2397 = vrot.slane %v2377, %v2396
        %v2398 = vlaneseq
        %v2399 = vshrl.u32 %v2398, 7
        %v2400 = vsub.s32 0, %v2399
        %v2401 = vrot.slane %v2378, %v2400
        %v2402 = vlaneseq
        %v2403 = vshrl.u32 %v2402, 7
        %v2404 = vsub.s32 0, %v2403
        %v2405 = vrot.slane %v2379, %v2404
        %v2406 = vlaneseq
        %v2407 = vshrl.u32 %v2406, 7
        %v2408 = vsub.s32 0, %v2407
        %v2409 = vrot.slane %v2380, %v2408
        %v2410 = vlaneseq
        %v2411 = vshrl.u32 %v2410, 7
        %v2412 = vsub.s32 0, %v2411
        %v2413 = vrot.slane %v2381, %v2412
        %2414 = vst [vmem:[%s2245 + $0x7] sm:$0x3] %v2385
        %2415 = vst [vmem:[%s2245 + $0x1f] sm:$0x3] %v2385
        %2416 = vst [vmem:[%s2245 + $0x37] sm:$0x3] %v2389
        %2417 = vst [vmem:[%s2245 + $0x4f] sm:$0x3] %v2389
        %2418 = vst [vmem:[%s2245 + $0x67] sm:$0x3] %v2393
        %2419 = vst [vmem:[%s2245 + $0x7f] sm:$0x3] %v2393
        %2420 = vst [vmem:[%s2245 + $0x97] sm:$0x3] %v2397
        %2421 = vst [vmem:[%s2245 + $0xaf] sm:$0x3] %v2397
        %2422 = vst [vmem:[%s2245 + $0xc7] sm:$0x3] %v2401
        %2423 = vst [vmem:[%s2245 + $0xdf] sm:$0x3] %v2401
        %2424 = vst [vmem:[%s2245 + $0xf7] sm:$0x3] %v2405
        %2425 = vst [vmem:[%s2245 + $0x10f] sm:$0x3] %v2405
        %2426 = vst [vmem:[%s2245 + $0x127] sm:$0x3] %v2409
        %2427 = vst [vmem:[%s2245 + $0x13f] sm:$0x3] %v2409
        %2428 = vst [vmem:[%s2245 + $0x157] sm:$0x3] %v2413
        %2429 = vst [vmem:[%s2245 + $0x16f] sm:$0x3] %v2413
        %v2430 = vld [vmem:[#allocation3 + $0x4] sm:$0x1]
        %v2431 = vld [vmem:[#allocation3 + $0xc] sm:$0x1]
        %v2432 = vld [vmem:[#allocation3 + $0x14] sm:$0x1]
        %v2433 = vld [vmem:[#allocation3 + $0x1c] sm:$0x1]
        %v2434 = vld [vmem:[#allocation3 + $0x24] sm:$0x1]
        %v2435 = vld [vmem:[#allocation3 + $0x2c] sm:$0x1]
        %v2436 = vld [vmem:[#allocation3 + $0x34] sm:$0x1]
        %v2437 = vld [vmem:[#allocation3 + $0x3c] sm:$0x1]
        %v2438 = vlaneseq
        %v2439 = vshrl.u32 %v2438, 7
        %v2440 = vsub.s32 0, %v2439
        %v2441 = vrot.slane %v2430, %v2440
        %v2442 = vlaneseq
        %v2443 = vshrl.u32 %v2442, 7
        %v2444 = vsub.s32 0, %v2443
        %v2445 = vrot.slane %v2431, %v2444
        %v2446 = vlaneseq
        %v2447 = vshrl.u32 %v2446, 7
        %v2448 = vsub.s32 0, %v2447
        %v2449 = vrot.slane %v2432, %v2448
        %v2450 = vlaneseq
        %v2451 = vshrl.u32 %v2450, 7
        %v2452 = vsub.s32 0, %v2451
        %v2453 = vrot.slane %v2433, %v2452
        %v2454 = vlaneseq
        %v2455 = vshrl.u32 %v2454, 7
        %v2456 = vsub.s32 0, %v2455
        %v2457 = vrot.slane %v2434, %v2456
        %v2458 = vlaneseq
        %v2459 = vshrl.u32 %v2458, 7
        %v2460 = vsub.s32 0, %v2459
        %v2461 = vrot.slane %v2435, %v2460
        %v2462 = vlaneseq
        %v2463 = vshrl.u32 %v2462, 7
        %v2464 = vsub.s32 0, %v2463
        %v2465 = vrot.slane %v2436, %v2464
        %v2466 = vlaneseq
        %v2467 = vshrl.u32 %v2466, 7
        %v2468 = vsub.s32 0, %v2467
        %v2469 = vrot.slane %v2437, %v2468
        %2470 = vst [vmem:[%s2245 + $0x9] sm:$0x3] %v2441
        %2471 = vst [vmem:[%s2245 + $0x21] sm:$0x3] %v2441
        %2472 = vst [vmem:[%s2245 + $0x39] sm:$0x3] %v2445
        %2473 = vst [vmem:[%s2245 + $0x51] sm:$0x3] %v2445
        %2474 = vst [vmem:[%s2245 + $0x69] sm:$0x3] %v2449
        %2475 = vst [vmem:[%s2245 + $0x81] sm:$0x3] %v2449
        %2476 = vst [vmem:[%s2245 + $0x99] sm:$0x3] %v2453
        %2477 = vst [vmem:[%s2245 + $0xb1] sm:$0x3] %v2453
        %2478 = vst [vmem:[%s2245 + $0xc9] sm:$0x3] %v2457
        %2479 = vst [vmem:[%s2245 + $0xe1] sm:$0x3] %v2457
        %2480 = vst [vmem:[%s2245 + $0xf9] sm:$0x3] %v2461
        %2481 = vst [vmem:[%s2245 + $0x111] sm:$0x3] %v2461
        %2482 = vst [vmem:[%s2245 + $0x129] sm:$0x3] %v2465
        %2483 = vst [vmem:[%s2245 + $0x141] sm:$0x3] %v2465
        %2484 = vst [vmem:[%s2245 + $0x159] sm:$0x3] %v2469
        %2485 = vst [vmem:[%s2245 + $0x171] sm:$0x3] %v2469
        %v2486 = vld [vmem:[#allocation3 + $0x5] sm:$0x1]
        %v2487 = vld [vmem:[#allocation3 + $0xd] sm:$0x1]
        %v2488 = vld [vmem:[#allocation3 + $0x15] sm:$0x1]
        %v2489 = vld [vmem:[#allocation3 + $0x1d] sm:$0x1]
        %v2490 = vld [vmem:[#allocation3 + $0x25] sm:$0x1]
        %v2491 = vld [vmem:[#allocation3 + $0x2d] sm:$0x1]
        %v2492 = vld [vmem:[#allocation3 + $0x35] sm:$0x1]
        %v2493 = vld [vmem:[#allocation3 + $0x3d] sm:$0x1]
        %v2494 = vlaneseq
        %v2495 = vshrl.u32 %v2494, 7
        %v2496 = vsub.s32 0, %v2495
        %v2497 = vrot.slane %v2486, %v2496
        %v2498 = vlaneseq
        %v2499 = vshrl.u32 %v2498, 7
        %v2500 = vsub.s32 0, %v2499
        %v2501 = vrot.slane %v2487, %v2500
        %v2502 = vlaneseq
        %v2503 = vshrl.u32 %v2502, 7
        %v2504 = vsub.s32 0, %v2503
        %v2505 = vrot.slane %v2488, %v2504
        %v2506 = vlaneseq
        %v2507 = vshrl.u32 %v2506, 7
        %v2508 = vsub.s32 0, %v2507
        %v2509 = vrot.slane %v2489, %v2508
        %v2510 = vlaneseq
        %v2511 = vshrl.u32 %v2510, 7
        %v2512 = vsub.s32 0, %v2511
        %v2513 = vrot.slane %v2490, %v2512
        %v2514 = vlaneseq
        %v2515 = vshrl.u32 %v2514, 7
        %v2516 = vsub.s32 0, %v2515
        %v2517 = vrot.slane %v2491, %v2516
        %v2518 = vlaneseq
        %v2519 = vshrl.u32 %v2518, 7
        %v2520 = vsub.s32 0, %v2519
        %v2521 = vrot.slane %v2492, %v2520
        %v2522 = vlaneseq
        %v2523 = vshrl.u32 %v2522, 7
        %v2524 = vsub.s32 0, %v2523
        %v2525 = vrot.slane %v2493, %v2524
        %2526 = vst [vmem:[%s2245 + $0xb] sm:$0x3] %v2497
        %2527 = vst [vmem:[%s2245 + $0x23] sm:$0x3] %v2497
        %2528 = vst [vmem:[%s2245 + $0x3b] sm:$0x3] %v2501
        %2529 = vst [vmem:[%s2245 + $0x53] sm:$0x3] %v2501
        %2530 = vst [vmem:[%s2245 + $0x6b] sm:$0x3] %v2505
        %2531 = vst [vmem:[%s2245 + $0x83] sm:$0x3] %v2505
        %2532 = vst [vmem:[%s2245 + $0x9b] sm:$0x3] %v2509
        %2533 = vst [vmem:[%s2245 + $0xb3] sm:$0x3] %v2509
        %2534 = vst [vmem:[%s2245 + $0xcb] sm:$0x3] %v2513
        %2535 = vst [vmem:[%s2245 + $0xe3] sm:$0x3] %v2513
        %2536 = vst [vmem:[%s2245 + $0xfb] sm:$0x3] %v2517
        %2537 = vst [vmem:[%s2245 + $0x113] sm:$0x3] %v2517
        %2538 = vst [vmem:[%s2245 + $0x12b] sm:$0x3] %v2521
        %2539 = vst [vmem:[%s2245 + $0x143] sm:$0x3] %v2521
        %2540 = vst [vmem:[%s2245 + $0x15b] sm:$0x3] %v2525
        %2541 = vst [vmem:[%s2245 + $0x173] sm:$0x3] %v2525
        %v2542 = vld [vmem:[#allocation3 + $0x6] sm:$0x1]
        %v2543 = vld [vmem:[#allocation3 + $0xe] sm:$0x1]
        %v2544 = vld [vmem:[#allocation3 + $0x16] sm:$0x1]
        %v2545 = vld [vmem:[#allocation3 + $0x1e] sm:$0x1]
        %v2546 = vld [vmem:[#allocation3 + $0x26] sm:$0x1]
        %v2547 = vld [vmem:[#allocation3 + $0x2e] sm:$0x1]
        %v2548 = vld [vmem:[#allocation3 + $0x36] sm:$0x1]
        %v2549 = vld [vmem:[#allocation3 + $0x3e] sm:$0x1]
        %v2550 = vlaneseq
        %v2551 = vshrl.u32 %v2550, 7
        %v2552 = vsub.s32 0, %v2551
        %v2553 = vrot.slane %v2542, %v2552
        %v2554 = vlaneseq
        %v2555 = vshrl.u32 %v2554, 7
        %v2556 = vsub.s32 0, %v2555
        %v2557 = vrot.slane %v2543, %v2556
        %v2558 = vlaneseq
        %v2559 = vshrl.u32 %v2558, 7
        %v2560 = vsub.s32 0, %v2559
        %v2561 = vrot.slane %v2544, %v2560
        %v2562 = vlaneseq
        %v2563 = vshrl.u32 %v2562, 7
        %v2564 = vsub.s32 0, %v2563
        %v2565 = vrot.slane %v2545, %v2564
        %v2566 = vlaneseq
        %v2567 = vshrl.u32 %v2566, 7
        %v2568 = vsub.s32 0, %v2567
        %v2569 = vrot.slane %v2546, %v2568
        %v2570 = vlaneseq
        %v2571 = vshrl.u32 %v2570, 7
        %v2572 = vsub.s32 0, %v2571
        %v2573 = vrot.slane %v2547, %v2572
        %v2574 = vlaneseq
        %v2575 = vshrl.u32 %v2574, 7
        %v2576 = vsub.s32 0, %v2575
        %v2577 = vrot.slane %v2548, %v2576
        %v2578 = vlaneseq
        %v2579 = vshrl.u32 %v2578, 7
        %v2580 = vsub.s32 0, %v2579
        %v2581 = vrot.slane %v2549, %v2580
        %2582 = vst [vmem:[%s2245 + $0xd] sm:$0x3] %v2553
        %2583 = vst [vmem:[%s2245 + $0x25] sm:$0x3] %v2553
        %2584 = vst [vmem:[%s2245 + $0x3d] sm:$0x3] %v2557
        %2585 = vst [vmem:[%s2245 + $0x55] sm:$0x3] %v2557
        %2586 = vst [vmem:[%s2245 + $0x6d] sm:$0x3] %v2561
        %2587 = vst [vmem:[%s2245 + $0x85] sm:$0x3] %v2561
        %2588 = vst [vmem:[%s2245 + $0x9d] sm:$0x3] %v2565
        %2589 = vst [vmem:[%s2245 + $0xb5] sm:$0x3] %v2565
        %2590 = vst [vmem:[%s2245 + $0xcd] sm:$0x3] %v2569
        %2591 = vst [vmem:[%s2245 + $0xe5] sm:$0x3] %v2569
        %2592 = vst [vmem:[%s2245 + $0xfd] sm:$0x3] %v2573
        %2593 = vst [vmem:[%s2245 + $0x115] sm:$0x3] %v2573
        %2594 = vst [vmem:[%s2245 + $0x12d] sm:$0x3] %v2577
        %2595 = vst [vmem:[%s2245 + $0x145] sm:$0x3] %v2577
        %2596 = vst [vmem:[%s2245 + $0x15d] sm:$0x3] %v2581
        %2597 = vst [vmem:[%s2245 + $0x175] sm:$0x3] %v2581
        %v2598 = vld [vmem:[#allocation3 + $0x7] sm:$0x1]
        %v2599 = vld [vmem:[#allocation3 + $0xf] sm:$0x1]
        %v2600 = vld [vmem:[#allocation3 + $0x17] sm:$0x1]
        %v2601 = vld [vmem:[#allocation3 + $0x1f] sm:$0x1]
        %v2602 = vld [vmem:[#allocation3 + $0x27] sm:$0x1]
        %v2603 = vld [vmem:[#allocation3 + $0x2f] sm:$0x1]
        %v2604 = vld [vmem:[#allocation3 + $0x37] sm:$0x1]
        %v2605 = vld [vmem:[#allocation3 + $0x3f] sm:$0x1]
        %v2606 = vlaneseq
        %v2607 = vshrl.u32 %v2606, 7
        %v2608 = vsub.s32 0, %v2607
        %v2609 = vrot.slane %v2598, %v2608
        %v2610 = vlaneseq
        %v2611 = vshrl.u32 %v2610, 7
        %v2612 = vsub.s32 0, %v2611
        %v2613 = vrot.slane %v2599, %v2612
        %v2614 = vlaneseq
        %v2615 = vshrl.u32 %v2614, 7
        %v2616 = vsub.s32 0, %v2615
        %v2617 = vrot.slane %v2600, %v2616
        %v2618 = vlaneseq
        %v2619 = vshrl.u32 %v2618, 7
        %v2620 = vsub.s32 0, %v2619
        %v2621 = vrot.slane %v2601, %v2620
        %v2622 = vlaneseq
        %v2623 = vshrl.u32 %v2622, 7
        %v2624 = vsub.s32 0, %v2623
        %v2625 = vrot.slane %v2602, %v2624
        %v2626 = vlaneseq
        %v2627 = vshrl.u32 %v2626, 7
        %v2628 = vsub.s32 0, %v2627
        %v2629 = vrot.slane %v2603, %v2628
        %v2630 = vlaneseq
        %v2631 = vshrl.u32 %v2630, 7
        %v2632 = vsub.s32 0, %v2631
        %v2633 = vrot.slane %v2604, %v2632
        %v2634 = vlaneseq
        %v2635 = vshrl.u32 %v2634, 7
        %v2636 = vsub.s32 0, %v2635
        %v2637 = vrot.slane %v2605, %v2636
        %2638 = vst [vmem:[%s2245 + $0xf] sm:$0x3] %v2609
        %2639 = vst [vmem:[%s2245 + $0x27] sm:$0x3] %v2609
        %2640 = vst [vmem:[%s2245 + $0x3f] sm:$0x3] %v2613
        %2641 = vst [vmem:[%s2245 + $0x57] sm:$0x3] %v2613
        %2642 = vst [vmem:[%s2245 + $0x6f] sm:$0x3] %v2617
        %2643 = vst [vmem:[%s2245 + $0x87] sm:$0x3] %v2617
        %2644 = vst [vmem:[%s2245 + $0x9f] sm:$0x3] %v2621
        %2645 = vst [vmem:[%s2245 + $0xb7] sm:$0x3] %v2621
        %2646 = vst [vmem:[%s2245 + $0xcf] sm:$0x3] %v2625
        %2647 = vst [vmem:[%s2245 + $0xe7] sm:$0x3] %v2625
        %2648 = vst [vmem:[%s2245 + $0xff] sm:$0x3] %v2629
        %2649 = vst [vmem:[%s2245 + $0x117] sm:$0x3] %v2629
        %2650 = vst [vmem:[%s2245 + $0x12f] sm:$0x3] %v2633
        %2651 = vst [vmem:[%s2245 + $0x147] sm:$0x3] %v2633
        %2652 = vst [vmem:[%s2245 + $0x15f] sm:$0x3] %v2637
        %2653 = vst [vmem:[%s2245 + $0x177] sm:$0x3] %v2637
        %v2654 = vld [vmem:[#allocation4] sm:$0xff]
        %v2655 = vld [vmem:[#allocation4 + $0x8] sm:$0xff]
        %v2656 = vld [vmem:[#allocation4 + $0x18] sm:$0xff]
        %v2657 = vld [vmem:[#allocation4 + $0x20] sm:$0xff]
        %v2658 = vld [vmem:[#allocation4 + $0x30] sm:$0xff]
        %v2659 = vld [vmem:[#allocation4 + $0x38] sm:$0xff]
        %v2660 = vld [vmem:[#allocation4 + $0x48] sm:$0xff]
        %v2661 = vld [vmem:[#allocation4 + $0x50] sm:$0xff]
        %v2662 = vld [vmem:[#allocation4 + $0x60] sm:$0xff]
        %v2663 = vld [vmem:[#allocation4 + $0x68] sm:$0xff]
        %v2664 = vld [vmem:[#allocation4 + $0x78] sm:$0xff]
        %v2665 = vld [vmem:[#allocation4 + $0x80] sm:$0xff]
        %v2666 = vld [vmem:[#allocation4 + $0x90] sm:$0xff]
        %v2667 = vld [vmem:[#allocation4 + $0x98] sm:$0xff]
        %v2668 = vld [vmem:[#allocation4 + $0xa8] sm:$0xff]
        %v2669 = vld [vmem:[#allocation4 + $0xb0] sm:$0xff]
        %v2670 = vld [vmem:[#allocation4 + $0xc0] sm:$0xff]
        %v2671 = vld [vmem:[#allocation4 + $0xc8] sm:$0xff]
        %v2672 = vld [vmem:[#allocation4 + $0xd8] sm:$0xff]
        %v2673 = vld [vmem:[#allocation4 + $0xe0] sm:$0xff]
        %v2674 = vld [vmem:[#allocation4 + $0xf0] sm:$0xff]
        %v2675 = vld [vmem:[#allocation4 + $0xf8] sm:$0xff]
        %v2676 = vld [vmem:[#allocation4 + $0x108] sm:$0xff]
        %v2677 = vld [vmem:[#allocation4 + $0x110] sm:$0xff]
        %v2678 = vld [vmem:[#allocation4 + $0x120] sm:$0xff]
        %v2679 = vld [vmem:[#allocation4 + $0x128] sm:$0xff]
        %v2680 = vld [vmem:[#allocation4 + $0x138] sm:$0xff]
        %v2681 = vld [vmem:[#allocation4 + $0x140] sm:$0xff]
        %v2682 = vld [vmem:[#allocation4 + $0x150] sm:$0xff]
        %v2683 = vld [vmem:[#allocation4 + $0x158] sm:$0xff]
        %v2684 = vld [vmem:[#allocation4 + $0x168] sm:$0xff]
        %v2685 = vld [vmem:[#allocation4 + $0x170] sm:$0xff]
        %v2686 = vld [vmem:[#allocation4 + $0x180] sm:$0xff]
        %v2687 = vld [vmem:[#allocation4 + $0x188] sm:$0xff]
        %v2688 = vld [vmem:[#allocation4 + $0x198] sm:$0xff]
        %v2689 = vld [vmem:[#allocation4 + $0x1a0] sm:$0xff]
        %v2690 = vld [vmem:[#allocation4 + $0x1] sm:$0xff]
        %v2691 = vld [vmem:[#allocation4 + $0x9] sm:$0xff]
        %v2692 = vld [vmem:[#allocation4 + $0x19] sm:$0xff]
        %v2693 = vld [vmem:[#allocation4 + $0x21] sm:$0xff]
        %v2694 = vld [vmem:[#allocation4 + $0x31] sm:$0xff]
        %v2695 = vld [vmem:[#allocation4 + $0x39] sm:$0xff]
        %v2696 = vld [vmem:[#allocation4 + $0x49] sm:$0xff]
        %v2697 = vld [vmem:[#allocation4 + $0x51] sm:$0xff]
        %v2698 = vld [vmem:[#allocation4 + $0x61] sm:$0xff]
        %v2699 = vld [vmem:[#allocation4 + $0x69] sm:$0xff]
        %v2700 = vld [vmem:[#allocation4 + $0x79] sm:$0xff]
        %v2701 = vld [vmem:[#allocation4 + $0x81] sm:$0xff]
        %v2702 = vld [vmem:[#allocation4 + $0x91] sm:$0xff]
        %v2703 = vld [vmem:[#allocation4 + $0x99] sm:$0xff]
        %v2704 = vld [vmem:[#allocation4 + $0xa9] sm:$0xff]
        %v2705 = vld [vmem:[#allocation4 + $0xb1] sm:$0xff]
        %v2706 = vld [vmem:[#allocation4 + $0xc1] sm:$0xff]
        %v2707 = vld [vmem:[#allocation4 + $0xc9] sm:$0xff]
        %v2708 = vld [vmem:[#allocation4 + $0xd9] sm:$0xff]
        %v2709 = vld [vmem:[#allocation4 + $0xe1] sm:$0xff]
        %v2710 = vld [vmem:[#allocation4 + $0xf1] sm:$0xff]
        %v2711 = vld [vmem:[#allocation4 + $0xf9] sm:$0xff]
        %v2712 = vld [vmem:[#allocation4 + $0x109] sm:$0xff]
        %v2713 = vld [vmem:[#allocation4 + $0x111] sm:$0xff]
        %v2714 = vld [vmem:[#allocation4 + $0x121] sm:$0xff]
        %v2715 = vld [vmem:[#allocation4 + $0x129] sm:$0xff]
        %v2716 = vld [vmem:[#allocation4 + $0x139] sm:$0xff]
        %v2717 = vld [vmem:[#allocation4 + $0x141] sm:$0xff]
        %v2718 = vld [vmem:[#allocation4 + $0x151] sm:$0xff]
        %v2719 = vld [vmem:[#allocation4 + $0x159] sm:$0xff]
        %v2720 = vld [vmem:[#allocation4 + $0x169] sm:$0xff]
        %v2721 = vld [vmem:[#allocation4 + $0x171] sm:$0xff]
        %v2722 = vld [vmem:[#allocation4 + $0x181] sm:$0xff]
        %v2723 = vld [vmem:[#allocation4 + $0x189] sm:$0xff]
        %v2724 = vld [vmem:[#allocation4 + $0x199] sm:$0xff]
        %v2725 = vld [vmem:[#allocation4 + $0x1a1] sm:$0xff]
        %v2726 = vld [vmem:[#allocation4 + $0x2] sm:$0xff]
        %v2727 = vld [vmem:[#allocation4 + $0xa] sm:$0xff]
        %v2728 = vld [vmem:[#allocation4 + $0x1a] sm:$0xff]
        %v2729 = vld [vmem:[#allocation4 + $0x22] sm:$0xff]
        %v2730 = vld [vmem:[#allocation4 + $0x32] sm:$0xff]
        %v2731 = vld [vmem:[#allocation4 + $0x3a] sm:$0xff]
        %v2732 = vld [vmem:[#allocation4 + $0x4a] sm:$0xff]
        %v2733 = vld [vmem:[#allocation4 + $0x52] sm:$0xff]
        %v2734 = vld [vmem:[#allocation4 + $0x62] sm:$0xff]
        %v2735 = vld [vmem:[#allocation4 + $0x6a] sm:$0xff]
        %v2736 = vld [vmem:[#allocation4 + $0x7a] sm:$0xff]
        %v2737 = vld [vmem:[#allocation4 + $0x82] sm:$0xff]
        %v2738 = vld [vmem:[#allocation4 + $0x92] sm:$0xff]
        %v2739 = vld [vmem:[#allocation4 + $0x9a] sm:$0xff]
        %v2740 = vld [vmem:[#allocation4 + $0xaa] sm:$0xff]
        %v2741 = vld [vmem:[#allocation4 + $0xb2] sm:$0xff]
        %v2742 = vld [vmem:[#allocation4 + $0xc2] sm:$0xff]
        %v2743 = vld [vmem:[#allocation4 + $0xca] sm:$0xff]
        %v2744 = vld [vmem:[#allocation4 + $0xda] sm:$0xff]
        %v2745 = vld [vmem:[#allocation4 + $0xe2] sm:$0xff]
        %v2746 = vld [vmem:[#allocation4 + $0xf2] sm:$0xff]
        %v2747 = vld [vmem:[#allocation4 + $0xfa] sm:$0xff]
        %v2748 = vld [vmem:[#allocation4 + $0x10a] sm:$0xff]
        %v2749 = vld [vmem:[#allocation4 + $0x112] sm:$0xff]
        %v2750 = vld [vmem:[#allocation4 + $0x122] sm:$0xff]
        %v2751 = vld [vmem:[#allocation4 + $0x12a] sm:$0xff]
        %v2752 = vld [vmem:[#allocation4 + $0x13a] sm:$0xff]
        %v2753 = vld [vmem:[#allocation4 + $0x142] sm:$0xff]
        %v2754 = vld [vmem:[#allocation4 + $0x152] sm:$0xff]
        %v2755 = vld [vmem:[#allocation4 + $0x15a] sm:$0xff]
        %v2756 = vld [vmem:[#allocation4 + $0x16a] sm:$0xff]
        %v2757 = vld [vmem:[#allocation4 + $0x172] sm:$0xff]
        %v2758 = vld [vmem:[#allocation4 + $0x182] sm:$0xff]
        %v2759 = vld [vmem:[#allocation4 + $0x18a] sm:$0xff]
        %v2760 = vld [vmem:[#allocation4 + $0x19a] sm:$0xff]
        %v2761 = vld [vmem:[#allocation4 + $0x1a2] sm:$0xff]
        %v2762 = vpack.c.bf16 %v2655, %v2654
        %v2763 = vpack.c.bf16 %v2691, %v2690
        %v2764 = vpack.c.bf16 %v2727, %v2726
        %v2765 = vpack.c.bf16 %v2657, %v2656
        %v2766 = vpack.c.bf16 %v2693, %v2692
        %v2767 = vpack.c.bf16 %v2729, %v2728
        %v2768 = vpack.c.bf16 %v2659, %v2658
        %v2769 = vpack.c.bf16 %v2695, %v2694
        %v2770 = vpack.c.bf16 %v2731, %v2730
        %v2771 = vpack.c.bf16 %v2661, %v2660
        %v2772 = vpack.c.bf16 %v2697, %v2696
        %v2773 = vpack.c.bf16 %v2733, %v2732
        %v2774 = vpack.c.bf16 %v2663, %v2662
        %v2775 = vpack.c.bf16 %v2699, %v2698
        %v2776 = vpack.c.bf16 %v2735, %v2734
        %v2777 = vpack.c.bf16 %v2665, %v2664
        %v2778 = vpack.c.bf16 %v2701, %v2700
        %v2779 = vpack.c.bf16 %v2737, %v2736
        %v2780 = vpack.c.bf16 %v2667, %v2666
        %v2781 = vpack.c.bf16 %v2703, %v2702
        %v2782 = vpack.c.bf16 %v2739, %v2738
        %v2783 = vpack.c.bf16 %v2669, %v2668
        %v2784 = vpack.c.bf16 %v2705, %v2704
        %v2785 = vpack.c.bf16 %v2741, %v2740
        %v2786 = vpack.c.bf16 %v2671, %v2670
        %v2787 = vpack.c.bf16 %v2707, %v2706
        %v2788 = vpack.c.bf16 %v2743, %v2742
        %v2789 = vpack.c.bf16 %v2673, %v2672
        %v2790 = vpack.c.bf16 %v2709, %v2708
        %v2791 = vpack.c.bf16 %v2745, %v2744
        %v2792 = vpack.c.bf16 %v2675, %v2674
        %v2793 = vpack.c.bf16 %v2711, %v2710
        %v2794 = vpack.c.bf16 %v2747, %v2746
        %v2795 = vpack.c.bf16 %v2677, %v2676
        %v2796 = vpack.c.bf16 %v2713, %v2712
        %v2797 = vpack.c.bf16 %v2749, %v2748
        %v2798 = vpack.c.bf16 %v2679, %v2678
        %v2799 = vpack.c.bf16 %v2715, %v2714
        %v2800 = vpack.c.bf16 %v2751, %v2750
        %v2801 = vpack.c.bf16 %v2681, %v2680
        %v2802 = vpack.c.bf16 %v2717, %v2716
        %v2803 = vpack.c.bf16 %v2753, %v2752
        %v2804 = vpack.c.bf16 %v2683, %v2682
        %v2805 = vpack.c.bf16 %v2719, %v2718
        %v2806 = vpack.c.bf16 %v2755, %v2754
        %v2807 = vpack.c.bf16 %v2685, %v2684
        %v2808 = vpack.c.bf16 %v2721, %v2720
        %v2809 = vpack.c.bf16 %v2757, %v2756
        %v2810 = vld [vmem:[%s5] sm:$0xf]
        %v2811 = vld [vmem:[%s5 + $0x4] sm:$0xf]
        %v2812 = vld [vmem:[%s5 + $0x8] sm:$0xf]
        %v2813 = vld [vmem:[%s5 + $0xc] sm:$0xf]
        %v2814 = vld [vmem:[%s5 + $0x10] sm:$0xf]
        %v2815 = vld [vmem:[%s5 + $0x14] sm:$0xf]
        %v2816 = vld [vmem:[%s5 + $0x18] sm:$0xf]
        %v2817 = vld [vmem:[%s5 + $0x1c] sm:$0xf]
        %v2818 = vld [vmem:[%s5 + $0x20] sm:$0xf]
        %v2819 = vld [vmem:[%s5 + $0x24] sm:$0xf]
        %v2820 = vld [vmem:[%s5 + $0x28] sm:$0xf]
        %v2821 = vld [vmem:[%s5 + $0x2c] sm:$0xf]
        %v2822 = vld [vmem:[%s5 + $0x30] sm:$0xf]
        %v2823 = vld [vmem:[%s5 + $0x34] sm:$0xf]
        %v2824 = vld [vmem:[%s5 + $0x38] sm:$0xf]
        %v2825 = vld [vmem:[%s5 + $0x3c] sm:$0xf]
        %v2826 = vld [vmem:[%s5 + $0x40] sm:$0xf]
        %v2827 = vld [vmem:[%s5 + $0x44] sm:$0xf]
        %v2828 = vld [vmem:[%s5 + $0x48] sm:$0xf]
        %v2829 = vld [vmem:[%s5 + $0x4c] sm:$0xf]
        %v2830 = vld [vmem:[%s5 + $0x50] sm:$0xf]
        %v2831 = vld [vmem:[%s5 + $0x54] sm:$0xf]
        %v2832 = vld [vmem:[%s5 + $0x58] sm:$0xf]
        %v2833 = vld [vmem:[%s5 + $0x5c] sm:$0xf]
        %v2834 = vld [vmem:[%s5 + $0x60] sm:$0xf]
        %v2835 = vld [vmem:[%s5 + $0x64] sm:$0xf]
        %v2836 = vld [vmem:[%s5 + $0x68] sm:$0xf]
        %v2837 = vld [vmem:[%s5 + $0x6c] sm:$0xf]
        %v2838 = vld [vmem:[%s5 + $0x70] sm:$0xf]
        %v2839 = vld [vmem:[%s5 + $0x74] sm:$0xf]
        %v2840 = vld [vmem:[%s5 + $0x78] sm:$0xf]
        %v2841 = vld [vmem:[%s5 + $0x7c] sm:$0xf]
        %v2842 = vld [vmem:[%s5 + $0x80] sm:$0xf]
        %v2843 = vld [vmem:[%s5 + $0x84] sm:$0xf]
        %v2844 = vld [vmem:[%s5 + $0x88] sm:$0xf]
        %v2845 = vld [vmem:[%s5 + $0x8c] sm:$0xf]
        %v2846 = vld [vmem:[%s5 + $0x90] sm:$0xf]
        %v2847 = vld [vmem:[%s5 + $0x94] sm:$0xf]
        %v2848 = vld [vmem:[%s5 + $0x98] sm:$0xf]
        %v2849 = vld [vmem:[%s5 + $0x9c] sm:$0xf]
        %v2850 = vld [vmem:[%s5 + $0xa0] sm:$0xf]
        %v2851 = vld [vmem:[%s5 + $0xa4] sm:$0xf]
        %v2852 = vld [vmem:[%s5 + $0xa8] sm:$0xf]
        %v2853 = vld [vmem:[%s5 + $0xac] sm:$0xf]
        %v2854 = vld [vmem:[%s5 + $0xb0] sm:$0xf]
        %v2855 = vld [vmem:[%s5 + $0xb4] sm:$0xf]
        %v2856 = vld [vmem:[%s5 + $0xb8] sm:$0xf]
        %v2857 = vld [vmem:[%s5 + $0xbc] sm:$0xf]
        %v2858 = vpack.c.bf16 %v2687, %v2686
        %v2859 = vpack.c.bf16 %v2723, %v2722
        %v2860 = vpack.c.bf16 %v2759, %v2758
        %s2861 = scalar_lea.vmem %s5, 192
        %v2862 = vld [vmem:[%s2861] sm:$0xf]
        %v2863 = vld [vmem:[%s2861 + $0x4] sm:$0xf]
        %v2864 = vld [vmem:[%s2861 + $0x8] sm:$0xf]
        %v2865 = vld [vmem:[%s2861 + $0xc] sm:$0xf]
        %v2866 = vld [vmem:[%s2861 + $0x10] sm:$0xf]
        %v2867 = vld [vmem:[%s2861 + $0x14] sm:$0xf]
        %v2868 = vld [vmem:[%s2861 + $0x18] sm:$0xf]
        %v2869 = vld [vmem:[%s2861 + $0x1c] sm:$0xf]
        %v2870 = vld [vmem:[%s2861 + $0x20] sm:$0xf]
        %v2871 = vld [vmem:[%s2861 + $0x24] sm:$0xf]
        %v2872 = vld [vmem:[%s2861 + $0x28] sm:$0xf]
        %v2873 = vld [vmem:[%s2861 + $0x2c] sm:$0xf]
        %v2874 = vld [vmem:[%s2861 + $0x30] sm:$0xf]
        %v2875 = vld [vmem:[%s2861 + $0x34] sm:$0xf]
        %v2876 = vld [vmem:[%s2861 + $0x38] sm:$0xf]
        %v2877 = vld [vmem:[%s2861 + $0x3c] sm:$0xf]
        %v2878 = vld [vmem:[%s2861 + $0x40] sm:$0xf]
        %v2879 = vld [vmem:[%s2861 + $0x44] sm:$0xf]
        %v2880 = vld [vmem:[%s2861 + $0x48] sm:$0xf]
        %v2881 = vld [vmem:[%s2861 + $0x4c] sm:$0xf]
        %v2882 = vld [vmem:[%s2861 + $0x50] sm:$0xf]
        %v2883 = vld [vmem:[%s2861 + $0x54] sm:$0xf]
        %v2884 = vld [vmem:[%s2861 + $0x58] sm:$0xf]
        %v2885 = vld [vmem:[%s2861 + $0x5c] sm:$0xf]
        %v2886 = vld [vmem:[%s2861 + $0x60] sm:$0xf]
        %v2887 = vld [vmem:[%s2861 + $0x64] sm:$0xf]
        %v2888 = vld [vmem:[%s2861 + $0x68] sm:$0xf]
        %v2889 = vld [vmem:[%s2861 + $0x6c] sm:$0xf]
        %v2890 = vld [vmem:[%s2861 + $0x70] sm:$0xf]
        %v2891 = vld [vmem:[%s2861 + $0x74] sm:$0xf]
        %v2892 = vld [vmem:[%s2861 + $0x78] sm:$0xf]
        %v2893 = vld [vmem:[%s2861 + $0x7c] sm:$0xf]
        %v2894 = vld [vmem:[%s2861 + $0x80] sm:$0xf]
        %v2895 = vld [vmem:[%s2861 + $0x84] sm:$0xf]
        %v2896 = vld [vmem:[%s2861 + $0x88] sm:$0xf]
        %v2897 = vld [vmem:[%s2861 + $0x8c] sm:$0xf]
        %v2898 = vld [vmem:[%s2861 + $0x90] sm:$0xf]
        %v2899 = vld [vmem:[%s2861 + $0x94] sm:$0xf]
        %v2900 = vld [vmem:[%s2861 + $0x98] sm:$0xf]
        %v2901 = vld [vmem:[%s2861 + $0x9c] sm:$0xf]
        %v2902 = vld [vmem:[%s2861 + $0xa0] sm:$0xf]
        %v2903 = vld [vmem:[%s2861 + $0xa4] sm:$0xf]
        %v2904 = vld [vmem:[%s2861 + $0xa8] sm:$0xf]
        %v2905 = vld [vmem:[%s2861 + $0xac] sm:$0xf]
        %v2906 = vld [vmem:[%s2861 + $0xb0] sm:$0xf]
        %v2907 = vld [vmem:[%s2861 + $0xb4] sm:$0xf]
        %v2908 = vld [vmem:[%s2861 + $0xb8] sm:$0xf]
        %v2909 = vld [vmem:[%s2861 + $0xbc] sm:$0xf]
        %v2958 = vunpack.c.l.b16 %v2862
        %v2959 = vunpack.c.l.b16 %v2863
        %v2960 = vunpack.c.l.b16 %v2864
        %v2961 = vunpack.c.l.b16 %v2865
        %v2962 = vunpack.c.l.b16 %v2866
        %v2963 = vunpack.c.l.b16 %v2867
        %v2964 = vunpack.c.l.b16 %v2868
        %v2965 = vunpack.c.l.b16 %v2869
        %v2966 = vunpack.c.l.b16 %v2870
        %v2967 = vunpack.c.l.b16 %v2871
        %v2968 = vunpack.c.l.b16 %v2872
        %v2969 = vunpack.c.l.b16 %v2873
        %v2970 = vunpack.c.l.b16 %v2874
        %v2971 = vunpack.c.l.b16 %v2875
        %v2972 = vunpack.c.l.b16 %v2876
        %v2973 = vunpack.c.l.b16 %v2877
        %v2974 = vunpack.c.l.b16 %v2878
        %v2975 = vunpack.c.l.b16 %v2879
        %v2976 = vunpack.c.l.b16 %v2880
        %v2977 = vunpack.c.l.b16 %v2881
        %v2978 = vunpack.c.l.b16 %v2882
        %v2979 = vunpack.c.l.b16 %v2883
        %v2980 = vunpack.c.l.b16 %v2884
        %v2981 = vunpack.c.l.b16 %v2885
        %v2982 = vunpack.c.l.b16 %v2886
        %v2983 = vunpack.c.l.b16 %v2887
        %v2984 = vunpack.c.l.b16 %v2888
        %v2985 = vunpack.c.l.b16 %v2889
        %v2986 = vunpack.c.l.b16 %v2890
        %v2987 = vunpack.c.l.b16 %v2891
        %v2988 = vunpack.c.l.b16 %v2892
        %v2989 = vunpack.c.l.b16 %v2893
        %v2990 = vunpack.c.l.b16 %v2894
        %v2991 = vunpack.c.l.b16 %v2895
        %v2992 = vunpack.c.l.b16 %v2896
        %v2993 = vunpack.c.l.b16 %v2897
        %v2994 = vunpack.c.l.b16 %v2898
        %v2995 = vunpack.c.l.b16 %v2899
        %v2996 = vunpack.c.l.b16 %v2900
        %v2997 = vunpack.c.l.b16 %v2901
        %v2998 = vunpack.c.l.b16 %v2902
        %v2999 = vunpack.c.l.b16 %v2903
        %v3000 = vunpack.c.l.b16 %v2904
        %v3001 = vunpack.c.l.b16 %v2905
        %v3002 = vunpack.c.l.b16 %v2906
        %v3003 = vunpack.c.l.b16 %v2907
        %v3004 = vunpack.c.l.b16 %v2908
        %v3005 = vunpack.c.l.b16 %v2909
        %v3006 = vpack.c.b16 %v2959, %v2958
        %v3007 = vpack.c.b16 %v2961, %v2960
        %v3008 = vpack.c.b16 %v2963, %v2962
        %v3009 = vpack.c.b16 %v2965, %v2964
        %v3010 = vpack.c.b16 %v2967, %v2966
        %v3011 = vpack.c.b16 %v2969, %v2968
        %v3012 = vpack.c.b16 %v2971, %v2970
        %v3013 = vpack.c.b16 %v2973, %v2972
        %v3014 = vpack.c.b16 %v2975, %v2974
        %v3015 = vpack.c.b16 %v2977, %v2976
        %v3016 = vpack.c.b16 %v2979, %v2978
        %v3017 = vpack.c.b16 %v2981, %v2980
        %v3018 = vpack.c.b16 %v2983, %v2982
        %v3019 = vpack.c.b16 %v2985, %v2984
        %v3020 = vpack.c.b16 %v2987, %v2986
        %v3021 = vpack.c.b16 %v2989, %v2988
        %v3022 = vpack.c.b16 %v2991, %v2990
        %v3023 = vpack.c.b16 %v2993, %v2992
        %v3024 = vpack.c.b16 %v2995, %v2994
        %v3025 = vpack.c.b16 %v2997, %v2996
        %v3026 = vpack.c.b16 %v2999, %v2998
        %v3027 = vpack.c.b16 %v3001, %v3000
        %v3028 = vpack.c.b16 %v3003, %v3002
        %v3029 = vpack.c.b16 %v3005, %v3004
        %3054 = vmatprep.subr.bf16.mxu0 0
        %3055 = vmatpush1.bf16.msra.mxu0 %v3006
        %3056 = vmatprep.subr.bf16.mxu0 0
        %3057 = vmatpush1.bf16.msra.mxu0 %v3007
        %3058 = vmatprep.subr.bf16.mxu0 0
        %3059 = vmatpush1.bf16.msra.mxu0 %v3008
        %3060 = vmatprep.subr.bf16.mxu0 0
        %3061 = vmatpush1.bf16.msra.mxu0 %v3009
        %3062 = vmatprep.subr.bf16.mxu0 0
        %3063 = vmatpush1.bf16.msra.mxu0 %v3010
        %3064 = vmatprep.subr.bf16.mxu0 0
        %3065 = vmatpush1.bf16.msra.mxu0 %v3011
        %3066 = vmatprep.subr.bf16.mxu0 0
        %3067 = vmatpush1.bf16.msra.mxu0 %v3012
        %3068 = vmatprep.subr.bf16.mxu0 0
        %3069 = vmatpush1.bf16.msra.mxu0 %v3013
        %3070 = vmatprep.subr.bf16.mxu0 0
        %3071 = vmatpush1.bf16.msra.mxu0 %v3014
        %3072 = vmatprep.subr.bf16.mxu0 0
        %3073 = vmatpush1.bf16.msra.mxu0 %v3015
        %3074 = vmatprep.subr.bf16.mxu0 0
        %3075 = vmatpush1.bf16.msra.mxu0 %v3016
        %3076 = vmatprep.subr.bf16.mxu0 0
        %3077 = vmatpush1.bf16.msra.mxu0 %v3017
        %3078 = vmatprep.subr.bf16.mxu0 0
        %3079 = vmatpush1.bf16.msra.mxu0 %v3018
        %3080 = vmatprep.subr.bf16.mxu0 0
        %3081 = vmatpush1.bf16.msra.mxu0 %v3019
        %3082 = vmatprep.subr.bf16.mxu0 0
        %3083 = vmatpush1.bf16.msra.mxu0 %v3020
        %3084 = vmatprep.subr.bf16.mxu0 0
        %3085 = vmatpush1.bf16.msra.mxu0 %v3021
        %3086 = vmatprep.mubr.bf16.mxu0 %v2766
        %3087 = vmatmul.mubr.bf16.gmra.mrb[0].mxu0 %v2765
        %v3088 = vpop.f32.mrb[0].mxu0
        %v3089 = vadd.f32 0.0, %v3088
        %v3090 = vpop.f32.mrb[0].mxu0
        %v3091 = vpop.f32.mrb[0].mxu0
        %v3092 = vadd.f32 0.0, %v3091
        %v3093 = vpop.f32.mrb[0].mxu0
        %3094 = vmatprep.mubr.bf16.mxu0 %v2769
        %3095 = vmatmul.mubr.bf16.gmra.mrb[0].mxu0 %v2768
        %v3096 = vpop.f32.mrb[0].mxu0
        %v3097 = vadd.f32 0.0, %v3096
        %v3098 = vpop.f32.mrb[0].mxu0
        %v3099 = vpop.f32.mrb[0].mxu0
        %v3100 = vadd.f32 0.0, %v3099
        %v3101 = vpop.f32.mrb[0].mxu0
        %3102 = vmatprep.mubr.bf16.mxu0 %v2772
        %3103 = vmatmul.mubr.bf16.gmra.mrb[0].mxu0 %v2771
        %v3104 = vpop.f32.mrb[0].mxu0
        %v3105 = vadd.f32 0.0, %v3104
        %v3106 = vpop.f32.mrb[0].mxu0
        %v3107 = vpop.f32.mrb[0].mxu0
        %v3108 = vadd.f32 0.0, %v3107
        %v3109 = vpop.f32.mrb[0].mxu0
        %3110 = vmatprep.mubr.bf16.mxu0 %v2775
        %3111 = vmatmul.mubr.bf16.gmra.mrb[0].mxu0 %v2774
        %v3112 = vpop.f32.mrb[0].mxu0
        %v3113 = vadd.f32 0.0, %v3112
        %v3114 = vpop.f32.mrb[0].mxu0
        %v3115 = vpop.f32.mrb[0].mxu0
        %v3116 = vadd.f32 0.0, %v3115
        %v3117 = vpop.f32.mrb[0].mxu0
        %3118 = vmatprep.mubr.bf16.mxu0 %v2778
        %3119 = vmatmul.mubr.bf16.gmra.mrb[0].mxu0 %v2777
        %v3120 = vpop.f32.mrb[0].mxu0
        %v3121 = vadd.f32 0.0, %v3120
        %v3122 = vpop.f32.mrb[0].mxu0
        %v3123 = vpop.f32.mrb[0].mxu0
        %v3124 = vadd.f32 0.0, %v3123
        %v3125 = vpop.f32.mrb[0].mxu0
        %3126 = vmatprep.mubr.bf16.mxu0 %v2781
        %3127 = vmatmul.mubr.bf16.gmra.mrb[0].mxu0 %v2780
        %v3128 = vpop.f32.mrb[0].mxu0
        %v3129 = vadd.f32 0.0, %v3128
        %v3130 = vpop.f32.mrb[0].mxu0
        %v3131 = vpop.f32.mrb[0].mxu0
        %v3132 = vadd.f32 0.0, %v3131
        %v3133 = vpop.f32.mrb[0].mxu0
        %3134 = vmatprep.mubr.bf16.mxu0 %v2784
        %3135 = vmatmul.mubr.bf16.gmra.mrb[0].mxu0 %v2783
        %v3136 = vpop.f32.mrb[0].mxu0
        %v3137 = vadd.f32 0.0, %v3136
        %v3138 = vpop.f32.mrb[0].mxu0
        %v3139 = vpop.f32.mrb[0].mxu0
        %v3140 = vadd.f32 0.0, %v3139
        %v3141 = vpop.f32.mrb[0].mxu0
        %3142 = vmatprep.mubr.bf16.mxu0 %v2787
        %3143 = vmatmul.mubr.bf16.gmra.mrb[0].mxu0 %v2786
        %v3144 = vpop.f32.mrb[0].mxu0
        %v3145 = vadd.f32 0.0, %v3144
        %v3146 = vpop.f32.mrb[0].mxu0
        %v3147 = vpop.f32.mrb[0].mxu0
        %v3148 = vadd.f32 0.0, %v3147
        %v3149 = vpop.f32.mrb[0].mxu0
        %3150 = vmatprep.mubr.bf16.mxu0 %v2790
        %3151 = vmatmul.mubr.bf16.gmra.mrb[0].mxu0 %v2789
        %v3152 = vpop.f32.mrb[0].mxu0
        %v3153 = vadd.f32 0.0, %v3152
        %v3154 = vpop.f32.mrb[0].mxu0
        %v3155 = vpop.f32.mrb[0].mxu0
        %v3156 = vadd.f32 0.0, %v3155
        %v3157 = vpop.f32.mrb[0].mxu0
        %3158 = vmatprep.mubr.bf16.mxu0 %v2793
        %3159 = vmatmul.mubr.bf16.gmra.mrb[0].mxu0 %v2792
        %v3160 = vpop.f32.mrb[0].mxu0
        %v3161 = vadd.f32 0.0, %v3160
        %v3162 = vpop.f32.mrb[0].mxu0
        %v3163 = vpop.f32.mrb[0].mxu0
        %v3164 = vadd.f32 0.0, %v3163
        %v3165 = vpop.f32.mrb[0].mxu0
        %3166 = vmatprep.mubr.bf16.mxu0 %v2796
        %3167 = vmatmul.mubr.bf16.gmra.mrb[0].mxu0 %v2795
        %v3168 = vpop.f32.mrb[0].mxu0
        %v3169 = vadd.f32 0.0, %v3168
        %v3170 = vpop.f32.mrb[0].mxu0
        %v3171 = vpop.f32.mrb[0].mxu0
        %v3172 = vadd.f32 0.0, %v3171
        %v3173 = vpop.f32.mrb[0].mxu0
        %3174 = vmatprep.mubr.bf16.mxu0 %v2799
        %3175 = vmatmul.mubr.bf16.gmra.mrb[0].mxu0 %v2798
        %v3176 = vpop.f32.mrb[0].mxu0
        %v3177 = vadd.f32 0.0, %v3176
        %v3178 = vpop.f32.mrb[0].mxu0
        %v3179 = vpop.f32.mrb[0].mxu0
        %v3180 = vadd.f32 0.0, %v3179
        %v3181 = vpop.f32.mrb[0].mxu0
        %3182 = vmatprep.mubr.bf16.mxu0 %v2802
        %3183 = vmatmul.mubr.bf16.gmra.mrb[0].mxu0 %v2801
        %v3184 = vpop.f32.mrb[0].mxu0
        %v3185 = vadd.f32 0.0, %v3184
        %v3186 = vpop.f32.mrb[0].mxu0
        %v3187 = vpop.f32.mrb[0].mxu0
        %v3188 = vadd.f32 0.0, %v3187
        %v3189 = vpop.f32.mrb[0].mxu0
        %3190 = vmatprep.mubr.bf16.mxu0 %v2805
        %3191 = vmatmul.mubr.bf16.gmra.mrb[0].mxu0 %v2804
        %v3192 = vpop.f32.mrb[0].mxu0
        %v3193 = vadd.f32 0.0, %v3192
        %v3194 = vpop.f32.mrb[0].mxu0
        %v3195 = vpop.f32.mrb[0].mxu0
        %v3196 = vadd.f32 0.0, %v3195
        %v3197 = vpop.f32.mrb[0].mxu0
        %3198 = vmatprep.mubr.bf16.mxu0 %v2808
        %3199 = vmatmul.mubr.bf16.gmra.mrb[0].mxu0 %v2807
        %v3200 = vpop.f32.mrb[0].mxu0
        %v3201 = vadd.f32 0.0, %v3200
        %v3202 = vpop.f32.mrb[0].mxu0
        %v3203 = vpop.f32.mrb[0].mxu0
        %v3204 = vadd.f32 0.0, %v3203
        %v3205 = vpop.f32.mrb[0].mxu0
        %3206 = vmatprep.mubr.bf16.mxu0 %v2859
        %3207 = vmatmul.mubr.bf16.gmra.mrb[0].mxu0 %v2858
        %v3208 = vpop.f32.mrb[0].mxu0
        %v3209 = vadd.f32 0.0, %v3208
        %v3210 = vpop.f32.mrb[0].mxu0
        %v3211 = vpop.f32.mrb[0].mxu0
        %v3212 = vadd.f32 0.0, %v3211
        %v3213 = vpop.f32.mrb[0].mxu0
        %3214 = vdwg.mxu0
        %3215 = vmatprep.subr.bf16.mxu0 0
        %3216 = vmatpush1.bf16.msra.mxu0 %v3022
        %3217 = vmatprep.subr.bf16.mxu0 0
        %3218 = vmatpush1.bf16.msra.mxu0 %v3023
        %3219 = vmatprep.subr.bf16.mxu0 0
        %3220 = vmatpush1.bf16.msra.mxu0 %v3024
        %3221 = vmatprep.subr.bf16.mxu0 0
        %3222 = vmatpush1.bf16.msra.mxu0 %v3025
        %3223 = vmatprep.subr.bf16.mxu0 0
        %3224 = vmatpush1.bf16.msra.mxu0 %v3026
        %3225 = vmatprep.subr.bf16.mxu0 0
        %3226 = vmatpush1.bf16.msra.mxu0 %v3027
        %3227 = vmatprep.subr.bf16.mxu0 0
        %3228 = vmatpush1.bf16.msra.mxu0 %v3028
        %3229 = vmatprep.subr.bf16.mxu0 0
        %3230 = vmatpush1.bf16.msra.mxu0 %v3029
        %3231 = vmatprep.subr.bf16.mxu0 0
        %3232 = vmatpush1.bf16.msra.mxu0 0
        %3233 = vmatprep.subr.bf16.mxu0 0
        %3234 = vmatpush1.bf16.msra.mxu0 0
        %3235 = vmatprep.subr.bf16.mxu0 0
        %3236 = vmatpush1.bf16.msra.mxu0 0
        %3237 = vmatprep.subr.bf16.mxu0 0
        %3238 = vmatpush1.bf16.msra.mxu0 0
        %3239 = vmatprep.subr.bf16.mxu0 0
        %3240 = vmatpush1.bf16.msra.mxu0 0
        %3241 = vmatprep.subr.bf16.mxu0 0
        %3242 = vmatpush1.bf16.msra.mxu0 0
        %3243 = vmatprep.subr.bf16.mxu0 0
        %3244 = vmatpush1.bf16.msra.mxu0 0
        %3245 = vmatprep.subr.bf16.mxu0 0
        %3246 = vmatpush1.bf16.msra.mxu0 0
        %3247 = vmatprep.mubr.bf16.mxu0 0
        %3248 = vmatmul.mubr.bf16.gmra.mrb[0].mxu0 %v2767
        %v3249 = vpop.f32.mrb[0].mxu0
        %v3250 = vadd.f32 %v3089, %v3249
        %v3251 = vpop.f32.mrb[0].mxu0
        %v3252 = vpop.f32.mrb[0].mxu0
        %v3253 = vadd.f32 %v3092, %v3252
        %v3254 = vpop.f32.mrb[0].mxu0
        %3255 = vmatprep.mubr.bf16.mxu0 0
        %3256 = vmatmul.mubr.bf16.gmra.mrb[0].mxu0 %v2770
        %v3257 = vpop.f32.mrb[0].mxu0
        %v3258 = vadd.f32 %v3097, %v3257
        %v3259 = vpop.f32.mrb[0].mxu0
        %v3260 = vpop.f32.mrb[0].mxu0
        %v3261 = vadd.f32 %v3100, %v3260
        %v3262 = vpop.f32.mrb[0].mxu0
        %3263 = vmatprep.mubr.bf16.mxu0 0
        %3264 = vmatmul.mubr.bf16.gmra.mrb[0].mxu0 %v2773
        %v3265 = vpop.f32.mrb[0].mxu0
        %v3266 = vadd.f32 %v3105, %v3265
        %v3267 = vpop.f32.mrb[0].mxu0
        %v3268 = vpop.f32.mrb[0].mxu0
        %v3269 = vadd.f32 %v3108, %v3268
        %v3270 = vpop.f32.mrb[0].mxu0
        %3271 = vmatprep.mubr.bf16.mxu0 0
        %3272 = vmatmul.mubr.bf16.gmra.mrb[0].mxu0 %v2776
        %v3273 = vpop.f32.mrb[0].mxu0
        %v3274 = vadd.f32 %v3113, %v3273
        %v3275 = vpop.f32.mrb[0].mxu0
        %v3276 = vpop.f32.mrb[0].mxu0
        %v3277 = vadd.f32 %v3116, %v3276
        %v3278 = vpop.f32.mrb[0].mxu0
        %3279 = vmatprep.mubr.bf16.mxu0 0
        %3280 = vmatmul.mubr.bf16.gmra.mrb[0].mxu0 %v2779
        %v3281 = vpop.f32.mrb[0].mxu0
        %v3282 = vadd.f32 %v3121, %v3281
        %v3283 = vpop.f32.mrb[0].mxu0
        %v3284 = vpop.f32.mrb[0].mxu0
        %v3285 = vadd.f32 %v3124, %v3284
        %v3286 = vpop.f32.mrb[0].mxu0
        %3287 = vmatprep.mubr.bf16.mxu0 0
        %3288 = vmatmul.mubr.bf16.gmra.mrb[0].mxu0 %v2782
        %v3289 = vpop.f32.mrb[0].mxu0
        %v3290 = vadd.f32 %v3129, %v3289
        %v3291 = vpop.f32.mrb[0].mxu0
        %v3292 = vpop.f32.mrb[0].mxu0
        %v3293 = vadd.f32 %v3132, %v3292
        %v3294 = vpop.f32.mrb[0].mxu0
        %3295 = vmatprep.mubr.bf16.mxu0 0
        %3296 = vmatmul.mubr.bf16.gmra.mrb[0].mxu0 %v2785
        %v3297 = vpop.f32.mrb[0].mxu0
        %v3298 = vadd.f32 %v3137, %v3297
        %v3299 = vpop.f32.mrb[0].mxu0
        %v3300 = vpop.f32.mrb[0].mxu0
        %v3301 = vadd.f32 %v3140, %v3300
        %v3302 = vpop.f32.mrb[0].mxu0
        %3303 = vmatprep.mubr.bf16.mxu0 0
        %3304 = vmatmul.mubr.bf16.gmra.mrb[0].mxu0 %v2788
        %v3305 = vpop.f32.mrb[0].mxu0
        %v3306 = vadd.f32 %v3145, %v3305
        %v3307 = vpop.f32.mrb[0].mxu0
        %v3308 = vpop.f32.mrb[0].mxu0
        %v3309 = vadd.f32 %v3148, %v3308
        %v3310 = vpop.f32.mrb[0].mxu0
        %3311 = vmatprep.mubr.bf16.mxu0 0
        %3312 = vmatmul.mubr.bf16.gmra.mrb[0].mxu0 %v2791
        %v3313 = vpop.f32.mrb[0].mxu0
        %v3314 = vadd.f32 %v3153, %v3313
        %v3315 = vpop.f32.mrb[0].mxu0
        %v3316 = vpop.f32.mrb[0].mxu0
        %v3317 = vadd.f32 %v3156, %v3316
        %v3318 = vpop.f32.mrb[0].mxu0
        %3319 = vmatprep.mubr.bf16.mxu0 0
        %3320 = vmatmul.mubr.bf16.gmra.mrb[0].mxu0 %v2794
        %v3321 = vpop.f32.mrb[0].mxu0
        %v3322 = vadd.f32 %v3161, %v3321
        %v3323 = vpop.f32.mrb[0].mxu0
        %v3324 = vpop.f32.mrb[0].mxu0
        %v3325 = vadd.f32 %v3164, %v3324
        %v3326 = vpop.f32.mrb[0].mxu0
        %3327 = vmatprep.mubr.bf16.mxu0 0
        %3328 = vmatmul.mubr.bf16.gmra.mrb[0].mxu0 %v2797
        %v3329 = vpop.f32.mrb[0].mxu0
        %v3330 = vadd.f32 %v3169, %v3329
        %v3331 = vpop.f32.mrb[0].mxu0
        %v3332 = vpop.f32.mrb[0].mxu0
        %v3333 = vadd.f32 %v3172, %v3332
        %v3334 = vpop.f32.mrb[0].mxu0
        %3335 = vmatprep.mubr.bf16.mxu0 0
        %3336 = vmatmul.mubr.bf16.gmra.mrb[0].mxu0 %v2800
        %v3337 = vpop.f32.mrb[0].mxu0
        %v3338 = vadd.f32 %v3177, %v3337
        %v3339 = vpop.f32.mrb[0].mxu0
        %v3340 = vpop.f32.mrb[0].mxu0
        %v3341 = vadd.f32 %v3180, %v3340
        %v3342 = vpop.f32.mrb[0].mxu0
        %3343 = vmatprep.mubr.bf16.mxu0 0
        %3344 = vmatmul.mubr.bf16.gmra.mrb[0].mxu0 %v2803
        %v3345 = vpop.f32.mrb[0].mxu0
        %v3346 = vadd.f32 %v3185, %v3345
        %v3347 = vpop.f32.mrb[0].mxu0
        %v3348 = vpop.f32.mrb[0].mxu0
        %v3349 = vadd.f32 %v3188, %v3348
        %v3350 = vpop.f32.mrb[0].mxu0
        %3351 = vmatprep.mubr.bf16.mxu0 0
        %3352 = vmatmul.mubr.bf16.gmra.mrb[0].mxu0 %v2806
        %v3353 = vpop.f32.mrb[0].mxu0
        %v3354 = vadd.f32 %v3193, %v3353
        %v3355 = vpop.f32.mrb[0].mxu0
        %v3356 = vpop.f32.mrb[0].mxu0
        %v3357 = vadd.f32 %v3196, %v3356
        %v3358 = vpop.f32.mrb[0].mxu0
        %3359 = vmatprep.mubr.bf16.mxu0 0
        %3360 = vmatmul.mubr.bf16.gmra.mrb[0].mxu0 %v2809
        %v3361 = vpop.f32.mrb[0].mxu0
        %v3362 = vadd.f32 %v3201, %v3361
        %v3363 = vpop.f32.mrb[0].mxu0
        %v3364 = vpop.f32.mrb[0].mxu0
        %v3365 = vadd.f32 %v3204, %v3364
        %v3366 = vpop.f32.mrb[0].mxu0
        %3367 = vmatprep.mubr.bf16.mxu0 0
        %3368 = vmatmul.mubr.bf16.gmra.mrb[0].mxu0 %v2860
        %v3369 = vpop.f32.mrb[0].mxu0
        %v3370 = vadd.f32 %v3209, %v3369
        %v3371 = vpop.f32.mrb[0].mxu0
        %v3372 = vpop.f32.mrb[0].mxu0
        %v3373 = vadd.f32 %v3212, %v3372
        %v3374 = vpop.f32.mrb[0].mxu0
        %3375 = vdwg.mxu0
        %v3424 = vunpack.c.l.b16 %v2810
        %v3425 = vunpack.c.l.b16 %v2811
        %v3426 = vunpack.c.l.b16 %v2812
        %v3427 = vunpack.c.l.b16 %v2813
        %v3428 = vunpack.c.l.b16 %v2814
        %v3429 = vunpack.c.l.b16 %v2815
        %v3430 = vunpack.c.l.b16 %v2816
        %v3431 = vunpack.c.l.b16 %v2817
        %v3432 = vunpack.c.l.b16 %v2818
        %v3433 = vunpack.c.l.b16 %v2819
        %v3434 = vunpack.c.l.b16 %v2820
        %v3435 = vunpack.c.l.b16 %v2821
        %v3436 = vunpack.c.l.b16 %v2822
        %v3437 = vunpack.c.l.b16 %v2823
        %v3438 = vunpack.c.l.b16 %v2824
        %v3439 = vunpack.c.l.b16 %v2825
        %v3440 = vunpack.c.l.b16 %v2826
        %v3441 = vunpack.c.l.b16 %v2827
        %v3442 = vunpack.c.l.b16 %v2828
        %v3443 = vunpack.c.l.b16 %v2829
        %v3444 = vunpack.c.l.b16 %v2830
        %v3445 = vunpack.c.l.b16 %v2831
        %v3446 = vunpack.c.l.b16 %v2832
        %v3447 = vunpack.c.l.b16 %v2833
        %v3448 = vunpack.c.l.b16 %v2834
        %v3449 = vunpack.c.l.b16 %v2835
        %v3450 = vunpack.c.l.b16 %v2836
        %v3451 = vunpack.c.l.b16 %v2837
        %v3452 = vunpack.c.l.b16 %v2838
        %v3453 = vunpack.c.l.b16 %v2839
        %v3454 = vunpack.c.l.b16 %v2840
        %v3455 = vunpack.c.l.b16 %v2841
        %v3456 = vunpack.c.l.b16 %v2842
        %v3457 = vunpack.c.l.b16 %v2843
        %v3458 = vunpack.c.l.b16 %v2844
        %v3459 = vunpack.c.l.b16 %v2845
        %v3460 = vunpack.c.l.b16 %v2846
        %v3461 = vunpack.c.l.b16 %v2847
        %v3462 = vunpack.c.l.b16 %v2848
        %v3463 = vunpack.c.l.b16 %v2849
        %v3464 = vunpack.c.l.b16 %v2850
        %v3465 = vunpack.c.l.b16 %v2851
        %v3466 = vunpack.c.l.b16 %v2852
        %v3467 = vunpack.c.l.b16 %v2853
        %v3468 = vunpack.c.l.b16 %v2854
        %v3469 = vunpack.c.l.b16 %v2855
        %v3470 = vunpack.c.l.b16 %v2856
        %v3471 = vunpack.c.l.b16 %v2857
        %v3472 = vpack.c.b16 %v3425, %v3424
        %v3473 = vpack.c.b16 %v3427, %v3426
        %v3474 = vpack.c.b16 %v3429, %v3428
        %v3475 = vpack.c.b16 %v3431, %v3430
        %v3476 = vpack.c.b16 %v3433, %v3432
        %v3477 = vpack.c.b16 %v3435, %v3434
        %v3478 = vpack.c.b16 %v3437, %v3436
        %v3479 = vpack.c.b16 %v3439, %v3438
        %v3480 = vpack.c.b16 %v3441, %v3440
        %v3481 = vpack.c.b16 %v3443, %v3442
        %v3482 = vpack.c.b16 %v3445, %v3444
        %v3483 = vpack.c.b16 %v3447, %v3446
        %v3484 = vpack.c.b16 %v3449, %v3448
        %v3485 = vpack.c.b16 %v3451, %v3450
        %v3486 = vpack.c.b16 %v3453, %v3452
        %v3487 = vpack.c.b16 %v3455, %v3454
        %v3488 = vpack.c.b16 %v3457, %v3456
        %v3489 = vpack.c.b16 %v3459, %v3458
        %v3490 = vpack.c.b16 %v3461, %v3460
        %v3491 = vpack.c.b16 %v3463, %v3462
        %v3492 = vpack.c.b16 %v3465, %v3464
        %v3493 = vpack.c.b16 %v3467, %v3466
        %v3494 = vpack.c.b16 %v3469, %v3468
        %v3495 = vpack.c.b16 %v3471, %v3470
        %3520 = vmatprep.subr.bf16.mxu0 0
        %3521 = vmatpush1.bf16.msra.mxu0 %v3472
        %3522 = vmatprep.subr.bf16.mxu0 0
        %3523 = vmatpush1.bf16.msra.mxu0 %v3473
        %3524 = vmatprep.subr.bf16.mxu0 0
        %3525 = vmatpush1.bf16.msra.mxu0 %v3474
        %3526 = vmatprep.subr.bf16.mxu0 0
        %3527 = vmatpush1.bf16.msra.mxu0 %v3475
        %3528 = vmatprep.subr.bf16.mxu0 0
        %3529 = vmatpush1.bf16.msra.mxu0 %v3476
        %3530 = vmatprep.subr.bf16.mxu0 0
        %3531 = vmatpush1.bf16.msra.mxu0 %v3477
        %3532 = vmatprep.subr.bf16.mxu0 0
        %3533 = vmatpush1.bf16.msra.mxu0 %v3478
        %3534 = vmatprep.subr.bf16.mxu0 0
        %3535 = vmatpush1.bf16.msra.mxu0 %v3479
        %3536 = vmatprep.subr.bf16.mxu0 0
        %3537 = vmatpush1.bf16.msra.mxu0 %v3480
        %3538 = vmatprep.subr.bf16.mxu0 0
        %3539 = vmatpush1.bf16.msra.mxu0 %v3481
        %3540 = vmatprep.subr.bf16.mxu0 0
        %3541 = vmatpush1.bf16.msra.mxu0 %v3482
        %3542 = vmatprep.subr.bf16.mxu0 0
        %3543 = vmatpush1.bf16.msra.mxu0 %v3483
        %3544 = vmatprep.subr.bf16.mxu0 0
        %3545 = vmatpush1.bf16.msra.mxu0 %v3484
        %3546 = vmatprep.subr.bf16.mxu0 0
        %3547 = vmatpush1.bf16.msra.mxu0 %v3485
        %3548 = vmatprep.subr.bf16.mxu0 0
        %3549 = vmatpush1.bf16.msra.mxu0 %v3486
        %3550 = vmatprep.subr.bf16.mxu0 0
        %3551 = vmatpush1.bf16.msra.mxu0 %v3487
        %3552 = vmatprep.mubr.bf16.mxu0 %v2763
        %3553 = vmatmul.mubr.bf16.gmra.mrb[0].mxu0 %v2762
        %v3554 = vpop.f32.mrb[0].mxu0
        %v3555 = vadd.f32 %v3250, %v3554
        %v3556 = vpop.f32.mrb[0].mxu0
        %v3557 = vpop.f32.mrb[0].mxu0
        %v3558 = vadd.f32 %v3253, %v3557
        %v3559 = vpop.f32.mrb[0].mxu0
        %3560 = vmatprep.mubr.bf16.mxu0 %v2766
        %3561 = vmatmul.mubr.bf16.gmra.mrb[0].mxu0 %v2765
        %v3562 = vpop.f32.mrb[0].mxu0
        %v3563 = vadd.f32 %v3258, %v3562
        %v3564 = vpop.f32.mrb[0].mxu0
        %v3565 = vpop.f32.mrb[0].mxu0
        %v3566 = vadd.f32 %v3261, %v3565
        %v3567 = vpop.f32.mrb[0].mxu0
        %3568 = vmatprep.mubr.bf16.mxu0 %v2769
        %3569 = vmatmul.mubr.bf16.gmra.mrb[0].mxu0 %v2768
        %v3570 = vpop.f32.mrb[0].mxu0
        %v3571 = vadd.f32 %v3266, %v3570
        %v3572 = vpop.f32.mrb[0].mxu0
        %v3573 = vpop.f32.mrb[0].mxu0
        %v3574 = vadd.f32 %v3269, %v3573
        %v3575 = vpop.f32.mrb[0].mxu0
        %3576 = vmatprep.mubr.bf16.mxu0 %v2772
        %3577 = vmatmul.mubr.bf16.gmra.mrb[0].mxu0 %v2771
        %v3578 = vpop.f32.mrb[0].mxu0
        %v3579 = vadd.f32 %v3274, %v3578
        %v3580 = vpop.f32.mrb[0].mxu0
        %v3581 = vpop.f32.mrb[0].mxu0
        %v3582 = vadd.f32 %v3277, %v3581
        %v3583 = vpop.f32.mrb[0].mxu0
        %3584 = vmatprep.mubr.bf16.mxu0 %v2775
        %3585 = vmatmul.mubr.bf16.gmra.mrb[0].mxu0 %v2774
        %v3586 = vpop.f32.mrb[0].mxu0
        %v3587 = vadd.f32 %v3282, %v3586
        %v3588 = vpop.f32.mrb[0].mxu0
        %v3589 = vpop.f32.mrb[0].mxu0
        %v3590 = vadd.f32 %v3285, %v3589
        %v3591 = vpop.f32.mrb[0].mxu0
        %3592 = vmatprep.mubr.bf16.mxu0 %v2778
        %3593 = vmatmul.mubr.bf16.gmra.mrb[0].mxu0 %v2777
        %v3594 = vpop.f32.mrb[0].mxu0
        %v3595 = vadd.f32 %v3290, %v3594
        %v3596 = vpop.f32.mrb[0].mxu0
        %v3597 = vpop.f32.mrb[0].mxu0
        %v3598 = vadd.f32 %v3293, %v3597
        %v3599 = vpop.f32.mrb[0].mxu0
        %3600 = vmatprep.mubr.bf16.mxu0 %v2781
        %3601 = vmatmul.mubr.bf16.gmra.mrb[0].mxu0 %v2780
        %v3602 = vpop.f32.mrb[0].mxu0
        %v3603 = vadd.f32 %v3298, %v3602
        %v3604 = vpop.f32.mrb[0].mxu0
        %v3605 = vpop.f32.mrb[0].mxu0
        %v3606 = vadd.f32 %v3301, %v3605
        %v3607 = vpop.f32.mrb[0].mxu0
        %3608 = vmatprep.mubr.bf16.mxu0 %v2784
        %3609 = vmatmul.mubr.bf16.gmra.mrb[0].mxu0 %v2783
        %v3610 = vpop.f32.mrb[0].mxu0
        %v3611 = vadd.f32 %v3306, %v3610
        %v3612 = vpop.f32.mrb[0].mxu0
        %v3613 = vpop.f32.mrb[0].mxu0
        %v3614 = vadd.f32 %v3309, %v3613
        %v3615 = vpop.f32.mrb[0].mxu0
        %3616 = vmatprep.mubr.bf16.mxu0 %v2787
        %3617 = vmatmul.mubr.bf16.gmra.mrb[0].mxu0 %v2786
        %v3618 = vpop.f32.mrb[0].mxu0
        %v3619 = vadd.f32 %v3314, %v3618
        %v3620 = vpop.f32.mrb[0].mxu0
        %v3621 = vpop.f32.mrb[0].mxu0
        %v3622 = vadd.f32 %v3317, %v3621
        %v3623 = vpop.f32.mrb[0].mxu0
        %3624 = vmatprep.mubr.bf16.mxu0 %v2790
        %3625 = vmatmul.mubr.bf16.gmra.mrb[0].mxu0 %v2789
        %v3626 = vpop.f32.mrb[0].mxu0
        %v3627 = vadd.f32 %v3322, %v3626
        %v3628 = vpop.f32.mrb[0].mxu0
        %v3629 = vpop.f32.mrb[0].mxu0
        %v3630 = vadd.f32 %v3325, %v3629
        %v3631 = vpop.f32.mrb[0].mxu0
        %3632 = vmatprep.mubr.bf16.mxu0 %v2793
        %3633 = vmatmul.mubr.bf16.gmra.mrb[0].mxu0 %v2792
        %v3634 = vpop.f32.mrb[0].mxu0
        %v3635 = vadd.f32 %v3330, %v3634
        %v3636 = vpop.f32.mrb[0].mxu0
        %v3637 = vpop.f32.mrb[0].mxu0
        %v3638 = vadd.f32 %v3333, %v3637
        %v3639 = vpop.f32.mrb[0].mxu0
        %3640 = vmatprep.mubr.bf16.mxu0 %v2796
        %3641 = vmatmul.mubr.bf16.gmra.mrb[0].mxu0 %v2795
        %v3642 = vpop.f32.mrb[0].mxu0
        %v3643 = vadd.f32 %v3338, %v3642
        %v3644 = vpop.f32.mrb[0].mxu0
        %v3645 = vpop.f32.mrb[0].mxu0
        %v3646 = vadd.f32 %v3341, %v3645
        %v3647 = vpop.f32.mrb[0].mxu0
        %3648 = vmatprep.mubr.bf16.mxu0 %v2799
        %3649 = vmatmul.mubr.bf16.gmra.mrb[0].mxu0 %v2798
        %v3650 = vpop.f32.mrb[0].mxu0
        %v3651 = vadd.f32 %v3346, %v3650
        %v3652 = vpop.f32.mrb[0].mxu0
        %v3653 = vpop.f32.mrb[0].mxu0
        %v3654 = vadd.f32 %v3349, %v3653
        %v3655 = vpop.f32.mrb[0].mxu0
        %3656 = vmatprep.mubr.bf16.mxu0 %v2802
        %3657 = vmatmul.mubr.bf16.gmra.mrb[0].mxu0 %v2801
        %v3658 = vpop.f32.mrb[0].mxu0
        %v3659 = vadd.f32 %v3354, %v3658
        %v3660 = vpop.f32.mrb[0].mxu0
        %v3661 = vpop.f32.mrb[0].mxu0
        %v3662 = vadd.f32 %v3357, %v3661
        %v3663 = vpop.f32.mrb[0].mxu0
        %3664 = vmatprep.mubr.bf16.mxu0 %v2805
        %3665 = vmatmul.mubr.bf16.gmra.mrb[0].mxu0 %v2804
        %v3666 = vpop.f32.mrb[0].mxu0
        %v3667 = vadd.f32 %v3362, %v3666
        %v3668 = vpop.f32.mrb[0].mxu0
        %v3669 = vpop.f32.mrb[0].mxu0
        %v3670 = vadd.f32 %v3365, %v3669
        %v3671 = vpop.f32.mrb[0].mxu0
        %3672 = vmatprep.mubr.bf16.mxu0 %v2808
        %3673 = vmatmul.mubr.bf16.gmra.mrb[0].mxu0 %v2807
        %v3674 = vpop.f32.mrb[0].mxu0
        %v3675 = vadd.f32 %v3370, %v3674
        %v3676 = vpop.f32.mrb[0].mxu0
        %v3677 = vpop.f32.mrb[0].mxu0
        %v3678 = vadd.f32 %v3373, %v3677
        %v3679 = vpop.f32.mrb[0].mxu0
        %3680 = vdwg.mxu0
        %3681 = vmatprep.subr.bf16.mxu0 0
        %3682 = vmatpush1.bf16.msra.mxu0 %v3488
        %3683 = vmatprep.subr.bf16.mxu0 0
        %3684 = vmatpush1.bf16.msra.mxu0 %v3489
        %3685 = vmatprep.subr.bf16.mxu0 0
        %3686 = vmatpush1.bf16.msra.mxu0 %v3490
        %3687 = vmatprep.subr.bf16.mxu0 0
        %3688 = vmatpush1.bf16.msra.mxu0 %v3491
        %3689 = vmatprep.subr.bf16.mxu0 0
        %3690 = vmatpush1.bf16.msra.mxu0 %v3492
        %3691 = vmatprep.subr.bf16.mxu0 0
        %3692 = vmatpush1.bf16.msra.mxu0 %v3493
        %3693 = vmatprep.subr.bf16.mxu0 0
        %3694 = vmatpush1.bf16.msra.mxu0 %v3494
        %3695 = vmatprep.subr.bf16.mxu0 0
        %3696 = vmatpush1.bf16.msra.mxu0 %v3495
        %3697 = vmatprep.subr.bf16.mxu0 0
        %3698 = vmatpush1.bf16.msra.mxu0 0
        %3699 = vmatprep.subr.bf16.mxu0 0
        %3700 = vmatpush1.bf16.msra.mxu0 0
        %3701 = vmatprep.subr.bf16.mxu0 0
        %3702 = vmatpush1.bf16.msra.mxu0 0
        %3703 = vmatprep.subr.bf16.mxu0 0
        %3704 = vmatpush1.bf16.msra.mxu0 0
        %3705 = vmatprep.subr.bf16.mxu0 0
        %3706 = vmatpush1.bf16.msra.mxu0 0
        %3707 = vmatprep.subr.bf16.mxu0 0
        %3708 = vmatpush1.bf16.msra.mxu0 0
        %3709 = vmatprep.subr.bf16.mxu0 0
        %3710 = vmatpush1.bf16.msra.mxu0 0
        %3711 = vmatprep.subr.bf16.mxu0 0
        %3712 = vmatpush1.bf16.msra.mxu0 0
        %3713 = vmatprep.mubr.bf16.mxu0 0
        %3714 = vmatmul.mubr.bf16.gmra.mrb[0].mxu0 %v2764
        %v3715 = vpop.f32.mrb[0].mxu0
        %v3716 = vadd.f32 %v3555, %v3715
        %v3717 = vpop.f32.mrb[0].mxu0
        %v3718 = vpop.f32.mrb[0].mxu0
        %v3719 = vadd.f32 %v3558, %v3718
        %v3720 = vpop.f32.mrb[0].mxu0
        %3721 = vmatprep.mubr.bf16.mxu0 0
        %3722 = vmatmul.mubr.bf16.gmra.mrb[0].mxu0 %v2767
        %v3723 = vpop.f32.mrb[0].mxu0
        %v3724 = vadd.f32 %v3563, %v3723
        %v3725 = vpop.f32.mrb[0].mxu0
        %v3726 = vpop.f32.mrb[0].mxu0
        %v3727 = vadd.f32 %v3566, %v3726
        %v3728 = vpop.f32.mrb[0].mxu0
        %3729 = vmatprep.mubr.bf16.mxu0 0
        %3730 = vmatmul.mubr.bf16.gmra.mrb[0].mxu0 %v2770
        %v3731 = vpop.f32.mrb[0].mxu0
        %v3732 = vadd.f32 %v3571, %v3731
        %v3733 = vpop.f32.mrb[0].mxu0
        %v3734 = vpop.f32.mrb[0].mxu0
        %v3735 = vadd.f32 %v3574, %v3734
        %v3736 = vpop.f32.mrb[0].mxu0
        %3737 = vmatprep.mubr.bf16.mxu0 0
        %3738 = vmatmul.mubr.bf16.gmra.mrb[0].mxu0 %v2773
        %v3739 = vpop.f32.mrb[0].mxu0
        %v3740 = vadd.f32 %v3579, %v3739
        %v3741 = vpop.f32.mrb[0].mxu0
        %v3742 = vpop.f32.mrb[0].mxu0
        %v3743 = vadd.f32 %v3582, %v3742
        %v3744 = vpop.f32.mrb[0].mxu0
        %3745 = vmatprep.mubr.bf16.mxu0 0
        %3746 = vmatmul.mubr.bf16.gmra.mrb[0].mxu0 %v2776
        %v3747 = vpop.f32.mrb[0].mxu0
        %v3748 = vadd.f32 %v3587, %v3747
        %v3749 = vpop.f32.mrb[0].mxu0
        %v3750 = vpop.f32.mrb[0].mxu0
        %v3751 = vadd.f32 %v3590, %v3750
        %v3752 = vpop.f32.mrb[0].mxu0
        %3753 = vmatprep.mubr.bf16.mxu0 0
        %3754 = vmatmul.mubr.bf16.gmra.mrb[0].mxu0 %v2779
        %v3755 = vpop.f32.mrb[0].mxu0
        %v3756 = vadd.f32 %v3595, %v3755
        %v3757 = vpop.f32.mrb[0].mxu0
        %v3758 = vpop.f32.mrb[0].mxu0
        %v3759 = vadd.f32 %v3598, %v3758
        %v3760 = vpop.f32.mrb[0].mxu0
        %3761 = vmatprep.mubr.bf16.mxu0 0
        %3762 = vmatmul.mubr.bf16.gmra.mrb[0].mxu0 %v2782
        %v3763 = vpop.f32.mrb[0].mxu0
        %v3764 = vadd.f32 %v3603, %v3763
        %v3765 = vpop.f32.mrb[0].mxu0
        %v3766 = vpop.f32.mrb[0].mxu0
        %v3767 = vadd.f32 %v3606, %v3766
        %v3768 = vpop.f32.mrb[0].mxu0
        %3769 = vmatprep.mubr.bf16.mxu0 0
        %3770 = vmatmul.mubr.bf16.gmra.mrb[0].mxu0 %v2785
        %v3771 = vpop.f32.mrb[0].mxu0
        %v3772 = vadd.f32 %v3611, %v3771
        %v3773 = vpop.f32.mrb[0].mxu0
        %v3774 = vpop.f32.mrb[0].mxu0
        %v3775 = vadd.f32 %v3614, %v3774
        %v3776 = vpop.f32.mrb[0].mxu0
        %3777 = vmatprep.mubr.bf16.mxu0 0
        %3778 = vmatmul.mubr.bf16.gmra.mrb[0].mxu0 %v2788
        %v3779 = vpop.f32.mrb[0].mxu0
        %v3780 = vadd.f32 %v3619, %v3779
        %v3781 = vpop.f32.mrb[0].mxu0
        %v3782 = vpop.f32.mrb[0].mxu0
        %v3783 = vadd.f32 %v3622, %v3782
        %v3784 = vpop.f32.mrb[0].mxu0
        %3785 = vmatprep.mubr.bf16.mxu0 0
        %3786 = vmatmul.mubr.bf16.gmra.mrb[0].mxu0 %v2791
        %v3787 = vpop.f32.mrb[0].mxu0
        %v3788 = vadd.f32 %v3627, %v3787
        %v3789 = vpop.f32.mrb[0].mxu0
        %v3790 = vpop.f32.mrb[0].mxu0
        %v3791 = vadd.f32 %v3630, %v3790
        %v3792 = vpop.f32.mrb[0].mxu0
        %3793 = vmatprep.mubr.bf16.mxu0 0
        %3794 = vmatmul.mubr.bf16.gmra.mrb[0].mxu0 %v2794
        %v3795 = vpop.f32.mrb[0].mxu0
        %v3796 = vadd.f32 %v3635, %v3795
        %v3797 = vpop.f32.mrb[0].mxu0
        %v3798 = vpop.f32.mrb[0].mxu0
        %v3799 = vadd.f32 %v3638, %v3798
        %v3800 = vpop.f32.mrb[0].mxu0
        %3801 = vmatprep.mubr.bf16.mxu0 0
        %3802 = vmatmul.mubr.bf16.gmra.mrb[0].mxu0 %v2797
        %v3803 = vpop.f32.mrb[0].mxu0
        %v3804 = vadd.f32 %v3643, %v3803
        %v3805 = vpop.f32.mrb[0].mxu0
        %v3806 = vpop.f32.mrb[0].mxu0
        %v3807 = vadd.f32 %v3646, %v3806
        %v3808 = vpop.f32.mrb[0].mxu0
        %3809 = vmatprep.mubr.bf16.mxu0 0
        %3810 = vmatmul.mubr.bf16.gmra.mrb[0].mxu0 %v2800
        %v3811 = vpop.f32.mrb[0].mxu0
        %v3812 = vadd.f32 %v3651, %v3811
        %v3813 = vpop.f32.mrb[0].mxu0
        %v3814 = vpop.f32.mrb[0].mxu0
        %v3815 = vadd.f32 %v3654, %v3814
        %v3816 = vpop.f32.mrb[0].mxu0
        %3817 = vmatprep.mubr.bf16.mxu0 0
        %3818 = vmatmul.mubr.bf16.gmra.mrb[0].mxu0 %v2803
        %v3819 = vpop.f32.mrb[0].mxu0
        %v3820 = vadd.f32 %v3659, %v3819
        %v3821 = vpop.f32.mrb[0].mxu0
        %v3822 = vpop.f32.mrb[0].mxu0
        %v3823 = vadd.f32 %v3662, %v3822
        %v3824 = vpop.f32.mrb[0].mxu0
        %3825 = vmatprep.mubr.bf16.mxu0 0
        %3826 = vmatmul.mubr.bf16.gmra.mrb[0].mxu0 %v2806
        %v3827 = vpop.f32.mrb[0].mxu0
        %v3828 = vadd.f32 %v3667, %v3827
        %v3829 = vpop.f32.mrb[0].mxu0
        %v3830 = vpop.f32.mrb[0].mxu0
        %v3831 = vadd.f32 %v3670, %v3830
        %v3832 = vpop.f32.mrb[0].mxu0
        %3833 = vmatprep.mubr.bf16.mxu0 0
        %3834 = vmatmul.mubr.bf16.gmra.mrb[0].mxu0 %v2809
        %v3835 = vpop.f32.mrb[0].mxu0
        %v3836 = vadd.f32 %v3675, %v3835
        %v3837 = vpop.f32.mrb[0].mxu0
        %v3838 = vpop.f32.mrb[0].mxu0
        %v3839 = vadd.f32 %v3678, %v3838
        %v3840 = vpop.f32.mrb[0].mxu0
        %3841 = vdwg.mxu0
        %v3842 = vpack.c.bf16 %v2689, %v2688
        %v3843 = vpack.c.bf16 %v2725, %v2724
        %v3844 = vpack.c.bf16 %v2761, %v2760
        %s3845 = scalar_lea.vmem %s5, 384
        %v3846 = vld [vmem:[%s3845] sm:$0xf]
        %v3847 = vld [vmem:[%s3845 + $0x4] sm:$0xf]
        %v3848 = vld [vmem:[%s3845 + $0x8] sm:$0xf]
        %v3849 = vld [vmem:[%s3845 + $0xc] sm:$0xf]
        %v3850 = vld [vmem:[%s3845 + $0x10] sm:$0xf]
        %v3851 = vld [vmem:[%s3845 + $0x14] sm:$0xf]
        %v3852 = vld [vmem:[%s3845 + $0x18] sm:$0xf]
        %v3853 = vld [vmem:[%s3845 + $0x1c] sm:$0xf]
        %v3854 = vld [vmem:[%s3845 + $0x20] sm:$0xf]
        %v3855 = vld [vmem:[%s3845 + $0x24] sm:$0xf]
        %v3856 = vld [vmem:[%s3845 + $0x28] sm:$0xf]
        %v3857 = vld [vmem:[%s3845 + $0x2c] sm:$0xf]
        %v3858 = vld [vmem:[%s3845 + $0x30] sm:$0xf]
        %v3859 = vld [vmem:[%s3845 + $0x34] sm:$0xf]
        %v3860 = vld [vmem:[%s3845 + $0x38] sm:$0xf]
        %v3861 = vld [vmem:[%s3845 + $0x3c] sm:$0xf]
        %v3862 = vld [vmem:[%s3845 + $0x40] sm:$0xf]
        %v3863 = vld [vmem:[%s3845 + $0x44] sm:$0xf]
        %v3864 = vld [vmem:[%s3845 + $0x48] sm:$0xf]
        %v3865 = vld [vmem:[%s3845 + $0x4c] sm:$0xf]
        %v3866 = vld [vmem:[%s3845 + $0x50] sm:$0xf]
        %v3867 = vld [vmem:[%s3845 + $0x54] sm:$0xf]
        %v3868 = vld [vmem:[%s3845 + $0x58] sm:$0xf]
        %v3869 = vld [vmem:[%s3845 + $0x5c] sm:$0xf]
        %v3870 = vld [vmem:[%s3845 + $0x60] sm:$0xf]
        %v3871 = vld [vmem:[%s3845 + $0x64] sm:$0xf]
        %v3872 = vld [vmem:[%s3845 + $0x68] sm:$0xf]
        %v3873 = vld [vmem:[%s3845 + $0x6c] sm:$0xf]
        %v3874 = vld [vmem:[%s3845 + $0x70] sm:$0xf]
        %v3875 = vld [vmem:[%s3845 + $0x74] sm:$0xf]
        %v3876 = vld [vmem:[%s3845 + $0x78] sm:$0xf]
        %v3877 = vld [vmem:[%s3845 + $0x7c] sm:$0xf]
        %v3878 = vld [vmem:[%s3845 + $0x80] sm:$0xf]
        %v3879 = vld [vmem:[%s3845 + $0x84] sm:$0xf]
        %v3880 = vld [vmem:[%s3845 + $0x88] sm:$0xf]
        %v3881 = vld [vmem:[%s3845 + $0x8c] sm:$0xf]
        %v3882 = vld [vmem:[%s3845 + $0x90] sm:$0xf]
        %v3883 = vld [vmem:[%s3845 + $0x94] sm:$0xf]
        %v3884 = vld [vmem:[%s3845 + $0x98] sm:$0xf]
        %v3885 = vld [vmem:[%s3845 + $0x9c] sm:$0xf]
        %v3886 = vld [vmem:[%s3845 + $0xa0] sm:$0xf]
        %v3887 = vld [vmem:[%s3845 + $0xa4] sm:$0xf]
        %v3888 = vld [vmem:[%s3845 + $0xa8] sm:$0xf]
        %v3889 = vld [vmem:[%s3845 + $0xac] sm:$0xf]
        %v3890 = vld [vmem:[%s3845 + $0xb0] sm:$0xf]
        %v3891 = vld [vmem:[%s3845 + $0xb4] sm:$0xf]
        %v3892 = vld [vmem:[%s3845 + $0xb8] sm:$0xf]
        %v3893 = vld [vmem:[%s3845 + $0xbc] sm:$0xf]
        %v3942 = vunpack.c.l.b16 %v3846
        %v3943 = vunpack.c.l.b16 %v3847
        %v3944 = vunpack.c.l.b16 %v3848
        %v3945 = vunpack.c.l.b16 %v3849
        %v3946 = vunpack.c.l.b16 %v3850
        %v3947 = vunpack.c.l.b16 %v3851
        %v3948 = vunpack.c.l.b16 %v3852
        %v3949 = vunpack.c.l.b16 %v3853
        %v3950 = vunpack.c.l.b16 %v3854
        %v3951 = vunpack.c.l.b16 %v3855
        %v3952 = vunpack.c.l.b16 %v3856
        %v3953 = vunpack.c.l.b16 %v3857
        %v3954 = vunpack.c.l.b16 %v3858
        %v3955 = vunpack.c.l.b16 %v3859
        %v3956 = vunpack.c.l.b16 %v3860
        %v3957 = vunpack.c.l.b16 %v3861
        %v3958 = vunpack.c.l.b16 %v3862
        %v3959 = vunpack.c.l.b16 %v3863
        %v3960 = vunpack.c.l.b16 %v3864
        %v3961 = vunpack.c.l.b16 %v3865
        %v3962 = vunpack.c.l.b16 %v3866
        %v3963 = vunpack.c.l.b16 %v3867
        %v3964 = vunpack.c.l.b16 %v3868
        %v3965 = vunpack.c.l.b16 %v3869
        %v3966 = vunpack.c.l.b16 %v3870
        %v3967 = vunpack.c.l.b16 %v3871
        %v3968 = vunpack.c.l.b16 %v3872
        %v3969 = vunpack.c.l.b16 %v3873
        %v3970 = vunpack.c.l.b16 %v3874
        %v3971 = vunpack.c.l.b16 %v3875
        %v3972 = vunpack.c.l.b16 %v3876
        %v3973 = vunpack.c.l.b16 %v3877
        %v3974 = vunpack.c.l.b16 %v3878
        %v3975 = vunpack.c.l.b16 %v3879
        %v3976 = vunpack.c.l.b16 %v3880
        %v3977 = vunpack.c.l.b16 %v3881
        %v3978 = vunpack.c.l.b16 %v3882
        %v3979 = vunpack.c.l.b16 %v3883
        %v3980 = vunpack.c.l.b16 %v3884
        %v3981 = vunpack.c.l.b16 %v3885
        %v3982 = vunpack.c.l.b16 %v3886
        %v3983 = vunpack.c.l.b16 %v3887
        %v3984 = vunpack.c.l.b16 %v3888
        %v3985 = vunpack.c.l.b16 %v3889
        %v3986 = vunpack.c.l.b16 %v3890
        %v3987 = vunpack.c.l.b16 %v3891
        %v3988 = vunpack.c.l.b16 %v3892
        %v3989 = vunpack.c.l.b16 %v3893
        %v3990 = vpack.c.b16 %v3943, %v3942
        %v3991 = vpack.c.b16 %v3945, %v3944
        %v3992 = vpack.c.b16 %v3947, %v3946
        %v3993 = vpack.c.b16 %v3949, %v3948
        %v3994 = vpack.c.b16 %v3951, %v3950
        %v3995 = vpack.c.b16 %v3953, %v3952
        %v3996 = vpack.c.b16 %v3955, %v3954
        %v3997 = vpack.c.b16 %v3957, %v3956
        %v3998 = vpack.c.b16 %v3959, %v3958
        %v3999 = vpack.c.b16 %v3961, %v3960
        %v4000 = vpack.c.b16 %v3963, %v3962
        %v4001 = vpack.c.b16 %v3965, %v3964
        %v4002 = vpack.c.b16 %v3967, %v3966
        %v4003 = vpack.c.b16 %v3969, %v3968
        %v4004 = vpack.c.b16 %v3971, %v3970
        %v4005 = vpack.c.b16 %v3973, %v3972
        %v4006 = vpack.c.b16 %v3975, %v3974
        %v4007 = vpack.c.b16 %v3977, %v3976
        %v4008 = vpack.c.b16 %v3979, %v3978
        %v4009 = vpack.c.b16 %v3981, %v3980
        %v4010 = vpack.c.b16 %v3983, %v3982
        %v4011 = vpack.c.b16 %v3985, %v3984
        %v4012 = vpack.c.b16 %v3987, %v3986
        %v4013 = vpack.c.b16 %v3989, %v3988
        %4038 = vmatprep.subr.bf16.mxu0 0
        %4039 = vmatpush1.bf16.msra.mxu0 %v3990
        %4040 = vmatprep.subr.bf16.mxu0 0
        %4041 = vmatpush1.bf16.msra.mxu0 %v3991
        %4042 = vmatprep.subr.bf16.mxu0 0
        %4043 = vmatpush1.bf16.msra.mxu0 %v3992
        %4044 = vmatprep.subr.bf16.mxu0 0
        %4045 = vmatpush1.bf16.msra.mxu0 %v3993
        %4046 = vmatprep.subr.bf16.mxu0 0
        %4047 = vmatpush1.bf16.msra.mxu0 %v3994
        %4048 = vmatprep.subr.bf16.mxu0 0
        %4049 = vmatpush1.bf16.msra.mxu0 %v3995
        %4050 = vmatprep.subr.bf16.mxu0 0
        %4051 = vmatpush1.bf16.msra.mxu0 %v3996
        %4052 = vmatprep.subr.bf16.mxu0 0
        %4053 = vmatpush1.bf16.msra.mxu0 %v3997
        %4054 = vmatprep.subr.bf16.mxu0 0
        %4055 = vmatpush1.bf16.msra.mxu0 %v3998
        %4056 = vmatprep.subr.bf16.mxu0 0
        %4057 = vmatpush1.bf16.msra.mxu0 %v3999
        %4058 = vmatprep.subr.bf16.mxu0 0
        %4059 = vmatpush1.bf16.msra.mxu0 %v4000
        %4060 = vmatprep.subr.bf16.mxu0 0
        %4061 = vmatpush1.bf16.msra.mxu0 %v4001
        %4062 = vmatprep.subr.bf16.mxu0 0
        %4063 = vmatpush1.bf16.msra.mxu0 %v4002
        %4064 = vmatprep.subr.bf16.mxu0 0
        %4065 = vmatpush1.bf16.msra.mxu0 %v4003
        %4066 = vmatprep.subr.bf16.mxu0 0
        %4067 = vmatpush1.bf16.msra.mxu0 %v4004
        %4068 = vmatprep.subr.bf16.mxu0 0
        %4069 = vmatpush1.bf16.msra.mxu0 %v4005
        %4070 = vmatprep.mubr.bf16.mxu0 %v2769
        %4071 = vmatmul.mubr.bf16.gmra.mrb[0].mxu0 %v2768
        %v4072 = vpop.f32.mrb[0].mxu0
        %v4073 = vadd.f32 0.0, %v4072
        %v4074 = vpop.f32.mrb[0].mxu0
        %v4075 = vpop.f32.mrb[0].mxu0
        %v4076 = vadd.f32 0.0, %v4075
        %v4077 = vpop.f32.mrb[0].mxu0
        %4078 = vmatprep.mubr.bf16.mxu0 %v2772
        %4079 = vmatmul.mubr.bf16.gmra.mrb[0].mxu0 %v2771
        %v4080 = vpop.f32.mrb[0].mxu0
        %v4081 = vadd.f32 0.0, %v4080
        %v4082 = vpop.f32.mrb[0].mxu0
        %v4083 = vpop.f32.mrb[0].mxu0
        %v4084 = vadd.f32 0.0, %v4083
        %v4085 = vpop.f32.mrb[0].mxu0
        %4086 = vmatprep.mubr.bf16.mxu0 %v2775
        %4087 = vmatmul.mubr.bf16.gmra.mrb[0].mxu0 %v2774
        %v4088 = vpop.f32.mrb[0].mxu0
        %v4089 = vadd.f32 0.0, %v4088
        %v4090 = vpop.f32.mrb[0].mxu0
        %v4091 = vpop.f32.mrb[0].mxu0
        %v4092 = vadd.f32 0.0, %v4091
        %v4093 = vpop.f32.mrb[0].mxu0
        %4094 = vmatprep.mubr.bf16.mxu0 %v2778
        %4095 = vmatmul.mubr.bf16.gmra.mrb[0].mxu0 %v2777
        %v4096 = vpop.f32.mrb[0].mxu0
        %v4097 = vadd.f32 0.0, %v4096
        %v4098 = vpop.f32.mrb[0].mxu0
        %v4099 = vpop.f32.mrb[0].mxu0
        %v4100 = vadd.f32 0.0, %v4099
        %v4101 = vpop.f32.mrb[0].mxu0
        %4102 = vmatprep.mubr.bf16.mxu0 %v2781
        %4103 = vmatmul.mubr.bf16.gmra.mrb[0].mxu0 %v2780
        %v4104 = vpop.f32.mrb[0].mxu0
        %v4105 = vadd.f32 0.0, %v4104
        %v4106 = vpop.f32.mrb[0].mxu0
        %v4107 = vpop.f32.mrb[0].mxu0
        %v4108 = vadd.f32 0.0, %v4107
        %v4109 = vpop.f32.mrb[0].mxu0
        %4110 = vmatprep.mubr.bf16.mxu0 %v2784
        %4111 = vmatmul.mubr.bf16.gmra.mrb[0].mxu0 %v2783
        %v4112 = vpop.f32.mrb[0].mxu0
        %v4113 = vadd.f32 0.0, %v4112
        %v4114 = vpop.f32.mrb[0].mxu0
        %v4115 = vpop.f32.mrb[0].mxu0
        %v4116 = vadd.f32 0.0, %v4115
        %v4117 = vpop.f32.mrb[0].mxu0
        %4118 = vmatprep.mubr.bf16.mxu0 %v2787
        %4119 = vmatmul.mubr.bf16.gmra.mrb[0].mxu0 %v2786
        %v4120 = vpop.f32.mrb[0].mxu0
        %v4121 = vadd.f32 0.0, %v4120
        %v4122 = vpop.f32.mrb[0].mxu0
        %v4123 = vpop.f32.mrb[0].mxu0
        %v4124 = vadd.f32 0.0, %v4123
        %v4125 = vpop.f32.mrb[0].mxu0
        %4126 = vmatprep.mubr.bf16.mxu0 %v2790
        %4127 = vmatmul.mubr.bf16.gmra.mrb[0].mxu0 %v2789
        %v4128 = vpop.f32.mrb[0].mxu0
        %v4129 = vadd.f32 0.0, %v4128
        %v4130 = vpop.f32.mrb[0].mxu0
        %v4131 = vpop.f32.mrb[0].mxu0
        %v4132 = vadd.f32 0.0, %v4131
        %v4133 = vpop.f32.mrb[0].mxu0
        %4134 = vmatprep.mubr.bf16.mxu0 %v2793
        %4135 = vmatmul.mubr.bf16.gmra.mrb[0].mxu0 %v2792
        %v4136 = vpop.f32.mrb[0].mxu0
        %v4137 = vadd.f32 0.0, %v4136
        %v4138 = vpop.f32.mrb[0].mxu0
        %v4139 = vpop.f32.mrb[0].mxu0
        %v4140 = vadd.f32 0.0, %v4139
        %v4141 = vpop.f32.mrb[0].mxu0
        %4142 = vmatprep.mubr.bf16.mxu0 %v2796
        %4143 = vmatmul.mubr.bf16.gmra.mrb[0].mxu0 %v2795
        %v4144 = vpop.f32.mrb[0].mxu0
        %v4145 = vadd.f32 0.0, %v4144
        %v4146 = vpop.f32.mrb[0].mxu0
        %v4147 = vpop.f32.mrb[0].mxu0
        %v4148 = vadd.f32 0.0, %v4147
        %v4149 = vpop.f32.mrb[0].mxu0
        %4150 = vmatprep.mubr.bf16.mxu0 %v2799
        %4151 = vmatmul.mubr.bf16.gmra.mrb[0].mxu0 %v2798
        %v4152 = vpop.f32.mrb[0].mxu0
        %v4153 = vadd.f32 0.0, %v4152
        %v4154 = vpop.f32.mrb[0].mxu0
        %v4155 = vpop.f32.mrb[0].mxu0
        %v4156 = vadd.f32 0.0, %v4155
        %v4157 = vpop.f32.mrb[0].mxu0
        %4158 = vmatprep.mubr.bf16.mxu0 %v2802
        %4159 = vmatmul.mubr.bf16.gmra.mrb[0].mxu0 %v2801
        %v4160 = vpop.f32.mrb[0].mxu0
        %v4161 = vadd.f32 0.0, %v4160
        %v4162 = vpop.f32.mrb[0].mxu0
        %v4163 = vpop.f32.mrb[0].mxu0
        %v4164 = vadd.f32 0.0, %v4163
        %v4165 = vpop.f32.mrb[0].mxu0
        %4166 = vmatprep.mubr.bf16.mxu0 %v2805
        %4167 = vmatmul.mubr.bf16.gmra.mrb[0].mxu0 %v2804
        %v4168 = vpop.f32.mrb[0].mxu0
        %v4169 = vadd.f32 0.0, %v4168
        %v4170 = vpop.f32.mrb[0].mxu0
        %v4171 = vpop.f32.mrb[0].mxu0
        %v4172 = vadd.f32 0.0, %v4171
        %v4173 = vpop.f32.mrb[0].mxu0
        %4174 = vmatprep.mubr.bf16.mxu0 %v2808
        %4175 = vmatmul.mubr.bf16.gmra.mrb[0].mxu0 %v2807
        %v4176 = vpop.f32.mrb[0].mxu0
        %v4177 = vadd.f32 0.0, %v4176
        %v4178 = vpop.f32.mrb[0].mxu0
        %v4179 = vpop.f32.mrb[0].mxu0
        %v4180 = vadd.f32 0.0, %v4179
        %v4181 = vpop.f32.mrb[0].mxu0
        %4182 = vmatprep.mubr.bf16.mxu0 %v2859
        %4183 = vmatmul.mubr.bf16.gmra.mrb[0].mxu0 %v2858
        %v4184 = vpop.f32.mrb[0].mxu0
        %v4185 = vadd.f32 0.0, %v4184
        %v4186 = vpop.f32.mrb[0].mxu0
        %v4187 = vpop.f32.mrb[0].mxu0
        %v4188 = vadd.f32 0.0, %v4187
        %v4189 = vpop.f32.mrb[0].mxu0
        %4190 = vmatprep.mubr.bf16.mxu0 %v3843
        %4191 = vmatmul.mubr.bf16.gmra.mrb[0].mxu0 %v3842
        %v4192 = vpop.f32.mrb[0].mxu0
        %v4193 = vadd.f32 0.0, %v4192
        %v4194 = vpop.f32.mrb[0].mxu0
        %v4195 = vpop.f32.mrb[0].mxu0
        %v4196 = vadd.f32 0.0, %v4195
        %v4197 = vpop.f32.mrb[0].mxu0
        %4198 = vdwg.mxu0
        %4199 = vmatprep.subr.bf16.mxu0 0
        %4200 = vmatpush1.bf16.msra.mxu0 %v4006
        %4201 = vmatprep.subr.bf16.mxu0 0
        %4202 = vmatpush1.bf16.msra.mxu0 %v4007
        %4203 = vmatprep.subr.bf16.mxu0 0
        %4204 = vmatpush1.bf16.msra.mxu0 %v4008
        %4205 = vmatprep.subr.bf16.mxu0 0
        %4206 = vmatpush1.bf16.msra.mxu0 %v4009
        %4207 = vmatprep.subr.bf16.mxu0 0
        %4208 = vmatpush1.bf16.msra.mxu0 %v4010
        %4209 = vmatprep.subr.bf16.mxu0 0
        %4210 = vmatpush1.bf16.msra.mxu0 %v4011
        %4211 = vmatprep.subr.bf16.mxu0 0
        %4212 = vmatpush1.bf16.msra.mxu0 %v4012
        %4213 = vmatprep.subr.bf16.mxu0 0
        %4214 = vmatpush1.bf16.msra.mxu0 %v4013
        %4215 = vmatprep.subr.bf16.mxu0 0
        %4216 = vmatpush1.bf16.msra.mxu0 0
        %4217 = vmatprep.subr.bf16.mxu0 0
        %4218 = vmatpush1.bf16.msra.mxu0 0
        %4219 = vmatprep.subr.bf16.mxu0 0
        %4220 = vmatpush1.bf16.msra.mxu0 0
        %4221 = vmatprep.subr.bf16.mxu0 0
        %4222 = vmatpush1.bf16.msra.mxu0 0
        %4223 = vmatprep.subr.bf16.mxu0 0
        %4224 = vmatpush1.bf16.msra.mxu0 0
        %4225 = vmatprep.subr.bf16.mxu0 0
        %4226 = vmatpush1.bf16.msra.mxu0 0
        %4227 = vmatprep.subr.bf16.mxu0 0
        %4228 = vmatpush1.bf16.msra.mxu0 0
        %4229 = vmatprep.subr.bf16.mxu0 0
        %4230 = vmatpush1.bf16.msra.mxu0 0
        %4231 = vmatprep.mubr.bf16.mxu0 0
        %4232 = vmatmul.mubr.bf16.gmra.mrb[0].mxu0 %v2770
        %v4233 = vpop.f32.mrb[0].mxu0
        %v4234 = vadd.f32 %v4073, %v4233
        %v4235 = vpop.f32.mrb[0].mxu0
        %v4236 = vpop.f32.mrb[0].mxu0
        %v4237 = vadd.f32 %v4076, %v4236
        %v4238 = vpop.f32.mrb[0].mxu0
        %4239 = vmatprep.mubr.bf16.mxu0 0
        %4240 = vmatmul.mubr.bf16.gmra.mrb[0].mxu0 %v2773
        %v4241 = vpop.f32.mrb[0].mxu0
        %v4242 = vadd.f32 %v4081, %v4241
        %v4243 = vpop.f32.mrb[0].mxu0
        %v4244 = vpop.f32.mrb[0].mxu0
        %v4245 = vadd.f32 %v4084, %v4244
        %v4246 = vpop.f32.mrb[0].mxu0
        %4247 = vmatprep.mubr.bf16.mxu0 0
        %4248 = vmatmul.mubr.bf16.gmra.mrb[0].mxu0 %v2776
        %v4249 = vpop.f32.mrb[0].mxu0
        %v4250 = vadd.f32 %v4089, %v4249
        %v4251 = vpop.f32.mrb[0].mxu0
        %v4252 = vpop.f32.mrb[0].mxu0
        %v4253 = vadd.f32 %v4092, %v4252
        %v4254 = vpop.f32.mrb[0].mxu0
        %4255 = vmatprep.mubr.bf16.mxu0 0
        %4256 = vmatmul.mubr.bf16.gmra.mrb[0].mxu0 %v2779
        %v4257 = vpop.f32.mrb[0].mxu0
        %v4258 = vadd.f32 %v4097, %v4257
        %v4259 = vpop.f32.mrb[0].mxu0
        %v4260 = vpop.f32.mrb[0].mxu0
        %v4261 = vadd.f32 %v4100, %v4260
        %v4262 = vpop.f32.mrb[0].mxu0
        %4263 = vmatprep.mubr.bf16.mxu0 0
        %4264 = vmatmul.mubr.bf16.gmra.mrb[0].mxu0 %v2782
        %v4265 = vpop.f32.mrb[0].mxu0
        %v4266 = vadd.f32 %v4105, %v4265
        %v4267 = vpop.f32.mrb[0].mxu0
        %v4268 = vpop.f32.mrb[0].mxu0
        %v4269 = vadd.f32 %v4108, %v4268
        %v4270 = vpop.f32.mrb[0].mxu0
        %4271 = vmatprep.mubr.bf16.mxu0 0
        %4272 = vmatmul.mubr.bf16.gmra.mrb[0].mxu0 %v2785
        %v4273 = vpop.f32.mrb[0].mxu0
        %v4274 = vadd.f32 %v4113, %v4273
        %v4275 = vpop.f32.mrb[0].mxu0
        %v4276 = vpop.f32.mrb[0].mxu0
        %v4277 = vadd.f32 %v4116, %v4276
        %v4278 = vpop.f32.mrb[0].mxu0
        %4279 = vmatprep.mubr.bf16.mxu0 0
        %4280 = vmatmul.mubr.bf16.gmra.mrb[0].mxu0 %v2788
        %v4281 = vpop.f32.mrb[0].mxu0
        %v4282 = vadd.f32 %v4121, %v4281
        %v4283 = vpop.f32.mrb[0].mxu0
        %v4284 = vpop.f32.mrb[0].mxu0
        %v4285 = vadd.f32 %v4124, %v4284
        %v4286 = vpop.f32.mrb[0].mxu0
        %4287 = vmatprep.mubr.bf16.mxu0 0
        %4288 = vmatmul.mubr.bf16.gmra.mrb[0].mxu0 %v2791
        %v4289 = vpop.f32.mrb[0].mxu0
        %v4290 = vadd.f32 %v4129, %v4289
        %v4291 = vpop.f32.mrb[0].mxu0
        %v4292 = vpop.f32.mrb[0].mxu0
        %v4293 = vadd.f32 %v4132, %v4292
        %v4294 = vpop.f32.mrb[0].mxu0
        %4295 = vmatprep.mubr.bf16.mxu0 0
        %4296 = vmatmul.mubr.bf16.gmra.mrb[0].mxu0 %v2794
        %v4297 = vpop.f32.mrb[0].mxu0
        %v4298 = vadd.f32 %v4137, %v4297
        %v4299 = vpop.f32.mrb[0].mxu0
        %v4300 = vpop.f32.mrb[0].mxu0
        %v4301 = vadd.f32 %v4140, %v4300
        %v4302 = vpop.f32.mrb[0].mxu0
        %4303 = vmatprep.mubr.bf16.mxu0 0
        %4304 = vmatmul.mubr.bf16.gmra.mrb[0].mxu0 %v2797
        %v4305 = vpop.f32.mrb[0].mxu0
        %v4306 = vadd.f32 %v4145, %v4305
        %v4307 = vpop.f32.mrb[0].mxu0
        %v4308 = vpop.f32.mrb[0].mxu0
        %v4309 = vadd.f32 %v4148, %v4308
        %v4310 = vpop.f32.mrb[0].mxu0
        %4311 = vmatprep.mubr.bf16.mxu0 0
        %4312 = vmatmul.mubr.bf16.gmra.mrb[0].mxu0 %v2800
        %v4313 = vpop.f32.mrb[0].mxu0
        %v4314 = vadd.f32 %v4153, %v4313
        %v4315 = vpop.f32.mrb[0].mxu0
        %v4316 = vpop.f32.mrb[0].mxu0
        %v4317 = vadd.f32 %v4156, %v4316
        %v4318 = vpop.f32.mrb[0].mxu0
        %4319 = vmatprep.mubr.bf16.mxu0 0
        %4320 = vmatmul.mubr.bf16.gmra.mrb[0].mxu0 %v2803
        %v4321 = vpop.f32.mrb[0].mxu0
        %v4322 = vadd.f32 %v4161, %v4321
        %v4323 = vpop.f32.mrb[0].mxu0
        %v4324 = vpop.f32.mrb[0].mxu0
        %v4325 = vadd.f32 %v4164, %v4324
        %v4326 = vpop.f32.mrb[0].mxu0
        %4327 = vmatprep.mubr.bf16.mxu0 0
        %4328 = vmatmul.mubr.bf16.gmra.mrb[0].mxu0 %v2806
        %v4329 = vpop.f32.mrb[0].mxu0
        %v4330 = vadd.f32 %v4169, %v4329
        %v4331 = vpop.f32.mrb[0].mxu0
        %v4332 = vpop.f32.mrb[0].mxu0
        %v4333 = vadd.f32 %v4172, %v4332
        %v4334 = vpop.f32.mrb[0].mxu0
        %4335 = vmatprep.mubr.bf16.mxu0 0
        %4336 = vmatmul.mubr.bf16.gmra.mrb[0].mxu0 %v2809
        %v4337 = vpop.f32.mrb[0].mxu0
        %v4338 = vadd.f32 %v4177, %v4337
        %v4339 = vpop.f32.mrb[0].mxu0
        %v4340 = vpop.f32.mrb[0].mxu0
        %v4341 = vadd.f32 %v4180, %v4340
        %v4342 = vpop.f32.mrb[0].mxu0
        %4343 = vmatprep.mubr.bf16.mxu0 0
        %4344 = vmatmul.mubr.bf16.gmra.mrb[0].mxu0 %v2860
        %v4345 = vpop.f32.mrb[0].mxu0
        %v4346 = vadd.f32 %v4185, %v4345
        %v4347 = vpop.f32.mrb[0].mxu0
        %v4348 = vpop.f32.mrb[0].mxu0
        %v4349 = vadd.f32 %v4188, %v4348
        %v4350 = vpop.f32.mrb[0].mxu0
        %4351 = vmatprep.mubr.bf16.mxu0 0
        %4352 = vmatmul.mubr.bf16.gmra.mrb[0].mxu0 %v3844
        %v4353 = vpop.f32.mrb[0].mxu0
        %v4354 = vadd.f32 %v4193, %v4353
        %v4355 = vpop.f32.mrb[0].mxu0
        %v4356 = vpop.f32.mrb[0].mxu0
        %v4357 = vadd.f32 %v4196, %v4356
        %v4358 = vpop.f32.mrb[0].mxu0
        %4359 = vdwg.mxu0
        %v4360 = vadd.f32 %v3716, %v4234
        %v4361 = vadd.f32 %v3719, %v4237
        %v4362 = vadd.f32 %v3724, %v4242
        %v4363 = vadd.f32 %v3727, %v4245
        %v4364 = vadd.f32 %v3732, %v4250
        %v4365 = vadd.f32 %v3735, %v4253
        %v4366 = vadd.f32 %v3740, %v4258
        %v4367 = vadd.f32 %v3743, %v4261
        %v4368 = vadd.f32 %v3748, %v4266
        %v4369 = vadd.f32 %v3751, %v4269
        %v4370 = vadd.f32 %v3756, %v4274
        %v4371 = vadd.f32 %v3759, %v4277
        %v4372 = vadd.f32 %v3764, %v4282
        %v4373 = vadd.f32 %v3767, %v4285
        %v4374 = vadd.f32 %v3772, %v4290
        %v4375 = vadd.f32 %v3775, %v4293
        %v4376 = vadd.f32 %v3780, %v4298
        %v4377 = vadd.f32 %v3783, %v4301
        %v4378 = vadd.f32 %v3788, %v4306
        %v4379 = vadd.f32 %v3791, %v4309
        %v4380 = vadd.f32 %v3796, %v4314
        %v4381 = vadd.f32 %v3799, %v4317
        %v4382 = vadd.f32 %v3804, %v4322
        %v4383 = vadd.f32 %v3807, %v4325
        %v4384 = vadd.f32 %v3812, %v4330
        %v4385 = vadd.f32 %v3815, %v4333
        %v4386 = vadd.f32 %v3820, %v4338
        %v4387 = vadd.f32 %v3823, %v4341
        %v4388 = vadd.f32 %v3828, %v4346
        %v4389 = vadd.f32 %v3831, %v4349
        %v4390 = vadd.f32 %v3836, %v4354
        %v4391 = vadd.f32 %v3839, %v4357
        %v4392 = vld [vmem:[%s6] sm:$0x1]
        %v4394 = vlaneseq
        %v4395 = vshrl.u32 %v4394, 7
        %v4396 = vsub.s32 0, %v4395
        %v4397 = vrot.slane %v4392, %v4396
        %v4399 = vadd.f32 %v4360, %v4397
        %v4400 = vadd.f32 %v4361, %v4397
        %v4401 = vadd.f32 %v4362, %v4397
        %v4402 = vadd.f32 %v4363, %v4397
        %v4403 = vadd.f32 %v4364, %v4397
        %v4404 = vadd.f32 %v4365, %v4397
        %v4405 = vadd.f32 %v4366, %v4397
        %v4406 = vadd.f32 %v4367, %v4397
        %v4407 = vadd.f32 %v4368, %v4397
        %v4408 = vadd.f32 %v4369, %v4397
        %v4409 = vadd.f32 %v4370, %v4397
        %v4410 = vadd.f32 %v4371, %v4397
        %v4411 = vadd.f32 %v4372, %v4397
        %v4412 = vadd.f32 %v4373, %v4397
        %v4413 = vadd.f32 %v4374, %v4397
        %v4414 = vadd.f32 %v4375, %v4397
        %v4415 = vadd.f32 %v4376, %v4397
        %v4416 = vadd.f32 %v4377, %v4397
        %v4417 = vadd.f32 %v4378, %v4397
        %v4418 = vadd.f32 %v4379, %v4397
        %v4419 = vadd.f32 %v4380, %v4397
        %v4420 = vadd.f32 %v4381, %v4397
        %v4421 = vadd.f32 %v4382, %v4397
        %v4422 = vadd.f32 %v4383, %v4397
        %v4423 = vadd.f32 %v4384, %v4397
        %v4424 = vadd.f32 %v4385, %v4397
        %v4425 = vadd.f32 %v4386, %v4397
        %v4426 = vadd.f32 %v4387, %v4397
        %v4427 = vadd.f32 %v4388, %v4397
        %v4428 = vadd.f32 %v4389, %v4397
        %v4429 = vadd.f32 %v4390, %v4397
        %v4430 = vadd.f32 %v4391, %v4397
        %vm4431 = vcmp.gt.f32.partialorder %v4399, 0.0
        %vm4432 = vcmp.gt.f32.partialorder %v4400, 0.0
        %vm4433 = vcmp.gt.f32.partialorder %v4401, 0.0
        %vm4434 = vcmp.gt.f32.partialorder %v4402, 0.0
        %vm4435 = vcmp.gt.f32.partialorder %v4403, 0.0
        %vm4436 = vcmp.gt.f32.partialorder %v4404, 0.0
        %vm4437 = vcmp.gt.f32.partialorder %v4405, 0.0
        %vm4438 = vcmp.gt.f32.partialorder %v4406, 0.0
        %vm4439 = vcmp.gt.f32.partialorder %v4407, 0.0
        %vm4440 = vcmp.gt.f32.partialorder %v4408, 0.0
        %vm4441 = vcmp.gt.f32.partialorder %v4409, 0.0
        %vm4442 = vcmp.gt.f32.partialorder %v4410, 0.0
        %vm4443 = vcmp.gt.f32.partialorder %v4411, 0.0
        %vm4444 = vcmp.gt.f32.partialorder %v4412, 0.0
        %vm4445 = vcmp.gt.f32.partialorder %v4413, 0.0
        %vm4446 = vcmp.gt.f32.partialorder %v4414, 0.0
        %vm4447 = vcmp.gt.f32.partialorder %v4415, 0.0
        %vm4448 = vcmp.gt.f32.partialorder %v4416, 0.0
        %vm4449 = vcmp.gt.f32.partialorder %v4417, 0.0
        %vm4450 = vcmp.gt.f32.partialorder %v4418, 0.0
        %vm4451 = vcmp.gt.f32.partialorder %v4419, 0.0
        %vm4452 = vcmp.gt.f32.partialorder %v4420, 0.0
        %vm4453 = vcmp.gt.f32.partialorder %v4421, 0.0
        %vm4454 = vcmp.gt.f32.partialorder %v4422, 0.0
        %vm4455 = vcmp.gt.f32.partialorder %v4423, 0.0
        %vm4456 = vcmp.gt.f32.partialorder %v4424, 0.0
        %vm4457 = vcmp.gt.f32.partialorder %v4425, 0.0
        %vm4458 = vcmp.gt.f32.partialorder %v4426, 0.0
        %vm4459 = vcmp.gt.f32.partialorder %v4427, 0.0
        %vm4460 = vcmp.gt.f32.partialorder %v4428, 0.0
        %vm4461 = vcmp.gt.f32.partialorder %v4429, 0.0
        %vm4462 = vcmp.gt.f32.partialorder %v4430, 0.0
        %v4463 = vmul.f32 %v4399, 0.2
        %v4464 = vmul.f32 %v4400, 0.2
        %v4465 = vmul.f32 %v4401, 0.2
        %v4466 = vmul.f32 %v4402, 0.2
        %v4467 = vmul.f32 %v4403, 0.2
        %v4468 = vmul.f32 %v4404, 0.2
        %v4469 = vmul.f32 %v4405, 0.2
        %v4470 = vmul.f32 %v4406, 0.2
        %v4471 = vmul.f32 %v4407, 0.2
        %v4472 = vmul.f32 %v4408, 0.2
        %v4473 = vmul.f32 %v4409, 0.2
        %v4474 = vmul.f32 %v4410, 0.2
        %v4475 = vmul.f32 %v4411, 0.2
        %v4476 = vmul.f32 %v4412, 0.2
        %v4477 = vmul.f32 %v4413, 0.2
        %v4478 = vmul.f32 %v4414, 0.2
        %v4479 = vmul.f32 %v4415, 0.2
        %v4480 = vmul.f32 %v4416, 0.2
        %v4481 = vmul.f32 %v4417, 0.2
        %v4482 = vmul.f32 %v4418, 0.2
        %v4483 = vmul.f32 %v4419, 0.2
        %v4484 = vmul.f32 %v4420, 0.2
        %v4485 = vmul.f32 %v4421, 0.2
        %v4486 = vmul.f32 %v4422, 0.2
        %v4487 = vmul.f32 %v4423, 0.2
        %v4488 = vmul.f32 %v4424, 0.2
        %v4489 = vmul.f32 %v4425, 0.2
        %v4490 = vmul.f32 %v4426, 0.2
        %v4491 = vmul.f32 %v4427, 0.2
        %v4492 = vmul.f32 %v4428, 0.2
        %v4493 = vmul.f32 %v4429, 0.2
        %v4494 = vmul.f32 %v4430, 0.2
        %v4495 = vsel %vm4431, %v4399, %v4463
        %v4496 = vsel %vm4432, %v4400, %v4464
        %v4497 = vsel %vm4433, %v4401, %v4465
        %v4498 = vsel %vm4434, %v4402, %v4466
        %v4499 = vsel %vm4435, %v4403, %v4467
        %v4500 = vsel %vm4436, %v4404, %v4468
        %v4501 = vsel %vm4437, %v4405, %v4469
        %v4502 = vsel %vm4438, %v4406, %v4470
        %v4503 = vsel %vm4439, %v4407, %v4471
        %v4504 = vsel %vm4440, %v4408, %v4472
        %v4505 = vsel %vm4441, %v4409, %v4473
        %v4506 = vsel %vm4442, %v4410, %v4474
        %v4507 = vsel %vm4443, %v4411, %v4475
        %v4508 = vsel %vm4444, %v4412, %v4476
        %v4509 = vsel %vm4445, %v4413, %v4477
        %v4510 = vsel %vm4446, %v4414, %v4478
        %v4511 = vsel %vm4447, %v4415, %v4479
        %v4512 = vsel %vm4448, %v4416, %v4480
        %v4513 = vsel %vm4449, %v4417, %v4481
        %v4514 = vsel %vm4450, %v4418, %v4482
        %v4515 = vsel %vm4451, %v4419, %v4483
        %v4516 = vsel %vm4452, %v4420, %v4484
        %v4517 = vsel %vm4453, %v4421, %v4485
        %v4518 = vsel %vm4454, %v4422, %v4486
        %v4519 = vsel %vm4455, %v4423, %v4487
        %v4520 = vsel %vm4456, %v4424, %v4488
        %v4521 = vsel %vm4457, %v4425, %v4489
        %v4522 = vsel %vm4458, %v4426, %v4490
        %v4523 = vsel %vm4459, %v4427, %v4491
        %v4524 = vsel %vm4460, %v4428, %v4492
        %v4525 = vsel %vm4461, %v4429, %v4493
        %v4526 = vsel %vm4462, %v4430, %v4494
        %vm4527 = vcmask 523264
        %4528 = vst.msk [vmem:[#allocation5] sm:$0xff] %vm4527, 0.0
        %4529 = vst.msk [vmem:[#allocation5 + $0x8] sm:$0xff] %vm4527, 0.0
        %vm4530 = vcmask 517120
        %4531 = vst.msk [vmem:[#allocation5 + $0x10] sm:$0x3] %vm4530, 0.0
        %4532 = vst.msk [vmem:[#allocation5 + $0x18] sm:$0xff] %vm4527, 0.0
        %4533 = vst.msk [vmem:[#allocation5 + $0x20] sm:$0xff] %vm4527, 0.0
        %4534 = vst.msk [vmem:[#allocation5 + $0x28] sm:$0x3] %vm4530, 0.0
        %4535 = vst.msk [vmem:[#allocation5 + $0x30] sm:$0xff] %vm4527, 0.0
        %4536 = vst.msk [vmem:[#allocation5 + $0x38] sm:$0xff] %vm4527, 0.0
        %4537 = vst.msk [vmem:[#allocation5 + $0x40] sm:$0x3] %vm4530, 0.0
        %4538 = vst.msk [vmem:[#allocation5 + $0x48] sm:$0xff] %vm4527, 0.0
        %4539 = vst.msk [vmem:[#allocation5 + $0x50] sm:$0xff] %vm4527, 0.0
        %4540 = vst.msk [vmem:[#allocation5 + $0x58] sm:$0x3] %vm4530, 0.0
        %4541 = vst.msk [vmem:[#allocation5 + $0x60] sm:$0xff] %vm4527, 0.0
        %4542 = vst.msk [vmem:[#allocation5 + $0x68] sm:$0xff] %vm4527, 0.0
        %4543 = vst.msk [vmem:[#allocation5 + $0x70] sm:$0x3] %vm4530, 0.0
        %4544 = vst.msk [vmem:[#allocation5 + $0x78] sm:$0xff] %vm4527, 0.0
        %4545 = vst.msk [vmem:[#allocation5 + $0x80] sm:$0xff] %vm4527, 0.0
        %4546 = vst.msk [vmem:[#allocation5 + $0x88] sm:$0x3] %vm4530, 0.0
        %4547 = vst.msk [vmem:[#allocation5 + $0x90] sm:$0xff] %vm4527, 0.0
        %4548 = vst.msk [vmem:[#allocation5 + $0x98] sm:$0xff] %vm4527, 0.0
        %4549 = vst.msk [vmem:[#allocation5 + $0xa0] sm:$0x3] %vm4530, 0.0
        %4550 = vst.msk [vmem:[#allocation5 + $0xa8] sm:$0xff] %vm4527, 0.0
        %4551 = vst.msk [vmem:[#allocation5 + $0xb0] sm:$0xff] %vm4527, 0.0
        %4552 = vst.msk [vmem:[#allocation5 + $0xb8] sm:$0x3] %vm4530, 0.0
        %4553 = vst.msk [vmem:[#allocation5 + $0xc0] sm:$0xff] %vm4527, 0.0
        %4554 = vst.msk [vmem:[#allocation5 + $0xc8] sm:$0xff] %vm4527, 0.0
        %4555 = vst.msk [vmem:[#allocation5 + $0xd0] sm:$0x3] %vm4530, 0.0
        %4556 = vst.msk [vmem:[#allocation5 + $0xd8] sm:$0xff] %vm4527, 0.0
        %4557 = vst.msk [vmem:[#allocation5 + $0xe0] sm:$0xff] %vm4527, 0.0
        %4558 = vst.msk [vmem:[#allocation5 + $0xe8] sm:$0x3] %vm4530, 0.0
        %4559 = vst.msk [vmem:[#allocation5 + $0xf0] sm:$0xff] %vm4527, 0.0
        %4560 = vst.msk [vmem:[#allocation5 + $0xf8] sm:$0xff] %vm4527, 0.0
        %4561 = vst.msk [vmem:[#allocation5 + $0x100] sm:$0x3] %vm4530, 0.0
        %4562 = vst.msk [vmem:[#allocation5 + $0x108] sm:$0xff] %vm4527, 0.0
        %4563 = vst.msk [vmem:[#allocation5 + $0x110] sm:$0xff] %vm4527, 0.0
        %4564 = vst.msk [vmem:[#allocation5 + $0x118] sm:$0x3] %vm4530, 0.0
        %4565 = vst.msk [vmem:[#allocation5 + $0x120] sm:$0xff] %vm4527, 0.0
        %4566 = vst.msk [vmem:[#allocation5 + $0x128] sm:$0xff] %vm4527, 0.0
        %4567 = vst.msk [vmem:[#allocation5 + $0x130] sm:$0x3] %vm4530, 0.0
        %4568 = vst.msk [vmem:[#allocation5 + $0x138] sm:$0xff] %vm4527, 0.0
        %4569 = vst.msk [vmem:[#allocation5 + $0x140] sm:$0xff] %vm4527, 0.0
        %4570 = vst.msk [vmem:[#allocation5 + $0x148] sm:$0x3] %vm4530, 0.0
        %4571 = vst.msk [vmem:[#allocation5 + $0x150] sm:$0xff] %vm4527, 0.0
        %4572 = vst.msk [vmem:[#allocation5 + $0x158] sm:$0xff] %vm4527, 0.0
        %4573 = vst.msk [vmem:[#allocation5 + $0x160] sm:$0x3] %vm4530, 0.0
        %4574 = vst.msk [vmem:[#allocation5 + $0x168] sm:$0xff] %vm4527, 0.0
        %4575 = vst.msk [vmem:[#allocation5 + $0x170] sm:$0xff] %vm4527, 0.0
        %4576 = vst.msk [vmem:[#allocation5 + $0x178] sm:$0x3] %vm4530, 0.0
        %4577 = vst.msk [vmem:[#allocation5 + $0x180] sm:$0xff] %vm4527, 0.0
        %4578 = vst.msk [vmem:[#allocation5 + $0x188] sm:$0xff] %vm4527, 0.0
        %4579 = vst.msk [vmem:[#allocation5 + $0x190] sm:$0x3] %vm4530, 0.0
        %4580 = vst.msk [vmem:[#allocation5 + $0x198] sm:$0xff] %vm4527, 0.0
        %4581 = vst.msk [vmem:[#allocation5 + $0x1a0] sm:$0xff] %vm4527, 0.0
        %4582 = vst.msk [vmem:[#allocation5 + $0x1a8] sm:$0x3] %vm4530, 0.0
        %s4583 = scalar_lea.vmem [#allocation5], 24
        %4584 = vst.msk [vmem:[%s4583 + $0x1] sm:$0xff] %vm4527, %v4495
        %4585 = vst.msk [vmem:[%s4583 + $0x9] sm:$0xff] %vm4527, %v4496
        %4586 = vst.msk [vmem:[%s4583 + $0x19] sm:$0xff] %vm4527, %v4497
        %4587 = vst.msk [vmem:[%s4583 + $0x21] sm:$0xff] %vm4527, %v4498
        %4588 = vst.msk [vmem:[%s4583 + $0x31] sm:$0xff] %vm4527, %v4499
        %4589 = vst.msk [vmem:[%s4583 + $0x39] sm:$0xff] %vm4527, %v4500
        %4590 = vst.msk [vmem:[%s4583 + $0x49] sm:$0xff] %vm4527, %v4501
        %4591 = vst.msk [vmem:[%s4583 + $0x51] sm:$0xff] %vm4527, %v4502
        %4592 = vst.msk [vmem:[%s4583 + $0x61] sm:$0xff] %vm4527, %v4503
        %4593 = vst.msk [vmem:[%s4583 + $0x69] sm:$0xff] %vm4527, %v4504
        %4594 = vst.msk [vmem:[%s4583 + $0x79] sm:$0xff] %vm4527, %v4505
        %4595 = vst.msk [vmem:[%s4583 + $0x81] sm:$0xff] %vm4527, %v4506
        %4596 = vst.msk [vmem:[%s4583 + $0x91] sm:$0xff] %vm4527, %v4507
        %4597 = vst.msk [vmem:[%s4583 + $0x99] sm:$0xff] %vm4527, %v4508
        %4598 = vst.msk [vmem:[%s4583 + $0xa9] sm:$0xff] %vm4527, %v4509
        %4599 = vst.msk [vmem:[%s4583 + $0xb1] sm:$0xff] %vm4527, %v4510
        %4600 = vst.msk [vmem:[%s4583 + $0xc1] sm:$0xff] %vm4527, %v4511
        %4601 = vst.msk [vmem:[%s4583 + $0xc9] sm:$0xff] %vm4527, %v4512
        %4602 = vst.msk [vmem:[%s4583 + $0xd9] sm:$0xff] %vm4527, %v4513
        %4603 = vst.msk [vmem:[%s4583 + $0xe1] sm:$0xff] %vm4527, %v4514
        %4604 = vst.msk [vmem:[%s4583 + $0xf1] sm:$0xff] %vm4527, %v4515
        %4605 = vst.msk [vmem:[%s4583 + $0xf9] sm:$0xff] %vm4527, %v4516
        %4606 = vst.msk [vmem:[%s4583 + $0x109] sm:$0xff] %vm4527, %v4517
        %4607 = vst.msk [vmem:[%s4583 + $0x111] sm:$0xff] %vm4527, %v4518
        %4608 = vst.msk [vmem:[%s4583 + $0x121] sm:$0xff] %vm4527, %v4519
        %4609 = vst.msk [vmem:[%s4583 + $0x129] sm:$0xff] %vm4527, %v4520
        %4610 = vst.msk [vmem:[%s4583 + $0x139] sm:$0xff] %vm4527, %v4521
        %4611 = vst.msk [vmem:[%s4583 + $0x141] sm:$0xff] %vm4527, %v4522
        %4612 = vst.msk [vmem:[%s4583 + $0x151] sm:$0xff] %vm4527, %v4523
        %4613 = vst.msk [vmem:[%s4583 + $0x159] sm:$0xff] %vm4527, %v4524
        %4614 = vst.msk [vmem:[%s4583 + $0x169] sm:$0xff] %vm4527, %v4525
        %4615 = vst.msk [vmem:[%s4583 + $0x171] sm:$0xff] %vm4527, %v4526
        %v4616 = vld [vmem:[#allocation5] sm:$0xff]
        %v4617 = vld [vmem:[#allocation5 + $0x8] sm:$0xff]
        %v4618 = vld [vmem:[#allocation5 + $0x18] sm:$0xff]
        %v4619 = vld [vmem:[#allocation5 + $0x20] sm:$0xff]
        %v4620 = vld [vmem:[#allocation5 + $0x30] sm:$0xff]
        %v4621 = vld [vmem:[#allocation5 + $0x38] sm:$0xff]
        %v4622 = vld [vmem:[#allocation5 + $0x48] sm:$0xff]
        %v4623 = vld [vmem:[#allocation5 + $0x50] sm:$0xff]
        %v4624 = vld [vmem:[#allocation5 + $0x60] sm:$0xff]
        %v4625 = vld [vmem:[#allocation5 + $0x68] sm:$0xff]
        %v4626 = vld [vmem:[#allocation5 + $0x78] sm:$0xff]
        %v4627 = vld [vmem:[#allocation5 + $0x80] sm:$0xff]
        %v4628 = vld [vmem:[#allocation5 + $0x90] sm:$0xff]
        %v4629 = vld [vmem:[#allocation5 + $0x98] sm:$0xff]
        %v4630 = vld [vmem:[#allocation5 + $0xa8] sm:$0xff]
        %v4631 = vld [vmem:[#allocation5 + $0xb0] sm:$0xff]
        %v4632 = vld [vmem:[#allocation5 + $0xc0] sm:$0xff]
        %v4633 = vld [vmem:[#allocation5 + $0xc8] sm:$0xff]
        %v4634 = vld [vmem:[#allocation5 + $0xd8] sm:$0xff]
        %v4635 = vld [vmem:[#allocation5 + $0xe0] sm:$0xff]
        %v4636 = vld [vmem:[#allocation5 + $0xf0] sm:$0xff]
        %v4637 = vld [vmem:[#allocation5 + $0xf8] sm:$0xff]
        %v4638 = vld [vmem:[#allocation5 + $0x108] sm:$0xff]
        %v4639 = vld [vmem:[#allocation5 + $0x110] sm:$0xff]
        %v4640 = vld [vmem:[#allocation5 + $0x120] sm:$0xff]
        %v4641 = vld [vmem:[#allocation5 + $0x128] sm:$0xff]
        %v4642 = vld [vmem:[#allocation5 + $0x138] sm:$0xff]
        %v4643 = vld [vmem:[#allocation5 + $0x140] sm:$0xff]
        %v4644 = vld [vmem:[#allocation5 + $0x150] sm:$0xff]
        %v4645 = vld [vmem:[#allocation5 + $0x158] sm:$0xff]
        %v4646 = vld [vmem:[#allocation5 + $0x168] sm:$0xff]
        %v4647 = vld [vmem:[#allocation5 + $0x170] sm:$0xff]
        %v4648 = vld [vmem:[#allocation5 + $0x180] sm:$0xff]
        %v4649 = vld [vmem:[#allocation5 + $0x188] sm:$0xff]
        %v4650 = vld [vmem:[#allocation5 + $0x198] sm:$0xff]
        %v4651 = vld [vmem:[#allocation5 + $0x1a0] sm:$0xff]
        %v4652 = vld [vmem:[#allocation5 + $0x1] sm:$0xff]
        %v4653 = vld [vmem:[#allocation5 + $0x9] sm:$0xff]
        %v4654 = vld [vmem:[#allocation5 + $0x19] sm:$0xff]
        %v4655 = vld [vmem:[#allocation5 + $0x21] sm:$0xff]
        %v4656 = vld [vmem:[#allocation5 + $0x31] sm:$0xff]
        %v4657 = vld [vmem:[#allocation5 + $0x39] sm:$0xff]
        %v4658 = vld [vmem:[#allocation5 + $0x49] sm:$0xff]
        %v4659 = vld [vmem:[#allocation5 + $0x51] sm:$0xff]
        %v4660 = vld [vmem:[#allocation5 + $0x61] sm:$0xff]
        %v4661 = vld [vmem:[#allocation5 + $0x69] sm:$0xff]
        %v4662 = vld [vmem:[#allocation5 + $0x79] sm:$0xff]
        %v4663 = vld [vmem:[#allocation5 + $0x81] sm:$0xff]
        %v4664 = vld [vmem:[#allocation5 + $0x91] sm:$0xff]
        %v4665 = vld [vmem:[#allocation5 + $0x99] sm:$0xff]
        %v4666 = vld [vmem:[#allocation5 + $0xa9] sm:$0xff]
        %v4667 = vld [vmem:[#allocation5 + $0xb1] sm:$0xff]
        %v4668 = vld [vmem:[#allocation5 + $0xc1] sm:$0xff]
        %v4669 = vld [vmem:[#allocation5 + $0xc9] sm:$0xff]
        %v4670 = vld [vmem:[#allocation5 + $0xd9] sm:$0xff]
        %v4671 = vld [vmem:[#allocation5 + $0xe1] sm:$0xff]
        %v4672 = vld [vmem:[#allocation5 + $0xf1] sm:$0xff]
        %v4673 = vld [vmem:[#allocation5 + $0xf9] sm:$0xff]
        %v4674 = vld [vmem:[#allocation5 + $0x109] sm:$0xff]
        %v4675 = vld [vmem:[#allocation5 + $0x111] sm:$0xff]
        %v4676 = vld [vmem:[#allocation5 + $0x121] sm:$0xff]
        %v4677 = vld [vmem:[#allocation5 + $0x129] sm:$0xff]
        %v4678 = vld [vmem:[#allocation5 + $0x139] sm:$0xff]
        %v4679 = vld [vmem:[#allocation5 + $0x141] sm:$0xff]
        %v4680 = vld [vmem:[#allocation5 + $0x151] sm:$0xff]
        %v4681 = vld [vmem:[#allocation5 + $0x159] sm:$0xff]
        %v4682 = vld [vmem:[#allocation5 + $0x169] sm:$0xff]
        %v4683 = vld [vmem:[#allocation5 + $0x171] sm:$0xff]
        %v4684 = vld [vmem:[#allocation5 + $0x181] sm:$0xff]
        %v4685 = vld [vmem:[#allocation5 + $0x189] sm:$0xff]
        %v4686 = vld [vmem:[#allocation5 + $0x199] sm:$0xff]
        %v4687 = vld [vmem:[#allocation5 + $0x1a1] sm:$0xff]
        %v4688 = vld [vmem:[#allocation5 + $0x2] sm:$0xff]
        %v4689 = vld [vmem:[#allocation5 + $0xa] sm:$0xff]
        %v4690 = vld [vmem:[#allocation5 + $0x1a] sm:$0xff]
        %v4691 = vld [vmem:[#allocation5 + $0x22] sm:$0xff]
        %v4692 = vld [vmem:[#allocation5 + $0x32] sm:$0xff]
        %v4693 = vld [vmem:[#allocation5 + $0x3a] sm:$0xff]
        %v4694 = vld [vmem:[#allocation5 + $0x4a] sm:$0xff]
        %v4695 = vld [vmem:[#allocation5 + $0x52] sm:$0xff]
        %v4696 = vld [vmem:[#allocation5 + $0x62] sm:$0xff]
        %v4697 = vld [vmem:[#allocation5 + $0x6a] sm:$0xff]
        %v4698 = vld [vmem:[#allocation5 + $0x7a] sm:$0xff]
        %v4699 = vld [vmem:[#allocation5 + $0x82] sm:$0xff]
        %v4700 = vld [vmem:[#allocation5 + $0x92] sm:$0xff]
        %v4701 = vld [vmem:[#allocation5 + $0x9a] sm:$0xff]
        %v4702 = vld [vmem:[#allocation5 + $0xaa] sm:$0xff]
        %v4703 = vld [vmem:[#allocation5 + $0xb2] sm:$0xff]
        %v4704 = vld [vmem:[#allocation5 + $0xc2] sm:$0xff]
        %v4705 = vld [vmem:[#allocation5 + $0xca] sm:$0xff]
        %v4706 = vld [vmem:[#allocation5 + $0xda] sm:$0xff]
        %v4707 = vld [vmem:[#allocation5 + $0xe2] sm:$0xff]
        %v4708 = vld [vmem:[#allocation5 + $0xf2] sm:$0xff]
        %v4709 = vld [vmem:[#allocation5 + $0xfa] sm:$0xff]
        %v4710 = vld [vmem:[#allocation5 + $0x10a] sm:$0xff]
        %v4711 = vld [vmem:[#allocation5 + $0x112] sm:$0xff]
        %v4712 = vld [vmem:[#allocation5 + $0x122] sm:$0xff]
        %v4713 = vld [vmem:[#allocation5 + $0x12a] sm:$0xff]
        %v4714 = vld [vmem:[#allocation5 + $0x13a] sm:$0xff]
        %v4715 = vld [vmem:[#allocation5 + $0x142] sm:$0xff]
        %v4716 = vld [vmem:[#allocation5 + $0x152] sm:$0xff]
        %v4717 = vld [vmem:[#allocation5 + $0x15a] sm:$0xff]
        %v4718 = vld [vmem:[#allocation5 + $0x16a] sm:$0xff]
        %v4719 = vld [vmem:[#allocation5 + $0x172] sm:$0xff]
        %v4720 = vld [vmem:[#allocation5 + $0x182] sm:$0xff]
        %v4721 = vld [vmem:[#allocation5 + $0x18a] sm:$0xff]
        %v4722 = vld [vmem:[#allocation5 + $0x19a] sm:$0xff]
        %v4723 = vld [vmem:[#allocation5 + $0x1a2] sm:$0xff]
        %4760 = vrot.lane.b32.xlu0 %v4652, 64
        %v4761 = vpop.permute.xlu0 %4760
        %4762 = vrot.lane.b32.xlu0 %v4653, 64
        %v4763 = vpop.permute.xlu0 %4762
        %4764 = vrot.lane.b32.xlu0 %v4654, 64
        %v4765 = vpop.permute.xlu0 %4764
        %4766 = vrot.lane.b32.xlu0 %v4655, 64
        %v4767 = vpop.permute.xlu0 %4766
        %4768 = vrot.lane.b32.xlu0 %v4656, 64
        %v4769 = vpop.permute.xlu0 %4768
        %4770 = vrot.lane.b32.xlu0 %v4657, 64
        %v4771 = vpop.permute.xlu0 %4770
        %4772 = vrot.lane.b32.xlu0 %v4658, 64
        %v4773 = vpop.permute.xlu0 %4772
        %4774 = vrot.lane.b32.xlu0 %v4659, 64
        %v4775 = vpop.permute.xlu0 %4774
        %4776 = vrot.lane.b32.xlu0 %v4660, 64
        %v4777 = vpop.permute.xlu0 %4776
        %4778 = vrot.lane.b32.xlu0 %v4661, 64
        %v4779 = vpop.permute.xlu0 %4778
        %4780 = vrot.lane.b32.xlu0 %v4662, 64
        %v4781 = vpop.permute.xlu0 %4780
        %4782 = vrot.lane.b32.xlu0 %v4663, 64
        %v4783 = vpop.permute.xlu0 %4782
        %4784 = vrot.lane.b32.xlu0 %v4664, 64
        %v4785 = vpop.permute.xlu0 %4784
        %4786 = vrot.lane.b32.xlu0 %v4665, 64
        %v4787 = vpop.permute.xlu0 %4786
        %4788 = vrot.lane.b32.xlu0 %v4666, 64
        %v4789 = vpop.permute.xlu0 %4788
        %4790 = vrot.lane.b32.xlu0 %v4667, 64
        %v4791 = vpop.permute.xlu0 %4790
        %4792 = vrot.lane.b32.xlu0 %v4668, 64
        %v4793 = vpop.permute.xlu0 %4792
        %4794 = vrot.lane.b32.xlu0 %v4669, 64
        %v4795 = vpop.permute.xlu0 %4794
        %4796 = vrot.lane.b32.xlu0 %v4670, 64
        %v4797 = vpop.permute.xlu0 %4796
        %4798 = vrot.lane.b32.xlu0 %v4671, 64
        %v4799 = vpop.permute.xlu0 %4798
        %4800 = vrot.lane.b32.xlu0 %v4672, 64
        %v4801 = vpop.permute.xlu0 %4800
        %4802 = vrot.lane.b32.xlu0 %v4673, 64
        %v4803 = vpop.permute.xlu0 %4802
        %4804 = vrot.lane.b32.xlu0 %v4674, 64
        %v4805 = vpop.permute.xlu0 %4804
        %4806 = vrot.lane.b32.xlu0 %v4675, 64
        %v4807 = vpop.permute.xlu0 %4806
        %4808 = vrot.lane.b32.xlu0 %v4676, 64
        %v4809 = vpop.permute.xlu0 %4808
        %4810 = vrot.lane.b32.xlu0 %v4677, 64
        %v4811 = vpop.permute.xlu0 %4810
        %4812 = vrot.lane.b32.xlu0 %v4678, 64
        %v4813 = vpop.permute.xlu0 %4812
        %4814 = vrot.lane.b32.xlu0 %v4679, 64
        %v4815 = vpop.permute.xlu0 %4814
        %4816 = vrot.lane.b32.xlu0 %v4680, 64
        %v4817 = vpop.permute.xlu0 %4816
        %4818 = vrot.lane.b32.xlu0 %v4681, 64
        %v4819 = vpop.permute.xlu0 %4818
        %4820 = vrot.lane.b32.xlu0 %v4682, 64
        %v4821 = vpop.permute.xlu0 %4820
        %4822 = vrot.lane.b32.xlu0 %v4683, 64
        %v4823 = vpop.permute.xlu0 %4822
        %4824 = vrot.lane.b32.xlu0 %v4684, 64
        %v4825 = vpop.permute.xlu0 %4824
        %4826 = vrot.lane.b32.xlu0 %v4685, 64
        %v4827 = vpop.permute.xlu0 %4826
        %4828 = vrot.lane.b32.xlu0 %v4686, 64
        %v4829 = vpop.permute.xlu0 %4828
        %4830 = vrot.lane.b32.xlu0 %v4687, 64
        %v4831 = vpop.permute.xlu0 %4830
        %v4868 = vsel %vm4527, %v4616, %v4761
        %v4869 = vsel %vm4527, %v4617, %v4763
        %v4870 = vsel %vm4527, %v4618, %v4765
        %v4871 = vsel %vm4527, %v4619, %v4767
        %v4872 = vsel %vm4527, %v4620, %v4769
        %v4873 = vsel %vm4527, %v4621, %v4771
        %v4874 = vsel %vm4527, %v4622, %v4773
        %v4875 = vsel %vm4527, %v4623, %v4775
        %v4876 = vsel %vm4527, %v4624, %v4777
        %v4877 = vsel %vm4527, %v4625, %v4779
        %v4878 = vsel %vm4527, %v4626, %v4781
        %v4879 = vsel %vm4527, %v4627, %v4783
        %v4880 = vsel %vm4527, %v4628, %v4785
        %v4881 = vsel %vm4527, %v4629, %v4787
        %v4882 = vsel %vm4527, %v4630, %v4789
        %v4883 = vsel %vm4527, %v4631, %v4791
        %v4884 = vsel %vm4527, %v4632, %v4793
        %v4885 = vsel %vm4527, %v4633, %v4795
        %v4886 = vsel %vm4527, %v4634, %v4797
        %v4887 = vsel %vm4527, %v4635, %v4799
        %v4888 = vsel %vm4527, %v4636, %v4801
        %v4889 = vsel %vm4527, %v4637, %v4803
        %v4890 = vsel %vm4527, %v4638, %v4805
        %v4891 = vsel %vm4527, %v4639, %v4807
        %v4892 = vsel %vm4527, %v4640, %v4809
        %v4893 = vsel %vm4527, %v4641, %v4811
        %v4894 = vsel %vm4527, %v4642, %v4813
        %v4895 = vsel %vm4527, %v4643, %v4815
        %v4896 = vsel %vm4527, %v4644, %v4817
        %v4897 = vsel %vm4527, %v4645, %v4819
        %v4898 = vsel %vm4527, %v4646, %v4821
        %v4899 = vsel %vm4527, %v4647, %v4823
        %v4900 = vsel %vm4527, %v4648, %v4825
        %v4901 = vsel %vm4527, %v4649, %v4827
        %v4902 = vsel %vm4527, %v4650, %v4829
        %v4903 = vsel %vm4527, %v4651, %v4831
        %v4904 = vpack.c.bf16 %v4869, %v4868
        %v4905 = vpack.c.bf16 %v4689, %v4688
        %v4906 = vpack.c.bf16 %v4871, %v4870
        %v4907 = vpack.c.bf16 %v4691, %v4690
        %v4908 = vpack.c.bf16 %v4873, %v4872
        %v4909 = vpack.c.bf16 %v4693, %v4692
        %v4910 = vpack.c.bf16 %v4875, %v4874
        %v4911 = vpack.c.bf16 %v4695, %v4694
        %v4912 = vpack.c.bf16 %v4877, %v4876
        %v4913 = vpack.c.bf16 %v4697, %v4696
        %v4914 = vpack.c.bf16 %v4879, %v4878
        %v4915 = vpack.c.bf16 %v4699, %v4698
        %v4916 = vpack.c.bf16 %v4881, %v4880
        %v4917 = vpack.c.bf16 %v4701, %v4700
        %v4918 = vpack.c.bf16 %v4883, %v4882
        %v4919 = vpack.c.bf16 %v4703, %v4702
        %v4920 = vpack.c.bf16 %v4885, %v4884
        %v4921 = vpack.c.bf16 %v4705, %v4704
        %v4922 = vpack.c.bf16 %v4887, %v4886
        %v4923 = vpack.c.bf16 %v4707, %v4706
        %v4924 = vpack.c.bf16 %v4889, %v4888
        %v4925 = vpack.c.bf16 %v4709, %v4708
        %v4926 = vpack.c.bf16 %v4891, %v4890
        %v4927 = vpack.c.bf16 %v4711, %v4710
        %v4928 = vpack.c.bf16 %v4893, %v4892
        %v4929 = vpack.c.bf16 %v4713, %v4712
        %v4930 = vpack.c.bf16 %v4895, %v4894
        %v4931 = vpack.c.bf16 %v4715, %v4714
        %v4932 = vpack.c.bf16 %v4897, %v4896
        %v4933 = vpack.c.bf16 %v4717, %v4716
        %v4934 = vpack.c.bf16 %v4899, %v4898
        %v4935 = vpack.c.bf16 %v4719, %v4718
        %v4936 = vld [vmem:[%s7] sm:$0xf]
        %v4937 = vld [vmem:[%s7 + $0x4] sm:$0xf]
        %v4938 = vld [vmem:[%s7 + $0x8] sm:$0xf]
        %v4939 = vld [vmem:[%s7 + $0xc] sm:$0xf]
        %v4940 = vld [vmem:[%s7 + $0x10] sm:$0xf]
        %v4941 = vld [vmem:[%s7 + $0x14] sm:$0xf]
        %v4942 = vld [vmem:[%s7 + $0x18] sm:$0xf]
        %v4943 = vld [vmem:[%s7 + $0x1c] sm:$0xf]
        %v4944 = vld [vmem:[%s7 + $0x20] sm:$0xf]
        %v4945 = vld [vmem:[%s7 + $0x24] sm:$0xf]
        %v4946 = vld [vmem:[%s7 + $0x28] sm:$0xf]
        %v4947 = vld [vmem:[%s7 + $0x2c] sm:$0xf]
        %v4948 = vld [vmem:[%s7 + $0x30] sm:$0xf]
        %v4949 = vld [vmem:[%s7 + $0x34] sm:$0xf]
        %v4950 = vld [vmem:[%s7 + $0x38] sm:$0xf]
        %v4951 = vld [vmem:[%s7 + $0x3c] sm:$0xf]
        %v4952 = vld [vmem:[%s7 + $0x40] sm:$0xf]
        %v4953 = vld [vmem:[%s7 + $0x44] sm:$0xf]
        %v4954 = vld [vmem:[%s7 + $0x48] sm:$0xf]
        %v4955 = vld [vmem:[%s7 + $0x4c] sm:$0xf]
        %v4956 = vld [vmem:[%s7 + $0x50] sm:$0xf]
        %v4957 = vld [vmem:[%s7 + $0x54] sm:$0xf]
        %v4958 = vld [vmem:[%s7 + $0x58] sm:$0xf]
        %v4959 = vld [vmem:[%s7 + $0x5c] sm:$0xf]
        %v4960 = vpack.c.bf16 %v4901, %v4900
        %v4961 = vpack.c.bf16 %v4721, %v4720
        %s4962 = scalar_lea.vmem %s7, 96
        %v4963 = vld [vmem:[%s4962] sm:$0xf]
        %v4964 = vld [vmem:[%s4962 + $0x4] sm:$0xf]
        %v4965 = vld [vmem:[%s4962 + $0x8] sm:$0xf]
        %v4966 = vld [vmem:[%s4962 + $0xc] sm:$0xf]
        %v4967 = vld [vmem:[%s4962 + $0x10] sm:$0xf]
        %v4968 = vld [vmem:[%s4962 + $0x14] sm:$0xf]
        %v4969 = vld [vmem:[%s4962 + $0x18] sm:$0xf]
        %v4970 = vld [vmem:[%s4962 + $0x1c] sm:$0xf]
        %v4971 = vld [vmem:[%s4962 + $0x20] sm:$0xf]
        %v4972 = vld [vmem:[%s4962 + $0x24] sm:$0xf]
        %v4973 = vld [vmem:[%s4962 + $0x28] sm:$0xf]
        %v4974 = vld [vmem:[%s4962 + $0x2c] sm:$0xf]
        %v4975 = vld [vmem:[%s4962 + $0x30] sm:$0xf]
        %v4976 = vld [vmem:[%s4962 + $0x34] sm:$0xf]
        %v4977 = vld [vmem:[%s4962 + $0x38] sm:$0xf]
        %v4978 = vld [vmem:[%s4962 + $0x3c] sm:$0xf]
        %v4979 = vld [vmem:[%s4962 + $0x40] sm:$0xf]
        %v4980 = vld [vmem:[%s4962 + $0x44] sm:$0xf]
        %v4981 = vld [vmem:[%s4962 + $0x48] sm:$0xf]
        %v4982 = vld [vmem:[%s4962 + $0x4c] sm:$0xf]
        %v4983 = vld [vmem:[%s4962 + $0x50] sm:$0xf]
        %v4984 = vld [vmem:[%s4962 + $0x54] sm:$0xf]
        %v4985 = vld [vmem:[%s4962 + $0x58] sm:$0xf]
        %v4986 = vld [vmem:[%s4962 + $0x5c] sm:$0xf]
        %v5011 = vunpack.c.l.b16 %v4963
        %v5012 = vunpack.c.l.b16 %v4964
        %v5013 = vunpack.c.l.b16 %v4965
        %v5014 = vunpack.c.l.b16 %v4966
        %v5015 = vunpack.c.l.b16 %v4967
        %v5016 = vunpack.c.l.b16 %v4968
        %v5017 = vunpack.c.l.b16 %v4969
        %v5018 = vunpack.c.l.b16 %v4970
        %v5019 = vunpack.c.l.b16 %v4971
        %v5020 = vunpack.c.l.b16 %v4972
        %v5021 = vunpack.c.l.b16 %v4973
        %v5022 = vunpack.c.l.b16 %v4974
        %v5023 = vunpack.c.l.b16 %v4975
        %v5024 = vunpack.c.l.b16 %v4976
        %v5025 = vunpack.c.l.b16 %v4977
        %v5026 = vunpack.c.l.b16 %v4978
        %v5027 = vunpack.c.l.b16 %v4979
        %v5028 = vunpack.c.l.b16 %v4980
        %v5029 = vunpack.c.l.b16 %v4981
        %v5030 = vunpack.c.l.b16 %v4982
        %v5031 = vunpack.c.l.b16 %v4983
        %v5032 = vunpack.c.l.b16 %v4984
        %v5033 = vunpack.c.l.b16 %v4985
        %v5034 = vunpack.c.l.b16 %v4986
        %v5035 = vpack.c.b16 %v5012, %v5011
        %v5036 = vpack.c.b16 %v5014, %v5013
        %v5037 = vpack.c.b16 %v5016, %v5015
        %v5038 = vpack.c.b16 %v5018, %v5017
        %v5039 = vpack.c.b16 %v5020, %v5019
        %v5040 = vpack.c.b16 %v5022, %v5021
        %v5041 = vpack.c.b16 %v5024, %v5023
        %v5042 = vpack.c.b16 %v5026, %v5025
        %v5043 = vpack.c.b16 %v5028, %v5027
        %v5044 = vpack.c.b16 %v5030, %v5029
        %v5045 = vpack.c.b16 %v5032, %v5031
        %v5046 = vpack.c.b16 %v5034, %v5033
        %v5060 = vsel %vm4527, %v4907, 0
        %v5063 = vsel %vm4527, %v4909, 0
        %v5066 = vsel %vm4527, %v4911, 0
        %v5069 = vsel %vm4527, %v4913, 0
        %v5072 = vsel %vm4527, %v4915, 0
        %v5075 = vsel %vm4527, %v4917, 0
        %v5078 = vsel %vm4527, %v4919, 0
        %v5081 = vsel %vm4527, %v4921, 0
        %v5084 = vsel %vm4527, %v4923, 0
        %v5087 = vsel %vm4527, %v4925, 0
        %v5090 = vsel %vm4527, %v4927, 0
        %v5093 = vsel %vm4527, %v4929, 0
        %v5096 = vsel %vm4527, %v4931, 0
        %v5099 = vsel %vm4527, %v4933, 0
        %v5102 = vsel %vm4527, %v4935, 0
        %v5105 = vsel %vm4527, %v4961, 0
        %5107 = vmatprep.subr.bf16.mxu0 0
        %5108 = vmatpush1.bf16.msra.mxu0 %v5035
        %5109 = vmatprep.subr.bf16.mxu0 0
        %5110 = vmatpush1.bf16.msra.mxu0 %v5036
        %5111 = vmatprep.subr.bf16.mxu0 0
        %5112 = vmatpush1.bf16.msra.mxu0 %v5037
        %5113 = vmatprep.subr.bf16.mxu0 0
        %5114 = vmatpush1.bf16.msra.mxu0 %v5038
        %5115 = vmatprep.subr.bf16.mxu0 0
        %5116 = vmatpush1.bf16.msra.mxu0 %v5039
        %5117 = vmatprep.subr.bf16.mxu0 0
        %5118 = vmatpush1.bf16.msra.mxu0 %v5040
        %5119 = vmatprep.subr.bf16.mxu0 0
        %5120 = vmatpush1.bf16.msra.mxu0 %v5041
        %5121 = vmatprep.subr.bf16.mxu0 0
        %5122 = vmatpush1.bf16.msra.mxu0 %v5042
        %5123 = vmatprep.subr.bf16.mxu0 0
        %5124 = vmatpush1.bf16.msra.mxu0 %v5043
        %5125 = vmatprep.subr.bf16.mxu0 0
        %5126 = vmatpush1.bf16.msra.mxu0 %v5044
        %5127 = vmatprep.subr.bf16.mxu0 0
        %5128 = vmatpush1.bf16.msra.mxu0 %v5045
        %5129 = vmatprep.subr.bf16.mxu0 0
        %5130 = vmatpush1.bf16.msra.mxu0 %v5046
        %5131 = vmatprep.subr.bf16.mxu0 0
        %5132 = vmatpush1.bf16.msra.mxu0 0
        %5133 = vmatprep.subr.bf16.mxu0 0
        %5134 = vmatpush1.bf16.msra.mxu0 0
        %5135 = vmatprep.subr.bf16.mxu0 0
        %5136 = vmatpush1.bf16.msra.mxu0 0
        %5137 = vmatprep.subr.bf16.mxu0 0
        %5138 = vmatpush1.bf16.msra.mxu0 0
        %5139 = vmatprep.mubr.bf16.mxu0 %v5060
        %5140 = vmatmul.mubr.bf16.gmra.mrb[0].mxu0 %v4906
        %v5141 = vpop.f32.mrb[0].mxu0
        %v5142 = vadd.f32 0.0, %v5141
        %v5143 = vpop.f32.mrb[0].mxu0
        %v5144 = vpop.f32.mrb[0].mxu0
        %v5145 = vadd.f32 0.0, %v5144
        %v5146 = vpop.f32.mrb[0].mxu0
        %5147 = vmatprep.mubr.bf16.mxu0 %v5063
        %5148 = vmatmul.mubr.bf16.gmra.mrb[0].mxu0 %v4908
        %v5149 = vpop.f32.mrb[0].mxu0
        %v5150 = vadd.f32 0.0, %v5149
        %v5151 = vpop.f32.mrb[0].mxu0
        %v5152 = vpop.f32.mrb[0].mxu0
        %v5153 = vadd.f32 0.0, %v5152
        %v5154 = vpop.f32.mrb[0].mxu0
        %5155 = vmatprep.mubr.bf16.mxu0 %v5066
        %5156 = vmatmul.mubr.bf16.gmra.mrb[0].mxu0 %v4910
        %v5157 = vpop.f32.mrb[0].mxu0
        %v5158 = vadd.f32 0.0, %v5157
        %v5159 = vpop.f32.mrb[0].mxu0
        %v5160 = vpop.f32.mrb[0].mxu0
        %v5161 = vadd.f32 0.0, %v5160
        %v5162 = vpop.f32.mrb[0].mxu0
        %5163 = vmatprep.mubr.bf16.mxu0 %v5069
        %5164 = vmatmul.mubr.bf16.gmra.mrb[0].mxu0 %v4912
        %v5165 = vpop.f32.mrb[0].mxu0
        %v5166 = vadd.f32 0.0, %v5165
        %v5167 = vpop.f32.mrb[0].mxu0
        %v5168 = vpop.f32.mrb[0].mxu0
        %v5169 = vadd.f32 0.0, %v5168
        %v5170 = vpop.f32.mrb[0].mxu0
        %5171 = vmatprep.mubr.bf16.mxu0 %v5072
        %5172 = vmatmul.mubr.bf16.gmra.mrb[0].mxu0 %v4914
        %v5173 = vpop.f32.mrb[0].mxu0
        %v5174 = vadd.f32 0.0, %v5173
        %v5175 = vpop.f32.mrb[0].mxu0
        %v5176 = vpop.f32.mrb[0].mxu0
        %v5177 = vadd.f32 0.0, %v5176
        %v5178 = vpop.f32.mrb[0].mxu0
        %5179 = vmatprep.mubr.bf16.mxu0 %v5075
        %5180 = vmatmul.mubr.bf16.gmra.mrb[0].mxu0 %v4916
        %v5181 = vpop.f32.mrb[0].mxu0
        %v5182 = vadd.f32 0.0, %v5181
        %v5183 = vpop.f32.mrb[0].mxu0
        %v5184 = vpop.f32.mrb[0].mxu0
        %v5185 = vadd.f32 0.0, %v5184
        %v5186 = vpop.f32.mrb[0].mxu0
        %5187 = vmatprep.mubr.bf16.mxu0 %v5078
        %5188 = vmatmul.mubr.bf16.gmra.mrb[0].mxu0 %v4918
        %v5189 = vpop.f32.mrb[0].mxu0
        %v5190 = vadd.f32 0.0, %v5189
        %v5191 = vpop.f32.mrb[0].mxu0
        %v5192 = vpop.f32.mrb[0].mxu0
        %v5193 = vadd.f32 0.0, %v5192
        %v5194 = vpop.f32.mrb[0].mxu0
        %5195 = vmatprep.mubr.bf16.mxu0 %v5081
        %5196 = vmatmul.mubr.bf16.gmra.mrb[0].mxu0 %v4920
        %v5197 = vpop.f32.mrb[0].mxu0
        %v5198 = vadd.f32 0.0, %v5197
        %v5199 = vpop.f32.mrb[0].mxu0
        %v5200 = vpop.f32.mrb[0].mxu0
        %v5201 = vadd.f32 0.0, %v5200
        %v5202 = vpop.f32.mrb[0].mxu0
        %5203 = vmatprep.mubr.bf16.mxu0 %v5084
        %5204 = vmatmul.mubr.bf16.gmra.mrb[0].mxu0 %v4922
        %v5205 = vpop.f32.mrb[0].mxu0
        %v5206 = vadd.f32 0.0, %v5205
        %v5207 = vpop.f32.mrb[0].mxu0
        %v5208 = vpop.f32.mrb[0].mxu0
        %v5209 = vadd.f32 0.0, %v5208
        %v5210 = vpop.f32.mrb[0].mxu0
        %5211 = vmatprep.mubr.bf16.mxu0 %v5087
        %5212 = vmatmul.mubr.bf16.gmra.mrb[0].mxu0 %v4924
        %v5213 = vpop.f32.mrb[0].mxu0
        %v5214 = vadd.f32 0.0, %v5213
        %v5215 = vpop.f32.mrb[0].mxu0
        %v5216 = vpop.f32.mrb[0].mxu0
        %v5217 = vadd.f32 0.0, %v5216
        %v5218 = vpop.f32.mrb[0].mxu0
        %5219 = vmatprep.mubr.bf16.mxu0 %v5090
        %5220 = vmatmul.mubr.bf16.gmra.mrb[0].mxu0 %v4926
        %v5221 = vpop.f32.mrb[0].mxu0
        %v5222 = vadd.f32 0.0, %v5221
        %v5223 = vpop.f32.mrb[0].mxu0
        %v5224 = vpop.f32.mrb[0].mxu0
        %v5225 = vadd.f32 0.0, %v5224
        %v5226 = vpop.f32.mrb[0].mxu0
        %5227 = vmatprep.mubr.bf16.mxu0 %v5093
        %5228 = vmatmul.mubr.bf16.gmra.mrb[0].mxu0 %v4928
        %v5229 = vpop.f32.mrb[0].mxu0
        %v5230 = vadd.f32 0.0, %v5229
        %v5231 = vpop.f32.mrb[0].mxu0
        %v5232 = vpop.f32.mrb[0].mxu0
        %v5233 = vadd.f32 0.0, %v5232
        %v5234 = vpop.f32.mrb[0].mxu0
        %5235 = vmatprep.mubr.bf16.mxu0 %v5096
        %5236 = vmatmul.mubr.bf16.gmra.mrb[0].mxu0 %v4930
        %v5237 = vpop.f32.mrb[0].mxu0
        %v5238 = vadd.f32 0.0, %v5237
        %v5239 = vpop.f32.mrb[0].mxu0
        %v5240 = vpop.f32.mrb[0].mxu0
        %v5241 = vadd.f32 0.0, %v5240
        %v5242 = vpop.f32.mrb[0].mxu0
        %5243 = vmatprep.mubr.bf16.mxu0 %v5099
        %5244 = vmatmul.mubr.bf16.gmra.mrb[0].mxu0 %v4932
        %v5245 = vpop.f32.mrb[0].mxu0
        %v5246 = vadd.f32 0.0, %v5245
        %v5247 = vpop.f32.mrb[0].mxu0
        %v5248 = vpop.f32.mrb[0].mxu0
        %v5249 = vadd.f32 0.0, %v5248
        %v5250 = vpop.f32.mrb[0].mxu0
        %5251 = vmatprep.mubr.bf16.mxu0 %v5102
        %5252 = vmatmul.mubr.bf16.gmra.mrb[0].mxu0 %v4934
        %v5253 = vpop.f32.mrb[0].mxu0
        %v5254 = vadd.f32 0.0, %v5253
        %v5255 = vpop.f32.mrb[0].mxu0
        %v5256 = vpop.f32.mrb[0].mxu0
        %v5257 = vadd.f32 0.0, %v5256
        %v5258 = vpop.f32.mrb[0].mxu0
        %5259 = vmatprep.mubr.bf16.mxu0 %v5105
        %5260 = vmatmul.mubr.bf16.gmra.mrb[0].mxu0 %v4960
        %v5261 = vpop.f32.mrb[0].mxu0
        %v5262 = vadd.f32 0.0, %v5261
        %v5263 = vpop.f32.mrb[0].mxu0
        %v5264 = vpop.f32.mrb[0].mxu0
        %v5265 = vadd.f32 0.0, %v5264
        %v5266 = vpop.f32.mrb[0].mxu0
        %5267 = vdwg.mxu0
        %v5292 = vunpack.c.l.b16 %v4936
        %v5293 = vunpack.c.l.b16 %v4937
        %v5294 = vunpack.c.l.b16 %v4938
        %v5295 = vunpack.c.l.b16 %v4939
        %v5296 = vunpack.c.l.b16 %v4940
        %v5297 = vunpack.c.l.b16 %v4941
        %v5298 = vunpack.c.l.b16 %v4942
        %v5299 = vunpack.c.l.b16 %v4943
        %v5300 = vunpack.c.l.b16 %v4944
        %v5301 = vunpack.c.l.b16 %v4945
        %v5302 = vunpack.c.l.b16 %v4946
        %v5303 = vunpack.c.l.b16 %v4947
        %v5304 = vunpack.c.l.b16 %v4948
        %v5305 = vunpack.c.l.b16 %v4949
        %v5306 = vunpack.c.l.b16 %v4950
        %v5307 = vunpack.c.l.b16 %v4951
        %v5308 = vunpack.c.l.b16 %v4952
        %v5309 = vunpack.c.l.b16 %v4953
        %v5310 = vunpack.c.l.b16 %v4954
        %v5311 = vunpack.c.l.b16 %v4955
        %v5312 = vunpack.c.l.b16 %v4956
        %v5313 = vunpack.c.l.b16 %v4957
        %v5314 = vunpack.c.l.b16 %v4958
        %v5315 = vunpack.c.l.b16 %v4959
        %v5316 = vpack.c.b16 %v5293, %v5292
        %v5317 = vpack.c.b16 %v5295, %v5294
        %v5318 = vpack.c.b16 %v5297, %v5296
        %v5319 = vpack.c.b16 %v5299, %v5298
        %v5320 = vpack.c.b16 %v5301, %v5300
        %v5321 = vpack.c.b16 %v5303, %v5302
        %v5322 = vpack.c.b16 %v5305, %v5304
        %v5323 = vpack.c.b16 %v5307, %v5306
        %v5324 = vpack.c.b16 %v5309, %v5308
        %v5325 = vpack.c.b16 %v5311, %v5310
        %v5326 = vpack.c.b16 %v5313, %v5312
        %v5327 = vpack.c.b16 %v5315, %v5314
        %v5341 = vsel %vm4527, %v4905, 0
        %5343 = vmatprep.subr.bf16.mxu0 0
        %5344 = vmatpush1.bf16.msra.mxu0 %v5316
        %5345 = vmatprep.subr.bf16.mxu0 0
        %5346 = vmatpush1.bf16.msra.mxu0 %v5317
        %5347 = vmatprep.subr.bf16.mxu0 0
        %5348 = vmatpush1.bf16.msra.mxu0 %v5318
        %5349 = vmatprep.subr.bf16.mxu0 0
        %5350 = vmatpush1.bf16.msra.mxu0 %v5319
        %5351 = vmatprep.subr.bf16.mxu0 0
        %5352 = vmatpush1.bf16.msra.mxu0 %v5320
        %5353 = vmatprep.subr.bf16.mxu0 0
        %5354 = vmatpush1.bf16.msra.mxu0 %v5321
        %5355 = vmatprep.subr.bf16.mxu0 0
        %5356 = vmatpush1.bf16.msra.mxu0 %v5322
        %5357 = vmatprep.subr.bf16.mxu0 0
        %5358 = vmatpush1.bf16.msra.mxu0 %v5323
        %5359 = vmatprep.subr.bf16.mxu0 0
        %5360 = vmatpush1.bf16.msra.mxu0 %v5324
        %5361 = vmatprep.subr.bf16.mxu0 0
        %5362 = vmatpush1.bf16.msra.mxu0 %v5325
        %5363 = vmatprep.subr.bf16.mxu0 0
        %5364 = vmatpush1.bf16.msra.mxu0 %v5326
        %5365 = vmatprep.subr.bf16.mxu0 0
        %5366 = vmatpush1.bf16.msra.mxu0 %v5327
        %5367 = vmatprep.subr.bf16.mxu0 0
        %5368 = vmatpush1.bf16.msra.mxu0 0
        %5369 = vmatprep.subr.bf16.mxu0 0
        %5370 = vmatpush1.bf16.msra.mxu0 0
        %5371 = vmatprep.subr.bf16.mxu0 0
        %5372 = vmatpush1.bf16.msra.mxu0 0
        %5373 = vmatprep.subr.bf16.mxu0 0
        %5374 = vmatpush1.bf16.msra.mxu0 0
        %5375 = vmatprep.mubr.bf16.mxu0 %v5341
        %5376 = vmatmul.mubr.bf16.gmra.mrb[0].mxu0 %v4904
        %v5377 = vpop.f32.mrb[0].mxu0
        %v5378 = vadd.f32 %v5142, %v5377
        %v5379 = vpop.f32.mrb[0].mxu0
        %v5380 = vpop.f32.mrb[0].mxu0
        %v5381 = vadd.f32 %v5145, %v5380
        %v5382 = vpop.f32.mrb[0].mxu0
        %5383 = vmatprep.mubr.bf16.mxu0 %v5060
        %5384 = vmatmul.mubr.bf16.gmra.mrb[0].mxu0 %v4906
        %v5385 = vpop.f32.mrb[0].mxu0
        %v5386 = vadd.f32 %v5150, %v5385
        %v5387 = vpop.f32.mrb[0].mxu0
        %v5388 = vpop.f32.mrb[0].mxu0
        %v5389 = vadd.f32 %v5153, %v5388
        %v5390 = vpop.f32.mrb[0].mxu0
        %5391 = vmatprep.mubr.bf16.mxu0 %v5063
        %5392 = vmatmul.mubr.bf16.gmra.mrb[0].mxu0 %v4908
        %v5393 = vpop.f32.mrb[0].mxu0
        %v5394 = vadd.f32 %v5158, %v5393
        %v5395 = vpop.f32.mrb[0].mxu0
        %v5396 = vpop.f32.mrb[0].mxu0
        %v5397 = vadd.f32 %v5161, %v5396
        %v5398 = vpop.f32.mrb[0].mxu0
        %5399 = vmatprep.mubr.bf16.mxu0 %v5066
        %5400 = vmatmul.mubr.bf16.gmra.mrb[0].mxu0 %v4910
        %v5401 = vpop.f32.mrb[0].mxu0
        %v5402 = vadd.f32 %v5166, %v5401
        %v5403 = vpop.f32.mrb[0].mxu0
        %v5404 = vpop.f32.mrb[0].mxu0
        %v5405 = vadd.f32 %v5169, %v5404
        %v5406 = vpop.f32.mrb[0].mxu0
        %5407 = vmatprep.mubr.bf16.mxu0 %v5069
        %5408 = vmatmul.mubr.bf16.gmra.mrb[0].mxu0 %v4912
        %v5409 = vpop.f32.mrb[0].mxu0
        %v5410 = vadd.f32 %v5174, %v5409
        %v5411 = vpop.f32.mrb[0].mxu0
        %v5412 = vpop.f32.mrb[0].mxu0
        %v5413 = vadd.f32 %v5177, %v5412
        %v5414 = vpop.f32.mrb[0].mxu0
        %5415 = vmatprep.mubr.bf16.mxu0 %v5072
        %5416 = vmatmul.mubr.bf16.gmra.mrb[0].mxu0 %v4914
        %v5417 = vpop.f32.mrb[0].mxu0
        %v5418 = vadd.f32 %v5182, %v5417
        %v5419 = vpop.f32.mrb[0].mxu0
        %v5420 = vpop.f32.mrb[0].mxu0
        %v5421 = vadd.f32 %v5185, %v5420
        %v5422 = vpop.f32.mrb[0].mxu0
        %5423 = vmatprep.mubr.bf16.mxu0 %v5075
        %5424 = vmatmul.mubr.bf16.gmra.mrb[0].mxu0 %v4916
        %v5425 = vpop.f32.mrb[0].mxu0
        %v5426 = vadd.f32 %v5190, %v5425
        %v5427 = vpop.f32.mrb[0].mxu0
        %v5428 = vpop.f32.mrb[0].mxu0
        %v5429 = vadd.f32 %v5193, %v5428
        %v5430 = vpop.f32.mrb[0].mxu0
        %5431 = vmatprep.mubr.bf16.mxu0 %v5078
        %5432 = vmatmul.mubr.bf16.gmra.mrb[0].mxu0 %v4918
        %v5433 = vpop.f32.mrb[0].mxu0
        %v5434 = vadd.f32 %v5198, %v5433
        %v5435 = vpop.f32.mrb[0].mxu0
        %v5436 = vpop.f32.mrb[0].mxu0
        %v5437 = vadd.f32 %v5201, %v5436
        %v5438 = vpop.f32.mrb[0].mxu0
        %5439 = vmatprep.mubr.bf16.mxu0 %v5081
        %5440 = vmatmul.mubr.bf16.gmra.mrb[0].mxu0 %v4920
        %v5441 = vpop.f32.mrb[0].mxu0
        %v5442 = vadd.f32 %v5206, %v5441
        %v5443 = vpop.f32.mrb[0].mxu0
        %v5444 = vpop.f32.mrb[0].mxu0
        %v5445 = vadd.f32 %v5209, %v5444
        %v5446 = vpop.f32.mrb[0].mxu0
        %5447 = vmatprep.mubr.bf16.mxu0 %v5084
        %5448 = vmatmul.mubr.bf16.gmra.mrb[0].mxu0 %v4922
        %v5449 = vpop.f32.mrb[0].mxu0
        %v5450 = vadd.f32 %v5214, %v5449
        %v5451 = vpop.f32.mrb[0].mxu0
        %v5452 = vpop.f32.mrb[0].mxu0
        %v5453 = vadd.f32 %v5217, %v5452
        %v5454 = vpop.f32.mrb[0].mxu0
        %5455 = vmatprep.mubr.bf16.mxu0 %v5087
        %5456 = vmatmul.mubr.bf16.gmra.mrb[0].mxu0 %v4924
        %v5457 = vpop.f32.mrb[0].mxu0
        %v5458 = vadd.f32 %v5222, %v5457
        %v5459 = vpop.f32.mrb[0].mxu0
        %v5460 = vpop.f32.mrb[0].mxu0
        %v5461 = vadd.f32 %v5225, %v5460
        %v5462 = vpop.f32.mrb[0].mxu0
        %5463 = vmatprep.mubr.bf16.mxu0 %v5090
        %5464 = vmatmul.mubr.bf16.gmra.mrb[0].mxu0 %v4926
        %v5465 = vpop.f32.mrb[0].mxu0
        %v5466 = vadd.f32 %v5230, %v5465
        %v5467 = vpop.f32.mrb[0].mxu0
        %v5468 = vpop.f32.mrb[0].mxu0
        %v5469 = vadd.f32 %v5233, %v5468
        %v5470 = vpop.f32.mrb[0].mxu0
        %5471 = vmatprep.mubr.bf16.mxu0 %v5093
        %5472 = vmatmul.mubr.bf16.gmra.mrb[0].mxu0 %v4928
        %v5473 = vpop.f32.mrb[0].mxu0
        %v5474 = vadd.f32 %v5238, %v5473
        %v5475 = vpop.f32.mrb[0].mxu0
        %v5476 = vpop.f32.mrb[0].mxu0
        %v5477 = vadd.f32 %v5241, %v5476
        %v5478 = vpop.f32.mrb[0].mxu0
        %5479 = vmatprep.mubr.bf16.mxu0 %v5096
        %5480 = vmatmul.mubr.bf16.gmra.mrb[0].mxu0 %v4930
        %v5481 = vpop.f32.mrb[0].mxu0
        %v5482 = vadd.f32 %v5246, %v5481
        %v5483 = vpop.f32.mrb[0].mxu0
        %v5484 = vpop.f32.mrb[0].mxu0
        %v5485 = vadd.f32 %v5249, %v5484
        %v5486 = vpop.f32.mrb[0].mxu0
        %5487 = vmatprep.mubr.bf16.mxu0 %v5099
        %5488 = vmatmul.mubr.bf16.gmra.mrb[0].mxu0 %v4932
        %v5489 = vpop.f32.mrb[0].mxu0
        %v5490 = vadd.f32 %v5254, %v5489
        %v5491 = vpop.f32.mrb[0].mxu0
        %v5492 = vpop.f32.mrb[0].mxu0
        %v5493 = vadd.f32 %v5257, %v5492
        %v5494 = vpop.f32.mrb[0].mxu0
        %5495 = vmatprep.mubr.bf16.mxu0 %v5102
        %5496 = vmatmul.mubr.bf16.gmra.mrb[0].mxu0 %v4934
        %v5497 = vpop.f32.mrb[0].mxu0
        %v5498 = vadd.f32 %v5262, %v5497
        %v5499 = vpop.f32.mrb[0].mxu0
        %v5500 = vpop.f32.mrb[0].mxu0
        %v5501 = vadd.f32 %v5265, %v5500
        %v5502 = vpop.f32.mrb[0].mxu0
        %5503 = vdwg.mxu0
        %v5504 = vpack.c.bf16 %v4903, %v4902
        %v5505 = vpack.c.bf16 %v4723, %v4722
        %s5506 = scalar_lea.vmem %s7, 192
        %v5507 = vld [vmem:[%s5506] sm:$0xf]
        %v5508 = vld [vmem:[%s5506 + $0x4] sm:$0xf]
        %v5509 = vld [vmem:[%s5506 + $0x8] sm:$0xf]
        %v5510 = vld [vmem:[%s5506 + $0xc] sm:$0xf]
        %v5511 = vld [vmem:[%s5506 + $0x10] sm:$0xf]
        %v5512 = vld [vmem:[%s5506 + $0x14] sm:$0xf]
        %v5513 = vld [vmem:[%s5506 + $0x18] sm:$0xf]
        %v5514 = vld [vmem:[%s5506 + $0x1c] sm:$0xf]
        %v5515 = vld [vmem:[%s5506 + $0x20] sm:$0xf]
        %v5516 = vld [vmem:[%s5506 + $0x24] sm:$0xf]
        %v5517 = vld [vmem:[%s5506 + $0x28] sm:$0xf]
        %v5518 = vld [vmem:[%s5506 + $0x2c] sm:$0xf]
        %v5519 = vld [vmem:[%s5506 + $0x30] sm:$0xf]
        %v5520 = vld [vmem:[%s5506 + $0x34] sm:$0xf]
        %v5521 = vld [vmem:[%s5506 + $0x38] sm:$0xf]
        %v5522 = vld [vmem:[%s5506 + $0x3c] sm:$0xf]
        %v5523 = vld [vmem:[%s5506 + $0x40] sm:$0xf]
        %v5524 = vld [vmem:[%s5506 + $0x44] sm:$0xf]
        %v5525 = vld [vmem:[%s5506 + $0x48] sm:$0xf]
        %v5526 = vld [vmem:[%s5506 + $0x4c] sm:$0xf]
        %v5527 = vld [vmem:[%s5506 + $0x50] sm:$0xf]
        %v5528 = vld [vmem:[%s5506 + $0x54] sm:$0xf]
        %v5529 = vld [vmem:[%s5506 + $0x58] sm:$0xf]
        %v5530 = vld [vmem:[%s5506 + $0x5c] sm:$0xf]
        %v5555 = vunpack.c.l.b16 %v5507
        %v5556 = vunpack.c.l.b16 %v5508
        %v5557 = vunpack.c.l.b16 %v5509
        %v5558 = vunpack.c.l.b16 %v5510
        %v5559 = vunpack.c.l.b16 %v5511
        %v5560 = vunpack.c.l.b16 %v5512
        %v5561 = vunpack.c.l.b16 %v5513
        %v5562 = vunpack.c.l.b16 %v5514
        %v5563 = vunpack.c.l.b16 %v5515
        %v5564 = vunpack.c.l.b16 %v5516
        %v5565 = vunpack.c.l.b16 %v5517
        %v5566 = vunpack.c.l.b16 %v5518
        %v5567 = vunpack.c.l.b16 %v5519
        %v5568 = vunpack.c.l.b16 %v5520
        %v5569 = vunpack.c.l.b16 %v5521
        %v5570 = vunpack.c.l.b16 %v5522
        %v5571 = vunpack.c.l.b16 %v5523
        %v5572 = vunpack.c.l.b16 %v5524
        %v5573 = vunpack.c.l.b16 %v5525
        %v5574 = vunpack.c.l.b16 %v5526
        %v5575 = vunpack.c.l.b16 %v5527
        %v5576 = vunpack.c.l.b16 %v5528
        %v5577 = vunpack.c.l.b16 %v5529
        %v5578 = vunpack.c.l.b16 %v5530
        %v5579 = vpack.c.b16 %v5556, %v5555
        %v5580 = vpack.c.b16 %v5558, %v5557
        %v5581 = vpack.c.b16 %v5560, %v5559
        %v5582 = vpack.c.b16 %v5562, %v5561
        %v5583 = vpack.c.b16 %v5564, %v5563
        %v5584 = vpack.c.b16 %v5566, %v5565
        %v5585 = vpack.c.b16 %v5568, %v5567
        %v5586 = vpack.c.b16 %v5570, %v5569
        %v5587 = vpack.c.b16 %v5572, %v5571
        %v5588 = vpack.c.b16 %v5574, %v5573
        %v5589 = vpack.c.b16 %v5576, %v5575
        %v5590 = vpack.c.b16 %v5578, %v5577
        %v5604 = vsel %vm4527, %v5505, 0
        %5606 = vmatprep.subr.bf16.mxu0 0
        %5607 = vmatpush1.bf16.msra.mxu0 %v5579
        %5608 = vmatprep.subr.bf16.mxu0 0
        %5609 = vmatpush1.bf16.msra.mxu0 %v5580
        %5610 = vmatprep.subr.bf16.mxu0 0
        %5611 = vmatpush1.bf16.msra.mxu0 %v5581
        %5612 = vmatprep.subr.bf16.mxu0 0
        %5613 = vmatpush1.bf16.msra.mxu0 %v5582
        %5614 = vmatprep.subr.bf16.mxu0 0
        %5615 = vmatpush1.bf16.msra.mxu0 %v5583
        %5616 = vmatprep.subr.bf16.mxu0 0
        %5617 = vmatpush1.bf16.msra.mxu0 %v5584
        %5618 = vmatprep.subr.bf16.mxu0 0
        %5619 = vmatpush1.bf16.msra.mxu0 %v5585
        %5620 = vmatprep.subr.bf16.mxu0 0
        %5621 = vmatpush1.bf16.msra.mxu0 %v5586
        %5622 = vmatprep.subr.bf16.mxu0 0
        %5623 = vmatpush1.bf16.msra.mxu0 %v5587
        %5624 = vmatprep.subr.bf16.mxu0 0
        %5625 = vmatpush1.bf16.msra.mxu0 %v5588
        %5626 = vmatprep.subr.bf16.mxu0 0
        %5627 = vmatpush1.bf16.msra.mxu0 %v5589
        %5628 = vmatprep.subr.bf16.mxu0 0
        %5629 = vmatpush1.bf16.msra.mxu0 %v5590
        %5630 = vmatprep.subr.bf16.mxu0 0
        %5631 = vmatpush1.bf16.msra.mxu0 0
        %5632 = vmatprep.subr.bf16.mxu0 0
        %5633 = vmatpush1.bf16.msra.mxu0 0
        %5634 = vmatprep.subr.bf16.mxu0 0
        %5635 = vmatpush1.bf16.msra.mxu0 0
        %5636 = vmatprep.subr.bf16.mxu0 0
        %5637 = vmatpush1.bf16.msra.mxu0 0
        %5638 = vmatprep.mubr.bf16.mxu0 %v5063
        %5639 = vmatmul.mubr.bf16.gmra.mrb[0].mxu0 %v4908
        %v5640 = vpop.f32.mrb[0].mxu0
        %v5641 = vadd.f32 0.0, %v5640
        %v5642 = vpop.f32.mrb[0].mxu0
        %v5643 = vpop.f32.mrb[0].mxu0
        %v5644 = vadd.f32 0.0, %v5643
        %v5645 = vpop.f32.mrb[0].mxu0
        %5646 = vmatprep.mubr.bf16.mxu0 %v5066
        %5647 = vmatmul.mubr.bf16.gmra.mrb[0].mxu0 %v4910
        %v5648 = vpop.f32.mrb[0].mxu0
        %v5649 = vadd.f32 0.0, %v5648
        %v5650 = vpop.f32.mrb[0].mxu0
        %v5651 = vpop.f32.mrb[0].mxu0
        %v5652 = vadd.f32 0.0, %v5651
        %v5653 = vpop.f32.mrb[0].mxu0
        %5654 = vmatprep.mubr.bf16.mxu0 %v5069
        %5655 = vmatmul.mubr.bf16.gmra.mrb[0].mxu0 %v4912
        %v5656 = vpop.f32.mrb[0].mxu0
        %v5657 = vadd.f32 0.0, %v5656
        %v5658 = vpop.f32.mrb[0].mxu0
        %v5659 = vpop.f32.mrb[0].mxu0
        %v5660 = vadd.f32 0.0, %v5659
        %v5661 = vpop.f32.mrb[0].mxu0
        %5662 = vmatprep.mubr.bf16.mxu0 %v5072
        %5663 = vmatmul.mubr.bf16.gmra.mrb[0].mxu0 %v4914
        %v5664 = vpop.f32.mrb[0].mxu0
        %v5665 = vadd.f32 0.0, %v5664
        %v5666 = vpop.f32.mrb[0].mxu0
        %v5667 = vpop.f32.mrb[0].mxu0
        %v5668 = vadd.f32 0.0, %v5667
        %v5669 = vpop.f32.mrb[0].mxu0
        %5670 = vmatprep.mubr.bf16.mxu0 %v5075
        %5671 = vmatmul.mubr.bf16.gmra.mrb[0].mxu0 %v4916
        %v5672 = vpop.f32.mrb[0].mxu0
        %v5673 = vadd.f32 0.0, %v5672
        %v5674 = vpop.f32.mrb[0].mxu0
        %v5675 = vpop.f32.mrb[0].mxu0
        %v5676 = vadd.f32 0.0, %v5675
        %v5677 = vpop.f32.mrb[0].mxu0
        %5678 = vmatprep.mubr.bf16.mxu0 %v5078
        %5679 = vmatmul.mubr.bf16.gmra.mrb[0].mxu0 %v4918
        %v5680 = vpop.f32.mrb[0].mxu0
        %v5681 = vadd.f32 0.0, %v5680
        %v5682 = vpop.f32.mrb[0].mxu0
        %v5683 = vpop.f32.mrb[0].mxu0
        %v5684 = vadd.f32 0.0, %v5683
        %v5685 = vpop.f32.mrb[0].mxu0
        %5686 = vmatprep.mubr.bf16.mxu0 %v5081
        %5687 = vmatmul.mubr.bf16.gmra.mrb[0].mxu0 %v4920
        %v5688 = vpop.f32.mrb[0].mxu0
        %v5689 = vadd.f32 0.0, %v5688
        %v5690 = vpop.f32.mrb[0].mxu0
        %v5691 = vpop.f32.mrb[0].mxu0
        %v5692 = vadd.f32 0.0, %v5691
        %v5693 = vpop.f32.mrb[0].mxu0
        %5694 = vmatprep.mubr.bf16.mxu0 %v5084
        %5695 = vmatmul.mubr.bf16.gmra.mrb[0].mxu0 %v4922
        %v5696 = vpop.f32.mrb[0].mxu0
        %v5697 = vadd.f32 0.0, %v5696
        %v5698 = vpop.f32.mrb[0].mxu0
        %v5699 = vpop.f32.mrb[0].mxu0
        %v5700 = vadd.f32 0.0, %v5699
        %v5701 = vpop.f32.mrb[0].mxu0
        %5702 = vmatprep.mubr.bf16.mxu0 %v5087
        %5703 = vmatmul.mubr.bf16.gmra.mrb[0].mxu0 %v4924
        %v5704 = vpop.f32.mrb[0].mxu0
        %v5705 = vadd.f32 0.0, %v5704
        %v5706 = vpop.f32.mrb[0].mxu0
        %v5707 = vpop.f32.mrb[0].mxu0
        %v5708 = vadd.f32 0.0, %v5707
        %v5709 = vpop.f32.mrb[0].mxu0
        %5710 = vmatprep.mubr.bf16.mxu0 %v5090
        %5711 = vmatmul.mubr.bf16.gmra.mrb[0].mxu0 %v4926
        %v5712 = vpop.f32.mrb[0].mxu0
        %v5713 = vadd.f32 0.0, %v5712
        %v5714 = vpop.f32.mrb[0].mxu0
        %v5715 = vpop.f32.mrb[0].mxu0
        %v5716 = vadd.f32 0.0, %v5715
        %v5717 = vpop.f32.mrb[0].mxu0
        %5718 = vmatprep.mubr.bf16.mxu0 %v5093
        %5719 = vmatmul.mubr.bf16.gmra.mrb[0].mxu0 %v4928
        %v5720 = vpop.f32.mrb[0].mxu0
        %v5721 = vadd.f32 0.0, %v5720
        %v5722 = vpop.f32.mrb[0].mxu0
        %v5723 = vpop.f32.mrb[0].mxu0
        %v5724 = vadd.f32 0.0, %v5723
        %v5725 = vpop.f32.mrb[0].mxu0
        %5726 = vmatprep.mubr.bf16.mxu0 %v5096
        %5727 = vmatmul.mubr.bf16.gmra.mrb[0].mxu0 %v4930
        %v5728 = vpop.f32.mrb[0].mxu0
        %v5729 = vadd.f32 0.0, %v5728
        %v5730 = vpop.f32.mrb[0].mxu0
        %v5731 = vpop.f32.mrb[0].mxu0
        %v5732 = vadd.f32 0.0, %v5731
        %v5733 = vpop.f32.mrb[0].mxu0
        %5734 = vmatprep.mubr.bf16.mxu0 %v5099
        %5735 = vmatmul.mubr.bf16.gmra.mrb[0].mxu0 %v4932
        %v5736 = vpop.f32.mrb[0].mxu0
        %v5737 = vadd.f32 0.0, %v5736
        %v5738 = vpop.f32.mrb[0].mxu0
        %v5739 = vpop.f32.mrb[0].mxu0
        %v5740 = vadd.f32 0.0, %v5739
        %v5741 = vpop.f32.mrb[0].mxu0
        %5742 = vmatprep.mubr.bf16.mxu0 %v5102
        %5743 = vmatmul.mubr.bf16.gmra.mrb[0].mxu0 %v4934
        %v5744 = vpop.f32.mrb[0].mxu0
        %v5745 = vadd.f32 0.0, %v5744
        %v5746 = vpop.f32.mrb[0].mxu0
        %v5747 = vpop.f32.mrb[0].mxu0
        %v5748 = vadd.f32 0.0, %v5747
        %v5749 = vpop.f32.mrb[0].mxu0
        %5750 = vmatprep.mubr.bf16.mxu0 %v5105
        %5751 = vmatmul.mubr.bf16.gmra.mrb[0].mxu0 %v4960
        %v5752 = vpop.f32.mrb[0].mxu0
        %v5753 = vadd.f32 0.0, %v5752
        %v5754 = vpop.f32.mrb[0].mxu0
        %v5755 = vpop.f32.mrb[0].mxu0
        %v5756 = vadd.f32 0.0, %v5755
        %v5757 = vpop.f32.mrb[0].mxu0
        %5758 = vmatprep.mubr.bf16.mxu0 %v5604
        %5759 = vmatmul.mubr.bf16.gmra.mrb[0].mxu0 %v5504
        %v5760 = vpop.f32.mrb[0].mxu0
        %v5761 = vadd.f32 0.0, %v5760
        %v5762 = vpop.f32.mrb[0].mxu0
        %v5763 = vpop.f32.mrb[0].mxu0
        %v5764 = vadd.f32 0.0, %v5763
        %v5765 = vpop.f32.mrb[0].mxu0
        %5766 = vdwg.mxu0
        %v5767 = vadd.f32 %v5378, %v5641
        %v5768 = vadd.f32 %v5381, %v5644
        %v5769 = vadd.f32 %v5386, %v5649
        %v5770 = vadd.f32 %v5389, %v5652
        %v5771 = vadd.f32 %v5394, %v5657
        %v5772 = vadd.f32 %v5397, %v5660
        %v5773 = vadd.f32 %v5402, %v5665
        %v5774 = vadd.f32 %v5405, %v5668
        %v5775 = vadd.f32 %v5410, %v5673
        %v5776 = vadd.f32 %v5413, %v5676
        %v5777 = vadd.f32 %v5418, %v5681
        %v5778 = vadd.f32 %v5421, %v5684
        %v5779 = vadd.f32 %v5426, %v5689
        %v5780 = vadd.f32 %v5429, %v5692
        %v5781 = vadd.f32 %v5434, %v5697
        %v5782 = vadd.f32 %v5437, %v5700
        %v5783 = vadd.f32 %v5442, %v5705
        %v5784 = vadd.f32 %v5445, %v5708
        %v5785 = vadd.f32 %v5450, %v5713
        %v5786 = vadd.f32 %v5453, %v5716
        %v5787 = vadd.f32 %v5458, %v5721
        %v5788 = vadd.f32 %v5461, %v5724
        %v5789 = vadd.f32 %v5466, %v5729
        %v5790 = vadd.f32 %v5469, %v5732
        %v5791 = vadd.f32 %v5474, %v5737
        %v5792 = vadd.f32 %v5477, %v5740
        %v5793 = vadd.f32 %v5482, %v5745
        %v5794 = vadd.f32 %v5485, %v5748
        %v5795 = vadd.f32 %v5490, %v5753
        %v5796 = vadd.f32 %v5493, %v5756
        %v5797 = vadd.f32 %v5498, %v5761
        %v5798 = vadd.f32 %v5501, %v5764
        %v5799 = vld [vmem:[%s8] sm:$0x1]
        %v5801 = vlaneseq
        %v5802 = vshrl.u32 %v5801, 7
        %v5803 = vsub.s32 0, %v5802
        %v5804 = vrot.slane %v5799, %v5803
        %v5806 = vadd.f32 %v5767, %v5804
        %v5807 = vadd.f32 %v5768, %v5804
        %v5808 = vadd.f32 %v5769, %v5804
        %v5809 = vadd.f32 %v5770, %v5804
        %v5810 = vadd.f32 %v5771, %v5804
        %v5811 = vadd.f32 %v5772, %v5804
        %v5812 = vadd.f32 %v5773, %v5804
        %v5813 = vadd.f32 %v5774, %v5804
        %v5814 = vadd.f32 %v5775, %v5804
        %v5815 = vadd.f32 %v5776, %v5804
        %v5816 = vadd.f32 %v5777, %v5804
        %v5817 = vadd.f32 %v5778, %v5804
        %v5818 = vadd.f32 %v5779, %v5804
        %v5819 = vadd.f32 %v5780, %v5804
        %v5820 = vadd.f32 %v5781, %v5804
        %v5821 = vadd.f32 %v5782, %v5804
        %v5822 = vadd.f32 %v5783, %v5804
        %v5823 = vadd.f32 %v5784, %v5804
        %v5824 = vadd.f32 %v5785, %v5804
        %v5825 = vadd.f32 %v5786, %v5804
        %v5826 = vadd.f32 %v5787, %v5804
        %v5827 = vadd.f32 %v5788, %v5804
        %v5828 = vadd.f32 %v5789, %v5804
        %v5829 = vadd.f32 %v5790, %v5804
        %v5830 = vadd.f32 %v5791, %v5804
        %v5831 = vadd.f32 %v5792, %v5804
        %v5832 = vadd.f32 %v5793, %v5804
        %v5833 = vadd.f32 %v5794, %v5804
        %v5834 = vadd.f32 %v5795, %v5804
        %v5835 = vadd.f32 %v5796, %v5804
        %v5836 = vadd.f32 %v5797, %v5804
        %v5837 = vadd.f32 %v5798, %v5804
        %v5838 = vtanh.pop %v5806
        %v5839 = vtanh.pop %v5807
        %v5840 = vtanh.pop %v5808
        %v5841 = vtanh.pop %v5809
        %v5842 = vtanh.pop %v5810
        %v5843 = vtanh.pop %v5811
        %v5844 = vtanh.pop %v5812
        %v5845 = vtanh.pop %v5813
        %v5846 = vtanh.pop %v5814
        %v5847 = vtanh.pop %v5815
        %v5848 = vtanh.pop %v5816
        %v5849 = vtanh.pop %v5817
        %v5850 = vtanh.pop %v5818
        %v5851 = vtanh.pop %v5819
        %v5852 = vtanh.pop %v5820
        %v5853 = vtanh.pop %v5821
        %v5854 = vtanh.pop %v5822
        %v5855 = vtanh.pop %v5823
        %v5856 = vtanh.pop %v5824
        %v5857 = vtanh.pop %v5825
        %v5858 = vtanh.pop %v5826
        %v5859 = vtanh.pop %v5827
        %v5860 = vtanh.pop %v5828
        %v5861 = vtanh.pop %v5829
        %v5862 = vtanh.pop %v5830
        %v5863 = vtanh.pop %v5831
        %v5864 = vtanh.pop %v5832
        %v5865 = vtanh.pop %v5833
        %v5866 = vtanh.pop %v5834
        %v5867 = vtanh.pop %v5835
        %v5868 = vtanh.pop %v5836
        %v5869 = vtanh.pop %v5837
        %5870 = vst [vmem:[%s338] sm:$0xff] %v5838
        %5871 = vst [vmem:[%s338 + $0x8] sm:$0xff] %v5839
        %5872 = vst [vmem:[%s338 + $0x10] sm:$0xff] %v5840
        %5873 = vst [vmem:[%s338 + $0x18] sm:$0xff] %v5841
        %5874 = vst [vmem:[%s338 + $0x20] sm:$0xff] %v5842
        %5875 = vst [vmem:[%s338 + $0x28] sm:$0xff] %v5843
        %5876 = vst [vmem:[%s338 + $0x30] sm:$0xff] %v5844
        %5877 = vst [vmem:[%s338 + $0x38] sm:$0xff] %v5845
        %5878 = vst [vmem:[%s338 + $0x40] sm:$0xff] %v5846
        %5879 = vst [vmem:[%s338 + $0x48] sm:$0xff] %v5847
        %5880 = vst [vmem:[%s338 + $0x50] sm:$0xff] %v5848
        %5881 = vst [vmem:[%s338 + $0x58] sm:$0xff] %v5849
        %5882 = vst [vmem:[%s338 + $0x60] sm:$0xff] %v5850
        %5883 = vst [vmem:[%s338 + $0x68] sm:$0xff] %v5851
        %5884 = vst [vmem:[%s338 + $0x70] sm:$0xff] %v5852
        %5885 = vst [vmem:[%s338 + $0x78] sm:$0xff] %v5853
        %5886 = vst [vmem:[%s338 + $0x80] sm:$0xff] %v5854
        %5887 = vst [vmem:[%s338 + $0x88] sm:$0xff] %v5855
        %5888 = vst [vmem:[%s338 + $0x90] sm:$0xff] %v5856
        %5889 = vst [vmem:[%s338 + $0x98] sm:$0xff] %v5857
        %5890 = vst [vmem:[%s338 + $0xa0] sm:$0xff] %v5858
        %5891 = vst [vmem:[%s338 + $0xa8] sm:$0xff] %v5859
        %5892 = vst [vmem:[%s338 + $0xb0] sm:$0xff] %v5860
        %5893 = vst [vmem:[%s338 + $0xb8] sm:$0xff] %v5861
        %5894 = vst [vmem:[%s338 + $0xc0] sm:$0xff] %v5862
        %5895 = vst [vmem:[%s338 + $0xc8] sm:$0xff] %v5863
        %5896 = vst [vmem:[%s338 + $0xd0] sm:$0xff] %v5864
        %5897 = vst [vmem:[%s338 + $0xd8] sm:$0xff] %v5865
        %5898 = vst [vmem:[%s338 + $0xe0] sm:$0xff] %v5866
        %5899 = vst [vmem:[%s338 + $0xe8] sm:$0xff] %v5867
        %5900 = vst [vmem:[%s338 + $0xf0] sm:$0xff] %v5868
        %5901 = vst [vmem:[%s338 + $0xf8] sm:$0xff] %v5869
        %s5902 = sand.u32 %s222, 1
        %s5903 = scalar_lea.sflag [#allocation8], %s5902
        %s5904 = sand.u32 %s222, 1
        %s5905 = smul.addr %s5904, 256
        %s5906 = scalar_lea.vmem [#allocation11], %s5905
        // Predicated region
        $region65: #{tpu_custom_call.1} parent=55 // pred_check
          %p5907 = pneg %p232
        $region66: #{tpu_custom_call.1} parent=55 // pred_check_branch
          %5909 = sbr.rel (%p5907) target = $region68
        $region67: #{tpu_custom_call.1} parent=55 // pred_region
          %s5911 = ssub.s32 4096, 4096
          %5912 = vsyncadd %s5903, %s5911
          %s5913 = smul.addr %s25, 32
          %s5914 = smul.addr %s5913, 128
          %s5915 = scalar_lea.hbm %s9, %s5914
          %s5916 = sshll.u32 %s5906, 4
          %s5917 = int_to_ptr.vmem [resolvable:$true] %s5916
          %5922 = dma.vmem_to_hbm [thread:$0]  %s5917, 4096, %s5915, %s5903, 128, 128, 8
        $region68: #{tpu_custom_call.1} parent=55 // pred_fallthru
          _
      $region56: #{tpu_custom_call.1} parent=5 // pred_fallthru
        _
      %p5923 = scmp.le.s32.totalorder 2, %s20
      // Predicated region
      $region69: #{tpu_custom_call.1} parent=5 // pred_check
        %p5924 = pneg %p5923
      $region70: #{tpu_custom_call.1} parent=5 // pred_check_branch
        %5926 = sbr.rel (%p5924) target = $region72
      $region71: #{tpu_custom_call.1} parent=5 // pred_region
        %s5927 = ssub.s32 %s20, 2
        // Predicated region
        $region73: #{tpu_custom_call.1} parent=71 // pred_check
          %p5928 = pneg %p238
        $region74: #{tpu_custom_call.1} parent=71 // pred_check_branch
          %5930 = sbr.rel (%p5928) target = $region76
        $region75: #{tpu_custom_call.1} parent=71 // pred_region
          %s5931 = sand.u32 %s223, 1
          %s5932 = scalar_lea.sflag [#allocation8], %s5931
          %s5933 = sand.u32 %s223, 1
          %s5934 = smul.addr %s5933, 256
          %s5935 = scalar_lea.vmem [#allocation11], %s5934
          %5936 = dma.done %s5932, 4096
        $region76: #{tpu_custom_call.1} parent=71 // pred_fallthru
          _
      $region72: #{tpu_custom_call.1} parent=5 // pred_fallthru
        _
    $region6: #{tpu_custom_call.1} parent=1 // loop_footer
      %s24 = sadd.s32 1, %s20
    $region7: #{tpu_custom_call.1} parent=1 // loop_footer_branch
      %19 = sbr.rel target = $region3
    $region8: #{tpu_custom_call.1} parent=1 // loop_exit
      _
    %5937 = vsyncpa [#allocation7], 1
    %s5938 = scalar_lea.sflag [#allocation7], 1
    %5939 = vsyncpa %s5938, 1
    %5940 = vsyncpa [#allocation10], 1
    %5941 = vsyncpa [#allocation8], 1
    %s5942 = scalar_lea.sflag [#allocation8], 1
    %5943 = vsyncpa %s5942, 1

</llo_original>
